<compile_context>
chip_gen: v7x
topology: tpu7x:2x2x1
jax: 0.10.0
libtpu: 0.0.40
codegen_flags: <defaults>
</compile_context>

<pallas_src>
import functools

import jax
import jax.numpy as jnp
from jax import lax
from jax.experimental import pallas as pl
from jax.experimental.pallas import tpu as pltpu


def _round_up(x, m):
    return ((x + m - 1) // m) * m


def _pick_tile_rows(H, W, target_m=512):
    """Largest divisor of H whose chunk M = rows*W stays <= target_m."""
    best = 1
    for d in range(1, H + 1):
        if H % d == 0 and d * W <= target_m:
            best = d
    return best


def _vmem_limit_bytes():
    """Generation-aware VMEM budget with headroom for Mosaic internal scratch."""
    try:
        cap = int(pltpu.get_tpu_info().vmem_capacity_bytes)
    except Exception:
        cap = 128 * 1024 * 1024
    return int(min(cap * 0.82, 110 * 1024 * 1024))


def _recursive_block_kernel(x_ref, w1_ref, w2_ref, o_ref,
                            pad_ref, col_ref, state_ref,
                            *, num_units, tile_r):
    # x_ref   : (H, W, C)            one batch element, compute dtype (batch squeezed)
    # w*_ref  : (9*C, C)             folded 3x3 weights, rows ordered (dy, dx, cin)
    # pad_ref : (H+2, Wp, C)         zero-padded activation scratch (compute dtype)
    # col_ref : (tile_r, W, 9*C)     im2col chunk scratch (compute dtype)
    # state_ref: (H, W, C) f32       running recursion state (in place)
    H, W, C = x_ref.shape
    cdt = pad_ref.dtype
    n_chunks = H // tile_r

    # Zero the padded scratch ONCE per grid step: the 1-pixel border (and the
    # sublane-alignment columns) stay zero forever; only the interior is
    # rewritten before each conv.
    pad_ref[...] = jnp.zeros(pad_ref.shape, pad_ref.dtype)

    # Running state lives in VMEM scratch; residual source stays in x_ref.
    state_ref[...] = x_ref[...].astype(jnp.float32)

    def conv_pass(w_ref, add_residual):
        # pad_ref interior already holds relu(state) in compute dtype; the conv
        # output may therefore overwrite state_ref chunk by chunk.
        for ci in range(n_chunks):
            r0 = ci * tile_r
            for t in range(9):
                dy, dx = divmod(t, 3)
                # Lane-aligned slice copy of a rectangular window (no reshape).
                col_ref[:, :, t * C:(t + 1) * C] = (
                    pad_ref[r0 + dy:r0 + dy + tile_r, dx:dx + W, :])
            acc = jnp.dot(col_ref[...].reshape(tile_r * W, 9 * C), w_ref[...],
                          preferred_element_type=jnp.float32)     # (M, C) f32
            acc = acc.reshape(tile_r, W, C)
            if add_residual:
                acc = acc + x_ref[r0:r0 + tile_r, :, :].astype(jnp.float32)
            state_ref[r0:r0 + tile_r, :, :] = acc

    def unit_body(u, carry):
        del u
        # ReLU -> Conv1 (overwrites state; residual is x, not the old state).
        pad_ref[1:H + 1, 1:W + 1, :] = (
            jnp.maximum(state_ref[...], 0.0).astype(cdt))
        conv_pass(w1_ref, add_residual=False)
        # ReLU -> Conv2, fused residual add of the block input x.
        pad_ref[1:H + 1, 1:W + 1, :] = (
            jnp.maximum(state_ref[...], 0.0).astype(cdt))
        conv_pass(w2_ref, add_residual=True)
        return carry

    lax.fori_loop(0, num_units, unit_body, 0)   # shared-weight recursion

    o_ref[...] = state_ref[...].astype(o_ref.dtype)


def recursive_block(x_nhwc, w1_hwio, w2_hwio, num_units,
                    *, compute_dtype=jnp.bfloat16):
    """x_nhwc: (B,H,W,C) f32; w*_hwio: (3,3,C,C); returns (B,H,W,C) f32."""
    B, H, W, C = x_nhwc.shape
    C_pad = max(128, _round_up(C, 128))          # lane-dense channels
    W_pad2 = _round_up(W + 2, 8)                 # sublane-aligned scratch rows
    tile_r = _pick_tile_rows(H, W)               # M-chunk = tile_r * W rows

    # Lane-dense channel padding (zeros stay zero through the recursion);
    # inputs DMA'd in compute dtype (halves HBM<->VMEM traffic for bf16).
    pc = C_pad - C
    x_p = jnp.pad(x_nhwc, ((0, 0), (0, 0), (0, 0), (0, pc))) if pc else x_nhwc
    x_p = x_p.astype(compute_dtype)
    w1_p = jnp.pad(w1_hwio, ((0, 0), (0, 0), (0, pc), (0, pc))) if pc else w1_hwio
    w2_p = jnp.pad(w2_hwio, ((0, 0), (0, 0), (0, pc), (0, pc))) if pc else w2_hwio

    # Fold the 3x3 taps into the contraction dim: (3,3,Ci,Co) -> (9*Ci, Co).
    w1_mat = w1_p.reshape(9 * C_pad, C_pad).astype(compute_dtype)
    w2_mat = w2_p.reshape(9 * C_pad, C_pad).astype(compute_dtype)

    flops = 2 * B * H * W * (9 * C_pad) * C_pad * 2 * num_units
    bytes_accessed = (x_p.size * x_p.dtype.itemsize
                      + B * H * W * C_pad * x_nhwc.dtype.itemsize
                      + 2 * w1_mat.size * w1_mat.dtype.itemsize)
    cost = pl.CostEstimate(flops=int(flops), transcendentals=0,
                           bytes_accessed=int(bytes_accessed))

    kernel = functools.partial(_recursive_block_kernel,
                               num_units=num_units, tile_r=tile_r)
    out_p = pl.pallas_call(
        kernel,
        out_shape=jax.ShapeDtypeStruct((B, H, W, C_pad), x_nhwc.dtype),
        grid=(B,),
        in_specs=[
            pl.BlockSpec((None, H, W, C_pad), lambda b: (b, 0, 0, 0)),
            pl.BlockSpec((9 * C_pad, C_pad), lambda b: (0, 0)),
            pl.BlockSpec((9 * C_pad, C_pad), lambda b: (0, 0)),
        ],
        out_specs=pl.BlockSpec((None, H, W, C_pad), lambda b: (b, 0, 0, 0)),
        scratch_shapes=[
            pltpu.VMEM((H + 2, W_pad2, C_pad), compute_dtype),     # padded image
            pltpu.VMEM((tile_r, W, 9 * C_pad), compute_dtype),     # im2col chunk
            pltpu.VMEM((H, W, C_pad), jnp.float32),                # running state
        ],
        compiler_params=pltpu.CompilerParams(
            dimension_semantics=("parallel",),
            vmem_limit_bytes=_vmem_limit_bytes()),
        cost_estimate=cost,
    )(x_p, w1_mat, w2_mat)

    return out_p[..., :C]


def ref_recursive_block(x_nhwc, w1_hwio, w2_hwio, num_units):
    dn = lax.conv_dimension_numbers(x_nhwc.shape, w1_hwio.shape,
                                    ("NHWC", "HWIO", "NHWC"))
    conv = lambda v, w: lax.conv_general_dilated(
        v, w, (1, 1), ((1, 1), (1, 1)), dimension_numbers=dn)
    out = x_nhwc
    for _ in range(num_units):
        h = conv(jax.nn.relu(out), w1_hwio)
        h = conv(jax.nn.relu(h), w2_hwio)
        out = h + x_nhwc
    return out


if __name__ == "__main__":
    B, C, H, W = 2, 4, 16, 16
    num_residual_unit = 3

    key = jax.random.PRNGKey(0)
    kx, k1, k2 = jax.random.split(key, 3)
    # Inputs / params in PyTorch conventions (NCHW activations, OIHW weights).
    x_nchw = jax.random.normal(kx, (B, C, H, W), dtype=jnp.float32)
    fan_in = C * 3 * 3
    w1_oihw = jax.random.normal(k1, (C, C, 3, 3), dtype=jnp.float32) / jnp.sqrt(fan_in)
    w2_oihw = jax.random.normal(k2, (C, C, 3, 3), dtype=jnp.float32) / jnp.sqrt(fan_in)

    # Boundary glue: NCHW -> NHWC, OIHW -> HWIO.
    x_nhwc = jnp.transpose(x_nchw, (0, 2, 3, 1))
    w1_hwio = jnp.transpose(w1_oihw, (2, 3, 1, 0))
    w2_hwio = jnp.transpose(w2_oihw, (2, 3, 1, 0))

    ref = ref_recursive_block(x_nhwc, w1_hwio, w2_hwio, num_residual_unit)

    # f32 compute path: tight check against the lax.conv reference.
    out_f32 = recursive_block(x_nhwc, w1_hwio, w2_hwio, num_residual_unit,
                              compute_dtype=jnp.float32)
    out_f32 = jax.block_until_ready(out_f32)
    err_f32 = float(jnp.max(jnp.abs(out_f32 - ref)))
    assert jnp.allclose(out_f32, ref, atol=1e-4, rtol=1e-4), \
        f"f32 path max abs err={err_f32}"

    # bf16 path (bf16 operands + DMA, f32 accumulation/residual): loose check.
    out_bf16 = recursive_block(x_nhwc, w1_hwio, w2_hwio, num_residual_unit,
                               compute_dtype=jnp.bfloat16)
    out_bf16 = jax.block_until_ready(out_bf16)
    err_bf16 = float(jnp.max(jnp.abs(out_bf16 - ref)))
    assert jnp.allclose(out_bf16, ref, atol=1e-1, rtol=1e-1), \
        f"bf16 path max abs err={err_bf16}"

    out_nchw = jnp.transpose(out_f32, (0, 3, 1, 2))   # back to PyTorch layout
    assert out_nchw.shape == (B, C, H, W)
    print("KERNEL_OK")
</pallas_src>

<mosaic_0001>
module attributes {stable_mosaic.version = 11 : i64} {
  func.func @_recursive_block_kernel(%arg0: i32, %arg1: memref<1x16x16x128xf32, #tpu.memory_space<vmem>>, %arg2: memref<1152x128xf32, #tpu.memory_space<vmem>>, %arg3: memref<1152x128xf32, #tpu.memory_space<vmem>>, %arg4: memref<1x16x16x128xf32, #tpu.memory_space<vmem>>, %arg5: memref<18x24x128xf32, #tpu.memory_space<vmem>>, %arg6: memref<16x16x1152xf32, #tpu.memory_space<vmem>>, %arg7: memref<16x16x128xf32, #tpu.memory_space<vmem>>) attributes {dimension_semantics = [#tpu.dimension_semantics<parallel>], iteration_bounds = array<i64: 2>, scalar_prefetch = 0 : i64, scratch_operands = 3 : i64, tpu.core_type = #tpu.core_type<tc>, window_params = [{transform_indices = @transform_0, window_bounds = array<i64: 1, 16, 16, 128>}, {pipeline_mode = #tpu.pipeline_mode<synchronous>, transform_indices = @transform_1, window_bounds = array<i64: 1152, 128>}, {pipeline_mode = #tpu.pipeline_mode<synchronous>, transform_indices = @transform_2, window_bounds = array<i64: 1152, 128>}, {transform_indices = @transform_3, window_bounds = array<i64: 1, 16, 16, 128>}]} {
    %cst = arith.constant 0.000000e+00 : f32
    %0 = vector.broadcast %cst : f32 to vector<18x24x128xf32>
    %c0 = arith.constant 0 : index
    %c0_0 = arith.constant 0 : index
    %c0_1 = arith.constant 0 : index
    %1 = vector.load %arg5[%c0, %c0_0, %c0_1] : memref<18x24x128xf32, #tpu.memory_space<vmem>>, vector<18x24x128xf32>
    tpu.vector_store %arg5[%c0, %c0_0, %c0_1], %0 {strides = array<i32>} : memref<18x24x128xf32, #tpu.memory_space<vmem>>, vector<18x24x128xf32>,
    %c0_2 = arith.constant 0 : index
    %c0_3 = arith.constant 0 : index
    %c0_4 = arith.constant 0 : index
    %c0_5 = arith.constant 0 : index
    %2 = vector.load %arg1[%c0_2, %c0_3, %c0_4, %c0_5] : memref<1x16x16x128xf32, #tpu.memory_space<vmem>>, vector<1x16x16x128xf32>
    %3 = vector.shape_cast %2 : vector<1x16x16x128xf32> to vector<16x16x128xf32>
    %c0_6 = arith.constant 0 : index
    %c0_7 = arith.constant 0 : index
    %c0_8 = arith.constant 0 : index
    %4 = vector.load %arg7[%c0_6, %c0_7, %c0_8] : memref<16x16x128xf32, #tpu.memory_space<vmem>>, vector<16x16x128xf32>
    tpu.vector_store %arg7[%c0_6, %c0_7, %c0_8], %3 {strides = array<i32>} : memref<16x16x128xf32, #tpu.memory_space<vmem>>, vector<16x16x128xf32>,
    %c0_i32 = arith.constant 0 : i32
    %c3_i32 = arith.constant 3 : i32
    %5 = arith.addi %c0_i32, %c3_i32 : i32
    %c1_i32 = arith.constant 1 : i32
    scf.for %arg8 = %c0_i32 to %5 step %c1_i32  : i32 {
      %c0_16 = arith.constant 0 : index
      %c0_17 = arith.constant 0 : index
      %c0_18 = arith.constant 0 : index
      %10 = vector.load %arg7[%c0_16, %c0_17, %c0_18] : memref<16x16x128xf32, #tpu.memory_space<vmem>>, vector<16x16x128xf32>
      %cst_19 = arith.constant 0.000000e+00 : f32
      %11 = vector.broadcast %cst_19 : f32 to vector<16x16x128xf32>
      %12 = arith.maximumf %10, %11 : vector<16x16x128xf32>
      %c1 = arith.constant 1 : index
      %c1_20 = arith.constant 1 : index
      %c0_21 = arith.constant 0 : index
      %13 = vector.load %arg5[%c1, %c1_20, %c0_21] : memref<18x24x128xf32, #tpu.memory_space<vmem>>, vector<16x16x128xf32>
      tpu.vector_store %arg5[%c1, %c1_20, %c0_21], %12 {strides = array<i32>} : memref<18x24x128xf32, #tpu.memory_space<vmem>>, vector<16x16x128xf32>,
      %c0_22 = arith.constant 0 : index
      %c0_23 = arith.constant 0 : index
      %c0_24 = arith.constant 0 : index
      %14 = vector.load %arg5[%c0_22, %c0_23, %c0_24] : memref<18x24x128xf32, #tpu.memory_space<vmem>>, vector<16x16x128xf32>
      %c0_25 = arith.constant 0 : index
      %c0_26 = arith.constant 0 : index
      %c0_27 = arith.constant 0 : index
      %15 = vector.load %arg6[%c0_25, %c0_26, %c0_27] : memref<16x16x1152xf32, #tpu.memory_space<vmem>>, vector<16x16x128xf32>
      tpu.vector_store %arg6[%c0_25, %c0_26, %c0_27], %14 {strides = array<i32>} : memref<16x16x1152xf32, #tpu.memory_space<vmem>>, vector<16x16x128xf32>,
      %c0_28 = arith.constant 0 : index
      %c1_29 = arith.constant 1 : index
      %c0_30 = arith.constant 0 : index
      %16 = vector.load %arg5[%c0_28, %c1_29, %c0_30] : memref<18x24x128xf32, #tpu.memory_space<vmem>>, vector<16x16x128xf32>
      %c0_31 = arith.constant 0 : index
      %c0_32 = arith.constant 0 : index
      %c128 = arith.constant 128 : index
      %17 = vector.load %arg6[%c0_31, %c0_32, %c128] : memref<16x16x1152xf32, #tpu.memory_space<vmem>>, vector<16x16x128xf32>
      tpu.vector_store %arg6[%c0_31, %c0_32, %c128], %16 {strides = array<i32>} : memref<16x16x1152xf32, #tpu.memory_space<vmem>>, vector<16x16x128xf32>,
      %c0_33 = arith.constant 0 : index
      %c2 = arith.constant 2 : index
      %c0_34 = arith.constant 0 : index
      %18 = vector.load %arg5[%c0_33, %c2, %c0_34] : memref<18x24x128xf32, #tpu.memory_space<vmem>>, vector<16x16x128xf32>
      %c0_35 = arith.constant 0 : index
      %c0_36 = arith.constant 0 : index
      %c256 = arith.constant 256 : index
      %19 = vector.load %arg6[%c0_35, %c0_36, %c256] : memref<16x16x1152xf32, #tpu.memory_space<vmem>>, vector<16x16x128xf32>
      tpu.vector_store %arg6[%c0_35, %c0_36, %c256], %18 {strides = array<i32>} : memref<16x16x1152xf32, #tpu.memory_space<vmem>>, vector<16x16x128xf32>,
      %c1_37 = arith.constant 1 : index
      %c0_38 = arith.constant 0 : index
      %c0_39 = arith.constant 0 : index
      %20 = vector.load %arg5[%c1_37, %c0_38, %c0_39] : memref<18x24x128xf32, #tpu.memory_space<vmem>>, vector<16x16x128xf32>
      %c0_40 = arith.constant 0 : index
      %c0_41 = arith.constant 0 : index
      %c384 = arith.constant 384 : index
      %21 = vector.load %arg6[%c0_40, %c0_41, %c384] : memref<16x16x1152xf32, #tpu.memory_space<vmem>>, vector<16x16x128xf32>
      tpu.vector_store %arg6[%c0_40, %c0_41, %c384], %20 {strides = array<i32>} : memref<16x16x1152xf32, #tpu.memory_space<vmem>>, vector<16x16x128xf32>,
      %c1_42 = arith.constant 1 : index
      %c1_43 = arith.constant 1 : index
      %c0_44 = arith.constant 0 : index
      %22 = vector.load %arg5[%c1_42, %c1_43, %c0_44] : memref<18x24x128xf32, #tpu.memory_space<vmem>>, vector<16x16x128xf32>
      %c0_45 = arith.constant 0 : index
      %c0_46 = arith.constant 0 : index
      %c512 = arith.constant 512 : index
      %23 = vector.load %arg6[%c0_45, %c0_46, %c512] : memref<16x16x1152xf32, #tpu.memory_space<vmem>>, vector<16x16x128xf32>
      tpu.vector_store %arg6[%c0_45, %c0_46, %c512], %22 {strides = array<i32>} : memref<16x16x1152xf32, #tpu.memory_space<vmem>>, vector<16x16x128xf32>,
      %c1_47 = arith.constant 1 : index
      %c2_48 = arith.constant 2 : index
      %c0_49 = arith.constant 0 : index
      %24 = vector.load %arg5[%c1_47, %c2_48, %c0_49] : memref<18x24x128xf32, #tpu.memory_space<vmem>>, vector<16x16x128xf32>
      %c0_50 = arith.constant 0 : index
      %c0_51 = arith.constant 0 : index
      %c640 = arith.constant 640 : index
      %25 = vector.load %arg6[%c0_50, %c0_51, %c640] : memref<16x16x1152xf32, #tpu.memory_space<vmem>>, vector<16x16x128xf32>
      tpu.vector_store %arg6[%c0_50, %c0_51, %c640], %24 {strides = array<i32>} : memref<16x16x1152xf32, #tpu.memory_space<vmem>>, vector<16x16x128xf32>,
      %c2_52 = arith.constant 2 : index
      %c0_53 = arith.constant 0 : index
      %c0_54 = arith.constant 0 : index
      %26 = vector.load %arg5[%c2_52, %c0_53, %c0_54] : memref<18x24x128xf32, #tpu.memory_space<vmem>>, vector<16x16x128xf32>
      %c0_55 = arith.constant 0 : index
      %c0_56 = arith.constant 0 : index
      %c768 = arith.constant 768 : index
      %27 = vector.load %arg6[%c0_55, %c0_56, %c768] : memref<16x16x1152xf32, #tpu.memory_space<vmem>>, vector<16x16x128xf32>
      tpu.vector_store %arg6[%c0_55, %c0_56, %c768], %26 {strides = array<i32>} : memref<16x16x1152xf32, #tpu.memory_space<vmem>>, vector<16x16x128xf32>,
      %c2_57 = arith.constant 2 : index
      %c1_58 = arith.constant 1 : index
      %c0_59 = arith.constant 0 : index
      %28 = vector.load %arg5[%c2_57, %c1_58, %c0_59] : memref<18x24x128xf32, #tpu.memory_space<vmem>>, vector<16x16x128xf32>
      %c0_60 = arith.constant 0 : index
      %c0_61 = arith.constant 0 : index
      %c896 = arith.constant 896 : index
      %29 = vector.load %arg6[%c0_60, %c0_61, %c896] : memref<16x16x1152xf32, #tpu.memory_space<vmem>>, vector<16x16x128xf32>
      tpu.vector_store %arg6[%c0_60, %c0_61, %c896], %28 {strides = array<i32>} : memref<16x16x1152xf32, #tpu.memory_space<vmem>>, vector<16x16x128xf32>,
      %c2_62 = arith.constant 2 : index
      %c2_63 = arith.constant 2 : index
      %c0_64 = arith.constant 0 : index
      %30 = vector.load %arg5[%c2_62, %c2_63, %c0_64] : memref<18x24x128xf32, #tpu.memory_space<vmem>>, vector<16x16x128xf32>
      %c0_65 = arith.constant 0 : index
      %c0_66 = arith.constant 0 : index
      %c1024 = arith.constant 1024 : index
      %31 = vector.load %arg6[%c0_65, %c0_66, %c1024] : memref<16x16x1152xf32, #tpu.memory_space<vmem>>, vector<16x16x128xf32>
      tpu.vector_store %arg6[%c0_65, %c0_66, %c1024], %30 {strides = array<i32>} : memref<16x16x1152xf32, #tpu.memory_space<vmem>>, vector<16x16x128xf32>,
      %c0_67 = arith.constant 0 : index
      %c0_68 = arith.constant 0 : index
      %c0_69 = arith.constant 0 : index
      %32 = vector.load %arg6[%c0_67, %c0_68, %c0_69] : memref<16x16x1152xf32, #tpu.memory_space<vmem>>, vector<16x16x1152xf32>
      %33 = vector.shape_cast %32 : vector<16x16x1152xf32> to vector<256x1152xf32>
      %c0_70 = arith.constant 0 : index
      %c0_71 = arith.constant 0 : index
      %34 = vector.load %arg2[%c0_70, %c0_71] : memref<1152x128xf32, #tpu.memory_space<vmem>>, vector<1152x128xf32>
      %cst_72 = arith.constant dense<0.000000e+00> : vector<256x128xf32>
      %35 = tpu.matmul %33, %34, %cst_72 {dimension_numbers = #tpu.dot_dimension_numbers<[1], [0], [0], [1], [0, 0, 1, 1], [], []>} : vector<256x1152xf32>, vector<1152x128xf32>, vector<256x128xf32> -> vector<256x128xf32>
      %36 = vector.shape_cast %35 : vector<256x128xf32> to vector<16x16x128xf32>
      %c0_73 = arith.constant 0 : index
      %c0_74 = arith.constant 0 : index
      %c0_75 = arith.constant 0 : index
      %37 = vector.load %arg7[%c0_73, %c0_74, %c0_75] : memref<16x16x128xf32, #tpu.memory_space<vmem>>, vector<16x16x128xf32>
      tpu.vector_store %arg7[%c0_73, %c0_74, %c0_75], %36 {strides = array<i32>} : memref<16x16x128xf32, #tpu.memory_space<vmem>>, vector<16x16x128xf32>,
      %c0_76 = arith.constant 0 : index
      %c0_77 = arith.constant 0 : index
      %c0_78 = arith.constant 0 : index
      %38 = vector.load %arg7[%c0_76, %c0_77, %c0_78] : memref<16x16x128xf32, #tpu.memory_space<vmem>>, vector<16x16x128xf32>
      %cst_79 = arith.constant 0.000000e+00 : f32
      %39 = vector.broadcast %cst_79 : f32 to vector<16x16x128xf32>
      %40 = arith.maximumf %38, %39 : vector<16x16x128xf32>
      %c1_80 = arith.constant 1 : index
      %c1_81 = arith.constant 1 : index
      %c0_82 = arith.constant 0 : index
      %41 = vector.load %arg5[%c1_80, %c1_81, %c0_82] : memref<18x24x128xf32, #tpu.memory_space<vmem>>, vector<16x16x128xf32>
      tpu.vector_store %arg5[%c1_80, %c1_81, %c0_82], %40 {strides = array<i32>} : memref<18x24x128xf32, #tpu.memory_space<vmem>>, vector<16x16x128xf32>,
      %c0_83 = arith.constant 0 : index
      %c0_84 = arith.constant 0 : index
      %c0_85 = arith.constant 0 : index
      %42 = vector.load %arg5[%c0_83, %c0_84, %c0_85] : memref<18x24x128xf32, #tpu.memory_space<vmem>>, vector<16x16x128xf32>
      %c0_86 = arith.constant 0 : index
      %c0_87 = arith.constant 0 : index
      %c0_88 = arith.constant 0 : index
      %43 = vector.load %arg6[%c0_86, %c0_87, %c0_88] : memref<16x16x1152xf32, #tpu.memory_space<vmem>>, vector<16x16x128xf32>
      tpu.vector_store %arg6[%c0_86, %c0_87, %c0_88], %42 {strides = array<i32>} : memref<16x16x1152xf32, #tpu.memory_space<vmem>>, vector<16x16x128xf32>,
      %c0_89 = arith.constant 0 : index
      %c1_90 = arith.constant 1 : index
      %c0_91 = arith.constant 0 : index
      %44 = vector.load %arg5[%c0_89, %c1_90, %c0_91] : memref<18x24x128xf32, #tpu.memory_space<vmem>>, vector<16x16x128xf32>
      %c0_92 = arith.constant 0 : index
      %c0_93 = arith.constant 0 : index
      %c128_94 = arith.constant 128 : index
      %45 = vector.load %arg6[%c0_92, %c0_93, %c128_94] : memref<16x16x1152xf32, #tpu.memory_space<vmem>>, vector<16x16x128xf32>
      tpu.vector_store %arg6[%c0_92, %c0_93, %c128_94], %44 {strides = array<i32>} : memref<16x16x1152xf32, #tpu.memory_space<vmem>>, vector<16x16x128xf32>,
      %c0_95 = arith.constant 0 : index
      %c2_96 = arith.constant 2 : index
      %c0_97 = arith.constant 0 : index
      %46 = vector.load %arg5[%c0_95, %c2_96, %c0_97] : memref<18x24x128xf32, #tpu.memory_space<vmem>>, vector<16x16x128xf32>
      %c0_98 = arith.constant 0 : index
      %c0_99 = arith.constant 0 : index
      %c256_100 = arith.constant 256 : index
      %47 = vector.load %arg6[%c0_98, %c0_99, %c256_100] : memref<16x16x1152xf32, #tpu.memory_space<vmem>>, vector<16x16x128xf32>
      tpu.vector_store %arg6[%c0_98, %c0_99, %c256_100], %46 {strides = array<i32>} : memref<16x16x1152xf32, #tpu.memory_space<vmem>>, vector<16x16x128xf32>,
      %c1_101 = arith.constant 1 : index
      %c0_102 = arith.constant 0 : index
      %c0_103 = arith.constant 0 : index
      %48 = vector.load %arg5[%c1_101, %c0_102, %c0_103] : memref<18x24x128xf32, #tpu.memory_space<vmem>>, vector<16x16x128xf32>
      %c0_104 = arith.constant 0 : index
      %c0_105 = arith.constant 0 : index
      %c384_106 = arith.constant 384 : index
      %49 = vector.load %arg6[%c0_104, %c0_105, %c384_106] : memref<16x16x1152xf32, #tpu.memory_space<vmem>>, vector<16x16x128xf32>
      tpu.vector_store %arg6[%c0_104, %c0_105, %c384_106], %48 {strides = array<i32>} : memref<16x16x1152xf32, #tpu.memory_space<vmem>>, vector<16x16x128xf32>,
      %c1_107 = arith.constant 1 : index
      %c1_108 = arith.constant 1 : index
      %c0_109 = arith.constant 0 : index
      %50 = vector.load %arg5[%c1_107, %c1_108, %c0_109] : memref<18x24x128xf32, #tpu.memory_space<vmem>>, vector<16x16x128xf32>
      %c0_110 = arith.constant 0 : index
      %c0_111 = arith.constant 0 : index
      %c512_112 = arith.constant 512 : index
      %51 = vector.load %arg6[%c0_110, %c0_111, %c512_112] : memref<16x16x1152xf32, #tpu.memory_space<vmem>>, vector<16x16x128xf32>
      tpu.vector_store %arg6[%c0_110, %c0_111, %c512_112], %50 {strides = array<i32>} : memref<16x16x1152xf32, #tpu.memory_space<vmem>>, vector<16x16x128xf32>,
      %c1_113 = arith.constant 1 : index
      %c2_114 = arith.constant 2 : index
      %c0_115 = arith.constant 0 : index
      %52 = vector.load %arg5[%c1_113, %c2_114, %c0_115] : memref<18x24x128xf32, #tpu.memory_space<vmem>>, vector<16x16x128xf32>
      %c0_116 = arith.constant 0 : index
      %c0_117 = arith.constant 0 : index
      %c640_118 = arith.constant 640 : index
      %53 = vector.load %arg6[%c0_116, %c0_117, %c640_118] : memref<16x16x1152xf32, #tpu.memory_space<vmem>>, vector<16x16x128xf32>
      tpu.vector_store %arg6[%c0_116, %c0_117, %c640_118], %52 {strides = array<i32>} : memref<16x16x1152xf32, #tpu.memory_space<vmem>>, vector<16x16x128xf32>,
      %c2_119 = arith.constant 2 : index
      %c0_120 = arith.constant 0 : index
      %c0_121 = arith.constant 0 : index
      %54 = vector.load %arg5[%c2_119, %c0_120, %c0_121] : memref<18x24x128xf32, #tpu.memory_space<vmem>>, vector<16x16x128xf32>
      %c0_122 = arith.constant 0 : index
      %c0_123 = arith.constant 0 : index
      %c768_124 = arith.constant 768 : index
      %55 = vector.load %arg6[%c0_122, %c0_123, %c768_124] : memref<16x16x1152xf32, #tpu.memory_space<vmem>>, vector<16x16x128xf32>
      tpu.vector_store %arg6[%c0_122, %c0_123, %c768_124], %54 {strides = array<i32>} : memref<16x16x1152xf32, #tpu.memory_space<vmem>>, vector<16x16x128xf32>,
      %c2_125 = arith.constant 2 : index
      %c1_126 = arith.constant 1 : index
      %c0_127 = arith.constant 0 : index
      %56 = vector.load %arg5[%c2_125, %c1_126, %c0_127] : memref<18x24x128xf32, #tpu.memory_space<vmem>>, vector<16x16x128xf32>
      %c0_128 = arith.constant 0 : index
      %c0_129 = arith.constant 0 : index
      %c896_130 = arith.constant 896 : index
      %57 = vector.load %arg6[%c0_128, %c0_129, %c896_130] : memref<16x16x1152xf32, #tpu.memory_space<vmem>>, vector<16x16x128xf32>
      tpu.vector_store %arg6[%c0_128, %c0_129, %c896_130], %56 {strides = array<i32>} : memref<16x16x1152xf32, #tpu.memory_space<vmem>>, vector<16x16x128xf32>,
      %c2_131 = arith.constant 2 : index
      %c2_132 = arith.constant 2 : index
      %c0_133 = arith.constant 0 : index
      %58 = vector.load %arg5[%c2_131, %c2_132, %c0_133] : memref<18x24x128xf32, #tpu.memory_space<vmem>>, vector<16x16x128xf32>
      %c0_134 = arith.constant 0 : index
      %c0_135 = arith.constant 0 : index
      %c1024_136 = arith.constant 1024 : index
      %59 = vector.load %arg6[%c0_134, %c0_135, %c1024_136] : memref<16x16x1152xf32, #tpu.memory_space<vmem>>, vector<16x16x128xf32>
      tpu.vector_store %arg6[%c0_134, %c0_135, %c1024_136], %58 {strides = array<i32>} : memref<16x16x1152xf32, #tpu.memory_space<vmem>>, vector<16x16x128xf32>,
      %c0_137 = arith.constant 0 : index
      %c0_138 = arith.constant 0 : index
      %c0_139 = arith.constant 0 : index
      %60 = vector.load %arg6[%c0_137, %c0_138, %c0_139] : memref<16x16x1152xf32, #tpu.memory_space<vmem>>, vector<16x16x1152xf32>
      %61 = vector.shape_cast %60 : vector<16x16x1152xf32> to vector<256x1152xf32>
      %c0_140 = arith.constant 0 : index
      %c0_141 = arith.constant 0 : index
      %62 = vector.load %arg3[%c0_140, %c0_141] : memref<1152x128xf32, #tpu.memory_space<vmem>>, vector<1152x128xf32>
      %cst_142 = arith.constant dense<0.000000e+00> : vector<256x128xf32>
      %63 = tpu.matmul %61, %62, %cst_142 {dimension_numbers = #tpu.dot_dimension_numbers<[1], [0], [0], [1], [0, 0, 1, 1], [], []>} : vector<256x1152xf32>, vector<1152x128xf32>, vector<256x128xf32> -> vector<256x128xf32>
      %64 = vector.shape_cast %63 : vector<256x128xf32> to vector<16x16x128xf32>
      %c0_143 = arith.constant 0 : index
      %c0_144 = arith.constant 0 : index
      %c0_145 = arith.constant 0 : index
      %c0_146 = arith.constant 0 : index
      %65 = vector.load %arg1[%c0_143, %c0_144, %c0_145, %c0_146] : memref<1x16x16x128xf32, #tpu.memory_space<vmem>>, vector<1x16x16x128xf32>
      %66 = vector.shape_cast %65 : vector<1x16x16x128xf32> to vector<16x16x128xf32>
      %67 = arith.addf %64, %66 : vector<16x16x128xf32>
      %c0_147 = arith.constant 0 : index
      %c0_148 = arith.constant 0 : index
      %c0_149 = arith.constant 0 : index
      %68 = vector.load %arg7[%c0_147, %c0_148, %c0_149] : memref<16x16x128xf32, #tpu.memory_space<vmem>>, vector<16x16x128xf32>
      tpu.vector_store %arg7[%c0_147, %c0_148, %c0_149], %67 {strides = array<i32>} : memref<16x16x128xf32, #tpu.memory_space<vmem>>, vector<16x16x128xf32>,
    }
    %c0_9 = arith.constant 0 : index
    %c0_10 = arith.constant 0 : index
    %c0_11 = arith.constant 0 : index
    %6 = vector.load %arg7[%c0_9, %c0_10, %c0_11] : memref<16x16x128xf32, #tpu.memory_space<vmem>>, vector<16x16x128xf32>
    %c0_12 = arith.constant 0 : index
    %c0_13 = arith.constant 0 : index
    %c0_14 = arith.constant 0 : index
    %c0_15 = arith.constant 0 : index
    %7 = vector.load %arg4[%c0_12, %c0_13, %c0_14, %c0_15] : memref<1x16x16x128xf32, #tpu.memory_space<vmem>>, vector<1x16x16x128xf32>
    %8 = vector.shape_cast %7 : vector<1x16x16x128xf32> to vector<16x16x128xf32>
    %9 = vector.shape_cast %6 : vector<16x16x128xf32> to vector<1x16x16x128xf32>
    tpu.vector_store %arg4[%c0_12, %c0_13, %c0_14, %c0_15], %9 {strides = array<i32>} : memref<1x16x16x128xf32, #tpu.memory_space<vmem>>, vector<1x16x16x128xf32>,
    return
  }
  func.func @transform_0(%arg0: i32) -> (i32, i32, i32, i32) {
    %c0_i32 = arith.constant 0 : i32
    %c0_i32_0 = arith.constant 0 : i32
    %c0_i32_1 = arith.constant 0 : i32
    %c0_i32_2 = arith.constant 0 : i32
    return %arg0, %c0_i32, %c0_i32_0, %c0_i32_1 : i32, i32, i32, i32
  }
  func.func @transform_1(%arg0: i32) -> (i32, i32) {
    %c0_i32 = arith.constant 0 : i32
    %c0_i32_0 = arith.constant 0 : i32
    %c0_i32_1 = arith.constant 0 : i32
    return %c0_i32, %c0_i32_0 : i32, i32
  }
  func.func @transform_2(%arg0: i32) -> (i32, i32) {
    %c0_i32 = arith.constant 0 : i32
    %c0_i32_0 = arith.constant 0 : i32
    %c0_i32_1 = arith.constant 0 : i32
    return %c0_i32, %c0_i32_0 : i32, i32
  }
  func.func @transform_3(%arg0: i32) -> (i32, i32, i32, i32) {
    %c0_i32 = arith.constant 0 : i32
    %c0_i32_0 = arith.constant 0 : i32
    %c0_i32_1 = arith.constant 0 : i32
    %c0_i32_2 = arith.constant 0 : i32
    return %arg0, %c0_i32, %c0_i32_0, %c0_i32_1 : i32, i32, i32, i32
  }
}

</mosaic_0001>

<llo_original>
// kernel: tpu_custom_call.1
$region0: #{tpu_custom_call.1}
  #allocation0 [shape = 'u32[]', space=smem, size = 0x4, offset = 0x4, fixed_abs, tag = 'smem constant byte address 0x4 - core index']
  #allocation1 [shape = 'u32[144,128]{1,0:T(1,128)}', space=vmem, size = 0x12000, scoped, tag = 'internal scratch']
  #allocation2 [shape = 'f32[18,24,128]{2,1,0:T(8,128)}', space=vmem, size = 0x36000, scoped, tag = 'scratch operand']
  #allocation3 [shape = 'f32[16,16,1152]{2,1,0:T(8,128)}', space=vmem, size = 0x120000, scoped, tag = 'scratch operand']
  #allocation4 [shape = 'f32[16,16,128]{2,1,0:T(8,128)}', space=vmem, size = 0x20000, scoped, tag = 'scratch operand']
  %s0 = inlined_call_operand.hbm [shape: f32[2,16,16,128], index: 0, kind: input, shape index: {}]
  %s1 = inlined_call_operand.hbm [shape: f32[1152,128], index: 1, kind: input, shape index: {}]
  %s2 = inlined_call_operand.hbm [shape: f32[1152,128], index: 2, kind: input, shape index: {}]
  %s3 = inlined_call_operand.hbm [shape: f32[2,16,16,128], index: 3, kind: output, shape index: {}]
  %s4 = sld [smem:[#allocation0]]
  $region64: #{tpu_custom_call.1} parent=0
    _
  %s6 = ssub.s32 1, %s4
  %s7 = scalar_select 0, %s6, %s4
  $region1: #{tpu_custom_call.1} parent=0
    #allocation5 [shape = 'u8[262144]{0}', space=vmem, size = 0x40000, scoped, tag = 'input window, operand 0']
    #allocation6 [shape = 's32[2]{0}', space=sflag, size = 0x8, scoped, tag = 'scoped memory for tpu_custom_call.1']
    #allocation7 [shape = 's32[2]{0}', space=sflag, size = 0x8, scoped, tag = 'scoped memory for tpu_custom_call.1']
    #allocation8 [shape = 'u8[589824]{0}', space=vmem, size = 0x90000, scoped, tag = 'input window, operand 1, single buffered']
    #allocation9 [shape = 's32[1]{0}', space=sflag, size = 0x4, scoped, tag = 'scoped memory for tpu_custom_call.1']
    #allocation10 [shape = 'u8[589824]{0}', space=vmem, size = 0x90000, scoped, tag = 'input window, operand 2, single buffered']
    #allocation11 [shape = 'u8[262144]{0}', space=vmem, size = 0x40000, scoped, tag = 'output window, operand 0']
    %8 = vsyncpa [#allocation6], 0
    %s9 = scalar_lea.sflag [#allocation6], 1
    %10 = vsyncpa %s9, 0
    %11 = vsyncpa [#allocation9], 0
    %12 = vsyncpa [#allocation7], 0
    %s13 = scalar_lea.sflag [#allocation7], 1
    %14 = vsyncpa %s13, 0
    loop: start=0, step=1, limit=4
    $region2: #{tpu_custom_call.1} parent=1 // loop_pre_header
      _
    $region3: #{tpu_custom_call.1} parent=1 // loop_header
      %s16 = sphi 0, %s20
      %p17 = scmp.ge.s32.totalorder %s16, 4
      %s26 = sphi 0, %s28
      %s29 = sphi 0, %s26
      %s30 = sphi 0, %s29
      %s46 = sphi 0, %s30
      %s50 = sphi 0, %s50
      %s52 = sphi 0, %s50
      %s53 = sphi 0, %s52
      %s67 = sphi 0, %s53
      %s71 = sphi 0, %s71
      %s73 = sphi 0, %s71
      %s74 = sphi 0, %s73
      %s88 = sphi 0, %s74
      %s94 = sphi 0, %s96
      %s97 = sphi 0, %s94
      %s98 = sphi 0, %s97
      %s114 = sphi 0, %s98
    $region4: #{tpu_custom_call.1} parent=1 // loop_header_branch
      %19 = sbr.rel (%p17) target = $region8
    $region5: #{tpu_custom_call.1} parent=1 // loop_body
      %s21 = ssub.s32 %s16, 1
      %s22 = ssub.s32 %s16, 2
      %s23 = sadd.s32 %s16, 1
      %s24 = ssub.s32 %s16, %s23
      %p25 = scmp.eq.s32.totalorder %s24, 0
      %s27 = sadd.s32 %s26, 1
      %s28 = scalar_select %p25, %s26, %s27
      %p31 = pneg %p25
      %p32 = scmp.eq.s32.totalorder %s16, 1
      %p33 = por %p31, %p32
      %p34 = scmp.ne.s32.totalorder %s26, %s29
      %p35 = scmp.eq.s32.totalorder %s16, 0
      %p36 = por %p34, %p35
      %p37 = scmp.ne.s32.totalorder %s26, %s29
      %p38 = scmp.eq.s32.totalorder %s21, 1
      %p39 = por %p37, %p38
      %p40 = scmp.ne.s32.totalorder %s29, %s30
      %p41 = scmp.eq.s32.totalorder %s21, 0
      %p42 = por %p40, %p41
      %p43 = scmp.ne.s32.totalorder %s29, %s30
      %p44 = scmp.eq.s32.totalorder %s22, 1
      %p45 = por %p43, %p44
      %p47 = scmp.ne.s32.totalorder %s30, %s46
      %p48 = scmp.eq.s32.totalorder %s22, 0
      %p49 = por %p47, %p48
      %s51 = sadd.s32 %s50, 1
      %p54 = scmp.eq.s32.totalorder %s16, 1
      %p55 = scmp.ne.s32.totalorder %s50, %s52
      %p56 = scmp.eq.s32.totalorder %s16, 0
      %p57 = por %p55, %p56
      %p58 = scmp.ne.s32.totalorder %s50, %s52
      %p59 = scmp.eq.s32.totalorder %s21, 1
      %p60 = por %p58, %p59
      %p61 = scmp.ne.s32.totalorder %s52, %s53
      %p62 = scmp.eq.s32.totalorder %s21, 0
      %p63 = por %p61, %p62
      %p64 = scmp.ne.s32.totalorder %s52, %s53
      %p65 = scmp.eq.s32.totalorder %s22, 1
      %p66 = por %p64, %p65
      %p68 = scmp.ne.s32.totalorder %s53, %s67
      %p69 = scmp.eq.s32.totalorder %s22, 0
      %p70 = por %p68, %p69
      %s72 = sadd.s32 %s71, 1
      %p75 = scmp.eq.s32.totalorder %s16, 1
      %p76 = scmp.ne.s32.totalorder %s71, %s73
      %p77 = scmp.eq.s32.totalorder %s16, 0
      %p78 = por %p76, %p77
      %p79 = scmp.ne.s32.totalorder %s71, %s73
      %p80 = scmp.eq.s32.totalorder %s21, 1
      %p81 = por %p79, %p80
      %p82 = scmp.ne.s32.totalorder %s73, %s74
      %p83 = scmp.eq.s32.totalorder %s21, 0
      %p84 = por %p82, %p83
      %p85 = scmp.ne.s32.totalorder %s73, %s74
      %p86 = scmp.eq.s32.totalorder %s22, 1
      %p87 = por %p85, %p86
      %p89 = scmp.ne.s32.totalorder %s74, %s88
      %p90 = scmp.eq.s32.totalorder %s22, 0
      %p91 = por %p89, %p90
      %s92 = ssub.s32 %s16, %s23
      %p93 = scmp.eq.s32.totalorder %s92, 0
      %s95 = sadd.s32 %s94, 1
      %s96 = scalar_select %p93, %s94, %s95
      %p99 = pneg %p93
      %p100 = scmp.eq.s32.totalorder %s16, 1
      %p101 = por %p99, %p100
      %p102 = scmp.ne.s32.totalorder %s94, %s97
      %p103 = scmp.eq.s32.totalorder %s16, 0
      %p104 = por %p102, %p103
      %p105 = scmp.ne.s32.totalorder %s94, %s97
      %p106 = scmp.eq.s32.totalorder %s21, 1
      %p107 = por %p105, %p106
      %p108 = scmp.ne.s32.totalorder %s97, %s98
      %p109 = scmp.eq.s32.totalorder %s21, 0
      %p110 = por %p108, %p109
      %p111 = scmp.ne.s32.totalorder %s97, %s98
      %p112 = scmp.eq.s32.totalorder %s22, 1
      %p113 = por %p111, %p112
      %p115 = scmp.ne.s32.totalorder %s98, %s114
      %p116 = scmp.eq.s32.totalorder %s22, 0
      %p117 = por %p115, %p116
      %p118 = scmp.le.s32.totalorder 1, %s16
      %p119 = scmp.lt.s32.totalorder %s16, 3
      %p120 = pnand %p118, %p119
      %p121 = pneg %p120
      // Predicated region
      $region9: #{tpu_custom_call.1} parent=5 // pred_check
        _
      $region10: #{tpu_custom_call.1} parent=5 // pred_check_branch
        %123 = sbr.rel (%p120) target = $region12
      $region11: #{tpu_custom_call.1} parent=5 // pred_region
        %s124 = ssub.s32 %s16, 1
        // Predicated region
        $region13: #{tpu_custom_call.1} parent=11 // pred_check
          %p125 = pneg %p63
        $region14: #{tpu_custom_call.1} parent=11 // pred_check_branch
          %127 = sbr.rel (%p125) target = $region16
        $region15: #{tpu_custom_call.1} parent=11 // pred_region
          %s129 = ssub.s32 18432, 18432
          %130 = vsyncadd [#allocation9], %s129
          %s131 = sshll.u32 [#allocation8], 4
          %s132 = int_to_ptr.vmem [resolvable:$true] %s131
          %137 = dma.hbm_to_vmem [thread:$0]  %s1, 18432, %s132, [#allocation9], 128, 128, 8
        $region16: #{tpu_custom_call.1} parent=11 // pred_fallthru
          _
        // Predicated region
        $region17: #{tpu_custom_call.1} parent=11 // pred_check
          %p138 = pneg %p84
        $region18: #{tpu_custom_call.1} parent=11 // pred_check_branch
          %140 = sbr.rel (%p138) target = $region20
        $region19: #{tpu_custom_call.1} parent=11 // pred_region
          %s142 = ssub.s32 18432, 18432
          %143 = vsyncadd [#allocation9], %s142
          %s144 = sshll.u32 [#allocation10], 4
          %s145 = int_to_ptr.vmem [resolvable:$true] %s144
          %150 = dma.hbm_to_vmem [thread:$0]  %s2, 18432, %s145, [#allocation9], 128, 128, 8
        $region20: #{tpu_custom_call.1} parent=11 // pred_fallthru
          _
      $region12: #{tpu_custom_call.1} parent=5 // pred_fallthru
        _
      %p151 = scmp.lt.s32.totalorder %s16, 2
      // Predicated region
      $region21: #{tpu_custom_call.1} parent=5 // pred_check
        %p152 = pneg %p151
      $region22: #{tpu_custom_call.1} parent=5 // pred_check_branch
        %154 = sbr.rel (%p152) target = $region24
      $region23: #{tpu_custom_call.1} parent=5 // pred_region
        // Predicated region
        $region25: #{tpu_custom_call.1} parent=23 // pred_check
          %p155 = pneg %p36
        $region26: #{tpu_custom_call.1} parent=23 // pred_check_branch
          %157 = sbr.rel (%p155) target = $region28
        $region27: #{tpu_custom_call.1} parent=23 // pred_region
          %s158 = sand.u32 %s26, 1
          %s159 = scalar_lea.sflag [#allocation6], %s158
          %s160 = sand.u32 %s26, 1
          %s161 = smul.addr %s160, 256
          %s162 = scalar_lea.vmem [#allocation5], %s161
          %s164 = ssub.s32 4096, 4096
          %165 = vsyncadd %s159, %s164
          %s166 = smul.addr %s16, 32
          %s167 = smul.addr %s166, 128
          %s168 = scalar_lea.hbm %s0, %s167
          %s169 = sshll.u32 %s162, 4
          %s170 = int_to_ptr.vmem [resolvable:$true] %s169
          %175 = dma.hbm_to_vmem [thread:$0]  %s168, 4096, %s170, %s159, 128, 128, 8
        $region28: #{tpu_custom_call.1} parent=23 // pred_fallthru
          _
      $region24: #{tpu_custom_call.1} parent=5 // pred_fallthru
        _
      %p176 = scmp.le.s32.totalorder 1, %s16
      %p177 = scmp.lt.s32.totalorder %s16, 3
      %p178 = pnand %p176, %p177
      %p179 = pneg %p178
      // Predicated region
      $region29: #{tpu_custom_call.1} parent=5 // pred_check
        _
      $region30: #{tpu_custom_call.1} parent=5 // pred_check_branch
        %181 = sbr.rel (%p178) target = $region32
      $region31: #{tpu_custom_call.1} parent=5 // pred_region
        %s182 = ssub.s32 %s16, 1
        %s183 = sand.u32 %s29, 1
        %s184 = scalar_lea.sflag [#allocation6], %s183
        %s185 = sand.u32 %s29, 1
        %s186 = smul.addr %s185, 256
        %s187 = scalar_lea.vmem [#allocation5], %s186
        // Predicated region
        $region33: #{tpu_custom_call.1} parent=31 // pred_check
          %p188 = pneg %p42
        $region34: #{tpu_custom_call.1} parent=31 // pred_check_branch
          %190 = sbr.rel (%p188) target = $region36
        $region35: #{tpu_custom_call.1} parent=31 // pred_region
          %191 = dma.done %s184, 4096
        $region36: #{tpu_custom_call.1} parent=31 // pred_fallthru
          _
        // Predicated region
        $region37: #{tpu_custom_call.1} parent=31 // pred_check
          %p192 = pneg %p63
        $region38: #{tpu_custom_call.1} parent=31 // pred_check_branch
          %194 = sbr.rel (%p192) target = $region40
        $region39: #{tpu_custom_call.1} parent=31 // pred_region
          %195 = dma.done [#allocation9], 18432
        $region40: #{tpu_custom_call.1} parent=31 // pred_fallthru
          _
        // Predicated region
        $region41: #{tpu_custom_call.1} parent=31 // pred_check
          %p196 = pneg %p84
        $region42: #{tpu_custom_call.1} parent=31 // pred_check_branch
          %198 = sbr.rel (%p196) target = $region44
        $region43: #{tpu_custom_call.1} parent=31 // pred_region
          %199 = dma.done [#allocation9], 18432
        $region44: #{tpu_custom_call.1} parent=31 // pred_fallthru
          _
        %s200 = sand.u32 %s29, 1
        %s201 = scalar_lea.sflag [#allocation6], %s200
        %s202 = sand.u32 %s29, 1
        %s203 = smul.addr %s202, 256
        %s204 = scalar_lea.vmem [#allocation5], %s203
        %p205 = pneg %p42
        %p206 = pneg %p39
        %p207 = pneg %p63
        %p208 = pneg %p60
        %p209 = pneg %p84
        %p210 = pneg %p81
        %p211 = pneg %p110
        %p212 = pneg %p107
        %s213 = sand.u32 %s97, 1
        %s214 = scalar_lea.sflag [#allocation7], %s213
        %s215 = sand.u32 %s97, 1
        %s216 = smul.addr %s215, 256
        %s217 = scalar_lea.vmem [#allocation11], %s216
        %218 = vst [vmem:[#allocation2] sm:$0xff] 0.0
        %219 = vst [vmem:[#allocation2 + $0x8] sm:$0xff] 0.0
        %220 = vst [vmem:[#allocation2 + $0x10] sm:$0xff] 0.0
        %221 = vst [vmem:[#allocation2 + $0x18] sm:$0xff] 0.0
        %222 = vst [vmem:[#allocation2 + $0x20] sm:$0xff] 0.0
        %223 = vst [vmem:[#allocation2 + $0x28] sm:$0xff] 0.0
        %224 = vst [vmem:[#allocation2 + $0x30] sm:$0xff] 0.0
        %225 = vst [vmem:[#allocation2 + $0x38] sm:$0xff] 0.0
        %226 = vst [vmem:[#allocation2 + $0x40] sm:$0xff] 0.0
        %227 = vst [vmem:[#allocation2 + $0x48] sm:$0xff] 0.0
        %228 = vst [vmem:[#allocation2 + $0x50] sm:$0xff] 0.0
        %229 = vst [vmem:[#allocation2 + $0x58] sm:$0xff] 0.0
        %230 = vst [vmem:[#allocation2 + $0x60] sm:$0xff] 0.0
        %231 = vst [vmem:[#allocation2 + $0x68] sm:$0xff] 0.0
        %232 = vst [vmem:[#allocation2 + $0x70] sm:$0xff] 0.0
        %233 = vst [vmem:[#allocation2 + $0x78] sm:$0xff] 0.0
        %234 = vst [vmem:[#allocation2 + $0x80] sm:$0xff] 0.0
        %235 = vst [vmem:[#allocation2 + $0x88] sm:$0xff] 0.0
        %236 = vst [vmem:[#allocation2 + $0x90] sm:$0xff] 0.0
        %237 = vst [vmem:[#allocation2 + $0x98] sm:$0xff] 0.0
        %238 = vst [vmem:[#allocation2 + $0xa0] sm:$0xff] 0.0
        %239 = vst [vmem:[#allocation2 + $0xa8] sm:$0xff] 0.0
        %240 = vst [vmem:[#allocation2 + $0xb0] sm:$0xff] 0.0
        %241 = vst [vmem:[#allocation2 + $0xb8] sm:$0xff] 0.0
        %242 = vst [vmem:[#allocation2 + $0xc0] sm:$0xff] 0.0
        %243 = vst [vmem:[#allocation2 + $0xc8] sm:$0xff] 0.0
        %244 = vst [vmem:[#allocation2 + $0xd0] sm:$0xff] 0.0
        %245 = vst [vmem:[#allocation2 + $0xd8] sm:$0xff] 0.0
        %246 = vst [vmem:[#allocation2 + $0xe0] sm:$0xff] 0.0
        %247 = vst [vmem:[#allocation2 + $0xe8] sm:$0xff] 0.0
        %248 = vst [vmem:[#allocation2 + $0xf0] sm:$0xff] 0.0
        %249 = vst [vmem:[#allocation2 + $0xf8] sm:$0xff] 0.0
        %250 = vst [vmem:[#allocation2 + $0x100] sm:$0xff] 0.0
        %251 = vst [vmem:[#allocation2 + $0x108] sm:$0xff] 0.0
        %252 = vst [vmem:[#allocation2 + $0x110] sm:$0xff] 0.0
        %253 = vst [vmem:[#allocation2 + $0x118] sm:$0xff] 0.0
        %254 = vst [vmem:[#allocation2 + $0x120] sm:$0xff] 0.0
        %255 = vst [vmem:[#allocation2 + $0x128] sm:$0xff] 0.0
        %256 = vst [vmem:[#allocation2 + $0x130] sm:$0xff] 0.0
        %257 = vst [vmem:[#allocation2 + $0x138] sm:$0xff] 0.0
        %258 = vst [vmem:[#allocation2 + $0x140] sm:$0xff] 0.0
        %259 = vst [vmem:[#allocation2 + $0x148] sm:$0xff] 0.0
        %260 = vst [vmem:[#allocation2 + $0x150] sm:$0xff] 0.0
        %261 = vst [vmem:[#allocation2 + $0x158] sm:$0xff] 0.0
        %262 = vst [vmem:[#allocation2 + $0x160] sm:$0xff] 0.0
        %263 = vst [vmem:[#allocation2 + $0x168] sm:$0xff] 0.0
        %264 = vst [vmem:[#allocation2 + $0x170] sm:$0xff] 0.0
        %265 = vst [vmem:[#allocation2 + $0x178] sm:$0xff] 0.0
        %266 = vst [vmem:[#allocation2 + $0x180] sm:$0xff] 0.0
        %267 = vst [vmem:[#allocation2 + $0x188] sm:$0xff] 0.0
        %268 = vst [vmem:[#allocation2 + $0x190] sm:$0xff] 0.0
        %269 = vst [vmem:[#allocation2 + $0x198] sm:$0xff] 0.0
        %270 = vst [vmem:[#allocation2 + $0x1a0] sm:$0xff] 0.0
        %271 = vst [vmem:[#allocation2 + $0x1a8] sm:$0xff] 0.0
        %v272 = vld [vmem:[%s187] sm:$0xff]
        %v273 = vld [vmem:[%s187 + $0x8] sm:$0xff]
        %v274 = vld [vmem:[%s187 + $0x10] sm:$0xff]
        %v275 = vld [vmem:[%s187 + $0x18] sm:$0xff]
        %v276 = vld [vmem:[%s187 + $0x20] sm:$0xff]
        %v277 = vld [vmem:[%s187 + $0x28] sm:$0xff]
        %v278 = vld [vmem:[%s187 + $0x30] sm:$0xff]
        %v279 = vld [vmem:[%s187 + $0x38] sm:$0xff]
        %v280 = vld [vmem:[%s187 + $0x40] sm:$0xff]
        %v281 = vld [vmem:[%s187 + $0x48] sm:$0xff]
        %v282 = vld [vmem:[%s187 + $0x50] sm:$0xff]
        %v283 = vld [vmem:[%s187 + $0x58] sm:$0xff]
        %v284 = vld [vmem:[%s187 + $0x60] sm:$0xff]
        %v285 = vld [vmem:[%s187 + $0x68] sm:$0xff]
        %v286 = vld [vmem:[%s187 + $0x70] sm:$0xff]
        %v287 = vld [vmem:[%s187 + $0x78] sm:$0xff]
        %v288 = vld [vmem:[%s187 + $0x80] sm:$0xff]
        %v289 = vld [vmem:[%s187 + $0x88] sm:$0xff]
        %v290 = vld [vmem:[%s187 + $0x90] sm:$0xff]
        %v291 = vld [vmem:[%s187 + $0x98] sm:$0xff]
        %v292 = vld [vmem:[%s187 + $0xa0] sm:$0xff]
        %v293 = vld [vmem:[%s187 + $0xa8] sm:$0xff]
        %v294 = vld [vmem:[%s187 + $0xb0] sm:$0xff]
        %v295 = vld [vmem:[%s187 + $0xb8] sm:$0xff]
        %v296 = vld [vmem:[%s187 + $0xc0] sm:$0xff]
        %v297 = vld [vmem:[%s187 + $0xc8] sm:$0xff]
        %v298 = vld [vmem:[%s187 + $0xd0] sm:$0xff]
        %v299 = vld [vmem:[%s187 + $0xd8] sm:$0xff]
        %v300 = vld [vmem:[%s187 + $0xe0] sm:$0xff]
        %v301 = vld [vmem:[%s187 + $0xe8] sm:$0xff]
        %v302 = vld [vmem:[%s187 + $0xf0] sm:$0xff]
        %v303 = vld [vmem:[%s187 + $0xf8] sm:$0xff]
        %304 = vst [vmem:[#allocation4] sm:$0xff] %v272
        %305 = vst [vmem:[#allocation4 + $0x8] sm:$0xff] %v273
        %306 = vst [vmem:[#allocation4 + $0x10] sm:$0xff] %v274
        %307 = vst [vmem:[#allocation4 + $0x18] sm:$0xff] %v275
        %308 = vst [vmem:[#allocation4 + $0x20] sm:$0xff] %v276
        %309 = vst [vmem:[#allocation4 + $0x28] sm:$0xff] %v277
        %310 = vst [vmem:[#allocation4 + $0x30] sm:$0xff] %v278
        %311 = vst [vmem:[#allocation4 + $0x38] sm:$0xff] %v279
        %312 = vst [vmem:[#allocation4 + $0x40] sm:$0xff] %v280
        %313 = vst [vmem:[#allocation4 + $0x48] sm:$0xff] %v281
        %314 = vst [vmem:[#allocation4 + $0x50] sm:$0xff] %v282
        %315 = vst [vmem:[#allocation4 + $0x58] sm:$0xff] %v283
        %316 = vst [vmem:[#allocation4 + $0x60] sm:$0xff] %v284
        %317 = vst [vmem:[#allocation4 + $0x68] sm:$0xff] %v285
        %318 = vst [vmem:[#allocation4 + $0x70] sm:$0xff] %v286
        %319 = vst [vmem:[#allocation4 + $0x78] sm:$0xff] %v287
        %320 = vst [vmem:[#allocation4 + $0x80] sm:$0xff] %v288
        %321 = vst [vmem:[#allocation4 + $0x88] sm:$0xff] %v289
        %322 = vst [vmem:[#allocation4 + $0x90] sm:$0xff] %v290
        %323 = vst [vmem:[#allocation4 + $0x98] sm:$0xff] %v291
        %324 = vst [vmem:[#allocation4 + $0xa0] sm:$0xff] %v292
        %325 = vst [vmem:[#allocation4 + $0xa8] sm:$0xff] %v293
        %326 = vst [vmem:[#allocation4 + $0xb0] sm:$0xff] %v294
        %327 = vst [vmem:[#allocation4 + $0xb8] sm:$0xff] %v295
        %328 = vst [vmem:[#allocation4 + $0xc0] sm:$0xff] %v296
        %329 = vst [vmem:[#allocation4 + $0xc8] sm:$0xff] %v297
        %330 = vst [vmem:[#allocation4 + $0xd0] sm:$0xff] %v298
        %331 = vst [vmem:[#allocation4 + $0xd8] sm:$0xff] %v299
        %332 = vst [vmem:[#allocation4 + $0xe0] sm:$0xff] %v300
        %333 = vst [vmem:[#allocation4 + $0xe8] sm:$0xff] %v301
        %334 = vst [vmem:[#allocation4 + $0xf0] sm:$0xff] %v302
        %335 = vst [vmem:[#allocation4 + $0xf8] sm:$0xff] %v303
        loop: start=0, step=1, limit=3
        $region45: #{tpu_custom_call.1} parent=31 // loop_pre_header
          _
        $region46: #{tpu_custom_call.1} parent=31 // loop_header
          %s337 = sphi 0, %s341
          %p338 = scmp.ge.s32.totalorder %s337, 3
        $region47: #{tpu_custom_call.1} parent=31 // loop_header_branch
          %340 = sbr.rel (%p338) target = $region51
        $region48: #{tpu_custom_call.1} parent=31 // loop_body
          %v342 = vld [vmem:[#allocation4] sm:$0xff]
          %v343 = vld [vmem:[#allocation4 + $0x8] sm:$0xff]
          %v344 = vld [vmem:[#allocation4 + $0x10] sm:$0xff]
          %v345 = vld [vmem:[#allocation4 + $0x18] sm:$0xff]
          %v346 = vld [vmem:[#allocation4 + $0x20] sm:$0xff]
          %v347 = vld [vmem:[#allocation4 + $0x28] sm:$0xff]
          %v348 = vld [vmem:[#allocation4 + $0x30] sm:$0xff]
          %v349 = vld [vmem:[#allocation4 + $0x38] sm:$0xff]
          %v350 = vld [vmem:[#allocation4 + $0x40] sm:$0xff]
          %v351 = vld [vmem:[#allocation4 + $0x48] sm:$0xff]
          %v352 = vld [vmem:[#allocation4 + $0x50] sm:$0xff]
          %v353 = vld [vmem:[#allocation4 + $0x58] sm:$0xff]
          %v354 = vld [vmem:[#allocation4 + $0x60] sm:$0xff]
          %v355 = vld [vmem:[#allocation4 + $0x68] sm:$0xff]
          %v356 = vld [vmem:[#allocation4 + $0x70] sm:$0xff]
          %v357 = vld [vmem:[#allocation4 + $0x78] sm:$0xff]
          %v358 = vld [vmem:[#allocation4 + $0x80] sm:$0xff]
          %v359 = vld [vmem:[#allocation4 + $0x88] sm:$0xff]
          %v360 = vld [vmem:[#allocation4 + $0x90] sm:$0xff]
          %v361 = vld [vmem:[#allocation4 + $0x98] sm:$0xff]
          %v362 = vld [vmem:[#allocation4 + $0xa0] sm:$0xff]
          %v363 = vld [vmem:[#allocation4 + $0xa8] sm:$0xff]
          %v364 = vld [vmem:[#allocation4 + $0xb0] sm:$0xff]
          %v365 = vld [vmem:[#allocation4 + $0xb8] sm:$0xff]
          %v366 = vld [vmem:[#allocation4 + $0xc0] sm:$0xff]
          %v367 = vld [vmem:[#allocation4 + $0xc8] sm:$0xff]
          %v368 = vld [vmem:[#allocation4 + $0xd0] sm:$0xff]
          %v369 = vld [vmem:[#allocation4 + $0xd8] sm:$0xff]
          %v370 = vld [vmem:[#allocation4 + $0xe0] sm:$0xff]
          %v371 = vld [vmem:[#allocation4 + $0xe8] sm:$0xff]
          %v372 = vld [vmem:[#allocation4 + $0xf0] sm:$0xff]
          %v373 = vld [vmem:[#allocation4 + $0xf8] sm:$0xff]
          %v374 = vmax.f32 %v342, 0.0
          %v375 = vmax.f32 %v343, 0.0
          %v376 = vmax.f32 %v344, 0.0
          %v377 = vmax.f32 %v345, 0.0
          %v378 = vmax.f32 %v346, 0.0
          %v379 = vmax.f32 %v347, 0.0
          %v380 = vmax.f32 %v348, 0.0
          %v381 = vmax.f32 %v349, 0.0
          %v382 = vmax.f32 %v350, 0.0
          %v383 = vmax.f32 %v351, 0.0
          %v384 = vmax.f32 %v352, 0.0
          %v385 = vmax.f32 %v353, 0.0
          %v386 = vmax.f32 %v354, 0.0
          %v387 = vmax.f32 %v355, 0.0
          %v388 = vmax.f32 %v356, 0.0
          %v389 = vmax.f32 %v357, 0.0
          %v390 = vmax.f32 %v358, 0.0
          %v391 = vmax.f32 %v359, 0.0
          %v392 = vmax.f32 %v360, 0.0
          %v393 = vmax.f32 %v361, 0.0
          %v394 = vmax.f32 %v362, 0.0
          %v395 = vmax.f32 %v363, 0.0
          %v396 = vmax.f32 %v364, 0.0
          %v397 = vmax.f32 %v365, 0.0
          %v398 = vmax.f32 %v366, 0.0
          %v399 = vmax.f32 %v367, 0.0
          %v400 = vmax.f32 %v368, 0.0
          %v401 = vmax.f32 %v369, 0.0
          %v402 = vmax.f32 %v370, 0.0
          %v403 = vmax.f32 %v371, 0.0
          %v404 = vmax.f32 %v372, 0.0
          %v405 = vmax.f32 %v373, 0.0
          %s406 = scalar_lea.vmem [#allocation2], 24
          %407 = vst [vmem:[%s406 + $0x1] sm:$0xff] %v374
          %408 = vst [vmem:[%s406 + $0x9] sm:$0xff] %v375
          %409 = vst [vmem:[%s406 + $0x19] sm:$0xff] %v376
          %410 = vst [vmem:[%s406 + $0x21] sm:$0xff] %v377
          %411 = vst [vmem:[%s406 + $0x31] sm:$0xff] %v378
          %412 = vst [vmem:[%s406 + $0x39] sm:$0xff] %v379
          %413 = vst [vmem:[%s406 + $0x49] sm:$0xff] %v380
          %414 = vst [vmem:[%s406 + $0x51] sm:$0xff] %v381
          %415 = vst [vmem:[%s406 + $0x61] sm:$0xff] %v382
          %416 = vst [vmem:[%s406 + $0x69] sm:$0xff] %v383
          %417 = vst [vmem:[%s406 + $0x79] sm:$0xff] %v384
          %418 = vst [vmem:[%s406 + $0x81] sm:$0xff] %v385
          %419 = vst [vmem:[%s406 + $0x91] sm:$0xff] %v386
          %420 = vst [vmem:[%s406 + $0x99] sm:$0xff] %v387
          %421 = vst [vmem:[%s406 + $0xa9] sm:$0xff] %v388
          %422 = vst [vmem:[%s406 + $0xb1] sm:$0xff] %v389
          %423 = vst [vmem:[%s406 + $0xc1] sm:$0xff] %v390
          %424 = vst [vmem:[%s406 + $0xc9] sm:$0xff] %v391
          %425 = vst [vmem:[%s406 + $0xd9] sm:$0xff] %v392
          %426 = vst [vmem:[%s406 + $0xe1] sm:$0xff] %v393
          %427 = vst [vmem:[%s406 + $0xf1] sm:$0xff] %v394
          %428 = vst [vmem:[%s406 + $0xf9] sm:$0xff] %v395
          %429 = vst [vmem:[%s406 + $0x109] sm:$0xff] %v396
          %430 = vst [vmem:[%s406 + $0x111] sm:$0xff] %v397
          %431 = vst [vmem:[%s406 + $0x121] sm:$0xff] %v398
          %432 = vst [vmem:[%s406 + $0x129] sm:$0xff] %v399
          %433 = vst [vmem:[%s406 + $0x139] sm:$0xff] %v400
          %434 = vst [vmem:[%s406 + $0x141] sm:$0xff] %v401
          %435 = vst [vmem:[%s406 + $0x151] sm:$0xff] %v402
          %436 = vst [vmem:[%s406 + $0x159] sm:$0xff] %v403
          %437 = vst [vmem:[%s406 + $0x169] sm:$0xff] %v404
          %438 = vst [vmem:[%s406 + $0x171] sm:$0xff] %v405
          %v439 = vld [vmem:[#allocation2] sm:$0xff]
          %v440 = vld [vmem:[#allocation2 + $0x8] sm:$0xff]
          %v441 = vld [vmem:[#allocation2 + $0x18] sm:$0xff]
          %v442 = vld [vmem:[#allocation2 + $0x20] sm:$0xff]
          %v443 = vld [vmem:[#allocation2 + $0x30] sm:$0xff]
          %v444 = vld [vmem:[#allocation2 + $0x38] sm:$0xff]
          %v445 = vld [vmem:[#allocation2 + $0x48] sm:$0xff]
          %v446 = vld [vmem:[#allocation2 + $0x50] sm:$0xff]
          %v447 = vld [vmem:[#allocation2 + $0x60] sm:$0xff]
          %v448 = vld [vmem:[#allocation2 + $0x68] sm:$0xff]
          %v449 = vld [vmem:[#allocation2 + $0x78] sm:$0xff]
          %v450 = vld [vmem:[#allocation2 + $0x80] sm:$0xff]
          %v451 = vld [vmem:[#allocation2 + $0x90] sm:$0xff]
          %v452 = vld [vmem:[#allocation2 + $0x98] sm:$0xff]
          %v453 = vld [vmem:[#allocation2 + $0xa8] sm:$0xff]
          %v454 = vld [vmem:[#allocation2 + $0xb0] sm:$0xff]
          %v455 = vld [vmem:[#allocation2 + $0xc0] sm:$0xff]
          %v456 = vld [vmem:[#allocation2 + $0xc8] sm:$0xff]
          %v457 = vld [vmem:[#allocation2 + $0xd8] sm:$0xff]
          %v458 = vld [vmem:[#allocation2 + $0xe0] sm:$0xff]
          %v459 = vld [vmem:[#allocation2 + $0xf0] sm:$0xff]
          %v460 = vld [vmem:[#allocation2 + $0xf8] sm:$0xff]
          %v461 = vld [vmem:[#allocation2 + $0x108] sm:$0xff]
          %v462 = vld [vmem:[#allocation2 + $0x110] sm:$0xff]
          %v463 = vld [vmem:[#allocation2 + $0x120] sm:$0xff]
          %v464 = vld [vmem:[#allocation2 + $0x128] sm:$0xff]
          %v465 = vld [vmem:[#allocation2 + $0x138] sm:$0xff]
          %v466 = vld [vmem:[#allocation2 + $0x140] sm:$0xff]
          %v467 = vld [vmem:[#allocation2 + $0x150] sm:$0xff]
          %v468 = vld [vmem:[#allocation2 + $0x158] sm:$0xff]
          %v469 = vld [vmem:[#allocation2 + $0x168] sm:$0xff]
          %v470 = vld [vmem:[#allocation2 + $0x170] sm:$0xff]
          %471 = vst [vmem:[#allocation3] sm:$0xff] %v439
          %472 = vst [vmem:[#allocation3 + $0x48] sm:$0xff] %v440
          %473 = vst [vmem:[#allocation3 + $0x90] sm:$0xff] %v441
          %474 = vst [vmem:[#allocation3 + $0xd8] sm:$0xff] %v442
          %475 = vst [vmem:[#allocation3 + $0x120] sm:$0xff] %v443
          %476 = vst [vmem:[#allocation3 + $0x168] sm:$0xff] %v444
          %477 = vst [vmem:[#allocation3 + $0x1b0] sm:$0xff] %v445
          %478 = vst [vmem:[#allocation3 + $0x1f8] sm:$0xff] %v446
          %479 = vst [vmem:[#allocation3 + $0x240] sm:$0xff] %v447
          %480 = vst [vmem:[#allocation3 + $0x288] sm:$0xff] %v448
          %481 = vst [vmem:[#allocation3 + $0x2d0] sm:$0xff] %v449
          %482 = vst [vmem:[#allocation3 + $0x318] sm:$0xff] %v450
          %483 = vst [vmem:[#allocation3 + $0x360] sm:$0xff] %v451
          %484 = vst [vmem:[#allocation3 + $0x3a8] sm:$0xff] %v452
          %485 = vst [vmem:[#allocation3 + $0x3f0] sm:$0xff] %v453
          %486 = vst [vmem:[#allocation3 + $0x438] sm:$0xff] %v454
          %487 = vst [vmem:[#allocation3 + $0x480] sm:$0xff] %v455
          %488 = vst [vmem:[#allocation3 + $0x4c8] sm:$0xff] %v456
          %489 = vst [vmem:[#allocation3 + $0x510] sm:$0xff] %v457
          %490 = vst [vmem:[#allocation3 + $0x558] sm:$0xff] %v458
          %491 = vst [vmem:[#allocation3 + $0x5a0] sm:$0xff] %v459
          %492 = vst [vmem:[#allocation3 + $0x5e8] sm:$0xff] %v460
          %493 = vst [vmem:[#allocation3 + $0x630] sm:$0xff] %v461
          %494 = vst [vmem:[#allocation3 + $0x678] sm:$0xff] %v462
          %495 = vst [vmem:[#allocation3 + $0x6c0] sm:$0xff] %v463
          %496 = vst [vmem:[#allocation3 + $0x708] sm:$0xff] %v464
          %497 = vst [vmem:[#allocation3 + $0x750] sm:$0xff] %v465
          %498 = vst [vmem:[#allocation3 + $0x798] sm:$0xff] %v466
          %499 = vst [vmem:[#allocation3 + $0x7e0] sm:$0xff] %v467
          %500 = vst [vmem:[#allocation3 + $0x828] sm:$0xff] %v468
          %501 = vst [vmem:[#allocation3 + $0x870] sm:$0xff] %v469
          %502 = vst [vmem:[#allocation3 + $0x8b8] sm:$0xff] %v470
          %v503 = vld [vmem:[#allocation2 + $0x1] sm:$0xff]
          %v504 = vld [vmem:[#allocation2 + $0x9] sm:$0xff]
          %v505 = vld [vmem:[#allocation2 + $0x19] sm:$0xff]
          %v506 = vld [vmem:[#allocation2 + $0x21] sm:$0xff]
          %v507 = vld [vmem:[#allocation2 + $0x31] sm:$0xff]
          %v508 = vld [vmem:[#allocation2 + $0x39] sm:$0xff]
          %v509 = vld [vmem:[#allocation2 + $0x49] sm:$0xff]
          %v510 = vld [vmem:[#allocation2 + $0x51] sm:$0xff]
          %v511 = vld [vmem:[#allocation2 + $0x61] sm:$0xff]
          %v512 = vld [vmem:[#allocation2 + $0x69] sm:$0xff]
          %v513 = vld [vmem:[#allocation2 + $0x79] sm:$0xff]
          %v514 = vld [vmem:[#allocation2 + $0x81] sm:$0xff]
          %v515 = vld [vmem:[#allocation2 + $0x91] sm:$0xff]
          %v516 = vld [vmem:[#allocation2 + $0x99] sm:$0xff]
          %v517 = vld [vmem:[#allocation2 + $0xa9] sm:$0xff]
          %v518 = vld [vmem:[#allocation2 + $0xb1] sm:$0xff]
          %v519 = vld [vmem:[#allocation2 + $0xc1] sm:$0xff]
          %v520 = vld [vmem:[#allocation2 + $0xc9] sm:$0xff]
          %v521 = vld [vmem:[#allocation2 + $0xd9] sm:$0xff]
          %v522 = vld [vmem:[#allocation2 + $0xe1] sm:$0xff]
          %v523 = vld [vmem:[#allocation2 + $0xf1] sm:$0xff]
          %v524 = vld [vmem:[#allocation2 + $0xf9] sm:$0xff]
          %v525 = vld [vmem:[#allocation2 + $0x109] sm:$0xff]
          %v526 = vld [vmem:[#allocation2 + $0x111] sm:$0xff]
          %v527 = vld [vmem:[#allocation2 + $0x121] sm:$0xff]
          %v528 = vld [vmem:[#allocation2 + $0x129] sm:$0xff]
          %v529 = vld [vmem:[#allocation2 + $0x139] sm:$0xff]
          %v530 = vld [vmem:[#allocation2 + $0x141] sm:$0xff]
          %v531 = vld [vmem:[#allocation2 + $0x151] sm:$0xff]
          %v532 = vld [vmem:[#allocation2 + $0x159] sm:$0xff]
          %v533 = vld [vmem:[#allocation2 + $0x169] sm:$0xff]
          %v534 = vld [vmem:[#allocation2 + $0x171] sm:$0xff]
          %535 = vst [vmem:[#allocation3 + $0x8] sm:$0xff] %v503
          %536 = vst [vmem:[#allocation3 + $0x50] sm:$0xff] %v504
          %537 = vst [vmem:[#allocation3 + $0x98] sm:$0xff] %v505
          %538 = vst [vmem:[#allocation3 + $0xe0] sm:$0xff] %v506
          %539 = vst [vmem:[#allocation3 + $0x128] sm:$0xff] %v507
          %540 = vst [vmem:[#allocation3 + $0x170] sm:$0xff] %v508
          %541 = vst [vmem:[#allocation3 + $0x1b8] sm:$0xff] %v509
          %542 = vst [vmem:[#allocation3 + $0x200] sm:$0xff] %v510
          %543 = vst [vmem:[#allocation3 + $0x248] sm:$0xff] %v511
          %544 = vst [vmem:[#allocation3 + $0x290] sm:$0xff] %v512
          %545 = vst [vmem:[#allocation3 + $0x2d8] sm:$0xff] %v513
          %546 = vst [vmem:[#allocation3 + $0x320] sm:$0xff] %v514
          %547 = vst [vmem:[#allocation3 + $0x368] sm:$0xff] %v515
          %548 = vst [vmem:[#allocation3 + $0x3b0] sm:$0xff] %v516
          %549 = vst [vmem:[#allocation3 + $0x3f8] sm:$0xff] %v517
          %550 = vst [vmem:[#allocation3 + $0x440] sm:$0xff] %v518
          %551 = vst [vmem:[#allocation3 + $0x488] sm:$0xff] %v519
          %552 = vst [vmem:[#allocation3 + $0x4d0] sm:$0xff] %v520
          %553 = vst [vmem:[#allocation3 + $0x518] sm:$0xff] %v521
          %554 = vst [vmem:[#allocation3 + $0x560] sm:$0xff] %v522
          %555 = vst [vmem:[#allocation3 + $0x5a8] sm:$0xff] %v523
          %556 = vst [vmem:[#allocation3 + $0x5f0] sm:$0xff] %v524
          %557 = vst [vmem:[#allocation3 + $0x638] sm:$0xff] %v525
          %558 = vst [vmem:[#allocation3 + $0x680] sm:$0xff] %v526
          %559 = vst [vmem:[#allocation3 + $0x6c8] sm:$0xff] %v527
          %560 = vst [vmem:[#allocation3 + $0x710] sm:$0xff] %v528
          %561 = vst [vmem:[#allocation3 + $0x758] sm:$0xff] %v529
          %562 = vst [vmem:[#allocation3 + $0x7a0] sm:$0xff] %v530
          %563 = vst [vmem:[#allocation3 + $0x7e8] sm:$0xff] %v531
          %564 = vst [vmem:[#allocation3 + $0x830] sm:$0xff] %v532
          %565 = vst [vmem:[#allocation3 + $0x878] sm:$0xff] %v533
          %566 = vst [vmem:[#allocation3 + $0x8c0] sm:$0xff] %v534
          %v567 = vld [vmem:[#allocation2 + $0x2] sm:$0xff]
          %v568 = vld [vmem:[#allocation2 + $0xa] sm:$0xff]
          %v569 = vld [vmem:[#allocation2 + $0x1a] sm:$0xff]
          %v570 = vld [vmem:[#allocation2 + $0x22] sm:$0xff]
          %v571 = vld [vmem:[#allocation2 + $0x32] sm:$0xff]
          %v572 = vld [vmem:[#allocation2 + $0x3a] sm:$0xff]
          %v573 = vld [vmem:[#allocation2 + $0x4a] sm:$0xff]
          %v574 = vld [vmem:[#allocation2 + $0x52] sm:$0xff]
          %v575 = vld [vmem:[#allocation2 + $0x62] sm:$0xff]
          %v576 = vld [vmem:[#allocation2 + $0x6a] sm:$0xff]
          %v577 = vld [vmem:[#allocation2 + $0x7a] sm:$0xff]
          %v578 = vld [vmem:[#allocation2 + $0x82] sm:$0xff]
          %v579 = vld [vmem:[#allocation2 + $0x92] sm:$0xff]
          %v580 = vld [vmem:[#allocation2 + $0x9a] sm:$0xff]
          %v581 = vld [vmem:[#allocation2 + $0xaa] sm:$0xff]
          %v582 = vld [vmem:[#allocation2 + $0xb2] sm:$0xff]
          %v583 = vld [vmem:[#allocation2 + $0xc2] sm:$0xff]
          %v584 = vld [vmem:[#allocation2 + $0xca] sm:$0xff]
          %v585 = vld [vmem:[#allocation2 + $0xda] sm:$0xff]
          %v586 = vld [vmem:[#allocation2 + $0xe2] sm:$0xff]
          %v587 = vld [vmem:[#allocation2 + $0xf2] sm:$0xff]
          %v588 = vld [vmem:[#allocation2 + $0xfa] sm:$0xff]
          %v589 = vld [vmem:[#allocation2 + $0x10a] sm:$0xff]
          %v590 = vld [vmem:[#allocation2 + $0x112] sm:$0xff]
          %v591 = vld [vmem:[#allocation2 + $0x122] sm:$0xff]
          %v592 = vld [vmem:[#allocation2 + $0x12a] sm:$0xff]
          %v593 = vld [vmem:[#allocation2 + $0x13a] sm:$0xff]
          %v594 = vld [vmem:[#allocation2 + $0x142] sm:$0xff]
          %v595 = vld [vmem:[#allocation2 + $0x152] sm:$0xff]
          %v596 = vld [vmem:[#allocation2 + $0x15a] sm:$0xff]
          %v597 = vld [vmem:[#allocation2 + $0x16a] sm:$0xff]
          %v598 = vld [vmem:[#allocation2 + $0x172] sm:$0xff]
          %599 = vst [vmem:[#allocation3 + $0x10] sm:$0xff] %v567
          %600 = vst [vmem:[#allocation3 + $0x58] sm:$0xff] %v568
          %601 = vst [vmem:[#allocation3 + $0xa0] sm:$0xff] %v569
          %602 = vst [vmem:[#allocation3 + $0xe8] sm:$0xff] %v570
          %603 = vst [vmem:[#allocation3 + $0x130] sm:$0xff] %v571
          %604 = vst [vmem:[#allocation3 + $0x178] sm:$0xff] %v572
          %605 = vst [vmem:[#allocation3 + $0x1c0] sm:$0xff] %v573
          %606 = vst [vmem:[#allocation3 + $0x208] sm:$0xff] %v574
          %607 = vst [vmem:[#allocation3 + $0x250] sm:$0xff] %v575
          %608 = vst [vmem:[#allocation3 + $0x298] sm:$0xff] %v576
          %609 = vst [vmem:[#allocation3 + $0x2e0] sm:$0xff] %v577
          %610 = vst [vmem:[#allocation3 + $0x328] sm:$0xff] %v578
          %611 = vst [vmem:[#allocation3 + $0x370] sm:$0xff] %v579
          %612 = vst [vmem:[#allocation3 + $0x3b8] sm:$0xff] %v580
          %613 = vst [vmem:[#allocation3 + $0x400] sm:$0xff] %v581
          %614 = vst [vmem:[#allocation3 + $0x448] sm:$0xff] %v582
          %615 = vst [vmem:[#allocation3 + $0x490] sm:$0xff] %v583
          %616 = vst [vmem:[#allocation3 + $0x4d8] sm:$0xff] %v584
          %617 = vst [vmem:[#allocation3 + $0x520] sm:$0xff] %v585
          %618 = vst [vmem:[#allocation3 + $0x568] sm:$0xff] %v586
          %619 = vst [vmem:[#allocation3 + $0x5b0] sm:$0xff] %v587
          %620 = vst [vmem:[#allocation3 + $0x5f8] sm:$0xff] %v588
          %621 = vst [vmem:[#allocation3 + $0x640] sm:$0xff] %v589
          %622 = vst [vmem:[#allocation3 + $0x688] sm:$0xff] %v590
          %623 = vst [vmem:[#allocation3 + $0x6d0] sm:$0xff] %v591
          %624 = vst [vmem:[#allocation3 + $0x718] sm:$0xff] %v592
          %625 = vst [vmem:[#allocation3 + $0x760] sm:$0xff] %v593
          %626 = vst [vmem:[#allocation3 + $0x7a8] sm:$0xff] %v594
          %627 = vst [vmem:[#allocation3 + $0x7f0] sm:$0xff] %v595
          %628 = vst [vmem:[#allocation3 + $0x838] sm:$0xff] %v596
          %629 = vst [vmem:[#allocation3 + $0x880] sm:$0xff] %v597
          %630 = vst [vmem:[#allocation3 + $0x8c8] sm:$0xff] %v598
          %v631 = vld [vmem:[%s406] sm:$0xff]
          %v632 = vld [vmem:[%s406 + $0x8] sm:$0xff]
          %v633 = vld [vmem:[%s406 + $0x18] sm:$0xff]
          %v634 = vld [vmem:[%s406 + $0x20] sm:$0xff]
          %v635 = vld [vmem:[%s406 + $0x30] sm:$0xff]
          %v636 = vld [vmem:[%s406 + $0x38] sm:$0xff]
          %v637 = vld [vmem:[%s406 + $0x48] sm:$0xff]
          %v638 = vld [vmem:[%s406 + $0x50] sm:$0xff]
          %v639 = vld [vmem:[%s406 + $0x60] sm:$0xff]
          %v640 = vld [vmem:[%s406 + $0x68] sm:$0xff]
          %v641 = vld [vmem:[%s406 + $0x78] sm:$0xff]
          %v642 = vld [vmem:[%s406 + $0x80] sm:$0xff]
          %v643 = vld [vmem:[%s406 + $0x90] sm:$0xff]
          %v644 = vld [vmem:[%s406 + $0x98] sm:$0xff]
          %v645 = vld [vmem:[%s406 + $0xa8] sm:$0xff]
          %v646 = vld [vmem:[%s406 + $0xb0] sm:$0xff]
          %v647 = vld [vmem:[%s406 + $0xc0] sm:$0xff]
          %v648 = vld [vmem:[%s406 + $0xc8] sm:$0xff]
          %v649 = vld [vmem:[%s406 + $0xd8] sm:$0xff]
          %v650 = vld [vmem:[%s406 + $0xe0] sm:$0xff]
          %v651 = vld [vmem:[%s406 + $0xf0] sm:$0xff]
          %v652 = vld [vmem:[%s406 + $0xf8] sm:$0xff]
          %v653 = vld [vmem:[%s406 + $0x108] sm:$0xff]
          %v654 = vld [vmem:[%s406 + $0x110] sm:$0xff]
          %v655 = vld [vmem:[%s406 + $0x120] sm:$0xff]
          %v656 = vld [vmem:[%s406 + $0x128] sm:$0xff]
          %v657 = vld [vmem:[%s406 + $0x138] sm:$0xff]
          %v658 = vld [vmem:[%s406 + $0x140] sm:$0xff]
          %v659 = vld [vmem:[%s406 + $0x150] sm:$0xff]
          %v660 = vld [vmem:[%s406 + $0x158] sm:$0xff]
          %v661 = vld [vmem:[%s406 + $0x168] sm:$0xff]
          %v662 = vld [vmem:[%s406 + $0x170] sm:$0xff]
          %663 = vst [vmem:[#allocation3 + $0x18] sm:$0xff] %v631
          %664 = vst [vmem:[#allocation3 + $0x60] sm:$0xff] %v632
          %665 = vst [vmem:[#allocation3 + $0xa8] sm:$0xff] %v633
          %666 = vst [vmem:[#allocation3 + $0xf0] sm:$0xff] %v634
          %667 = vst [vmem:[#allocation3 + $0x138] sm:$0xff] %v635
          %668 = vst [vmem:[#allocation3 + $0x180] sm:$0xff] %v636
          %669 = vst [vmem:[#allocation3 + $0x1c8] sm:$0xff] %v637
          %670 = vst [vmem:[#allocation3 + $0x210] sm:$0xff] %v638
          %671 = vst [vmem:[#allocation3 + $0x258] sm:$0xff] %v639
          %672 = vst [vmem:[#allocation3 + $0x2a0] sm:$0xff] %v640
          %673 = vst [vmem:[#allocation3 + $0x2e8] sm:$0xff] %v641
          %674 = vst [vmem:[#allocation3 + $0x330] sm:$0xff] %v642
          %675 = vst [vmem:[#allocation3 + $0x378] sm:$0xff] %v643
          %676 = vst [vmem:[#allocation3 + $0x3c0] sm:$0xff] %v644
          %677 = vst [vmem:[#allocation3 + $0x408] sm:$0xff] %v645
          %678 = vst [vmem:[#allocation3 + $0x450] sm:$0xff] %v646
          %679 = vst [vmem:[#allocation3 + $0x498] sm:$0xff] %v647
          %680 = vst [vmem:[#allocation3 + $0x4e0] sm:$0xff] %v648
          %681 = vst [vmem:[#allocation3 + $0x528] sm:$0xff] %v649
          %682 = vst [vmem:[#allocation3 + $0x570] sm:$0xff] %v650
          %683 = vst [vmem:[#allocation3 + $0x5b8] sm:$0xff] %v651
          %684 = vst [vmem:[#allocation3 + $0x600] sm:$0xff] %v652
          %685 = vst [vmem:[#allocation3 + $0x648] sm:$0xff] %v653
          %686 = vst [vmem:[#allocation3 + $0x690] sm:$0xff] %v654
          %687 = vst [vmem:[#allocation3 + $0x6d8] sm:$0xff] %v655
          %688 = vst [vmem:[#allocation3 + $0x720] sm:$0xff] %v656
          %689 = vst [vmem:[#allocation3 + $0x768] sm:$0xff] %v657
          %690 = vst [vmem:[#allocation3 + $0x7b0] sm:$0xff] %v658
          %691 = vst [vmem:[#allocation3 + $0x7f8] sm:$0xff] %v659
          %692 = vst [vmem:[#allocation3 + $0x840] sm:$0xff] %v660
          %693 = vst [vmem:[#allocation3 + $0x888] sm:$0xff] %v661
          %694 = vst [vmem:[#allocation3 + $0x8d0] sm:$0xff] %v662
          %v695 = vld [vmem:[%s406 + $0x1] sm:$0xff]
          %v696 = vld [vmem:[%s406 + $0x9] sm:$0xff]
          %v697 = vld [vmem:[%s406 + $0x19] sm:$0xff]
          %v698 = vld [vmem:[%s406 + $0x21] sm:$0xff]
          %v699 = vld [vmem:[%s406 + $0x31] sm:$0xff]
          %v700 = vld [vmem:[%s406 + $0x39] sm:$0xff]
          %v701 = vld [vmem:[%s406 + $0x49] sm:$0xff]
          %v702 = vld [vmem:[%s406 + $0x51] sm:$0xff]
          %v703 = vld [vmem:[%s406 + $0x61] sm:$0xff]
          %v704 = vld [vmem:[%s406 + $0x69] sm:$0xff]
          %v705 = vld [vmem:[%s406 + $0x79] sm:$0xff]
          %v706 = vld [vmem:[%s406 + $0x81] sm:$0xff]
          %v707 = vld [vmem:[%s406 + $0x91] sm:$0xff]
          %v708 = vld [vmem:[%s406 + $0x99] sm:$0xff]
          %v709 = vld [vmem:[%s406 + $0xa9] sm:$0xff]
          %v710 = vld [vmem:[%s406 + $0xb1] sm:$0xff]
          %v711 = vld [vmem:[%s406 + $0xc1] sm:$0xff]
          %v712 = vld [vmem:[%s406 + $0xc9] sm:$0xff]
          %v713 = vld [vmem:[%s406 + $0xd9] sm:$0xff]
          %v714 = vld [vmem:[%s406 + $0xe1] sm:$0xff]
          %v715 = vld [vmem:[%s406 + $0xf1] sm:$0xff]
          %v716 = vld [vmem:[%s406 + $0xf9] sm:$0xff]
          %v717 = vld [vmem:[%s406 + $0x109] sm:$0xff]
          %v718 = vld [vmem:[%s406 + $0x111] sm:$0xff]
          %v719 = vld [vmem:[%s406 + $0x121] sm:$0xff]
          %v720 = vld [vmem:[%s406 + $0x129] sm:$0xff]
          %v721 = vld [vmem:[%s406 + $0x139] sm:$0xff]
          %v722 = vld [vmem:[%s406 + $0x141] sm:$0xff]
          %v723 = vld [vmem:[%s406 + $0x151] sm:$0xff]
          %v724 = vld [vmem:[%s406 + $0x159] sm:$0xff]
          %v725 = vld [vmem:[%s406 + $0x169] sm:$0xff]
          %v726 = vld [vmem:[%s406 + $0x171] sm:$0xff]
          %727 = vst [vmem:[#allocation3 + $0x20] sm:$0xff] %v695
          %728 = vst [vmem:[#allocation3 + $0x68] sm:$0xff] %v696
          %729 = vst [vmem:[#allocation3 + $0xb0] sm:$0xff] %v697
          %730 = vst [vmem:[#allocation3 + $0xf8] sm:$0xff] %v698
          %731 = vst [vmem:[#allocation3 + $0x140] sm:$0xff] %v699
          %732 = vst [vmem:[#allocation3 + $0x188] sm:$0xff] %v700
          %733 = vst [vmem:[#allocation3 + $0x1d0] sm:$0xff] %v701
          %734 = vst [vmem:[#allocation3 + $0x218] sm:$0xff] %v702
          %735 = vst [vmem:[#allocation3 + $0x260] sm:$0xff] %v703
          %736 = vst [vmem:[#allocation3 + $0x2a8] sm:$0xff] %v704
          %737 = vst [vmem:[#allocation3 + $0x2f0] sm:$0xff] %v705
          %738 = vst [vmem:[#allocation3 + $0x338] sm:$0xff] %v706
          %739 = vst [vmem:[#allocation3 + $0x380] sm:$0xff] %v707
          %740 = vst [vmem:[#allocation3 + $0x3c8] sm:$0xff] %v708
          %741 = vst [vmem:[#allocation3 + $0x410] sm:$0xff] %v709
          %742 = vst [vmem:[#allocation3 + $0x458] sm:$0xff] %v710
          %743 = vst [vmem:[#allocation3 + $0x4a0] sm:$0xff] %v711
          %744 = vst [vmem:[#allocation3 + $0x4e8] sm:$0xff] %v712
          %745 = vst [vmem:[#allocation3 + $0x530] sm:$0xff] %v713
          %746 = vst [vmem:[#allocation3 + $0x578] sm:$0xff] %v714
          %747 = vst [vmem:[#allocation3 + $0x5c0] sm:$0xff] %v715
          %748 = vst [vmem:[#allocation3 + $0x608] sm:$0xff] %v716
          %749 = vst [vmem:[#allocation3 + $0x650] sm:$0xff] %v717
          %750 = vst [vmem:[#allocation3 + $0x698] sm:$0xff] %v718
          %751 = vst [vmem:[#allocation3 + $0x6e0] sm:$0xff] %v719
          %752 = vst [vmem:[#allocation3 + $0x728] sm:$0xff] %v720
          %753 = vst [vmem:[#allocation3 + $0x770] sm:$0xff] %v721
          %754 = vst [vmem:[#allocation3 + $0x7b8] sm:$0xff] %v722
          %755 = vst [vmem:[#allocation3 + $0x800] sm:$0xff] %v723
          %756 = vst [vmem:[#allocation3 + $0x848] sm:$0xff] %v724
          %757 = vst [vmem:[#allocation3 + $0x890] sm:$0xff] %v725
          %758 = vst [vmem:[#allocation3 + $0x8d8] sm:$0xff] %v726
          %v759 = vld [vmem:[%s406 + $0x2] sm:$0xff]
          %v760 = vld [vmem:[%s406 + $0xa] sm:$0xff]
          %v761 = vld [vmem:[%s406 + $0x1a] sm:$0xff]
          %v762 = vld [vmem:[%s406 + $0x22] sm:$0xff]
          %v763 = vld [vmem:[%s406 + $0x32] sm:$0xff]
          %v764 = vld [vmem:[%s406 + $0x3a] sm:$0xff]
          %v765 = vld [vmem:[%s406 + $0x4a] sm:$0xff]
          %v766 = vld [vmem:[%s406 + $0x52] sm:$0xff]
          %v767 = vld [vmem:[%s406 + $0x62] sm:$0xff]
          %v768 = vld [vmem:[%s406 + $0x6a] sm:$0xff]
          %v769 = vld [vmem:[%s406 + $0x7a] sm:$0xff]
          %v770 = vld [vmem:[%s406 + $0x82] sm:$0xff]
          %v771 = vld [vmem:[%s406 + $0x92] sm:$0xff]
          %v772 = vld [vmem:[%s406 + $0x9a] sm:$0xff]
          %v773 = vld [vmem:[%s406 + $0xaa] sm:$0xff]
          %v774 = vld [vmem:[%s406 + $0xb2] sm:$0xff]
          %v775 = vld [vmem:[%s406 + $0xc2] sm:$0xff]
          %v776 = vld [vmem:[%s406 + $0xca] sm:$0xff]
          %v777 = vld [vmem:[%s406 + $0xda] sm:$0xff]
          %v778 = vld [vmem:[%s406 + $0xe2] sm:$0xff]
          %v779 = vld [vmem:[%s406 + $0xf2] sm:$0xff]
          %v780 = vld [vmem:[%s406 + $0xfa] sm:$0xff]
          %v781 = vld [vmem:[%s406 + $0x10a] sm:$0xff]
          %v782 = vld [vmem:[%s406 + $0x112] sm:$0xff]
          %v783 = vld [vmem:[%s406 + $0x122] sm:$0xff]
          %v784 = vld [vmem:[%s406 + $0x12a] sm:$0xff]
          %v785 = vld [vmem:[%s406 + $0x13a] sm:$0xff]
          %v786 = vld [vmem:[%s406 + $0x142] sm:$0xff]
          %v787 = vld [vmem:[%s406 + $0x152] sm:$0xff]
          %v788 = vld [vmem:[%s406 + $0x15a] sm:$0xff]
          %v789 = vld [vmem:[%s406 + $0x16a] sm:$0xff]
          %v790 = vld [vmem:[%s406 + $0x172] sm:$0xff]
          %791 = vst [vmem:[#allocation3 + $0x28] sm:$0xff] %v759
          %792 = vst [vmem:[#allocation3 + $0x70] sm:$0xff] %v760
          %793 = vst [vmem:[#allocation3 + $0xb8] sm:$0xff] %v761
          %794 = vst [vmem:[#allocation3 + $0x100] sm:$0xff] %v762
          %795 = vst [vmem:[#allocation3 + $0x148] sm:$0xff] %v763
          %796 = vst [vmem:[#allocation3 + $0x190] sm:$0xff] %v764
          %797 = vst [vmem:[#allocation3 + $0x1d8] sm:$0xff] %v765
          %798 = vst [vmem:[#allocation3 + $0x220] sm:$0xff] %v766
          %799 = vst [vmem:[#allocation3 + $0x268] sm:$0xff] %v767
          %800 = vst [vmem:[#allocation3 + $0x2b0] sm:$0xff] %v768
          %801 = vst [vmem:[#allocation3 + $0x2f8] sm:$0xff] %v769
          %802 = vst [vmem:[#allocation3 + $0x340] sm:$0xff] %v770
          %803 = vst [vmem:[#allocation3 + $0x388] sm:$0xff] %v771
          %804 = vst [vmem:[#allocation3 + $0x3d0] sm:$0xff] %v772
          %805 = vst [vmem:[#allocation3 + $0x418] sm:$0xff] %v773
          %806 = vst [vmem:[#allocation3 + $0x460] sm:$0xff] %v774
          %807 = vst [vmem:[#allocation3 + $0x4a8] sm:$0xff] %v775
          %808 = vst [vmem:[#allocation3 + $0x4f0] sm:$0xff] %v776
          %809 = vst [vmem:[#allocation3 + $0x538] sm:$0xff] %v777
          %810 = vst [vmem:[#allocation3 + $0x580] sm:$0xff] %v778
          %811 = vst [vmem:[#allocation3 + $0x5c8] sm:$0xff] %v779
          %812 = vst [vmem:[#allocation3 + $0x610] sm:$0xff] %v780
          %813 = vst [vmem:[#allocation3 + $0x658] sm:$0xff] %v781
          %814 = vst [vmem:[#allocation3 + $0x6a0] sm:$0xff] %v782
          %815 = vst [vmem:[#allocation3 + $0x6e8] sm:$0xff] %v783
          %816 = vst [vmem:[#allocation3 + $0x730] sm:$0xff] %v784
          %817 = vst [vmem:[#allocation3 + $0x778] sm:$0xff] %v785
          %818 = vst [vmem:[#allocation3 + $0x7c0] sm:$0xff] %v786
          %819 = vst [vmem:[#allocation3 + $0x808] sm:$0xff] %v787
          %820 = vst [vmem:[#allocation3 + $0x850] sm:$0xff] %v788
          %821 = vst [vmem:[#allocation3 + $0x898] sm:$0xff] %v789
          %822 = vst [vmem:[#allocation3 + $0x8e0] sm:$0xff] %v790
          %s823 = scalar_lea.vmem [#allocation2], 48
          %v824 = vld [vmem:[%s823] sm:$0xff]
          %v825 = vld [vmem:[%s823 + $0x8] sm:$0xff]
          %v826 = vld [vmem:[%s823 + $0x18] sm:$0xff]
          %v827 = vld [vmem:[%s823 + $0x20] sm:$0xff]
          %v828 = vld [vmem:[%s823 + $0x30] sm:$0xff]
          %v829 = vld [vmem:[%s823 + $0x38] sm:$0xff]
          %v830 = vld [vmem:[%s823 + $0x48] sm:$0xff]
          %v831 = vld [vmem:[%s823 + $0x50] sm:$0xff]
          %v832 = vld [vmem:[%s823 + $0x60] sm:$0xff]
          %v833 = vld [vmem:[%s823 + $0x68] sm:$0xff]
          %v834 = vld [vmem:[%s823 + $0x78] sm:$0xff]
          %v835 = vld [vmem:[%s823 + $0x80] sm:$0xff]
          %v836 = vld [vmem:[%s823 + $0x90] sm:$0xff]
          %v837 = vld [vmem:[%s823 + $0x98] sm:$0xff]
          %v838 = vld [vmem:[%s823 + $0xa8] sm:$0xff]
          %v839 = vld [vmem:[%s823 + $0xb0] sm:$0xff]
          %v840 = vld [vmem:[%s823 + $0xc0] sm:$0xff]
          %v841 = vld [vmem:[%s823 + $0xc8] sm:$0xff]
          %v842 = vld [vmem:[%s823 + $0xd8] sm:$0xff]
          %v843 = vld [vmem:[%s823 + $0xe0] sm:$0xff]
          %v844 = vld [vmem:[%s823 + $0xf0] sm:$0xff]
          %v845 = vld [vmem:[%s823 + $0xf8] sm:$0xff]
          %v846 = vld [vmem:[%s823 + $0x108] sm:$0xff]
          %v847 = vld [vmem:[%s823 + $0x110] sm:$0xff]
          %v848 = vld [vmem:[%s823 + $0x120] sm:$0xff]
          %v849 = vld [vmem:[%s823 + $0x128] sm:$0xff]
          %v850 = vld [vmem:[%s823 + $0x138] sm:$0xff]
          %v851 = vld [vmem:[%s823 + $0x140] sm:$0xff]
          %v852 = vld [vmem:[%s823 + $0x150] sm:$0xff]
          %v853 = vld [vmem:[%s823 + $0x158] sm:$0xff]
          %v854 = vld [vmem:[%s823 + $0x168] sm:$0xff]
          %v855 = vld [vmem:[%s823 + $0x170] sm:$0xff]
          %856 = vst [vmem:[#allocation3 + $0x30] sm:$0xff] %v824
          %857 = vst [vmem:[#allocation3 + $0x78] sm:$0xff] %v825
          %858 = vst [vmem:[#allocation3 + $0xc0] sm:$0xff] %v826
          %859 = vst [vmem:[#allocation3 + $0x108] sm:$0xff] %v827
          %860 = vst [vmem:[#allocation3 + $0x150] sm:$0xff] %v828
          %861 = vst [vmem:[#allocation3 + $0x198] sm:$0xff] %v829
          %862 = vst [vmem:[#allocation3 + $0x1e0] sm:$0xff] %v830
          %863 = vst [vmem:[#allocation3 + $0x228] sm:$0xff] %v831
          %864 = vst [vmem:[#allocation3 + $0x270] sm:$0xff] %v832
          %865 = vst [vmem:[#allocation3 + $0x2b8] sm:$0xff] %v833
          %866 = vst [vmem:[#allocation3 + $0x300] sm:$0xff] %v834
          %867 = vst [vmem:[#allocation3 + $0x348] sm:$0xff] %v835
          %868 = vst [vmem:[#allocation3 + $0x390] sm:$0xff] %v836
          %869 = vst [vmem:[#allocation3 + $0x3d8] sm:$0xff] %v837
          %870 = vst [vmem:[#allocation3 + $0x420] sm:$0xff] %v838
          %871 = vst [vmem:[#allocation3 + $0x468] sm:$0xff] %v839
          %872 = vst [vmem:[#allocation3 + $0x4b0] sm:$0xff] %v840
          %873 = vst [vmem:[#allocation3 + $0x4f8] sm:$0xff] %v841
          %874 = vst [vmem:[#allocation3 + $0x540] sm:$0xff] %v842
          %875 = vst [vmem:[#allocation3 + $0x588] sm:$0xff] %v843
          %876 = vst [vmem:[#allocation3 + $0x5d0] sm:$0xff] %v844
          %877 = vst [vmem:[#allocation3 + $0x618] sm:$0xff] %v845
          %878 = vst [vmem:[#allocation3 + $0x660] sm:$0xff] %v846
          %879 = vst [vmem:[#allocation3 + $0x6a8] sm:$0xff] %v847
          %880 = vst [vmem:[#allocation3 + $0x6f0] sm:$0xff] %v848
          %881 = vst [vmem:[#allocation3 + $0x738] sm:$0xff] %v849
          %882 = vst [vmem:[#allocation3 + $0x780] sm:$0xff] %v850
          %883 = vst [vmem:[#allocation3 + $0x7c8] sm:$0xff] %v851
          %884 = vst [vmem:[#allocation3 + $0x810] sm:$0xff] %v852
          %885 = vst [vmem:[#allocation3 + $0x858] sm:$0xff] %v853
          %886 = vst [vmem:[#allocation3 + $0x8a0] sm:$0xff] %v854
          %887 = vst [vmem:[#allocation3 + $0x8e8] sm:$0xff] %v855
          %v888 = vld [vmem:[%s823 + $0x1] sm:$0xff]
          %v889 = vld [vmem:[%s823 + $0x9] sm:$0xff]
          %v890 = vld [vmem:[%s823 + $0x19] sm:$0xff]
          %v891 = vld [vmem:[%s823 + $0x21] sm:$0xff]
          %v892 = vld [vmem:[%s823 + $0x31] sm:$0xff]
          %v893 = vld [vmem:[%s823 + $0x39] sm:$0xff]
          %v894 = vld [vmem:[%s823 + $0x49] sm:$0xff]
          %v895 = vld [vmem:[%s823 + $0x51] sm:$0xff]
          %v896 = vld [vmem:[%s823 + $0x61] sm:$0xff]
          %v897 = vld [vmem:[%s823 + $0x69] sm:$0xff]
          %v898 = vld [vmem:[%s823 + $0x79] sm:$0xff]
          %v899 = vld [vmem:[%s823 + $0x81] sm:$0xff]
          %v900 = vld [vmem:[%s823 + $0x91] sm:$0xff]
          %v901 = vld [vmem:[%s823 + $0x99] sm:$0xff]
          %v902 = vld [vmem:[%s823 + $0xa9] sm:$0xff]
          %v903 = vld [vmem:[%s823 + $0xb1] sm:$0xff]
          %v904 = vld [vmem:[%s823 + $0xc1] sm:$0xff]
          %v905 = vld [vmem:[%s823 + $0xc9] sm:$0xff]
          %v906 = vld [vmem:[%s823 + $0xd9] sm:$0xff]
          %v907 = vld [vmem:[%s823 + $0xe1] sm:$0xff]
          %v908 = vld [vmem:[%s823 + $0xf1] sm:$0xff]
          %v909 = vld [vmem:[%s823 + $0xf9] sm:$0xff]
          %v910 = vld [vmem:[%s823 + $0x109] sm:$0xff]
          %v911 = vld [vmem:[%s823 + $0x111] sm:$0xff]
          %v912 = vld [vmem:[%s823 + $0x121] sm:$0xff]
          %v913 = vld [vmem:[%s823 + $0x129] sm:$0xff]
          %v914 = vld [vmem:[%s823 + $0x139] sm:$0xff]
          %v915 = vld [vmem:[%s823 + $0x141] sm:$0xff]
          %v916 = vld [vmem:[%s823 + $0x151] sm:$0xff]
          %v917 = vld [vmem:[%s823 + $0x159] sm:$0xff]
          %v918 = vld [vmem:[%s823 + $0x169] sm:$0xff]
          %v919 = vld [vmem:[%s823 + $0x171] sm:$0xff]
          %920 = vst [vmem:[#allocation3 + $0x38] sm:$0xff] %v888
          %921 = vst [vmem:[#allocation3 + $0x80] sm:$0xff] %v889
          %922 = vst [vmem:[#allocation3 + $0xc8] sm:$0xff] %v890
          %923 = vst [vmem:[#allocation3 + $0x110] sm:$0xff] %v891
          %924 = vst [vmem:[#allocation3 + $0x158] sm:$0xff] %v892
          %925 = vst [vmem:[#allocation3 + $0x1a0] sm:$0xff] %v893
          %926 = vst [vmem:[#allocation3 + $0x1e8] sm:$0xff] %v894
          %927 = vst [vmem:[#allocation3 + $0x230] sm:$0xff] %v895
          %928 = vst [vmem:[#allocation3 + $0x278] sm:$0xff] %v896
          %929 = vst [vmem:[#allocation3 + $0x2c0] sm:$0xff] %v897
          %930 = vst [vmem:[#allocation3 + $0x308] sm:$0xff] %v898
          %931 = vst [vmem:[#allocation3 + $0x350] sm:$0xff] %v899
          %932 = vst [vmem:[#allocation3 + $0x398] sm:$0xff] %v900
          %933 = vst [vmem:[#allocation3 + $0x3e0] sm:$0xff] %v901
          %934 = vst [vmem:[#allocation3 + $0x428] sm:$0xff] %v902
          %935 = vst [vmem:[#allocation3 + $0x470] sm:$0xff] %v903
          %936 = vst [vmem:[#allocation3 + $0x4b8] sm:$0xff] %v904
          %937 = vst [vmem:[#allocation3 + $0x500] sm:$0xff] %v905
          %938 = vst [vmem:[#allocation3 + $0x548] sm:$0xff] %v906
          %939 = vst [vmem:[#allocation3 + $0x590] sm:$0xff] %v907
          %940 = vst [vmem:[#allocation3 + $0x5d8] sm:$0xff] %v908
          %941 = vst [vmem:[#allocation3 + $0x620] sm:$0xff] %v909
          %942 = vst [vmem:[#allocation3 + $0x668] sm:$0xff] %v910
          %943 = vst [vmem:[#allocation3 + $0x6b0] sm:$0xff] %v911
          %944 = vst [vmem:[#allocation3 + $0x6f8] sm:$0xff] %v912
          %945 = vst [vmem:[#allocation3 + $0x740] sm:$0xff] %v913
          %946 = vst [vmem:[#allocation3 + $0x788] sm:$0xff] %v914
          %947 = vst [vmem:[#allocation3 + $0x7d0] sm:$0xff] %v915
          %948 = vst [vmem:[#allocation3 + $0x818] sm:$0xff] %v916
          %949 = vst [vmem:[#allocation3 + $0x860] sm:$0xff] %v917
          %950 = vst [vmem:[#allocation3 + $0x8a8] sm:$0xff] %v918
          %951 = vst [vmem:[#allocation3 + $0x8f0] sm:$0xff] %v919
          %v952 = vld [vmem:[%s823 + $0x2] sm:$0xff]
          %v953 = vld [vmem:[%s823 + $0xa] sm:$0xff]
          %v954 = vld [vmem:[%s823 + $0x1a] sm:$0xff]
          %v955 = vld [vmem:[%s823 + $0x22] sm:$0xff]
          %v956 = vld [vmem:[%s823 + $0x32] sm:$0xff]
          %v957 = vld [vmem:[%s823 + $0x3a] sm:$0xff]
          %v958 = vld [vmem:[%s823 + $0x4a] sm:$0xff]
          %v959 = vld [vmem:[%s823 + $0x52] sm:$0xff]
          %v960 = vld [vmem:[%s823 + $0x62] sm:$0xff]
          %v961 = vld [vmem:[%s823 + $0x6a] sm:$0xff]
          %v962 = vld [vmem:[%s823 + $0x7a] sm:$0xff]
          %v963 = vld [vmem:[%s823 + $0x82] sm:$0xff]
          %v964 = vld [vmem:[%s823 + $0x92] sm:$0xff]
          %v965 = vld [vmem:[%s823 + $0x9a] sm:$0xff]
          %v966 = vld [vmem:[%s823 + $0xaa] sm:$0xff]
          %v967 = vld [vmem:[%s823 + $0xb2] sm:$0xff]
          %v968 = vld [vmem:[%s823 + $0xc2] sm:$0xff]
          %v969 = vld [vmem:[%s823 + $0xca] sm:$0xff]
          %v970 = vld [vmem:[%s823 + $0xda] sm:$0xff]
          %v971 = vld [vmem:[%s823 + $0xe2] sm:$0xff]
          %v972 = vld [vmem:[%s823 + $0xf2] sm:$0xff]
          %v973 = vld [vmem:[%s823 + $0xfa] sm:$0xff]
          %v974 = vld [vmem:[%s823 + $0x10a] sm:$0xff]
          %v975 = vld [vmem:[%s823 + $0x112] sm:$0xff]
          %v976 = vld [vmem:[%s823 + $0x122] sm:$0xff]
          %v977 = vld [vmem:[%s823 + $0x12a] sm:$0xff]
          %v978 = vld [vmem:[%s823 + $0x13a] sm:$0xff]
          %v979 = vld [vmem:[%s823 + $0x142] sm:$0xff]
          %v980 = vld [vmem:[%s823 + $0x152] sm:$0xff]
          %v981 = vld [vmem:[%s823 + $0x15a] sm:$0xff]
          %v982 = vld [vmem:[%s823 + $0x16a] sm:$0xff]
          %v983 = vld [vmem:[%s823 + $0x172] sm:$0xff]
          %984 = vst [vmem:[#allocation3 + $0x40] sm:$0xff] %v952
          %985 = vst [vmem:[#allocation3 + $0x88] sm:$0xff] %v953
          %986 = vst [vmem:[#allocation3 + $0xd0] sm:$0xff] %v954
          %987 = vst [vmem:[#allocation3 + $0x118] sm:$0xff] %v955
          %988 = vst [vmem:[#allocation3 + $0x160] sm:$0xff] %v956
          %989 = vst [vmem:[#allocation3 + $0x1a8] sm:$0xff] %v957
          %990 = vst [vmem:[#allocation3 + $0x1f0] sm:$0xff] %v958
          %991 = vst [vmem:[#allocation3 + $0x238] sm:$0xff] %v959
          %992 = vst [vmem:[#allocation3 + $0x280] sm:$0xff] %v960
          %993 = vst [vmem:[#allocation3 + $0x2c8] sm:$0xff] %v961
          %994 = vst [vmem:[#allocation3 + $0x310] sm:$0xff] %v962
          %995 = vst [vmem:[#allocation3 + $0x358] sm:$0xff] %v963
          %996 = vst [vmem:[#allocation3 + $0x3a0] sm:$0xff] %v964
          %997 = vst [vmem:[#allocation3 + $0x3e8] sm:$0xff] %v965
          %998 = vst [vmem:[#allocation3 + $0x430] sm:$0xff] %v966
          %999 = vst [vmem:[#allocation3 + $0x478] sm:$0xff] %v967
          %1000 = vst [vmem:[#allocation3 + $0x4c0] sm:$0xff] %v968
          %1001 = vst [vmem:[#allocation3 + $0x508] sm:$0xff] %v969
          %1002 = vst [vmem:[#allocation3 + $0x550] sm:$0xff] %v970
          %1003 = vst [vmem:[#allocation3 + $0x598] sm:$0xff] %v971
          %1004 = vst [vmem:[#allocation3 + $0x5e0] sm:$0xff] %v972
          %1005 = vst [vmem:[#allocation3 + $0x628] sm:$0xff] %v973
          %1006 = vst [vmem:[#allocation3 + $0x670] sm:$0xff] %v974
          %1007 = vst [vmem:[#allocation3 + $0x6b8] sm:$0xff] %v975
          %1008 = vst [vmem:[#allocation3 + $0x700] sm:$0xff] %v976
          %1009 = vst [vmem:[#allocation3 + $0x748] sm:$0xff] %v977
          %1010 = vst [vmem:[#allocation3 + $0x790] sm:$0xff] %v978
          %1011 = vst [vmem:[#allocation3 + $0x7d8] sm:$0xff] %v979
          %1012 = vst [vmem:[#allocation3 + $0x820] sm:$0xff] %v980
          %1013 = vst [vmem:[#allocation3 + $0x868] sm:$0xff] %v981
          %1014 = vst [vmem:[#allocation3 + $0x8b0] sm:$0xff] %v982
          %1015 = vst [vmem:[#allocation3 + $0x8f8] sm:$0xff] %v983
          %v1016 = vld [vmem:[#allocation3] sm:$0xff]
          %v1017 = vld [vmem:[#allocation3 + $0x8] sm:$0xff]
          %v1018 = vld [vmem:[#allocation3 + $0x10] sm:$0xff]
          %v1019 = vld [vmem:[#allocation3 + $0x18] sm:$0xff]
          %v1020 = vld [vmem:[#allocation3 + $0x20] sm:$0xff]
          %v1021 = vld [vmem:[#allocation3 + $0x28] sm:$0xff]
          %v1022 = vld [vmem:[#allocation3 + $0x30] sm:$0xff]
          %v1023 = vld [vmem:[#allocation3 + $0x38] sm:$0xff]
          %v1024 = vld [vmem:[#allocation3 + $0x40] sm:$0xff]
          %v1025 = vld [vmem:[#allocation3 + $0x48] sm:$0xff]
          %v1026 = vld [vmem:[#allocation3 + $0x50] sm:$0xff]
          %v1027 = vld [vmem:[#allocation3 + $0x58] sm:$0xff]
          %v1028 = vld [vmem:[#allocation3 + $0x60] sm:$0xff]
          %v1029 = vld [vmem:[#allocation3 + $0x68] sm:$0xff]
          %v1030 = vld [vmem:[#allocation3 + $0x70] sm:$0xff]
          %v1031 = vld [vmem:[#allocation3 + $0x78] sm:$0xff]
          %v1032 = vld [vmem:[#allocation3 + $0x80] sm:$0xff]
          %v1033 = vld [vmem:[#allocation3 + $0x88] sm:$0xff]
          %v1034 = vld [vmem:[#allocation3 + $0x90] sm:$0xff]
          %v1035 = vld [vmem:[#allocation3 + $0x98] sm:$0xff]
          %v1036 = vld [vmem:[#allocation3 + $0xa0] sm:$0xff]
          %v1037 = vld [vmem:[#allocation3 + $0xa8] sm:$0xff]
          %v1038 = vld [vmem:[#allocation3 + $0xb0] sm:$0xff]
          %v1039 = vld [vmem:[#allocation3 + $0xb8] sm:$0xff]
          %v1040 = vld [vmem:[#allocation3 + $0xc0] sm:$0xff]
          %v1041 = vld [vmem:[#allocation3 + $0xc8] sm:$0xff]
          %v1042 = vld [vmem:[#allocation3 + $0xd0] sm:$0xff]
          %v1043 = vld [vmem:[#allocation3 + $0xd8] sm:$0xff]
          %v1044 = vld [vmem:[#allocation3 + $0xe0] sm:$0xff]
          %v1045 = vld [vmem:[#allocation3 + $0xe8] sm:$0xff]
          %v1046 = vld [vmem:[#allocation3 + $0xf0] sm:$0xff]
          %v1047 = vld [vmem:[#allocation3 + $0xf8] sm:$0xff]
          %v1048 = vld [vmem:[#allocation3 + $0x100] sm:$0xff]
          %v1049 = vld [vmem:[#allocation3 + $0x108] sm:$0xff]
          %v1050 = vld [vmem:[#allocation3 + $0x110] sm:$0xff]
          %v1051 = vld [vmem:[#allocation3 + $0x118] sm:$0xff]
          %v1052 = vld [vmem:[#allocation3 + $0x120] sm:$0xff]
          %v1053 = vld [vmem:[#allocation3 + $0x128] sm:$0xff]
          %v1054 = vld [vmem:[#allocation3 + $0x130] sm:$0xff]
          %v1055 = vld [vmem:[#allocation3 + $0x138] sm:$0xff]
          %v1056 = vld [vmem:[#allocation3 + $0x140] sm:$0xff]
          %v1057 = vld [vmem:[#allocation3 + $0x148] sm:$0xff]
          %v1058 = vld [vmem:[#allocation3 + $0x150] sm:$0xff]
          %v1059 = vld [vmem:[#allocation3 + $0x158] sm:$0xff]
          %v1060 = vld [vmem:[#allocation3 + $0x160] sm:$0xff]
          %v1061 = vld [vmem:[#allocation3 + $0x168] sm:$0xff]
          %v1062 = vld [vmem:[#allocation3 + $0x170] sm:$0xff]
          %v1063 = vld [vmem:[#allocation3 + $0x178] sm:$0xff]
          %v1064 = vld [vmem:[#allocation3 + $0x180] sm:$0xff]
          %v1065 = vld [vmem:[#allocation3 + $0x188] sm:$0xff]
          %v1066 = vld [vmem:[#allocation3 + $0x190] sm:$0xff]
          %v1067 = vld [vmem:[#allocation3 + $0x198] sm:$0xff]
          %v1068 = vld [vmem:[#allocation3 + $0x1a0] sm:$0xff]
          %v1069 = vld [vmem:[#allocation3 + $0x1a8] sm:$0xff]
          %v1070 = vld [vmem:[#allocation3 + $0x1b0] sm:$0xff]
          %v1071 = vld [vmem:[#allocation3 + $0x1b8] sm:$0xff]
          %v1072 = vld [vmem:[#allocation3 + $0x1c0] sm:$0xff]
          %v1073 = vld [vmem:[#allocation3 + $0x1c8] sm:$0xff]
          %v1074 = vld [vmem:[#allocation3 + $0x1d0] sm:$0xff]
          %v1075 = vld [vmem:[#allocation3 + $0x1d8] sm:$0xff]
          %v1076 = vld [vmem:[#allocation3 + $0x1e0] sm:$0xff]
          %v1077 = vld [vmem:[#allocation3 + $0x1e8] sm:$0xff]
          %v1078 = vld [vmem:[#allocation3 + $0x1f0] sm:$0xff]
          %v1079 = vld [vmem:[#allocation3 + $0x1f8] sm:$0xff]
          %v1080 = vld [vmem:[#allocation3 + $0x200] sm:$0xff]
          %v1081 = vld [vmem:[#allocation3 + $0x208] sm:$0xff]
          %v1082 = vld [vmem:[#allocation3 + $0x210] sm:$0xff]
          %v1083 = vld [vmem:[#allocation3 + $0x218] sm:$0xff]
          %v1084 = vld [vmem:[#allocation3 + $0x220] sm:$0xff]
          %v1085 = vld [vmem:[#allocation3 + $0x228] sm:$0xff]
          %v1086 = vld [vmem:[#allocation3 + $0x230] sm:$0xff]
          %v1087 = vld [vmem:[#allocation3 + $0x238] sm:$0xff]
          %v1088 = vld [vmem:[#allocation3 + $0x240] sm:$0xff]
          %v1089 = vld [vmem:[#allocation3 + $0x248] sm:$0xff]
          %v1090 = vld [vmem:[#allocation3 + $0x250] sm:$0xff]
          %v1091 = vld [vmem:[#allocation3 + $0x258] sm:$0xff]
          %v1092 = vld [vmem:[#allocation3 + $0x260] sm:$0xff]
          %v1093 = vld [vmem:[#allocation3 + $0x268] sm:$0xff]
          %v1094 = vld [vmem:[#allocation3 + $0x270] sm:$0xff]
          %v1095 = vld [vmem:[#allocation3 + $0x278] sm:$0xff]
          %v1096 = vld [vmem:[#allocation3 + $0x280] sm:$0xff]
          %v1097 = vld [vmem:[#allocation3 + $0x288] sm:$0xff]
          %v1098 = vld [vmem:[#allocation3 + $0x290] sm:$0xff]
          %v1099 = vld [vmem:[#allocation3 + $0x298] sm:$0xff]
          %v1100 = vld [vmem:[#allocation3 + $0x2a0] sm:$0xff]
          %v1101 = vld [vmem:[#allocation3 + $0x2a8] sm:$0xff]
          %v1102 = vld [vmem:[#allocation3 + $0x2b0] sm:$0xff]
          %v1103 = vld [vmem:[#allocation3 + $0x2b8] sm:$0xff]
          %v1104 = vld [vmem:[#allocation3 + $0x2c0] sm:$0xff]
          %v1105 = vld [vmem:[#allocation3 + $0x2c8] sm:$0xff]
          %v1106 = vld [vmem:[#allocation3 + $0x2d0] sm:$0xff]
          %v1107 = vld [vmem:[#allocation3 + $0x2d8] sm:$0xff]
          %v1108 = vld [vmem:[#allocation3 + $0x2e0] sm:$0xff]
          %v1109 = vld [vmem:[#allocation3 + $0x2e8] sm:$0xff]
          %v1110 = vld [vmem:[#allocation3 + $0x2f0] sm:$0xff]
          %v1111 = vld [vmem:[#allocation3 + $0x2f8] sm:$0xff]
          %v1112 = vld [vmem:[#allocation3 + $0x300] sm:$0xff]
          %v1113 = vld [vmem:[#allocation3 + $0x308] sm:$0xff]
          %v1114 = vld [vmem:[#allocation3 + $0x310] sm:$0xff]
          %v1115 = vld [vmem:[#allocation3 + $0x318] sm:$0xff]
          %v1116 = vld [vmem:[#allocation3 + $0x320] sm:$0xff]
          %v1117 = vld [vmem:[#allocation3 + $0x328] sm:$0xff]
          %v1118 = vld [vmem:[#allocation3 + $0x330] sm:$0xff]
          %v1119 = vld [vmem:[#allocation3 + $0x338] sm:$0xff]
          %v1120 = vld [vmem:[#allocation3 + $0x340] sm:$0xff]
          %v1121 = vld [vmem:[#allocation3 + $0x348] sm:$0xff]
          %v1122 = vld [vmem:[#allocation3 + $0x350] sm:$0xff]
          %v1123 = vld [vmem:[#allocation3 + $0x358] sm:$0xff]
          %v1124 = vld [vmem:[#allocation3 + $0x360] sm:$0xff]
          %v1125 = vld [vmem:[#allocation3 + $0x368] sm:$0xff]
          %v1126 = vld [vmem:[#allocation3 + $0x370] sm:$0xff]
          %v1127 = vld [vmem:[#allocation3 + $0x378] sm:$0xff]
          %v1128 = vld [vmem:[#allocation3 + $0x380] sm:$0xff]
          %v1129 = vld [vmem:[#allocation3 + $0x388] sm:$0xff]
          %v1130 = vld [vmem:[#allocation3 + $0x390] sm:$0xff]
          %v1131 = vld [vmem:[#allocation3 + $0x398] sm:$0xff]
          %v1132 = vld [vmem:[#allocation3 + $0x3a0] sm:$0xff]
          %v1133 = vld [vmem:[#allocation3 + $0x3a8] sm:$0xff]
          %v1134 = vld [vmem:[#allocation3 + $0x3b0] sm:$0xff]
          %v1135 = vld [vmem:[#allocation3 + $0x3b8] sm:$0xff]
          %v1136 = vld [vmem:[#allocation3 + $0x3c0] sm:$0xff]
          %v1137 = vld [vmem:[#allocation3 + $0x3c8] sm:$0xff]
          %v1138 = vld [vmem:[#allocation3 + $0x3d0] sm:$0xff]
          %v1139 = vld [vmem:[#allocation3 + $0x3d8] sm:$0xff]
          %v1140 = vld [vmem:[#allocation3 + $0x3e0] sm:$0xff]
          %v1141 = vld [vmem:[#allocation3 + $0x3e8] sm:$0xff]
          %v1142 = vld [vmem:[#allocation3 + $0x3f0] sm:$0xff]
          %v1143 = vld [vmem:[#allocation3 + $0x3f8] sm:$0xff]
          %v1144 = vld [vmem:[#allocation3 + $0x400] sm:$0xff]
          %v1145 = vld [vmem:[#allocation3 + $0x408] sm:$0xff]
          %v1146 = vld [vmem:[#allocation3 + $0x410] sm:$0xff]
          %v1147 = vld [vmem:[#allocation3 + $0x418] sm:$0xff]
          %v1148 = vld [vmem:[#allocation3 + $0x420] sm:$0xff]
          %v1149 = vld [vmem:[#allocation3 + $0x428] sm:$0xff]
          %v1150 = vld [vmem:[#allocation3 + $0x430] sm:$0xff]
          %v1151 = vld [vmem:[#allocation3 + $0x438] sm:$0xff]
          %v1152 = vld [vmem:[#allocation3 + $0x440] sm:$0xff]
          %v1153 = vld [vmem:[#allocation3 + $0x448] sm:$0xff]
          %v1154 = vld [vmem:[#allocation3 + $0x450] sm:$0xff]
          %v1155 = vld [vmem:[#allocation3 + $0x458] sm:$0xff]
          %v1156 = vld [vmem:[#allocation3 + $0x460] sm:$0xff]
          %v1157 = vld [vmem:[#allocation3 + $0x468] sm:$0xff]
          %v1158 = vld [vmem:[#allocation3 + $0x470] sm:$0xff]
          %v1159 = vld [vmem:[#allocation3 + $0x478] sm:$0xff]
          %v1160 = vld [vmem:[#allocation3 + $0x480] sm:$0xff]
          %v1161 = vld [vmem:[#allocation3 + $0x488] sm:$0xff]
          %v1162 = vld [vmem:[#allocation3 + $0x490] sm:$0xff]
          %v1163 = vld [vmem:[#allocation3 + $0x498] sm:$0xff]
          %v1164 = vld [vmem:[#allocation3 + $0x4a0] sm:$0xff]
          %v1165 = vld [vmem:[#allocation3 + $0x4a8] sm:$0xff]
          %v1166 = vld [vmem:[#allocation3 + $0x4b0] sm:$0xff]
          %v1167 = vld [vmem:[#allocation3 + $0x4b8] sm:$0xff]
          %v1168 = vld [vmem:[#allocation3 + $0x4c0] sm:$0xff]
          %v1169 = vld [vmem:[#allocation3 + $0x4c8] sm:$0xff]
          %v1170 = vld [vmem:[#allocation3 + $0x4d0] sm:$0xff]
          %v1171 = vld [vmem:[#allocation3 + $0x4d8] sm:$0xff]
          %v1172 = vld [vmem:[#allocation3 + $0x4e0] sm:$0xff]
          %v1173 = vld [vmem:[#allocation3 + $0x4e8] sm:$0xff]
          %v1174 = vld [vmem:[#allocation3 + $0x4f0] sm:$0xff]
          %v1175 = vld [vmem:[#allocation3 + $0x4f8] sm:$0xff]
          %v1176 = vld [vmem:[#allocation3 + $0x500] sm:$0xff]
          %v1177 = vld [vmem:[#allocation3 + $0x508] sm:$0xff]
          %v1178 = vld [vmem:[#allocation3 + $0x510] sm:$0xff]
          %v1179 = vld [vmem:[#allocation3 + $0x518] sm:$0xff]
          %v1180 = vld [vmem:[#allocation3 + $0x520] sm:$0xff]
          %v1181 = vld [vmem:[#allocation3 + $0x528] sm:$0xff]
          %v1182 = vld [vmem:[#allocation3 + $0x530] sm:$0xff]
          %v1183 = vld [vmem:[#allocation3 + $0x538] sm:$0xff]
          %v1184 = vld [vmem:[#allocation3 + $0x540] sm:$0xff]
          %v1185 = vld [vmem:[#allocation3 + $0x548] sm:$0xff]
          %v1186 = vld [vmem:[#allocation3 + $0x550] sm:$0xff]
          %v1187 = vld [vmem:[#allocation3 + $0x558] sm:$0xff]
          %v1188 = vld [vmem:[#allocation3 + $0x560] sm:$0xff]
          %v1189 = vld [vmem:[#allocation3 + $0x568] sm:$0xff]
          %v1190 = vld [vmem:[#allocation3 + $0x570] sm:$0xff]
          %v1191 = vld [vmem:[#allocation3 + $0x578] sm:$0xff]
          %v1192 = vld [vmem:[#allocation3 + $0x580] sm:$0xff]
          %v1193 = vld [vmem:[#allocation3 + $0x588] sm:$0xff]
          %v1194 = vld [vmem:[#allocation3 + $0x590] sm:$0xff]
          %v1195 = vld [vmem:[#allocation3 + $0x598] sm:$0xff]
          %v1196 = vld [vmem:[#allocation3 + $0x5a0] sm:$0xff]
          %v1197 = vld [vmem:[#allocation3 + $0x5a8] sm:$0xff]
          %v1198 = vld [vmem:[#allocation3 + $0x5b0] sm:$0xff]
          %v1199 = vld [vmem:[#allocation3 + $0x5b8] sm:$0xff]
          %v1200 = vld [vmem:[#allocation3 + $0x5c0] sm:$0xff]
          %v1201 = vld [vmem:[#allocation3 + $0x5c8] sm:$0xff]
          %v1202 = vld [vmem:[#allocation3 + $0x5d0] sm:$0xff]
          %v1203 = vld [vmem:[#allocation3 + $0x5d8] sm:$0xff]
          %v1204 = vld [vmem:[#allocation3 + $0x5e0] sm:$0xff]
          %v1205 = vld [vmem:[#allocation3 + $0x5e8] sm:$0xff]
          %v1206 = vld [vmem:[#allocation3 + $0x5f0] sm:$0xff]
          %v1207 = vld [vmem:[#allocation3 + $0x5f8] sm:$0xff]
          %v1208 = vld [vmem:[#allocation3 + $0x600] sm:$0xff]
          %v1209 = vld [vmem:[#allocation3 + $0x608] sm:$0xff]
          %v1210 = vld [vmem:[#allocation3 + $0x610] sm:$0xff]
          %v1211 = vld [vmem:[#allocation3 + $0x618] sm:$0xff]
          %v1212 = vld [vmem:[#allocation3 + $0x620] sm:$0xff]
          %v1213 = vld [vmem:[#allocation3 + $0x628] sm:$0xff]
          %v1214 = vld [vmem:[#allocation3 + $0x630] sm:$0xff]
          %v1215 = vld [vmem:[#allocation3 + $0x638] sm:$0xff]
          %v1216 = vld [vmem:[#allocation3 + $0x640] sm:$0xff]
          %v1217 = vld [vmem:[#allocation3 + $0x648] sm:$0xff]
          %v1218 = vld [vmem:[#allocation3 + $0x650] sm:$0xff]
          %v1219 = vld [vmem:[#allocation3 + $0x658] sm:$0xff]
          %v1220 = vld [vmem:[#allocation3 + $0x660] sm:$0xff]
          %v1221 = vld [vmem:[#allocation3 + $0x668] sm:$0xff]
          %v1222 = vld [vmem:[#allocation3 + $0x670] sm:$0xff]
          %v1223 = vld [vmem:[#allocation3 + $0x678] sm:$0xff]
          %v1224 = vld [vmem:[#allocation3 + $0x680] sm:$0xff]
          %v1225 = vld [vmem:[#allocation3 + $0x688] sm:$0xff]
          %v1226 = vld [vmem:[#allocation3 + $0x690] sm:$0xff]
          %v1227 = vld [vmem:[#allocation3 + $0x698] sm:$0xff]
          %v1228 = vld [vmem:[#allocation3 + $0x6a0] sm:$0xff]
          %v1229 = vld [vmem:[#allocation3 + $0x6a8] sm:$0xff]
          %v1230 = vld [vmem:[#allocation3 + $0x6b0] sm:$0xff]
          %v1231 = vld [vmem:[#allocation3 + $0x6b8] sm:$0xff]
          %v1232 = vld [vmem:[#allocation3 + $0x6c0] sm:$0xff]
          %v1233 = vld [vmem:[#allocation3 + $0x6c8] sm:$0xff]
          %v1234 = vld [vmem:[#allocation3 + $0x6d0] sm:$0xff]
          %v1235 = vld [vmem:[#allocation3 + $0x6d8] sm:$0xff]
          %v1236 = vld [vmem:[#allocation3 + $0x6e0] sm:$0xff]
          %v1237 = vld [vmem:[#allocation3 + $0x6e8] sm:$0xff]
          %v1238 = vld [vmem:[#allocation3 + $0x6f0] sm:$0xff]
          %v1239 = vld [vmem:[#allocation3 + $0x6f8] sm:$0xff]
          %v1240 = vld [vmem:[#allocation3 + $0x700] sm:$0xff]
          %v1241 = vld [vmem:[#allocation3 + $0x708] sm:$0xff]
          %v1242 = vld [vmem:[#allocation3 + $0x710] sm:$0xff]
          %v1243 = vld [vmem:[#allocation3 + $0x718] sm:$0xff]
          %v1244 = vld [vmem:[#allocation3 + $0x720] sm:$0xff]
          %v1245 = vld [vmem:[#allocation3 + $0x728] sm:$0xff]
          %v1246 = vld [vmem:[#allocation3 + $0x730] sm:$0xff]
          %v1247 = vld [vmem:[#allocation3 + $0x738] sm:$0xff]
          %v1248 = vld [vmem:[#allocation3 + $0x740] sm:$0xff]
          %v1249 = vld [vmem:[#allocation3 + $0x748] sm:$0xff]
          %v1250 = vld [vmem:[#allocation3 + $0x750] sm:$0xff]
          %v1251 = vld [vmem:[#allocation3 + $0x758] sm:$0xff]
          %v1252 = vld [vmem:[#allocation3 + $0x760] sm:$0xff]
          %v1253 = vld [vmem:[#allocation3 + $0x768] sm:$0xff]
          %v1254 = vld [vmem:[#allocation3 + $0x770] sm:$0xff]
          %v1255 = vld [vmem:[#allocation3 + $0x778] sm:$0xff]
          %v1256 = vld [vmem:[#allocation3 + $0x780] sm:$0xff]
          %v1257 = vld [vmem:[#allocation3 + $0x788] sm:$0xff]
          %v1258 = vld [vmem:[#allocation3 + $0x790] sm:$0xff]
          %v1259 = vld [vmem:[#allocation3 + $0x798] sm:$0xff]
          %v1260 = vld [vmem:[#allocation3 + $0x7a0] sm:$0xff]
          %v1261 = vld [vmem:[#allocation3 + $0x7a8] sm:$0xff]
          %v1262 = vld [vmem:[#allocation3 + $0x7b0] sm:$0xff]
          %v1263 = vld [vmem:[#allocation3 + $0x7b8] sm:$0xff]
          %v1264 = vld [vmem:[#allocation3 + $0x7c0] sm:$0xff]
          %v1265 = vld [vmem:[#allocation3 + $0x7c8] sm:$0xff]
          %v1266 = vld [vmem:[#allocation3 + $0x7d0] sm:$0xff]
          %v1267 = vld [vmem:[#allocation3 + $0x7d8] sm:$0xff]
          %v1268 = vld [vmem:[#allocation3 + $0x7e0] sm:$0xff]
          %v1269 = vld [vmem:[#allocation3 + $0x7e8] sm:$0xff]
          %v1270 = vld [vmem:[#allocation3 + $0x7f0] sm:$0xff]
          %v1271 = vld [vmem:[#allocation3 + $0x7f8] sm:$0xff]
          %v1272 = vld [vmem:[#allocation3 + $0x800] sm:$0xff]
          %v1273 = vld [vmem:[#allocation3 + $0x808] sm:$0xff]
          %v1274 = vld [vmem:[#allocation3 + $0x810] sm:$0xff]
          %v1275 = vld [vmem:[#allocation3 + $0x818] sm:$0xff]
          %v1276 = vld [vmem:[#allocation3 + $0x820] sm:$0xff]
          %v1277 = vld [vmem:[#allocation3 + $0x828] sm:$0xff]
          %v1278 = vld [vmem:[#allocation3 + $0x830] sm:$0xff]
          %v1279 = vld [vmem:[#allocation3 + $0x838] sm:$0xff]
          %v1280 = vld [vmem:[#allocation3 + $0x840] sm:$0xff]
          %v1281 = vld [vmem:[#allocation3 + $0x848] sm:$0xff]
          %v1282 = vld [vmem:[#allocation3 + $0x850] sm:$0xff]
          %v1283 = vld [vmem:[#allocation3 + $0x858] sm:$0xff]
          %v1284 = vld [vmem:[#allocation3 + $0x860] sm:$0xff]
          %v1285 = vld [vmem:[#allocation3 + $0x868] sm:$0xff]
          %v1286 = vld [vmem:[#allocation3 + $0x870] sm:$0xff]
          %v1287 = vld [vmem:[#allocation3 + $0x878] sm:$0xff]
          %v1288 = vld [vmem:[#allocation3 + $0x880] sm:$0xff]
          %v1289 = vld [vmem:[#allocation3 + $0x888] sm:$0xff]
          %v1290 = vld [vmem:[#allocation3 + $0x890] sm:$0xff]
          %v1291 = vld [vmem:[#allocation3 + $0x898] sm:$0xff]
          %v1292 = vld [vmem:[#allocation3 + $0x8a0] sm:$0xff]
          %v1293 = vld [vmem:[#allocation3 + $0x8a8] sm:$0xff]
          %v1294 = vld [vmem:[#allocation3 + $0x8b0] sm:$0xff]
          %v1295 = vld [vmem:[#allocation3 + $0x8b8] sm:$0xff]
          %v1296 = vld [vmem:[#allocation3 + $0x8c0] sm:$0xff]
          %v1297 = vld [vmem:[#allocation3 + $0x8c8] sm:$0xff]
          %v1298 = vld [vmem:[#allocation3 + $0x8d0] sm:$0xff]
          %v1299 = vld [vmem:[#allocation3 + $0x8d8] sm:$0xff]
          %v1300 = vld [vmem:[#allocation3 + $0x8e0] sm:$0xff]
          %v1301 = vld [vmem:[#allocation3 + $0x8e8] sm:$0xff]
          %v1302 = vld [vmem:[#allocation3 + $0x8f0] sm:$0xff]
          %v1303 = vld [vmem:[#allocation3 + $0x8f8] sm:$0xff]
          %v1304 = vld [vmem:[#allocation8] sm:$0xff]
          %v1305 = vld [vmem:[#allocation8 + $0x8] sm:$0xff]
          %v1306 = vld [vmem:[#allocation8 + $0x10] sm:$0xff]
          %v1307 = vld [vmem:[#allocation8 + $0x18] sm:$0xff]
          %v1308 = vld [vmem:[#allocation8 + $0x20] sm:$0xff]
          %v1309 = vld [vmem:[#allocation8 + $0x28] sm:$0xff]
          %v1310 = vld [vmem:[#allocation8 + $0x30] sm:$0xff]
          %v1311 = vld [vmem:[#allocation8 + $0x38] sm:$0xff]
          %v1312 = vld [vmem:[#allocation8 + $0x40] sm:$0xff]
          %v1313 = vld [vmem:[#allocation8 + $0x48] sm:$0xff]
          %v1314 = vld [vmem:[#allocation8 + $0x50] sm:$0xff]
          %v1315 = vld [vmem:[#allocation8 + $0x58] sm:$0xff]
          %v1316 = vld [vmem:[#allocation8 + $0x60] sm:$0xff]
          %v1317 = vld [vmem:[#allocation8 + $0x68] sm:$0xff]
          %v1318 = vld [vmem:[#allocation8 + $0x70] sm:$0xff]
          %v1319 = vld [vmem:[#allocation8 + $0x78] sm:$0xff]
          %v1320 = vld [vmem:[#allocation8 + $0x80] sm:$0xff]
          %v1321 = vld [vmem:[#allocation8 + $0x88] sm:$0xff]
          %v1322 = vld [vmem:[#allocation8 + $0x90] sm:$0xff]
          %v1323 = vld [vmem:[#allocation8 + $0x98] sm:$0xff]
          %v1324 = vld [vmem:[#allocation8 + $0xa0] sm:$0xff]
          %v1325 = vld [vmem:[#allocation8 + $0xa8] sm:$0xff]
          %v1326 = vld [vmem:[#allocation8 + $0xb0] sm:$0xff]
          %v1327 = vld [vmem:[#allocation8 + $0xb8] sm:$0xff]
          %v1328 = vld [vmem:[#allocation8 + $0xc0] sm:$0xff]
          %v1329 = vld [vmem:[#allocation8 + $0xc8] sm:$0xff]
          %v1330 = vld [vmem:[#allocation8 + $0xd0] sm:$0xff]
          %v1331 = vld [vmem:[#allocation8 + $0xd8] sm:$0xff]
          %v1332 = vld [vmem:[#allocation8 + $0xe0] sm:$0xff]
          %v1333 = vld [vmem:[#allocation8 + $0xe8] sm:$0xff]
          %v1334 = vld [vmem:[#allocation8 + $0xf0] sm:$0xff]
          %v1335 = vld [vmem:[#allocation8 + $0xf8] sm:$0xff]
          %v1336 = vld [vmem:[#allocation8 + $0x100] sm:$0xff]
          %v1337 = vld [vmem:[#allocation8 + $0x108] sm:$0xff]
          %v1338 = vld [vmem:[#allocation8 + $0x110] sm:$0xff]
          %v1339 = vld [vmem:[#allocation8 + $0x118] sm:$0xff]
          %v1340 = vld [vmem:[#allocation8 + $0x120] sm:$0xff]
          %v1341 = vld [vmem:[#allocation8 + $0x128] sm:$0xff]
          %v1342 = vld [vmem:[#allocation8 + $0x130] sm:$0xff]
          %v1343 = vld [vmem:[#allocation8 + $0x138] sm:$0xff]
          %v1344 = vld [vmem:[#allocation8 + $0x140] sm:$0xff]
          %v1345 = vld [vmem:[#allocation8 + $0x148] sm:$0xff]
          %v1346 = vld [vmem:[#allocation8 + $0x150] sm:$0xff]
          %v1347 = vld [vmem:[#allocation8 + $0x158] sm:$0xff]
          %v1348 = vld [vmem:[#allocation8 + $0x160] sm:$0xff]
          %v1349 = vld [vmem:[#allocation8 + $0x168] sm:$0xff]
          %v1350 = vld [vmem:[#allocation8 + $0x170] sm:$0xff]
          %v1351 = vld [vmem:[#allocation8 + $0x178] sm:$0xff]
          %v1352 = vld [vmem:[#allocation8 + $0x180] sm:$0xff]
          %v1353 = vld [vmem:[#allocation8 + $0x188] sm:$0xff]
          %v1354 = vld [vmem:[#allocation8 + $0x190] sm:$0xff]
          %v1355 = vld [vmem:[#allocation8 + $0x198] sm:$0xff]
          %v1356 = vld [vmem:[#allocation8 + $0x1a0] sm:$0xff]
          %v1357 = vld [vmem:[#allocation8 + $0x1a8] sm:$0xff]
          %v1358 = vld [vmem:[#allocation8 + $0x1b0] sm:$0xff]
          %v1359 = vld [vmem:[#allocation8 + $0x1b8] sm:$0xff]
          %v1360 = vld [vmem:[#allocation8 + $0x1c0] sm:$0xff]
          %v1361 = vld [vmem:[#allocation8 + $0x1c8] sm:$0xff]
          %v1362 = vld [vmem:[#allocation8 + $0x1d0] sm:$0xff]
          %v1363 = vld [vmem:[#allocation8 + $0x1d8] sm:$0xff]
          %v1364 = vld [vmem:[#allocation8 + $0x1e0] sm:$0xff]
          %v1365 = vld [vmem:[#allocation8 + $0x1e8] sm:$0xff]
          %v1366 = vld [vmem:[#allocation8 + $0x1f0] sm:$0xff]
          %v1367 = vld [vmem:[#allocation8 + $0x1f8] sm:$0xff]
          %v1368 = vld [vmem:[#allocation8 + $0x200] sm:$0xff]
          %v1369 = vld [vmem:[#allocation8 + $0x208] sm:$0xff]
          %v1370 = vld [vmem:[#allocation8 + $0x210] sm:$0xff]
          %v1371 = vld [vmem:[#allocation8 + $0x218] sm:$0xff]
          %v1372 = vld [vmem:[#allocation8 + $0x220] sm:$0xff]
          %v1373 = vld [vmem:[#allocation8 + $0x228] sm:$0xff]
          %v1374 = vld [vmem:[#allocation8 + $0x230] sm:$0xff]
          %v1375 = vld [vmem:[#allocation8 + $0x238] sm:$0xff]
          %v1376 = vld [vmem:[#allocation8 + $0x240] sm:$0xff]
          %v1377 = vld [vmem:[#allocation8 + $0x248] sm:$0xff]
          %v1378 = vld [vmem:[#allocation8 + $0x250] sm:$0xff]
          %v1379 = vld [vmem:[#allocation8 + $0x258] sm:$0xff]
          %v1380 = vld [vmem:[#allocation8 + $0x260] sm:$0xff]
          %v1381 = vld [vmem:[#allocation8 + $0x268] sm:$0xff]
          %v1382 = vld [vmem:[#allocation8 + $0x270] sm:$0xff]
          %v1383 = vld [vmem:[#allocation8 + $0x278] sm:$0xff]
          %v1384 = vld [vmem:[#allocation8 + $0x280] sm:$0xff]
          %v1385 = vld [vmem:[#allocation8 + $0x288] sm:$0xff]
          %v1386 = vld [vmem:[#allocation8 + $0x290] sm:$0xff]
          %v1387 = vld [vmem:[#allocation8 + $0x298] sm:$0xff]
          %v1388 = vld [vmem:[#allocation8 + $0x2a0] sm:$0xff]
          %v1389 = vld [vmem:[#allocation8 + $0x2a8] sm:$0xff]
          %v1390 = vld [vmem:[#allocation8 + $0x2b0] sm:$0xff]
          %v1391 = vld [vmem:[#allocation8 + $0x2b8] sm:$0xff]
          %v1392 = vld [vmem:[#allocation8 + $0x2c0] sm:$0xff]
          %v1393 = vld [vmem:[#allocation8 + $0x2c8] sm:$0xff]
          %v1394 = vld [vmem:[#allocation8 + $0x2d0] sm:$0xff]
          %v1395 = vld [vmem:[#allocation8 + $0x2d8] sm:$0xff]
          %v1396 = vld [vmem:[#allocation8 + $0x2e0] sm:$0xff]
          %v1397 = vld [vmem:[#allocation8 + $0x2e8] sm:$0xff]
          %v1398 = vld [vmem:[#allocation8 + $0x2f0] sm:$0xff]
          %v1399 = vld [vmem:[#allocation8 + $0x2f8] sm:$0xff]
          %v1400 = vld [vmem:[#allocation8 + $0x300] sm:$0xff]
          %v1401 = vld [vmem:[#allocation8 + $0x308] sm:$0xff]
          %v1402 = vld [vmem:[#allocation8 + $0x310] sm:$0xff]
          %v1403 = vld [vmem:[#allocation8 + $0x318] sm:$0xff]
          %v1404 = vld [vmem:[#allocation8 + $0x320] sm:$0xff]
          %v1405 = vld [vmem:[#allocation8 + $0x328] sm:$0xff]
          %v1406 = vld [vmem:[#allocation8 + $0x330] sm:$0xff]
          %v1407 = vld [vmem:[#allocation8 + $0x338] sm:$0xff]
          %v1408 = vld [vmem:[#allocation8 + $0x340] sm:$0xff]
          %v1409 = vld [vmem:[#allocation8 + $0x348] sm:$0xff]
          %v1410 = vld [vmem:[#allocation8 + $0x350] sm:$0xff]
          %v1411 = vld [vmem:[#allocation8 + $0x358] sm:$0xff]
          %v1412 = vld [vmem:[#allocation8 + $0x360] sm:$0xff]
          %v1413 = vld [vmem:[#allocation8 + $0x368] sm:$0xff]
          %v1414 = vld [vmem:[#allocation8 + $0x370] sm:$0xff]
          %v1415 = vld [vmem:[#allocation8 + $0x378] sm:$0xff]
          %v1416 = vld [vmem:[#allocation8 + $0x380] sm:$0xff]
          %v1417 = vld [vmem:[#allocation8 + $0x388] sm:$0xff]
          %v1418 = vld [vmem:[#allocation8 + $0x390] sm:$0xff]
          %v1419 = vld [vmem:[#allocation8 + $0x398] sm:$0xff]
          %v1420 = vld [vmem:[#allocation8 + $0x3a0] sm:$0xff]
          %v1421 = vld [vmem:[#allocation8 + $0x3a8] sm:$0xff]
          %v1422 = vld [vmem:[#allocation8 + $0x3b0] sm:$0xff]
          %v1423 = vld [vmem:[#allocation8 + $0x3b8] sm:$0xff]
          %v1424 = vld [vmem:[#allocation8 + $0x3c0] sm:$0xff]
          %v1425 = vld [vmem:[#allocation8 + $0x3c8] sm:$0xff]
          %v1426 = vld [vmem:[#allocation8 + $0x3d0] sm:$0xff]
          %v1427 = vld [vmem:[#allocation8 + $0x3d8] sm:$0xff]
          %v1428 = vld [vmem:[#allocation8 + $0x3e0] sm:$0xff]
          %v1429 = vld [vmem:[#allocation8 + $0x3e8] sm:$0xff]
          %v1430 = vld [vmem:[#allocation8 + $0x3f0] sm:$0xff]
          %v1431 = vld [vmem:[#allocation8 + $0x3f8] sm:$0xff]
          %v1432 = vld [vmem:[#allocation8 + $0x400] sm:$0xff]
          %v1433 = vld [vmem:[#allocation8 + $0x408] sm:$0xff]
          %v1434 = vld [vmem:[#allocation8 + $0x410] sm:$0xff]
          %v1435 = vld [vmem:[#allocation8 + $0x418] sm:$0xff]
          %v1436 = vld [vmem:[#allocation8 + $0x420] sm:$0xff]
          %v1437 = vld [vmem:[#allocation8 + $0x428] sm:$0xff]
          %v1438 = vld [vmem:[#allocation8 + $0x430] sm:$0xff]
          %v1439 = vld [vmem:[#allocation8 + $0x438] sm:$0xff]
          %v1440 = vld [vmem:[#allocation8 + $0x440] sm:$0xff]
          %v1441 = vld [vmem:[#allocation8 + $0x448] sm:$0xff]
          %v1442 = vld [vmem:[#allocation8 + $0x450] sm:$0xff]
          %v1443 = vld [vmem:[#allocation8 + $0x458] sm:$0xff]
          %v1444 = vld [vmem:[#allocation8 + $0x460] sm:$0xff]
          %v1445 = vld [vmem:[#allocation8 + $0x468] sm:$0xff]
          %v1446 = vld [vmem:[#allocation8 + $0x470] sm:$0xff]
          %v1447 = vld [vmem:[#allocation8 + $0x478] sm:$0xff]
          %1448 = vmatprep.subr.mxu0 0.0
          %1449 = vmatpush1.msra.mxu0 %v1304
          %1450 = vmatprep.subr.mxu0 0.0
          %1451 = vmatpush1.msra.mxu0 %v1305
          %1452 = vmatprep.subr.mxu0 0.0
          %1453 = vmatpush1.msra.mxu0 %v1306
          %1454 = vmatprep.subr.mxu0 0.0
          %1455 = vmatpush1.msra.mxu0 %v1307
          %1456 = vmatprep.subr.mxu0 0.0
          %1457 = vmatpush1.msra.mxu0 %v1308
          %1458 = vmatprep.subr.mxu0 0.0
          %1459 = vmatpush1.msra.mxu0 %v1309
          %1460 = vmatprep.subr.mxu0 0.0
          %1461 = vmatpush1.msra.mxu0 %v1310
          %1462 = vmatprep.subr.mxu0 0.0
          %1463 = vmatpush1.msra.mxu0 %v1311
          %1464 = vmatprep.subr.mxu0 0.0
          %1465 = vmatpush1.msra.mxu0 %v1312
          %1466 = vmatprep.subr.mxu0 0.0
          %1467 = vmatpush1.msra.mxu0 %v1313
          %1468 = vmatprep.subr.mxu0 0.0
          %1469 = vmatpush1.msra.mxu0 %v1314
          %1470 = vmatprep.subr.mxu0 0.0
          %1471 = vmatpush1.msra.mxu0 %v1315
          %1472 = vmatprep.subr.mxu0 0.0
          %1473 = vmatpush1.msra.mxu0 %v1316
          %1474 = vmatprep.subr.mxu0 0.0
          %1475 = vmatpush1.msra.mxu0 %v1317
          %1476 = vmatprep.subr.mxu0 0.0
          %1477 = vmatpush1.msra.mxu0 %v1318
          %1478 = vmatprep.subr.mxu0 0.0
          %1479 = vmatpush1.msra.mxu0 %v1319
          %1480 = vmatprep.subr.mxu0 0.0
          %1481 = vmatpush1.msra.mxu0 %v1320
          %1482 = vmatprep.subr.mxu0 0.0
          %1483 = vmatpush1.msra.mxu0 %v1321
          %1484 = vmatprep.subr.mxu0 0.0
          %1485 = vmatpush1.msra.mxu0 %v1322
          %1486 = vmatprep.subr.mxu0 0.0
          %1487 = vmatpush1.msra.mxu0 %v1323
          %1488 = vmatprep.subr.mxu0 0.0
          %1489 = vmatpush1.msra.mxu0 %v1324
          %1490 = vmatprep.subr.mxu0 0.0
          %1491 = vmatpush1.msra.mxu0 %v1325
          %1492 = vmatprep.subr.mxu0 0.0
          %1493 = vmatpush1.msra.mxu0 %v1326
          %1494 = vmatprep.subr.mxu0 0.0
          %1495 = vmatpush1.msra.mxu0 %v1327
          %1496 = vmatprep.subr.mxu0 0.0
          %1497 = vmatpush1.msra.mxu0 %v1328
          %1498 = vmatprep.subr.mxu0 0.0
          %1499 = vmatpush1.msra.mxu0 %v1329
          %1500 = vmatprep.subr.mxu0 0.0
          %1501 = vmatpush1.msra.mxu0 %v1330
          %1502 = vmatprep.subr.mxu0 0.0
          %1503 = vmatpush1.msra.mxu0 %v1331
          %1504 = vmatprep.subr.mxu0 0.0
          %1505 = vmatpush1.msra.mxu0 %v1332
          %1506 = vmatprep.subr.mxu0 0.0
          %1507 = vmatpush1.msra.mxu0 %v1333
          %1508 = vmatprep.subr.mxu0 0.0
          %1509 = vmatpush1.msra.mxu0 %v1334
          %1510 = vmatprep.subr.mxu0 0.0
          %1511 = vmatpush1.msra.mxu0 %v1335
          %1512 = vmatprep.mubr.f32.mxu0 %v1017
          %1513 = vmatmul.mubr.f32.gmra.mrb[0].mxu0 %v1016
          %v1514 = vpop.f32.mrb[0].mxu0
          %v1515 = vadd.f32 0.0, %v1514
          %v1516 = vpop.f32.mrb[0].mxu0
          %1517 = vmatprep.mubr.f32.mxu0 %v1026
          %1518 = vmatmul.mubr.f32.gmra.mrb[0].mxu0 %v1025
          %v1519 = vpop.f32.mrb[0].mxu0
          %v1520 = vadd.f32 0.0, %v1519
          %v1521 = vpop.f32.mrb[0].mxu0
          %1522 = vmatprep.mubr.f32.mxu0 %v1035
          %1523 = vmatmul.mubr.f32.gmra.mrb[0].mxu0 %v1034
          %v1524 = vpop.f32.mrb[0].mxu0
          %v1525 = vadd.f32 0.0, %v1524
          %v1526 = vpop.f32.mrb[0].mxu0
          %1527 = vmatprep.mubr.f32.mxu0 %v1044
          %1528 = vmatmul.mubr.f32.gmra.mrb[0].mxu0 %v1043
          %v1529 = vpop.f32.mrb[0].mxu0
          %v1530 = vadd.f32 0.0, %v1529
          %v1531 = vpop.f32.mrb[0].mxu0
          %1532 = vmatprep.mubr.f32.mxu0 %v1053
          %1533 = vmatmul.mubr.f32.gmra.mrb[0].mxu0 %v1052
          %v1534 = vpop.f32.mrb[0].mxu0
          %v1535 = vadd.f32 0.0, %v1534
          %v1536 = vpop.f32.mrb[0].mxu0
          %1537 = vmatprep.mubr.f32.mxu0 %v1062
          %1538 = vmatmul.mubr.f32.gmra.mrb[0].mxu0 %v1061
          %v1539 = vpop.f32.mrb[0].mxu0
          %v1540 = vadd.f32 0.0, %v1539
          %v1541 = vpop.f32.mrb[0].mxu0
          %1542 = vmatprep.mubr.f32.mxu0 %v1071
          %1543 = vmatmul.mubr.f32.gmra.mrb[0].mxu0 %v1070
          %v1544 = vpop.f32.mrb[0].mxu0
          %v1545 = vadd.f32 0.0, %v1544
          %v1546 = vpop.f32.mrb[0].mxu0
          %1547 = vmatprep.mubr.f32.mxu0 %v1080
          %1548 = vmatmul.mubr.f32.gmra.mrb[0].mxu0 %v1079
          %v1549 = vpop.f32.mrb[0].mxu0
          %v1550 = vadd.f32 0.0, %v1549
          %v1551 = vpop.f32.mrb[0].mxu0
          %1552 = vmatprep.mubr.f32.mxu0 %v1089
          %1553 = vmatmul.mubr.f32.gmra.mrb[0].mxu0 %v1088
          %v1554 = vpop.f32.mrb[0].mxu0
          %v1555 = vadd.f32 0.0, %v1554
          %v1556 = vpop.f32.mrb[0].mxu0
          %1557 = vmatprep.mubr.f32.mxu0 %v1098
          %1558 = vmatmul.mubr.f32.gmra.mrb[0].mxu0 %v1097
          %v1559 = vpop.f32.mrb[0].mxu0
          %v1560 = vadd.f32 0.0, %v1559
          %v1561 = vpop.f32.mrb[0].mxu0
          %1562 = vmatprep.mubr.f32.mxu0 %v1107
          %1563 = vmatmul.mubr.f32.gmra.mrb[0].mxu0 %v1106
          %v1564 = vpop.f32.mrb[0].mxu0
          %v1565 = vadd.f32 0.0, %v1564
          %v1566 = vpop.f32.mrb[0].mxu0
          %1567 = vmatprep.mubr.f32.mxu0 %v1116
          %1568 = vmatmul.mubr.f32.gmra.mrb[0].mxu0 %v1115
          %v1569 = vpop.f32.mrb[0].mxu0
          %v1570 = vadd.f32 0.0, %v1569
          %v1571 = vpop.f32.mrb[0].mxu0
          %1572 = vmatprep.mubr.f32.mxu0 %v1125
          %1573 = vmatmul.mubr.f32.gmra.mrb[0].mxu0 %v1124
          %v1574 = vpop.f32.mrb[0].mxu0
          %v1575 = vadd.f32 0.0, %v1574
          %v1576 = vpop.f32.mrb[0].mxu0
          %1577 = vmatprep.mubr.f32.mxu0 %v1134
          %1578 = vmatmul.mubr.f32.gmra.mrb[0].mxu0 %v1133
          %v1579 = vpop.f32.mrb[0].mxu0
          %v1580 = vadd.f32 0.0, %v1579
          %v1581 = vpop.f32.mrb[0].mxu0
          %1582 = vmatprep.mubr.f32.mxu0 %v1143
          %1583 = vmatmul.mubr.f32.gmra.mrb[0].mxu0 %v1142
          %v1584 = vpop.f32.mrb[0].mxu0
          %v1585 = vadd.f32 0.0, %v1584
          %v1586 = vpop.f32.mrb[0].mxu0
          %1587 = vmatprep.mubr.f32.mxu0 %v1152
          %1588 = vmatmul.mubr.f32.gmra.mrb[0].mxu0 %v1151
          %v1589 = vpop.f32.mrb[0].mxu0
          %v1590 = vadd.f32 0.0, %v1589
          %v1591 = vpop.f32.mrb[0].mxu0
          %1592 = vmatprep.mubr.f32.mxu0 %v1161
          %1593 = vmatmul.mubr.f32.gmra.mrb[0].mxu0 %v1160
          %v1594 = vpop.f32.mrb[0].mxu0
          %v1595 = vadd.f32 0.0, %v1594
          %v1596 = vpop.f32.mrb[0].mxu0
          %1597 = vmatprep.mubr.f32.mxu0 %v1170
          %1598 = vmatmul.mubr.f32.gmra.mrb[0].mxu0 %v1169
          %v1599 = vpop.f32.mrb[0].mxu0
          %v1600 = vadd.f32 0.0, %v1599
          %v1601 = vpop.f32.mrb[0].mxu0
          %1602 = vmatprep.mubr.f32.mxu0 %v1179
          %1603 = vmatmul.mubr.f32.gmra.mrb[0].mxu0 %v1178
          %v1604 = vpop.f32.mrb[0].mxu0
          %v1605 = vadd.f32 0.0, %v1604
          %v1606 = vpop.f32.mrb[0].mxu0
          %1607 = vmatprep.mubr.f32.mxu0 %v1188
          %1608 = vmatmul.mubr.f32.gmra.mrb[0].mxu0 %v1187
          %v1609 = vpop.f32.mrb[0].mxu0
          %v1610 = vadd.f32 0.0, %v1609
          %v1611 = vpop.f32.mrb[0].mxu0
          %1612 = vmatprep.mubr.f32.mxu0 %v1197
          %1613 = vmatmul.mubr.f32.gmra.mrb[0].mxu0 %v1196
          %v1614 = vpop.f32.mrb[0].mxu0
          %v1615 = vadd.f32 0.0, %v1614
          %v1616 = vpop.f32.mrb[0].mxu0
          %1617 = vmatprep.mubr.f32.mxu0 %v1206
          %1618 = vmatmul.mubr.f32.gmra.mrb[0].mxu0 %v1205
          %v1619 = vpop.f32.mrb[0].mxu0
          %v1620 = vadd.f32 0.0, %v1619
          %v1621 = vpop.f32.mrb[0].mxu0
          %1622 = vmatprep.mubr.f32.mxu0 %v1215
          %1623 = vmatmul.mubr.f32.gmra.mrb[0].mxu0 %v1214
          %v1624 = vpop.f32.mrb[0].mxu0
          %v1625 = vadd.f32 0.0, %v1624
          %v1626 = vpop.f32.mrb[0].mxu0
          %1627 = vmatprep.mubr.f32.mxu0 %v1224
          %1628 = vmatmul.mubr.f32.gmra.mrb[0].mxu0 %v1223
          %v1629 = vpop.f32.mrb[0].mxu0
          %v1630 = vadd.f32 0.0, %v1629
          %v1631 = vpop.f32.mrb[0].mxu0
          %1632 = vmatprep.mubr.f32.mxu0 %v1233
          %1633 = vmatmul.mubr.f32.gmra.mrb[0].mxu0 %v1232
          %v1634 = vpop.f32.mrb[0].mxu0
          %v1635 = vadd.f32 0.0, %v1634
          %v1636 = vpop.f32.mrb[0].mxu0
          %1637 = vmatprep.mubr.f32.mxu0 %v1242
          %1638 = vmatmul.mubr.f32.gmra.mrb[0].mxu0 %v1241
          %v1639 = vpop.f32.mrb[0].mxu0
          %v1640 = vadd.f32 0.0, %v1639
          %v1641 = vpop.f32.mrb[0].mxu0
          %1642 = vmatprep.mubr.f32.mxu0 %v1251
          %1643 = vmatmul.mubr.f32.gmra.mrb[0].mxu0 %v1250
          %v1644 = vpop.f32.mrb[0].mxu0
          %v1645 = vadd.f32 0.0, %v1644
          %v1646 = vpop.f32.mrb[0].mxu0
          %1647 = vmatprep.mubr.f32.mxu0 %v1260
          %1648 = vmatmul.mubr.f32.gmra.mrb[0].mxu0 %v1259
          %v1649 = vpop.f32.mrb[0].mxu0
          %v1650 = vadd.f32 0.0, %v1649
          %v1651 = vpop.f32.mrb[0].mxu0
          %1652 = vmatprep.mubr.f32.mxu0 %v1269
          %1653 = vmatmul.mubr.f32.gmra.mrb[0].mxu0 %v1268
          %v1654 = vpop.f32.mrb[0].mxu0
          %v1655 = vadd.f32 0.0, %v1654
          %v1656 = vpop.f32.mrb[0].mxu0
          %1657 = vmatprep.mubr.f32.mxu0 %v1278
          %1658 = vmatmul.mubr.f32.gmra.mrb[0].mxu0 %v1277
          %v1659 = vpop.f32.mrb[0].mxu0
          %v1660 = vadd.f32 0.0, %v1659
          %v1661 = vpop.f32.mrb[0].mxu0
          %1662 = vmatprep.mubr.f32.mxu0 %v1287
          %1663 = vmatmul.mubr.f32.gmra.mrb[0].mxu0 %v1286
          %v1664 = vpop.f32.mrb[0].mxu0
          %v1665 = vadd.f32 0.0, %v1664
          %v1666 = vpop.f32.mrb[0].mxu0
          %1667 = vmatprep.mubr.f32.mxu0 %v1296
          %1668 = vmatmul.mubr.f32.gmra.mrb[0].mxu0 %v1295
          %v1669 = vpop.f32.mrb[0].mxu0
          %v1670 = vadd.f32 0.0, %v1669
          %v1671 = vpop.f32.mrb[0].mxu0
          %1672 = vdwg.mxu0
          %1673 = vmatprep.subr.mxu0 0.0
          %1674 = vmatpush1.msra.mxu0 %v1336
          %1675 = vmatprep.subr.mxu0 0.0
          %1676 = vmatpush1.msra.mxu0 %v1337
          %1677 = vmatprep.subr.mxu0 0.0
          %1678 = vmatpush1.msra.mxu0 %v1338
          %1679 = vmatprep.subr.mxu0 0.0
          %1680 = vmatpush1.msra.mxu0 %v1339
          %1681 = vmatprep.subr.mxu0 0.0
          %1682 = vmatpush1.msra.mxu0 %v1340
          %1683 = vmatprep.subr.mxu0 0.0
          %1684 = vmatpush1.msra.mxu0 %v1341
          %1685 = vmatprep.subr.mxu0 0.0
          %1686 = vmatpush1.msra.mxu0 %v1342
          %1687 = vmatprep.subr.mxu0 0.0
          %1688 = vmatpush1.msra.mxu0 %v1343
          %1689 = vmatprep.subr.mxu0 0.0
          %1690 = vmatpush1.msra.mxu0 %v1344
          %1691 = vmatprep.subr.mxu0 0.0
          %1692 = vmatpush1.msra.mxu0 %v1345
          %1693 = vmatprep.subr.mxu0 0.0
          %1694 = vmatpush1.msra.mxu0 %v1346
          %1695 = vmatprep.subr.mxu0 0.0
          %1696 = vmatpush1.msra.mxu0 %v1347
          %1697 = vmatprep.subr.mxu0 0.0
          %1698 = vmatpush1.msra.mxu0 %v1348
          %1699 = vmatprep.subr.mxu0 0.0
          %1700 = vmatpush1.msra.mxu0 %v1349
          %1701 = vmatprep.subr.mxu0 0.0
          %1702 = vmatpush1.msra.mxu0 %v1350
          %1703 = vmatprep.subr.mxu0 0.0
          %1704 = vmatpush1.msra.mxu0 %v1351
          %1705 = vmatprep.subr.mxu0 0.0
          %1706 = vmatpush1.msra.mxu0 %v1352
          %1707 = vmatprep.subr.mxu0 0.0
          %1708 = vmatpush1.msra.mxu0 %v1353
          %1709 = vmatprep.subr.mxu0 0.0
          %1710 = vmatpush1.msra.mxu0 %v1354
          %1711 = vmatprep.subr.mxu0 0.0
          %1712 = vmatpush1.msra.mxu0 %v1355
          %1713 = vmatprep.subr.mxu0 0.0
          %1714 = vmatpush1.msra.mxu0 %v1356
          %1715 = vmatprep.subr.mxu0 0.0
          %1716 = vmatpush1.msra.mxu0 %v1357
          %1717 = vmatprep.subr.mxu0 0.0
          %1718 = vmatpush1.msra.mxu0 %v1358
          %1719 = vmatprep.subr.mxu0 0.0
          %1720 = vmatpush1.msra.mxu0 %v1359
          %1721 = vmatprep.subr.mxu0 0.0
          %1722 = vmatpush1.msra.mxu0 %v1360
          %1723 = vmatprep.subr.mxu0 0.0
          %1724 = vmatpush1.msra.mxu0 %v1361
          %1725 = vmatprep.subr.mxu0 0.0
          %1726 = vmatpush1.msra.mxu0 %v1362
          %1727 = vmatprep.subr.mxu0 0.0
          %1728 = vmatpush1.msra.mxu0 %v1363
          %1729 = vmatprep.subr.mxu0 0.0
          %1730 = vmatpush1.msra.mxu0 %v1364
          %1731 = vmatprep.subr.mxu0 0.0
          %1732 = vmatpush1.msra.mxu0 %v1365
          %1733 = vmatprep.subr.mxu0 0.0
          %1734 = vmatpush1.msra.mxu0 %v1366
          %1735 = vmatprep.subr.mxu0 0.0
          %1736 = vmatpush1.msra.mxu0 %v1367
          %1737 = vmatprep.mubr.f32.mxu0 %v1019
          %1738 = vmatmul.mubr.f32.gmra.mrb[0].mxu0 %v1018
          %v1739 = vpop.f32.mrb[0].mxu0
          %v1740 = vadd.f32 %v1515, %v1739
          %v1741 = vpop.f32.mrb[0].mxu0
          %1742 = vmatprep.mubr.f32.mxu0 %v1028
          %1743 = vmatmul.mubr.f32.gmra.mrb[0].mxu0 %v1027
          %v1744 = vpop.f32.mrb[0].mxu0
          %v1745 = vadd.f32 %v1520, %v1744
          %v1746 = vpop.f32.mrb[0].mxu0
          %1747 = vmatprep.mubr.f32.mxu0 %v1037
          %1748 = vmatmul.mubr.f32.gmra.mrb[0].mxu0 %v1036
          %v1749 = vpop.f32.mrb[0].mxu0
          %v1750 = vadd.f32 %v1525, %v1749
          %v1751 = vpop.f32.mrb[0].mxu0
          %1752 = vmatprep.mubr.f32.mxu0 %v1046
          %1753 = vmatmul.mubr.f32.gmra.mrb[0].mxu0 %v1045
          %v1754 = vpop.f32.mrb[0].mxu0
          %v1755 = vadd.f32 %v1530, %v1754
          %v1756 = vpop.f32.mrb[0].mxu0
          %1757 = vmatprep.mubr.f32.mxu0 %v1055
          %1758 = vmatmul.mubr.f32.gmra.mrb[0].mxu0 %v1054
          %v1759 = vpop.f32.mrb[0].mxu0
          %v1760 = vadd.f32 %v1535, %v1759
          %v1761 = vpop.f32.mrb[0].mxu0
          %1762 = vmatprep.mubr.f32.mxu0 %v1064
          %1763 = vmatmul.mubr.f32.gmra.mrb[0].mxu0 %v1063
          %v1764 = vpop.f32.mrb[0].mxu0
          %v1765 = vadd.f32 %v1540, %v1764
          %v1766 = vpop.f32.mrb[0].mxu0
          %1767 = vmatprep.mubr.f32.mxu0 %v1073
          %1768 = vmatmul.mubr.f32.gmra.mrb[0].mxu0 %v1072
          %v1769 = vpop.f32.mrb[0].mxu0
          %v1770 = vadd.f32 %v1545, %v1769
          %v1771 = vpop.f32.mrb[0].mxu0
          %1772 = vmatprep.mubr.f32.mxu0 %v1082
          %1773 = vmatmul.mubr.f32.gmra.mrb[0].mxu0 %v1081
          %v1774 = vpop.f32.mrb[0].mxu0
          %v1775 = vadd.f32 %v1550, %v1774
          %v1776 = vpop.f32.mrb[0].mxu0
          %1777 = vmatprep.mubr.f32.mxu0 %v1091
          %1778 = vmatmul.mubr.f32.gmra.mrb[0].mxu0 %v1090
          %v1779 = vpop.f32.mrb[0].mxu0
          %v1780 = vadd.f32 %v1555, %v1779
          %v1781 = vpop.f32.mrb[0].mxu0
          %1782 = vmatprep.mubr.f32.mxu0 %v1100
          %1783 = vmatmul.mubr.f32.gmra.mrb[0].mxu0 %v1099
          %v1784 = vpop.f32.mrb[0].mxu0
          %v1785 = vadd.f32 %v1560, %v1784
          %v1786 = vpop.f32.mrb[0].mxu0
          %1787 = vmatprep.mubr.f32.mxu0 %v1109
          %1788 = vmatmul.mubr.f32.gmra.mrb[0].mxu0 %v1108
          %v1789 = vpop.f32.mrb[0].mxu0
          %v1790 = vadd.f32 %v1565, %v1789
          %v1791 = vpop.f32.mrb[0].mxu0
          %1792 = vmatprep.mubr.f32.mxu0 %v1118
          %1793 = vmatmul.mubr.f32.gmra.mrb[0].mxu0 %v1117
          %v1794 = vpop.f32.mrb[0].mxu0
          %v1795 = vadd.f32 %v1570, %v1794
          %v1796 = vpop.f32.mrb[0].mxu0
          %1797 = vmatprep.mubr.f32.mxu0 %v1127
          %1798 = vmatmul.mubr.f32.gmra.mrb[0].mxu0 %v1126
          %v1799 = vpop.f32.mrb[0].mxu0
          %v1800 = vadd.f32 %v1575, %v1799
          %v1801 = vpop.f32.mrb[0].mxu0
          %1802 = vmatprep.mubr.f32.mxu0 %v1136
          %1803 = vmatmul.mubr.f32.gmra.mrb[0].mxu0 %v1135
          %v1804 = vpop.f32.mrb[0].mxu0
          %v1805 = vadd.f32 %v1580, %v1804
          %v1806 = vpop.f32.mrb[0].mxu0
          %1807 = vmatprep.mubr.f32.mxu0 %v1145
          %1808 = vmatmul.mubr.f32.gmra.mrb[0].mxu0 %v1144
          %v1809 = vpop.f32.mrb[0].mxu0
          %v1810 = vadd.f32 %v1585, %v1809
          %v1811 = vpop.f32.mrb[0].mxu0
          %1812 = vmatprep.mubr.f32.mxu0 %v1154
          %1813 = vmatmul.mubr.f32.gmra.mrb[0].mxu0 %v1153
          %v1814 = vpop.f32.mrb[0].mxu0
          %v1815 = vadd.f32 %v1590, %v1814
          %v1816 = vpop.f32.mrb[0].mxu0
          %1817 = vmatprep.mubr.f32.mxu0 %v1163
          %1818 = vmatmul.mubr.f32.gmra.mrb[0].mxu0 %v1162
          %v1819 = vpop.f32.mrb[0].mxu0
          %v1820 = vadd.f32 %v1595, %v1819
          %v1821 = vpop.f32.mrb[0].mxu0
          %1822 = vmatprep.mubr.f32.mxu0 %v1172
          %1823 = vmatmul.mubr.f32.gmra.mrb[0].mxu0 %v1171
          %v1824 = vpop.f32.mrb[0].mxu0
          %v1825 = vadd.f32 %v1600, %v1824
          %v1826 = vpop.f32.mrb[0].mxu0
          %1827 = vmatprep.mubr.f32.mxu0 %v1181
          %1828 = vmatmul.mubr.f32.gmra.mrb[0].mxu0 %v1180
          %v1829 = vpop.f32.mrb[0].mxu0
          %v1830 = vadd.f32 %v1605, %v1829
          %v1831 = vpop.f32.mrb[0].mxu0
          %1832 = vmatprep.mubr.f32.mxu0 %v1190
          %1833 = vmatmul.mubr.f32.gmra.mrb[0].mxu0 %v1189
          %v1834 = vpop.f32.mrb[0].mxu0
          %v1835 = vadd.f32 %v1610, %v1834
          %v1836 = vpop.f32.mrb[0].mxu0
          %1837 = vmatprep.mubr.f32.mxu0 %v1199
          %1838 = vmatmul.mubr.f32.gmra.mrb[0].mxu0 %v1198
          %v1839 = vpop.f32.mrb[0].mxu0
          %v1840 = vadd.f32 %v1615, %v1839
          %v1841 = vpop.f32.mrb[0].mxu0
          %1842 = vmatprep.mubr.f32.mxu0 %v1208
          %1843 = vmatmul.mubr.f32.gmra.mrb[0].mxu0 %v1207
          %v1844 = vpop.f32.mrb[0].mxu0
          %v1845 = vadd.f32 %v1620, %v1844
          %v1846 = vpop.f32.mrb[0].mxu0
          %1847 = vmatprep.mubr.f32.mxu0 %v1217
          %1848 = vmatmul.mubr.f32.gmra.mrb[0].mxu0 %v1216
          %v1849 = vpop.f32.mrb[0].mxu0
          %v1850 = vadd.f32 %v1625, %v1849
          %v1851 = vpop.f32.mrb[0].mxu0
          %1852 = vmatprep.mubr.f32.mxu0 %v1226
          %1853 = vmatmul.mubr.f32.gmra.mrb[0].mxu0 %v1225
          %v1854 = vpop.f32.mrb[0].mxu0
          %v1855 = vadd.f32 %v1630, %v1854
          %v1856 = vpop.f32.mrb[0].mxu0
          %1857 = vmatprep.mubr.f32.mxu0 %v1235
          %1858 = vmatmul.mubr.f32.gmra.mrb[0].mxu0 %v1234
          %v1859 = vpop.f32.mrb[0].mxu0
          %v1860 = vadd.f32 %v1635, %v1859
          %v1861 = vpop.f32.mrb[0].mxu0
          %1862 = vmatprep.mubr.f32.mxu0 %v1244
          %1863 = vmatmul.mubr.f32.gmra.mrb[0].mxu0 %v1243
          %v1864 = vpop.f32.mrb[0].mxu0
          %v1865 = vadd.f32 %v1640, %v1864
          %v1866 = vpop.f32.mrb[0].mxu0
          %1867 = vmatprep.mubr.f32.mxu0 %v1253
          %1868 = vmatmul.mubr.f32.gmra.mrb[0].mxu0 %v1252
          %v1869 = vpop.f32.mrb[0].mxu0
          %v1870 = vadd.f32 %v1645, %v1869
          %v1871 = vpop.f32.mrb[0].mxu0
          %1872 = vmatprep.mubr.f32.mxu0 %v1262
          %1873 = vmatmul.mubr.f32.gmra.mrb[0].mxu0 %v1261
          %v1874 = vpop.f32.mrb[0].mxu0
          %v1875 = vadd.f32 %v1650, %v1874
          %v1876 = vpop.f32.mrb[0].mxu0
          %1877 = vmatprep.mubr.f32.mxu0 %v1271
          %1878 = vmatmul.mubr.f32.gmra.mrb[0].mxu0 %v1270
          %v1879 = vpop.f32.mrb[0].mxu0
          %v1880 = vadd.f32 %v1655, %v1879
          %v1881 = vpop.f32.mrb[0].mxu0
          %1882 = vmatprep.mubr.f32.mxu0 %v1280
          %1883 = vmatmul.mubr.f32.gmra.mrb[0].mxu0 %v1279
          %v1884 = vpop.f32.mrb[0].mxu0
          %v1885 = vadd.f32 %v1660, %v1884
          %v1886 = vpop.f32.mrb[0].mxu0
          %1887 = vmatprep.mubr.f32.mxu0 %v1289
          %1888 = vmatmul.mubr.f32.gmra.mrb[0].mxu0 %v1288
          %v1889 = vpop.f32.mrb[0].mxu0
          %v1890 = vadd.f32 %v1665, %v1889
          %v1891 = vpop.f32.mrb[0].mxu0
          %1892 = vmatprep.mubr.f32.mxu0 %v1298
          %1893 = vmatmul.mubr.f32.gmra.mrb[0].mxu0 %v1297
          %v1894 = vpop.f32.mrb[0].mxu0
          %v1895 = vadd.f32 %v1670, %v1894
          %v1896 = vpop.f32.mrb[0].mxu0
          %1897 = vdwg.mxu0
          %1898 = vmatprep.subr.mxu0 0.0
          %1899 = vmatpush1.msra.mxu0 %v1368
          %1900 = vmatprep.subr.mxu0 0.0
          %1901 = vmatpush1.msra.mxu0 %v1369
          %1902 = vmatprep.subr.mxu0 0.0
          %1903 = vmatpush1.msra.mxu0 %v1370
          %1904 = vmatprep.subr.mxu0 0.0
          %1905 = vmatpush1.msra.mxu0 %v1371
          %1906 = vmatprep.subr.mxu0 0.0
          %1907 = vmatpush1.msra.mxu0 %v1372
          %1908 = vmatprep.subr.mxu0 0.0
          %1909 = vmatpush1.msra.mxu0 %v1373
          %1910 = vmatprep.subr.mxu0 0.0
          %1911 = vmatpush1.msra.mxu0 %v1374
          %1912 = vmatprep.subr.mxu0 0.0
          %1913 = vmatpush1.msra.mxu0 %v1375
          %1914 = vmatprep.subr.mxu0 0.0
          %1915 = vmatpush1.msra.mxu0 %v1376
          %1916 = vmatprep.subr.mxu0 0.0
          %1917 = vmatpush1.msra.mxu0 %v1377
          %1918 = vmatprep.subr.mxu0 0.0
          %1919 = vmatpush1.msra.mxu0 %v1378
          %1920 = vmatprep.subr.mxu0 0.0
          %1921 = vmatpush1.msra.mxu0 %v1379
          %1922 = vmatprep.subr.mxu0 0.0
          %1923 = vmatpush1.msra.mxu0 %v1380
          %1924 = vmatprep.subr.mxu0 0.0
          %1925 = vmatpush1.msra.mxu0 %v1381
          %1926 = vmatprep.subr.mxu0 0.0
          %1927 = vmatpush1.msra.mxu0 %v1382
          %1928 = vmatprep.subr.mxu0 0.0
          %1929 = vmatpush1.msra.mxu0 %v1383
          %1930 = vmatprep.subr.mxu0 0.0
          %1931 = vmatpush1.msra.mxu0 %v1384
          %1932 = vmatprep.subr.mxu0 0.0
          %1933 = vmatpush1.msra.mxu0 %v1385
          %1934 = vmatprep.subr.mxu0 0.0
          %1935 = vmatpush1.msra.mxu0 %v1386
          %1936 = vmatprep.subr.mxu0 0.0
          %1937 = vmatpush1.msra.mxu0 %v1387
          %1938 = vmatprep.subr.mxu0 0.0
          %1939 = vmatpush1.msra.mxu0 %v1388
          %1940 = vmatprep.subr.mxu0 0.0
          %1941 = vmatpush1.msra.mxu0 %v1389
          %1942 = vmatprep.subr.mxu0 0.0
          %1943 = vmatpush1.msra.mxu0 %v1390
          %1944 = vmatprep.subr.mxu0 0.0
          %1945 = vmatpush1.msra.mxu0 %v1391
          %1946 = vmatprep.subr.mxu0 0.0
          %1947 = vmatpush1.msra.mxu0 %v1392
          %1948 = vmatprep.subr.mxu0 0.0
          %1949 = vmatpush1.msra.mxu0 %v1393
          %1950 = vmatprep.subr.mxu0 0.0
          %1951 = vmatpush1.msra.mxu0 %v1394
          %1952 = vmatprep.subr.mxu0 0.0
          %1953 = vmatpush1.msra.mxu0 %v1395
          %1954 = vmatprep.subr.mxu0 0.0
          %1955 = vmatpush1.msra.mxu0 %v1396
          %1956 = vmatprep.subr.mxu0 0.0
          %1957 = vmatpush1.msra.mxu0 %v1397
          %1958 = vmatprep.subr.mxu0 0.0
          %1959 = vmatpush1.msra.mxu0 %v1398
          %1960 = vmatprep.subr.mxu0 0.0
          %1961 = vmatpush1.msra.mxu0 %v1399
          %1962 = vmatprep.mubr.f32.mxu0 %v1021
          %1963 = vmatmul.mubr.f32.gmra.mrb[0].mxu0 %v1020
          %v1964 = vpop.f32.mrb[0].mxu0
          %v1965 = vadd.f32 %v1740, %v1964
          %v1966 = vpop.f32.mrb[0].mxu0
          %1967 = vmatprep.mubr.f32.mxu0 %v1030
          %1968 = vmatmul.mubr.f32.gmra.mrb[0].mxu0 %v1029
          %v1969 = vpop.f32.mrb[0].mxu0
          %v1970 = vadd.f32 %v1745, %v1969
          %v1971 = vpop.f32.mrb[0].mxu0
          %1972 = vmatprep.mubr.f32.mxu0 %v1039
          %1973 = vmatmul.mubr.f32.gmra.mrb[0].mxu0 %v1038
          %v1974 = vpop.f32.mrb[0].mxu0
          %v1975 = vadd.f32 %v1750, %v1974
          %v1976 = vpop.f32.mrb[0].mxu0
          %1977 = vmatprep.mubr.f32.mxu0 %v1048
          %1978 = vmatmul.mubr.f32.gmra.mrb[0].mxu0 %v1047
          %v1979 = vpop.f32.mrb[0].mxu0
          %v1980 = vadd.f32 %v1755, %v1979
          %v1981 = vpop.f32.mrb[0].mxu0
          %1982 = vmatprep.mubr.f32.mxu0 %v1057
          %1983 = vmatmul.mubr.f32.gmra.mrb[0].mxu0 %v1056
          %v1984 = vpop.f32.mrb[0].mxu0
          %v1985 = vadd.f32 %v1760, %v1984
          %v1986 = vpop.f32.mrb[0].mxu0
          %1987 = vmatprep.mubr.f32.mxu0 %v1066
          %1988 = vmatmul.mubr.f32.gmra.mrb[0].mxu0 %v1065
          %v1989 = vpop.f32.mrb[0].mxu0
          %v1990 = vadd.f32 %v1765, %v1989
          %v1991 = vpop.f32.mrb[0].mxu0
          %1992 = vmatprep.mubr.f32.mxu0 %v1075
          %1993 = vmatmul.mubr.f32.gmra.mrb[0].mxu0 %v1074
          %v1994 = vpop.f32.mrb[0].mxu0
          %v1995 = vadd.f32 %v1770, %v1994
          %v1996 = vpop.f32.mrb[0].mxu0
          %1997 = vmatprep.mubr.f32.mxu0 %v1084
          %1998 = vmatmul.mubr.f32.gmra.mrb[0].mxu0 %v1083
          %v1999 = vpop.f32.mrb[0].mxu0
          %v2000 = vadd.f32 %v1775, %v1999
          %v2001 = vpop.f32.mrb[0].mxu0
          %2002 = vmatprep.mubr.f32.mxu0 %v1093
          %2003 = vmatmul.mubr.f32.gmra.mrb[0].mxu0 %v1092
          %v2004 = vpop.f32.mrb[0].mxu0
          %v2005 = vadd.f32 %v1780, %v2004
          %v2006 = vpop.f32.mrb[0].mxu0
          %2007 = vmatprep.mubr.f32.mxu0 %v1102
          %2008 = vmatmul.mubr.f32.gmra.mrb[0].mxu0 %v1101
          %v2009 = vpop.f32.mrb[0].mxu0
          %v2010 = vadd.f32 %v1785, %v2009
          %v2011 = vpop.f32.mrb[0].mxu0
          %2012 = vmatprep.mubr.f32.mxu0 %v1111
          %2013 = vmatmul.mubr.f32.gmra.mrb[0].mxu0 %v1110
          %v2014 = vpop.f32.mrb[0].mxu0
          %v2015 = vadd.f32 %v1790, %v2014
          %v2016 = vpop.f32.mrb[0].mxu0
          %2017 = vmatprep.mubr.f32.mxu0 %v1120
          %2018 = vmatmul.mubr.f32.gmra.mrb[0].mxu0 %v1119
          %v2019 = vpop.f32.mrb[0].mxu0
          %v2020 = vadd.f32 %v1795, %v2019
          %v2021 = vpop.f32.mrb[0].mxu0
          %2022 = vmatprep.mubr.f32.mxu0 %v1129
          %2023 = vmatmul.mubr.f32.gmra.mrb[0].mxu0 %v1128
          %v2024 = vpop.f32.mrb[0].mxu0
          %v2025 = vadd.f32 %v1800, %v2024
          %v2026 = vpop.f32.mrb[0].mxu0
          %2027 = vmatprep.mubr.f32.mxu0 %v1138
          %2028 = vmatmul.mubr.f32.gmra.mrb[0].mxu0 %v1137
          %v2029 = vpop.f32.mrb[0].mxu0
          %v2030 = vadd.f32 %v1805, %v2029
          %v2031 = vpop.f32.mrb[0].mxu0
          %2032 = vmatprep.mubr.f32.mxu0 %v1147
          %2033 = vmatmul.mubr.f32.gmra.mrb[0].mxu0 %v1146
          %v2034 = vpop.f32.mrb[0].mxu0
          %v2035 = vadd.f32 %v1810, %v2034
          %v2036 = vpop.f32.mrb[0].mxu0
          %2037 = vmatprep.mubr.f32.mxu0 %v1156
          %2038 = vmatmul.mubr.f32.gmra.mrb[0].mxu0 %v1155
          %v2039 = vpop.f32.mrb[0].mxu0
          %v2040 = vadd.f32 %v1815, %v2039
          %v2041 = vpop.f32.mrb[0].mxu0
          %2042 = vmatprep.mubr.f32.mxu0 %v1165
          %2043 = vmatmul.mubr.f32.gmra.mrb[0].mxu0 %v1164
          %v2044 = vpop.f32.mrb[0].mxu0
          %v2045 = vadd.f32 %v1820, %v2044
          %v2046 = vpop.f32.mrb[0].mxu0
          %2047 = vmatprep.mubr.f32.mxu0 %v1174
          %2048 = vmatmul.mubr.f32.gmra.mrb[0].mxu0 %v1173
          %v2049 = vpop.f32.mrb[0].mxu0
          %v2050 = vadd.f32 %v1825, %v2049
          %v2051 = vpop.f32.mrb[0].mxu0
          %2052 = vmatprep.mubr.f32.mxu0 %v1183
          %2053 = vmatmul.mubr.f32.gmra.mrb[0].mxu0 %v1182
          %v2054 = vpop.f32.mrb[0].mxu0
          %v2055 = vadd.f32 %v1830, %v2054
          %v2056 = vpop.f32.mrb[0].mxu0
          %2057 = vmatprep.mubr.f32.mxu0 %v1192
          %2058 = vmatmul.mubr.f32.gmra.mrb[0].mxu0 %v1191
          %v2059 = vpop.f32.mrb[0].mxu0
          %v2060 = vadd.f32 %v1835, %v2059
          %v2061 = vpop.f32.mrb[0].mxu0
          %2062 = vmatprep.mubr.f32.mxu0 %v1201
          %2063 = vmatmul.mubr.f32.gmra.mrb[0].mxu0 %v1200
          %v2064 = vpop.f32.mrb[0].mxu0
          %v2065 = vadd.f32 %v1840, %v2064
          %v2066 = vpop.f32.mrb[0].mxu0
          %2067 = vmatprep.mubr.f32.mxu0 %v1210
          %2068 = vmatmul.mubr.f32.gmra.mrb[0].mxu0 %v1209
          %v2069 = vpop.f32.mrb[0].mxu0
          %v2070 = vadd.f32 %v1845, %v2069
          %v2071 = vpop.f32.mrb[0].mxu0
          %2072 = vmatprep.mubr.f32.mxu0 %v1219
          %2073 = vmatmul.mubr.f32.gmra.mrb[0].mxu0 %v1218
          %v2074 = vpop.f32.mrb[0].mxu0
          %v2075 = vadd.f32 %v1850, %v2074
          %v2076 = vpop.f32.mrb[0].mxu0
          %2077 = vmatprep.mubr.f32.mxu0 %v1228
          %2078 = vmatmul.mubr.f32.gmra.mrb[0].mxu0 %v1227
          %v2079 = vpop.f32.mrb[0].mxu0
          %v2080 = vadd.f32 %v1855, %v2079
          %v2081 = vpop.f32.mrb[0].mxu0
          %2082 = vmatprep.mubr.f32.mxu0 %v1237
          %2083 = vmatmul.mubr.f32.gmra.mrb[0].mxu0 %v1236
          %v2084 = vpop.f32.mrb[0].mxu0
          %v2085 = vadd.f32 %v1860, %v2084
          %v2086 = vpop.f32.mrb[0].mxu0
          %2087 = vmatprep.mubr.f32.mxu0 %v1246
          %2088 = vmatmul.mubr.f32.gmra.mrb[0].mxu0 %v1245
          %v2089 = vpop.f32.mrb[0].mxu0
          %v2090 = vadd.f32 %v1865, %v2089
          %v2091 = vpop.f32.mrb[0].mxu0
          %2092 = vmatprep.mubr.f32.mxu0 %v1255
          %2093 = vmatmul.mubr.f32.gmra.mrb[0].mxu0 %v1254
          %v2094 = vpop.f32.mrb[0].mxu0
          %v2095 = vadd.f32 %v1870, %v2094
          %v2096 = vpop.f32.mrb[0].mxu0
          %2097 = vmatprep.mubr.f32.mxu0 %v1264
          %2098 = vmatmul.mubr.f32.gmra.mrb[0].mxu0 %v1263
          %v2099 = vpop.f32.mrb[0].mxu0
          %v2100 = vadd.f32 %v1875, %v2099
          %v2101 = vpop.f32.mrb[0].mxu0
          %2102 = vmatprep.mubr.f32.mxu0 %v1273
          %2103 = vmatmul.mubr.f32.gmra.mrb[0].mxu0 %v1272
          %v2104 = vpop.f32.mrb[0].mxu0
          %v2105 = vadd.f32 %v1880, %v2104
          %v2106 = vpop.f32.mrb[0].mxu0
          %2107 = vmatprep.mubr.f32.mxu0 %v1282
          %2108 = vmatmul.mubr.f32.gmra.mrb[0].mxu0 %v1281
          %v2109 = vpop.f32.mrb[0].mxu0
          %v2110 = vadd.f32 %v1885, %v2109
          %v2111 = vpop.f32.mrb[0].mxu0
          %2112 = vmatprep.mubr.f32.mxu0 %v1291
          %2113 = vmatmul.mubr.f32.gmra.mrb[0].mxu0 %v1290
          %v2114 = vpop.f32.mrb[0].mxu0
          %v2115 = vadd.f32 %v1890, %v2114
          %v2116 = vpop.f32.mrb[0].mxu0
          %2117 = vmatprep.mubr.f32.mxu0 %v1300
          %2118 = vmatmul.mubr.f32.gmra.mrb[0].mxu0 %v1299
          %v2119 = vpop.f32.mrb[0].mxu0
          %v2120 = vadd.f32 %v1895, %v2119
          %v2121 = vpop.f32.mrb[0].mxu0
          %2122 = vdwg.mxu0
          %2123 = vmatprep.subr.mxu0 0.0
          %2124 = vmatpush1.msra.mxu0 %v1400
          %2125 = vmatprep.subr.mxu0 0.0
          %2126 = vmatpush1.msra.mxu0 %v1401
          %2127 = vmatprep.subr.mxu0 0.0
          %2128 = vmatpush1.msra.mxu0 %v1402
          %2129 = vmatprep.subr.mxu0 0.0
          %2130 = vmatpush1.msra.mxu0 %v1403
          %2131 = vmatprep.subr.mxu0 0.0
          %2132 = vmatpush1.msra.mxu0 %v1404
          %2133 = vmatprep.subr.mxu0 0.0
          %2134 = vmatpush1.msra.mxu0 %v1405
          %2135 = vmatprep.subr.mxu0 0.0
          %2136 = vmatpush1.msra.mxu0 %v1406
          %2137 = vmatprep.subr.mxu0 0.0
          %2138 = vmatpush1.msra.mxu0 %v1407
          %2139 = vmatprep.subr.mxu0 0.0
          %2140 = vmatpush1.msra.mxu0 %v1408
          %2141 = vmatprep.subr.mxu0 0.0
          %2142 = vmatpush1.msra.mxu0 %v1409
          %2143 = vmatprep.subr.mxu0 0.0
          %2144 = vmatpush1.msra.mxu0 %v1410
          %2145 = vmatprep.subr.mxu0 0.0
          %2146 = vmatpush1.msra.mxu0 %v1411
          %2147 = vmatprep.subr.mxu0 0.0
          %2148 = vmatpush1.msra.mxu0 %v1412
          %2149 = vmatprep.subr.mxu0 0.0
          %2150 = vmatpush1.msra.mxu0 %v1413
          %2151 = vmatprep.subr.mxu0 0.0
          %2152 = vmatpush1.msra.mxu0 %v1414
          %2153 = vmatprep.subr.mxu0 0.0
          %2154 = vmatpush1.msra.mxu0 %v1415
          %2155 = vmatprep.subr.mxu0 0.0
          %2156 = vmatpush1.msra.mxu0 %v1416
          %2157 = vmatprep.subr.mxu0 0.0
          %2158 = vmatpush1.msra.mxu0 %v1417
          %2159 = vmatprep.subr.mxu0 0.0
          %2160 = vmatpush1.msra.mxu0 %v1418
          %2161 = vmatprep.subr.mxu0 0.0
          %2162 = vmatpush1.msra.mxu0 %v1419
          %2163 = vmatprep.subr.mxu0 0.0
          %2164 = vmatpush1.msra.mxu0 %v1420
          %2165 = vmatprep.subr.mxu0 0.0
          %2166 = vmatpush1.msra.mxu0 %v1421
          %2167 = vmatprep.subr.mxu0 0.0
          %2168 = vmatpush1.msra.mxu0 %v1422
          %2169 = vmatprep.subr.mxu0 0.0
          %2170 = vmatpush1.msra.mxu0 %v1423
          %2171 = vmatprep.subr.mxu0 0.0
          %2172 = vmatpush1.msra.mxu0 %v1424
          %2173 = vmatprep.subr.mxu0 0.0
          %2174 = vmatpush1.msra.mxu0 %v1425
          %2175 = vmatprep.subr.mxu0 0.0
          %2176 = vmatpush1.msra.mxu0 %v1426
          %2177 = vmatprep.subr.mxu0 0.0
          %2178 = vmatpush1.msra.mxu0 %v1427
          %2179 = vmatprep.subr.mxu0 0.0
          %2180 = vmatpush1.msra.mxu0 %v1428
          %2181 = vmatprep.subr.mxu0 0.0
          %2182 = vmatpush1.msra.mxu0 %v1429
          %2183 = vmatprep.subr.mxu0 0.0
          %2184 = vmatpush1.msra.mxu0 %v1430
          %2185 = vmatprep.subr.mxu0 0.0
          %2186 = vmatpush1.msra.mxu0 %v1431
          %2187 = vmatprep.mubr.f32.mxu0 %v1023
          %2188 = vmatmul.mubr.f32.gmra.mrb[0].mxu0 %v1022
          %v2189 = vpop.f32.mrb[0].mxu0
          %v2190 = vadd.f32 %v1965, %v2189
          %v2191 = vpop.f32.mrb[0].mxu0
          %2192 = vmatprep.mubr.f32.mxu0 %v1032
          %2193 = vmatmul.mubr.f32.gmra.mrb[0].mxu0 %v1031
          %v2194 = vpop.f32.mrb[0].mxu0
          %v2195 = vadd.f32 %v1970, %v2194
          %v2196 = vpop.f32.mrb[0].mxu0
          %2197 = vmatprep.mubr.f32.mxu0 %v1041
          %2198 = vmatmul.mubr.f32.gmra.mrb[0].mxu0 %v1040
          %v2199 = vpop.f32.mrb[0].mxu0
          %v2200 = vadd.f32 %v1975, %v2199
          %v2201 = vpop.f32.mrb[0].mxu0
          %2202 = vmatprep.mubr.f32.mxu0 %v1050
          %2203 = vmatmul.mubr.f32.gmra.mrb[0].mxu0 %v1049
          %v2204 = vpop.f32.mrb[0].mxu0
          %v2205 = vadd.f32 %v1980, %v2204
          %v2206 = vpop.f32.mrb[0].mxu0
          %2207 = vmatprep.mubr.f32.mxu0 %v1059
          %2208 = vmatmul.mubr.f32.gmra.mrb[0].mxu0 %v1058
          %v2209 = vpop.f32.mrb[0].mxu0
          %v2210 = vadd.f32 %v1985, %v2209
          %v2211 = vpop.f32.mrb[0].mxu0
          %2212 = vmatprep.mubr.f32.mxu0 %v1068
          %2213 = vmatmul.mubr.f32.gmra.mrb[0].mxu0 %v1067
          %v2214 = vpop.f32.mrb[0].mxu0
          %v2215 = vadd.f32 %v1990, %v2214
          %v2216 = vpop.f32.mrb[0].mxu0
          %2217 = vmatprep.mubr.f32.mxu0 %v1077
          %2218 = vmatmul.mubr.f32.gmra.mrb[0].mxu0 %v1076
          %v2219 = vpop.f32.mrb[0].mxu0
          %v2220 = vadd.f32 %v1995, %v2219
          %v2221 = vpop.f32.mrb[0].mxu0
          %2222 = vmatprep.mubr.f32.mxu0 %v1086
          %2223 = vmatmul.mubr.f32.gmra.mrb[0].mxu0 %v1085
          %v2224 = vpop.f32.mrb[0].mxu0
          %v2225 = vadd.f32 %v2000, %v2224
          %v2226 = vpop.f32.mrb[0].mxu0
          %2227 = vmatprep.mubr.f32.mxu0 %v1095
          %2228 = vmatmul.mubr.f32.gmra.mrb[0].mxu0 %v1094
          %v2229 = vpop.f32.mrb[0].mxu0
          %v2230 = vadd.f32 %v2005, %v2229
          %v2231 = vpop.f32.mrb[0].mxu0
          %2232 = vmatprep.mubr.f32.mxu0 %v1104
          %2233 = vmatmul.mubr.f32.gmra.mrb[0].mxu0 %v1103
          %v2234 = vpop.f32.mrb[0].mxu0
          %v2235 = vadd.f32 %v2010, %v2234
          %v2236 = vpop.f32.mrb[0].mxu0
          %2237 = vmatprep.mubr.f32.mxu0 %v1113
          %2238 = vmatmul.mubr.f32.gmra.mrb[0].mxu0 %v1112
          %v2239 = vpop.f32.mrb[0].mxu0
          %v2240 = vadd.f32 %v2015, %v2239
          %v2241 = vpop.f32.mrb[0].mxu0
          %2242 = vmatprep.mubr.f32.mxu0 %v1122
          %2243 = vmatmul.mubr.f32.gmra.mrb[0].mxu0 %v1121
          %v2244 = vpop.f32.mrb[0].mxu0
          %v2245 = vadd.f32 %v2020, %v2244
          %v2246 = vpop.f32.mrb[0].mxu0
          %2247 = vmatprep.mubr.f32.mxu0 %v1131
          %2248 = vmatmul.mubr.f32.gmra.mrb[0].mxu0 %v1130
          %v2249 = vpop.f32.mrb[0].mxu0
          %v2250 = vadd.f32 %v2025, %v2249
          %v2251 = vpop.f32.mrb[0].mxu0
          %2252 = vmatprep.mubr.f32.mxu0 %v1140
          %2253 = vmatmul.mubr.f32.gmra.mrb[0].mxu0 %v1139
          %v2254 = vpop.f32.mrb[0].mxu0
          %v2255 = vadd.f32 %v2030, %v2254
          %v2256 = vpop.f32.mrb[0].mxu0
          %2257 = vmatprep.mubr.f32.mxu0 %v1149
          %2258 = vmatmul.mubr.f32.gmra.mrb[0].mxu0 %v1148
          %v2259 = vpop.f32.mrb[0].mxu0
          %v2260 = vadd.f32 %v2035, %v2259
          %v2261 = vpop.f32.mrb[0].mxu0
          %2262 = vmatprep.mubr.f32.mxu0 %v1158
          %2263 = vmatmul.mubr.f32.gmra.mrb[0].mxu0 %v1157
          %v2264 = vpop.f32.mrb[0].mxu0
          %v2265 = vadd.f32 %v2040, %v2264
          %v2266 = vpop.f32.mrb[0].mxu0
          %2267 = vmatprep.mubr.f32.mxu0 %v1167
          %2268 = vmatmul.mubr.f32.gmra.mrb[0].mxu0 %v1166
          %v2269 = vpop.f32.mrb[0].mxu0
          %v2270 = vadd.f32 %v2045, %v2269
          %v2271 = vpop.f32.mrb[0].mxu0
          %2272 = vmatprep.mubr.f32.mxu0 %v1176
          %2273 = vmatmul.mubr.f32.gmra.mrb[0].mxu0 %v1175
          %v2274 = vpop.f32.mrb[0].mxu0
          %v2275 = vadd.f32 %v2050, %v2274
          %v2276 = vpop.f32.mrb[0].mxu0
          %2277 = vmatprep.mubr.f32.mxu0 %v1185
          %2278 = vmatmul.mubr.f32.gmra.mrb[0].mxu0 %v1184
          %v2279 = vpop.f32.mrb[0].mxu0
          %v2280 = vadd.f32 %v2055, %v2279
          %v2281 = vpop.f32.mrb[0].mxu0
          %2282 = vmatprep.mubr.f32.mxu0 %v1194
          %2283 = vmatmul.mubr.f32.gmra.mrb[0].mxu0 %v1193
          %v2284 = vpop.f32.mrb[0].mxu0
          %v2285 = vadd.f32 %v2060, %v2284
          %v2286 = vpop.f32.mrb[0].mxu0
          %2287 = vmatprep.mubr.f32.mxu0 %v1203
          %2288 = vmatmul.mubr.f32.gmra.mrb[0].mxu0 %v1202
          %v2289 = vpop.f32.mrb[0].mxu0
          %v2290 = vadd.f32 %v2065, %v2289
          %v2291 = vpop.f32.mrb[0].mxu0
          %2292 = vmatprep.mubr.f32.mxu0 %v1212
          %2293 = vmatmul.mubr.f32.gmra.mrb[0].mxu0 %v1211
          %v2294 = vpop.f32.mrb[0].mxu0
          %v2295 = vadd.f32 %v2070, %v2294
          %v2296 = vpop.f32.mrb[0].mxu0
          %2297 = vmatprep.mubr.f32.mxu0 %v1221
          %2298 = vmatmul.mubr.f32.gmra.mrb[0].mxu0 %v1220
          %v2299 = vpop.f32.mrb[0].mxu0
          %v2300 = vadd.f32 %v2075, %v2299
          %v2301 = vpop.f32.mrb[0].mxu0
          %2302 = vmatprep.mubr.f32.mxu0 %v1230
          %2303 = vmatmul.mubr.f32.gmra.mrb[0].mxu0 %v1229
          %v2304 = vpop.f32.mrb[0].mxu0
          %v2305 = vadd.f32 %v2080, %v2304
          %v2306 = vpop.f32.mrb[0].mxu0
          %2307 = vmatprep.mubr.f32.mxu0 %v1239
          %2308 = vmatmul.mubr.f32.gmra.mrb[0].mxu0 %v1238
          %v2309 = vpop.f32.mrb[0].mxu0
          %v2310 = vadd.f32 %v2085, %v2309
          %v2311 = vpop.f32.mrb[0].mxu0
          %2312 = vmatprep.mubr.f32.mxu0 %v1248
          %2313 = vmatmul.mubr.f32.gmra.mrb[0].mxu0 %v1247
          %v2314 = vpop.f32.mrb[0].mxu0
          %v2315 = vadd.f32 %v2090, %v2314
          %v2316 = vpop.f32.mrb[0].mxu0
          %2317 = vmatprep.mubr.f32.mxu0 %v1257
          %2318 = vmatmul.mubr.f32.gmra.mrb[0].mxu0 %v1256
          %v2319 = vpop.f32.mrb[0].mxu0
          %v2320 = vadd.f32 %v2095, %v2319
          %v2321 = vpop.f32.mrb[0].mxu0
          %2322 = vmatprep.mubr.f32.mxu0 %v1266
          %2323 = vmatmul.mubr.f32.gmra.mrb[0].mxu0 %v1265
          %v2324 = vpop.f32.mrb[0].mxu0
          %v2325 = vadd.f32 %v2100, %v2324
          %v2326 = vpop.f32.mrb[0].mxu0
          %2327 = vmatprep.mubr.f32.mxu0 %v1275
          %2328 = vmatmul.mubr.f32.gmra.mrb[0].mxu0 %v1274
          %v2329 = vpop.f32.mrb[0].mxu0
          %v2330 = vadd.f32 %v2105, %v2329
          %v2331 = vpop.f32.mrb[0].mxu0
          %2332 = vmatprep.mubr.f32.mxu0 %v1284
          %2333 = vmatmul.mubr.f32.gmra.mrb[0].mxu0 %v1283
          %v2334 = vpop.f32.mrb[0].mxu0
          %v2335 = vadd.f32 %v2110, %v2334
          %v2336 = vpop.f32.mrb[0].mxu0
          %2337 = vmatprep.mubr.f32.mxu0 %v1293
          %2338 = vmatmul.mubr.f32.gmra.mrb[0].mxu0 %v1292
          %v2339 = vpop.f32.mrb[0].mxu0
          %v2340 = vadd.f32 %v2115, %v2339
          %v2341 = vpop.f32.mrb[0].mxu0
          %2342 = vmatprep.mubr.f32.mxu0 %v1302
          %2343 = vmatmul.mubr.f32.gmra.mrb[0].mxu0 %v1301
          %v2344 = vpop.f32.mrb[0].mxu0
          %v2345 = vadd.f32 %v2120, %v2344
          %v2346 = vpop.f32.mrb[0].mxu0
          %2347 = vdwg.mxu0
          %2348 = vmatprep.subr.mxu0 0.0
          %2349 = vmatpush1.msra.mxu0 %v1432
          %2350 = vmatprep.subr.mxu0 0.0
          %2351 = vmatpush1.msra.mxu0 %v1433
          %2352 = vmatprep.subr.mxu0 0.0
          %2353 = vmatpush1.msra.mxu0 %v1434
          %2354 = vmatprep.subr.mxu0 0.0
          %2355 = vmatpush1.msra.mxu0 %v1435
          %2356 = vmatprep.subr.mxu0 0.0
          %2357 = vmatpush1.msra.mxu0 %v1436
          %2358 = vmatprep.subr.mxu0 0.0
          %2359 = vmatpush1.msra.mxu0 %v1437
          %2360 = vmatprep.subr.mxu0 0.0
          %2361 = vmatpush1.msra.mxu0 %v1438
          %2362 = vmatprep.subr.mxu0 0.0
          %2363 = vmatpush1.msra.mxu0 %v1439
          %2364 = vmatprep.subr.mxu0 0.0
          %2365 = vmatpush1.msra.mxu0 %v1440
          %2366 = vmatprep.subr.mxu0 0.0
          %2367 = vmatpush1.msra.mxu0 %v1441
          %2368 = vmatprep.subr.mxu0 0.0
          %2369 = vmatpush1.msra.mxu0 %v1442
          %2370 = vmatprep.subr.mxu0 0.0
          %2371 = vmatpush1.msra.mxu0 %v1443
          %2372 = vmatprep.subr.mxu0 0.0
          %2373 = vmatpush1.msra.mxu0 %v1444
          %2374 = vmatprep.subr.mxu0 0.0
          %2375 = vmatpush1.msra.mxu0 %v1445
          %2376 = vmatprep.subr.mxu0 0.0
          %2377 = vmatpush1.msra.mxu0 %v1446
          %2378 = vmatprep.subr.mxu0 0.0
          %2379 = vmatpush1.msra.mxu0 %v1447
          %2380 = vmatprep.subr.mxu0 0.0
          %2381 = vmatpush1.msra.mxu0 0.0
          %2382 = vmatprep.subr.mxu0 0.0
          %2383 = vmatpush1.msra.mxu0 0.0
          %2384 = vmatprep.subr.mxu0 0.0
          %2385 = vmatpush1.msra.mxu0 0.0
          %2386 = vmatprep.subr.mxu0 0.0
          %2387 = vmatpush1.msra.mxu0 0.0
          %2388 = vmatprep.subr.mxu0 0.0
          %2389 = vmatpush1.msra.mxu0 0.0
          %2390 = vmatprep.subr.mxu0 0.0
          %2391 = vmatpush1.msra.mxu0 0.0
          %2392 = vmatprep.subr.mxu0 0.0
          %2393 = vmatpush1.msra.mxu0 0.0
          %2394 = vmatprep.subr.mxu0 0.0
          %2395 = vmatpush1.msra.mxu0 0.0
          %2396 = vmatprep.subr.mxu0 0.0
          %2397 = vmatpush1.msra.mxu0 0.0
          %2398 = vmatprep.subr.mxu0 0.0
          %2399 = vmatpush1.msra.mxu0 0.0
          %2400 = vmatprep.subr.mxu0 0.0
          %2401 = vmatpush1.msra.mxu0 0.0
          %2402 = vmatprep.subr.mxu0 0.0
          %2403 = vmatpush1.msra.mxu0 0.0
          %2404 = vmatprep.subr.mxu0 0.0
          %2405 = vmatpush1.msra.mxu0 0.0
          %2406 = vmatprep.subr.mxu0 0.0
          %2407 = vmatpush1.msra.mxu0 0.0
          %2408 = vmatprep.subr.mxu0 0.0
          %2409 = vmatpush1.msra.mxu0 0.0
          %2410 = vmatprep.subr.mxu0 0.0
          %2411 = vmatpush1.msra.mxu0 0.0
          %2412 = vmatprep.mubr.f32.mxu0 0.0
          %2413 = vmatmul.mubr.f32.gmra.mrb[0].mxu0 %v1024
          %v2414 = vpop.f32.mrb[0].mxu0
          %v2415 = vadd.f32 %v2190, %v2414
          %v2416 = vpop.f32.mrb[0].mxu0
          %2417 = vmatprep.mubr.f32.mxu0 0.0
          %2418 = vmatmul.mubr.f32.gmra.mrb[0].mxu0 %v1033
          %v2419 = vpop.f32.mrb[0].mxu0
          %v2420 = vadd.f32 %v2195, %v2419
          %v2421 = vpop.f32.mrb[0].mxu0
          %2422 = vmatprep.mubr.f32.mxu0 0.0
          %2423 = vmatmul.mubr.f32.gmra.mrb[0].mxu0 %v1042
          %v2424 = vpop.f32.mrb[0].mxu0
          %v2425 = vadd.f32 %v2200, %v2424
          %v2426 = vpop.f32.mrb[0].mxu0
          %2427 = vmatprep.mubr.f32.mxu0 0.0
          %2428 = vmatmul.mubr.f32.gmra.mrb[0].mxu0 %v1051
          %v2429 = vpop.f32.mrb[0].mxu0
          %v2430 = vadd.f32 %v2205, %v2429
          %v2431 = vpop.f32.mrb[0].mxu0
          %2432 = vmatprep.mubr.f32.mxu0 0.0
          %2433 = vmatmul.mubr.f32.gmra.mrb[0].mxu0 %v1060
          %v2434 = vpop.f32.mrb[0].mxu0
          %v2435 = vadd.f32 %v2210, %v2434
          %v2436 = vpop.f32.mrb[0].mxu0
          %2437 = vmatprep.mubr.f32.mxu0 0.0
          %2438 = vmatmul.mubr.f32.gmra.mrb[0].mxu0 %v1069
          %v2439 = vpop.f32.mrb[0].mxu0
          %v2440 = vadd.f32 %v2215, %v2439
          %v2441 = vpop.f32.mrb[0].mxu0
          %2442 = vmatprep.mubr.f32.mxu0 0.0
          %2443 = vmatmul.mubr.f32.gmra.mrb[0].mxu0 %v1078
          %v2444 = vpop.f32.mrb[0].mxu0
          %v2445 = vadd.f32 %v2220, %v2444
          %v2446 = vpop.f32.mrb[0].mxu0
          %2447 = vmatprep.mubr.f32.mxu0 0.0
          %2448 = vmatmul.mubr.f32.gmra.mrb[0].mxu0 %v1087
          %v2449 = vpop.f32.mrb[0].mxu0
          %v2450 = vadd.f32 %v2225, %v2449
          %v2451 = vpop.f32.mrb[0].mxu0
          %2452 = vmatprep.mubr.f32.mxu0 0.0
          %2453 = vmatmul.mubr.f32.gmra.mrb[0].mxu0 %v1096
          %v2454 = vpop.f32.mrb[0].mxu0
          %v2455 = vadd.f32 %v2230, %v2454
          %v2456 = vpop.f32.mrb[0].mxu0
          %2457 = vmatprep.mubr.f32.mxu0 0.0
          %2458 = vmatmul.mubr.f32.gmra.mrb[0].mxu0 %v1105
          %v2459 = vpop.f32.mrb[0].mxu0
          %v2460 = vadd.f32 %v2235, %v2459
          %v2461 = vpop.f32.mrb[0].mxu0
          %2462 = vmatprep.mubr.f32.mxu0 0.0
          %2463 = vmatmul.mubr.f32.gmra.mrb[0].mxu0 %v1114
          %v2464 = vpop.f32.mrb[0].mxu0
          %v2465 = vadd.f32 %v2240, %v2464
          %v2466 = vpop.f32.mrb[0].mxu0
          %2467 = vmatprep.mubr.f32.mxu0 0.0
          %2468 = vmatmul.mubr.f32.gmra.mrb[0].mxu0 %v1123
          %v2469 = vpop.f32.mrb[0].mxu0
          %v2470 = vadd.f32 %v2245, %v2469
          %v2471 = vpop.f32.mrb[0].mxu0
          %2472 = vmatprep.mubr.f32.mxu0 0.0
          %2473 = vmatmul.mubr.f32.gmra.mrb[0].mxu0 %v1132
          %v2474 = vpop.f32.mrb[0].mxu0
          %v2475 = vadd.f32 %v2250, %v2474
          %v2476 = vpop.f32.mrb[0].mxu0
          %2477 = vmatprep.mubr.f32.mxu0 0.0
          %2478 = vmatmul.mubr.f32.gmra.mrb[0].mxu0 %v1141
          %v2479 = vpop.f32.mrb[0].mxu0
          %v2480 = vadd.f32 %v2255, %v2479
          %v2481 = vpop.f32.mrb[0].mxu0
          %2482 = vmatprep.mubr.f32.mxu0 0.0
          %2483 = vmatmul.mubr.f32.gmra.mrb[0].mxu0 %v1150
          %v2484 = vpop.f32.mrb[0].mxu0
          %v2485 = vadd.f32 %v2260, %v2484
          %v2486 = vpop.f32.mrb[0].mxu0
          %2487 = vmatprep.mubr.f32.mxu0 0.0
          %2488 = vmatmul.mubr.f32.gmra.mrb[0].mxu0 %v1159
          %v2489 = vpop.f32.mrb[0].mxu0
          %v2490 = vadd.f32 %v2265, %v2489
          %v2491 = vpop.f32.mrb[0].mxu0
          %2492 = vmatprep.mubr.f32.mxu0 0.0
          %2493 = vmatmul.mubr.f32.gmra.mrb[0].mxu0 %v1168
          %v2494 = vpop.f32.mrb[0].mxu0
          %v2495 = vadd.f32 %v2270, %v2494
          %v2496 = vpop.f32.mrb[0].mxu0
          %2497 = vmatprep.mubr.f32.mxu0 0.0
          %2498 = vmatmul.mubr.f32.gmra.mrb[0].mxu0 %v1177
          %v2499 = vpop.f32.mrb[0].mxu0
          %v2500 = vadd.f32 %v2275, %v2499
          %v2501 = vpop.f32.mrb[0].mxu0
          %2502 = vmatprep.mubr.f32.mxu0 0.0
          %2503 = vmatmul.mubr.f32.gmra.mrb[0].mxu0 %v1186
          %v2504 = vpop.f32.mrb[0].mxu0
          %v2505 = vadd.f32 %v2280, %v2504
          %v2506 = vpop.f32.mrb[0].mxu0
          %2507 = vmatprep.mubr.f32.mxu0 0.0
          %2508 = vmatmul.mubr.f32.gmra.mrb[0].mxu0 %v1195
          %v2509 = vpop.f32.mrb[0].mxu0
          %v2510 = vadd.f32 %v2285, %v2509
          %v2511 = vpop.f32.mrb[0].mxu0
          %2512 = vmatprep.mubr.f32.mxu0 0.0
          %2513 = vmatmul.mubr.f32.gmra.mrb[0].mxu0 %v1204
          %v2514 = vpop.f32.mrb[0].mxu0
          %v2515 = vadd.f32 %v2290, %v2514
          %v2516 = vpop.f32.mrb[0].mxu0
          %2517 = vmatprep.mubr.f32.mxu0 0.0
          %2518 = vmatmul.mubr.f32.gmra.mrb[0].mxu0 %v1213
          %v2519 = vpop.f32.mrb[0].mxu0
          %v2520 = vadd.f32 %v2295, %v2519
          %v2521 = vpop.f32.mrb[0].mxu0
          %2522 = vmatprep.mubr.f32.mxu0 0.0
          %2523 = vmatmul.mubr.f32.gmra.mrb[0].mxu0 %v1222
          %v2524 = vpop.f32.mrb[0].mxu0
          %v2525 = vadd.f32 %v2300, %v2524
          %v2526 = vpop.f32.mrb[0].mxu0
          %2527 = vmatprep.mubr.f32.mxu0 0.0
          %2528 = vmatmul.mubr.f32.gmra.mrb[0].mxu0 %v1231
          %v2529 = vpop.f32.mrb[0].mxu0
          %v2530 = vadd.f32 %v2305, %v2529
          %v2531 = vpop.f32.mrb[0].mxu0
          %2532 = vmatprep.mubr.f32.mxu0 0.0
          %2533 = vmatmul.mubr.f32.gmra.mrb[0].mxu0 %v1240
          %v2534 = vpop.f32.mrb[0].mxu0
          %v2535 = vadd.f32 %v2310, %v2534
          %v2536 = vpop.f32.mrb[0].mxu0
          %2537 = vmatprep.mubr.f32.mxu0 0.0
          %2538 = vmatmul.mubr.f32.gmra.mrb[0].mxu0 %v1249
          %v2539 = vpop.f32.mrb[0].mxu0
          %v2540 = vadd.f32 %v2315, %v2539
          %v2541 = vpop.f32.mrb[0].mxu0
          %2542 = vmatprep.mubr.f32.mxu0 0.0
          %2543 = vmatmul.mubr.f32.gmra.mrb[0].mxu0 %v1258
          %v2544 = vpop.f32.mrb[0].mxu0
          %v2545 = vadd.f32 %v2320, %v2544
          %v2546 = vpop.f32.mrb[0].mxu0
          %2547 = vmatprep.mubr.f32.mxu0 0.0
          %2548 = vmatmul.mubr.f32.gmra.mrb[0].mxu0 %v1267
          %v2549 = vpop.f32.mrb[0].mxu0
          %v2550 = vadd.f32 %v2325, %v2549
          %v2551 = vpop.f32.mrb[0].mxu0
          %2552 = vmatprep.mubr.f32.mxu0 0.0
          %2553 = vmatmul.mubr.f32.gmra.mrb[0].mxu0 %v1276
          %v2554 = vpop.f32.mrb[0].mxu0
          %v2555 = vadd.f32 %v2330, %v2554
          %v2556 = vpop.f32.mrb[0].mxu0
          %2557 = vmatprep.mubr.f32.mxu0 0.0
          %2558 = vmatmul.mubr.f32.gmra.mrb[0].mxu0 %v1285
          %v2559 = vpop.f32.mrb[0].mxu0
          %v2560 = vadd.f32 %v2335, %v2559
          %v2561 = vpop.f32.mrb[0].mxu0
          %2562 = vmatprep.mubr.f32.mxu0 0.0
          %2563 = vmatmul.mubr.f32.gmra.mrb[0].mxu0 %v1294
          %v2564 = vpop.f32.mrb[0].mxu0
          %v2565 = vadd.f32 %v2340, %v2564
          %v2566 = vpop.f32.mrb[0].mxu0
          %2567 = vmatprep.mubr.f32.mxu0 0.0
          %2568 = vmatmul.mubr.f32.gmra.mrb[0].mxu0 %v1303
          %v2569 = vpop.f32.mrb[0].mxu0
          %v2570 = vadd.f32 %v2345, %v2569
          %v2571 = vpop.f32.mrb[0].mxu0
          %2572 = vdwg.mxu0
          %2573 = vst [vmem:[#allocation4] sm:$0xff] %v2415
          %2574 = vst [vmem:[#allocation4 + $0x8] sm:$0xff] %v2420
          %2575 = vst [vmem:[#allocation4 + $0x10] sm:$0xff] %v2425
          %2576 = vst [vmem:[#allocation4 + $0x18] sm:$0xff] %v2430
          %2577 = vst [vmem:[#allocation4 + $0x20] sm:$0xff] %v2435
          %2578 = vst [vmem:[#allocation4 + $0x28] sm:$0xff] %v2440
          %2579 = vst [vmem:[#allocation4 + $0x30] sm:$0xff] %v2445
          %2580 = vst [vmem:[#allocation4 + $0x38] sm:$0xff] %v2450
          %2581 = vst [vmem:[#allocation4 + $0x40] sm:$0xff] %v2455
          %2582 = vst [vmem:[#allocation4 + $0x48] sm:$0xff] %v2460
          %2583 = vst [vmem:[#allocation4 + $0x50] sm:$0xff] %v2465
          %2584 = vst [vmem:[#allocation4 + $0x58] sm:$0xff] %v2470
          %2585 = vst [vmem:[#allocation4 + $0x60] sm:$0xff] %v2475
          %2586 = vst [vmem:[#allocation4 + $0x68] sm:$0xff] %v2480
          %2587 = vst [vmem:[#allocation4 + $0x70] sm:$0xff] %v2485
          %2588 = vst [vmem:[#allocation4 + $0x78] sm:$0xff] %v2490
          %2589 = vst [vmem:[#allocation4 + $0x80] sm:$0xff] %v2495
          %2590 = vst [vmem:[#allocation4 + $0x88] sm:$0xff] %v2500
          %2591 = vst [vmem:[#allocation4 + $0x90] sm:$0xff] %v2505
          %2592 = vst [vmem:[#allocation4 + $0x98] sm:$0xff] %v2510
          %2593 = vst [vmem:[#allocation4 + $0xa0] sm:$0xff] %v2515
          %2594 = vst [vmem:[#allocation4 + $0xa8] sm:$0xff] %v2520
          %2595 = vst [vmem:[#allocation4 + $0xb0] sm:$0xff] %v2525
          %2596 = vst [vmem:[#allocation4 + $0xb8] sm:$0xff] %v2530
          %2597 = vst [vmem:[#allocation4 + $0xc0] sm:$0xff] %v2535
          %2598 = vst [vmem:[#allocation4 + $0xc8] sm:$0xff] %v2540
          %2599 = vst [vmem:[#allocation4 + $0xd0] sm:$0xff] %v2545
          %2600 = vst [vmem:[#allocation4 + $0xd8] sm:$0xff] %v2550
          %2601 = vst [vmem:[#allocation4 + $0xe0] sm:$0xff] %v2555
          %2602 = vst [vmem:[#allocation4 + $0xe8] sm:$0xff] %v2560
          %2603 = vst [vmem:[#allocation4 + $0xf0] sm:$0xff] %v2565
          %2604 = vst [vmem:[#allocation4 + $0xf8] sm:$0xff] %v2570
          %v2605 = vld [vmem:[#allocation4] sm:$0xff]
          %v2606 = vld [vmem:[#allocation4 + $0x8] sm:$0xff]
          %v2607 = vld [vmem:[#allocation4 + $0x10] sm:$0xff]
          %v2608 = vld [vmem:[#allocation4 + $0x18] sm:$0xff]
          %v2609 = vld [vmem:[#allocation4 + $0x20] sm:$0xff]
          %v2610 = vld [vmem:[#allocation4 + $0x28] sm:$0xff]
          %v2611 = vld [vmem:[#allocation4 + $0x30] sm:$0xff]
          %v2612 = vld [vmem:[#allocation4 + $0x38] sm:$0xff]
          %v2613 = vld [vmem:[#allocation4 + $0x40] sm:$0xff]
          %v2614 = vld [vmem:[#allocation4 + $0x48] sm:$0xff]
          %v2615 = vld [vmem:[#allocation4 + $0x50] sm:$0xff]
          %v2616 = vld [vmem:[#allocation4 + $0x58] sm:$0xff]
          %v2617 = vld [vmem:[#allocation4 + $0x60] sm:$0xff]
          %v2618 = vld [vmem:[#allocation4 + $0x68] sm:$0xff]
          %v2619 = vld [vmem:[#allocation4 + $0x70] sm:$0xff]
          %v2620 = vld [vmem:[#allocation4 + $0x78] sm:$0xff]
          %v2621 = vld [vmem:[#allocation4 + $0x80] sm:$0xff]
          %v2622 = vld [vmem:[#allocation4 + $0x88] sm:$0xff]
          %v2623 = vld [vmem:[#allocation4 + $0x90] sm:$0xff]
          %v2624 = vld [vmem:[#allocation4 + $0x98] sm:$0xff]
          %v2625 = vld [vmem:[#allocation4 + $0xa0] sm:$0xff]
          %v2626 = vld [vmem:[#allocation4 + $0xa8] sm:$0xff]
          %v2627 = vld [vmem:[#allocation4 + $0xb0] sm:$0xff]
          %v2628 = vld [vmem:[#allocation4 + $0xb8] sm:$0xff]
          %v2629 = vld [vmem:[#allocation4 + $0xc0] sm:$0xff]
          %v2630 = vld [vmem:[#allocation4 + $0xc8] sm:$0xff]
          %v2631 = vld [vmem:[#allocation4 + $0xd0] sm:$0xff]
          %v2632 = vld [vmem:[#allocation4 + $0xd8] sm:$0xff]
          %v2633 = vld [vmem:[#allocation4 + $0xe0] sm:$0xff]
          %v2634 = vld [vmem:[#allocation4 + $0xe8] sm:$0xff]
          %v2635 = vld [vmem:[#allocation4 + $0xf0] sm:$0xff]
          %v2636 = vld [vmem:[#allocation4 + $0xf8] sm:$0xff]
          %v2637 = vmax.f32 %v2605, 0.0
          %v2638 = vmax.f32 %v2606, 0.0
          %v2639 = vmax.f32 %v2607, 0.0
          %v2640 = vmax.f32 %v2608, 0.0
          %v2641 = vmax.f32 %v2609, 0.0
          %v2642 = vmax.f32 %v2610, 0.0
          %v2643 = vmax.f32 %v2611, 0.0
          %v2644 = vmax.f32 %v2612, 0.0
          %v2645 = vmax.f32 %v2613, 0.0
          %v2646 = vmax.f32 %v2614, 0.0
          %v2647 = vmax.f32 %v2615, 0.0
          %v2648 = vmax.f32 %v2616, 0.0
          %v2649 = vmax.f32 %v2617, 0.0
          %v2650 = vmax.f32 %v2618, 0.0
          %v2651 = vmax.f32 %v2619, 0.0
          %v2652 = vmax.f32 %v2620, 0.0
          %v2653 = vmax.f32 %v2621, 0.0
          %v2654 = vmax.f32 %v2622, 0.0
          %v2655 = vmax.f32 %v2623, 0.0
          %v2656 = vmax.f32 %v2624, 0.0
          %v2657 = vmax.f32 %v2625, 0.0
          %v2658 = vmax.f32 %v2626, 0.0
          %v2659 = vmax.f32 %v2627, 0.0
          %v2660 = vmax.f32 %v2628, 0.0
          %v2661 = vmax.f32 %v2629, 0.0
          %v2662 = vmax.f32 %v2630, 0.0
          %v2663 = vmax.f32 %v2631, 0.0
          %v2664 = vmax.f32 %v2632, 0.0
          %v2665 = vmax.f32 %v2633, 0.0
          %v2666 = vmax.f32 %v2634, 0.0
          %v2667 = vmax.f32 %v2635, 0.0
          %v2668 = vmax.f32 %v2636, 0.0
          %2669 = vst [vmem:[%s406 + $0x1] sm:$0xff] %v2637
          %2670 = vst [vmem:[%s406 + $0x9] sm:$0xff] %v2638
          %2671 = vst [vmem:[%s406 + $0x19] sm:$0xff] %v2639
          %2672 = vst [vmem:[%s406 + $0x21] sm:$0xff] %v2640
          %2673 = vst [vmem:[%s406 + $0x31] sm:$0xff] %v2641
          %2674 = vst [vmem:[%s406 + $0x39] sm:$0xff] %v2642
          %2675 = vst [vmem:[%s406 + $0x49] sm:$0xff] %v2643
          %2676 = vst [vmem:[%s406 + $0x51] sm:$0xff] %v2644
          %2677 = vst [vmem:[%s406 + $0x61] sm:$0xff] %v2645
          %2678 = vst [vmem:[%s406 + $0x69] sm:$0xff] %v2646
          %2679 = vst [vmem:[%s406 + $0x79] sm:$0xff] %v2647
          %2680 = vst [vmem:[%s406 + $0x81] sm:$0xff] %v2648
          %2681 = vst [vmem:[%s406 + $0x91] sm:$0xff] %v2649
          %2682 = vst [vmem:[%s406 + $0x99] sm:$0xff] %v2650
          %2683 = vst [vmem:[%s406 + $0xa9] sm:$0xff] %v2651
          %2684 = vst [vmem:[%s406 + $0xb1] sm:$0xff] %v2652
          %2685 = vst [vmem:[%s406 + $0xc1] sm:$0xff] %v2653
          %2686 = vst [vmem:[%s406 + $0xc9] sm:$0xff] %v2654
          %2687 = vst [vmem:[%s406 + $0xd9] sm:$0xff] %v2655
          %2688 = vst [vmem:[%s406 + $0xe1] sm:$0xff] %v2656
          %2689 = vst [vmem:[%s406 + $0xf1] sm:$0xff] %v2657
          %2690 = vst [vmem:[%s406 + $0xf9] sm:$0xff] %v2658
          %2691 = vst [vmem:[%s406 + $0x109] sm:$0xff] %v2659
          %2692 = vst [vmem:[%s406 + $0x111] sm:$0xff] %v2660
          %2693 = vst [vmem:[%s406 + $0x121] sm:$0xff] %v2661
          %2694 = vst [vmem:[%s406 + $0x129] sm:$0xff] %v2662
          %2695 = vst [vmem:[%s406 + $0x139] sm:$0xff] %v2663
          %2696 = vst [vmem:[%s406 + $0x141] sm:$0xff] %v2664
          %2697 = vst [vmem:[%s406 + $0x151] sm:$0xff] %v2665
          %2698 = vst [vmem:[%s406 + $0x159] sm:$0xff] %v2666
          %2699 = vst [vmem:[%s406 + $0x169] sm:$0xff] %v2667
          %2700 = vst [vmem:[%s406 + $0x171] sm:$0xff] %v2668
          %v2701 = vld [vmem:[#allocation2] sm:$0xff]
          %v2702 = vld [vmem:[#allocation2 + $0x8] sm:$0xff]
          %v2703 = vld [vmem:[#allocation2 + $0x18] sm:$0xff]
          %v2704 = vld [vmem:[#allocation2 + $0x20] sm:$0xff]
          %v2705 = vld [vmem:[#allocation2 + $0x30] sm:$0xff]
          %v2706 = vld [vmem:[#allocation2 + $0x38] sm:$0xff]
          %v2707 = vld [vmem:[#allocation2 + $0x48] sm:$0xff]
          %v2708 = vld [vmem:[#allocation2 + $0x50] sm:$0xff]
          %v2709 = vld [vmem:[#allocation2 + $0x60] sm:$0xff]
          %v2710 = vld [vmem:[#allocation2 + $0x68] sm:$0xff]
          %v2711 = vld [vmem:[#allocation2 + $0x78] sm:$0xff]
          %v2712 = vld [vmem:[#allocation2 + $0x80] sm:$0xff]
          %v2713 = vld [vmem:[#allocation2 + $0x90] sm:$0xff]
          %v2714 = vld [vmem:[#allocation2 + $0x98] sm:$0xff]
          %v2715 = vld [vmem:[#allocation2 + $0xa8] sm:$0xff]
          %v2716 = vld [vmem:[#allocation2 + $0xb0] sm:$0xff]
          %v2717 = vld [vmem:[#allocation2 + $0xc0] sm:$0xff]
          %v2718 = vld [vmem:[#allocation2 + $0xc8] sm:$0xff]
          %v2719 = vld [vmem:[#allocation2 + $0xd8] sm:$0xff]
          %v2720 = vld [vmem:[#allocation2 + $0xe0] sm:$0xff]
          %v2721 = vld [vmem:[#allocation2 + $0xf0] sm:$0xff]
          %v2722 = vld [vmem:[#allocation2 + $0xf8] sm:$0xff]
          %v2723 = vld [vmem:[#allocation2 + $0x108] sm:$0xff]
          %v2724 = vld [vmem:[#allocation2 + $0x110] sm:$0xff]
          %v2725 = vld [vmem:[#allocation2 + $0x120] sm:$0xff]
          %v2726 = vld [vmem:[#allocation2 + $0x128] sm:$0xff]
          %v2727 = vld [vmem:[#allocation2 + $0x138] sm:$0xff]
          %v2728 = vld [vmem:[#allocation2 + $0x140] sm:$0xff]
          %v2729 = vld [vmem:[#allocation2 + $0x150] sm:$0xff]
          %v2730 = vld [vmem:[#allocation2 + $0x158] sm:$0xff]
          %v2731 = vld [vmem:[#allocation2 + $0x168] sm:$0xff]
          %v2732 = vld [vmem:[#allocation2 + $0x170] sm:$0xff]
          %2733 = vst [vmem:[#allocation3] sm:$0xff] %v2701
          %2734 = vst [vmem:[#allocation3 + $0x48] sm:$0xff] %v2702
          %2735 = vst [vmem:[#allocation3 + $0x90] sm:$0xff] %v2703
          %2736 = vst [vmem:[#allocation3 + $0xd8] sm:$0xff] %v2704
          %2737 = vst [vmem:[#allocation3 + $0x120] sm:$0xff] %v2705
          %2738 = vst [vmem:[#allocation3 + $0x168] sm:$0xff] %v2706
          %2739 = vst [vmem:[#allocation3 + $0x1b0] sm:$0xff] %v2707
          %2740 = vst [vmem:[#allocation3 + $0x1f8] sm:$0xff] %v2708
          %2741 = vst [vmem:[#allocation3 + $0x240] sm:$0xff] %v2709
          %2742 = vst [vmem:[#allocation3 + $0x288] sm:$0xff] %v2710
          %2743 = vst [vmem:[#allocation3 + $0x2d0] sm:$0xff] %v2711
          %2744 = vst [vmem:[#allocation3 + $0x318] sm:$0xff] %v2712
          %2745 = vst [vmem:[#allocation3 + $0x360] sm:$0xff] %v2713
          %2746 = vst [vmem:[#allocation3 + $0x3a8] sm:$0xff] %v2714
          %2747 = vst [vmem:[#allocation3 + $0x3f0] sm:$0xff] %v2715
          %2748 = vst [vmem:[#allocation3 + $0x438] sm:$0xff] %v2716
          %2749 = vst [vmem:[#allocation3 + $0x480] sm:$0xff] %v2717
          %2750 = vst [vmem:[#allocation3 + $0x4c8] sm:$0xff] %v2718
          %2751 = vst [vmem:[#allocation3 + $0x510] sm:$0xff] %v2719
          %2752 = vst [vmem:[#allocation3 + $0x558] sm:$0xff] %v2720
          %2753 = vst [vmem:[#allocation3 + $0x5a0] sm:$0xff] %v2721
          %2754 = vst [vmem:[#allocation3 + $0x5e8] sm:$0xff] %v2722
          %2755 = vst [vmem:[#allocation3 + $0x630] sm:$0xff] %v2723
          %2756 = vst [vmem:[#allocation3 + $0x678] sm:$0xff] %v2724
          %2757 = vst [vmem:[#allocation3 + $0x6c0] sm:$0xff] %v2725
          %2758 = vst [vmem:[#allocation3 + $0x708] sm:$0xff] %v2726
          %2759 = vst [vmem:[#allocation3 + $0x750] sm:$0xff] %v2727
          %2760 = vst [vmem:[#allocation3 + $0x798] sm:$0xff] %v2728
          %2761 = vst [vmem:[#allocation3 + $0x7e0] sm:$0xff] %v2729
          %2762 = vst [vmem:[#allocation3 + $0x828] sm:$0xff] %v2730
          %2763 = vst [vmem:[#allocation3 + $0x870] sm:$0xff] %v2731
          %2764 = vst [vmem:[#allocation3 + $0x8b8] sm:$0xff] %v2732
          %v2765 = vld [vmem:[#allocation2 + $0x1] sm:$0xff]
          %v2766 = vld [vmem:[#allocation2 + $0x9] sm:$0xff]
          %v2767 = vld [vmem:[#allocation2 + $0x19] sm:$0xff]
          %v2768 = vld [vmem:[#allocation2 + $0x21] sm:$0xff]
          %v2769 = vld [vmem:[#allocation2 + $0x31] sm:$0xff]
          %v2770 = vld [vmem:[#allocation2 + $0x39] sm:$0xff]
          %v2771 = vld [vmem:[#allocation2 + $0x49] sm:$0xff]
          %v2772 = vld [vmem:[#allocation2 + $0x51] sm:$0xff]
          %v2773 = vld [vmem:[#allocation2 + $0x61] sm:$0xff]
          %v2774 = vld [vmem:[#allocation2 + $0x69] sm:$0xff]
          %v2775 = vld [vmem:[#allocation2 + $0x79] sm:$0xff]
          %v2776 = vld [vmem:[#allocation2 + $0x81] sm:$0xff]
          %v2777 = vld [vmem:[#allocation2 + $0x91] sm:$0xff]
          %v2778 = vld [vmem:[#allocation2 + $0x99] sm:$0xff]
          %v2779 = vld [vmem:[#allocation2 + $0xa9] sm:$0xff]
          %v2780 = vld [vmem:[#allocation2 + $0xb1] sm:$0xff]
          %v2781 = vld [vmem:[#allocation2 + $0xc1] sm:$0xff]
          %v2782 = vld [vmem:[#allocation2 + $0xc9] sm:$0xff]
          %v2783 = vld [vmem:[#allocation2 + $0xd9] sm:$0xff]
          %v2784 = vld [vmem:[#allocation2 + $0xe1] sm:$0xff]
          %v2785 = vld [vmem:[#allocation2 + $0xf1] sm:$0xff]
          %v2786 = vld [vmem:[#allocation2 + $0xf9] sm:$0xff]
          %v2787 = vld [vmem:[#allocation2 + $0x109] sm:$0xff]
          %v2788 = vld [vmem:[#allocation2 + $0x111] sm:$0xff]
          %v2789 = vld [vmem:[#allocation2 + $0x121] sm:$0xff]
          %v2790 = vld [vmem:[#allocation2 + $0x129] sm:$0xff]
          %v2791 = vld [vmem:[#allocation2 + $0x139] sm:$0xff]
          %v2792 = vld [vmem:[#allocation2 + $0x141] sm:$0xff]
          %v2793 = vld [vmem:[#allocation2 + $0x151] sm:$0xff]
          %v2794 = vld [vmem:[#allocation2 + $0x159] sm:$0xff]
          %v2795 = vld [vmem:[#allocation2 + $0x169] sm:$0xff]
          %v2796 = vld [vmem:[#allocation2 + $0x171] sm:$0xff]
          %2797 = vst [vmem:[#allocation3 + $0x8] sm:$0xff] %v2765
          %2798 = vst [vmem:[#allocation3 + $0x50] sm:$0xff] %v2766
          %2799 = vst [vmem:[#allocation3 + $0x98] sm:$0xff] %v2767
          %2800 = vst [vmem:[#allocation3 + $0xe0] sm:$0xff] %v2768
          %2801 = vst [vmem:[#allocation3 + $0x128] sm:$0xff] %v2769
          %2802 = vst [vmem:[#allocation3 + $0x170] sm:$0xff] %v2770
          %2803 = vst [vmem:[#allocation3 + $0x1b8] sm:$0xff] %v2771
          %2804 = vst [vmem:[#allocation3 + $0x200] sm:$0xff] %v2772
          %2805 = vst [vmem:[#allocation3 + $0x248] sm:$0xff] %v2773
          %2806 = vst [vmem:[#allocation3 + $0x290] sm:$0xff] %v2774
          %2807 = vst [vmem:[#allocation3 + $0x2d8] sm:$0xff] %v2775
          %2808 = vst [vmem:[#allocation3 + $0x320] sm:$0xff] %v2776
          %2809 = vst [vmem:[#allocation3 + $0x368] sm:$0xff] %v2777
          %2810 = vst [vmem:[#allocation3 + $0x3b0] sm:$0xff] %v2778
          %2811 = vst [vmem:[#allocation3 + $0x3f8] sm:$0xff] %v2779
          %2812 = vst [vmem:[#allocation3 + $0x440] sm:$0xff] %v2780
          %2813 = vst [vmem:[#allocation3 + $0x488] sm:$0xff] %v2781
          %2814 = vst [vmem:[#allocation3 + $0x4d0] sm:$0xff] %v2782
          %2815 = vst [vmem:[#allocation3 + $0x518] sm:$0xff] %v2783
          %2816 = vst [vmem:[#allocation3 + $0x560] sm:$0xff] %v2784
          %2817 = vst [vmem:[#allocation3 + $0x5a8] sm:$0xff] %v2785
          %2818 = vst [vmem:[#allocation3 + $0x5f0] sm:$0xff] %v2786
          %2819 = vst [vmem:[#allocation3 + $0x638] sm:$0xff] %v2787
          %2820 = vst [vmem:[#allocation3 + $0x680] sm:$0xff] %v2788
          %2821 = vst [vmem:[#allocation3 + $0x6c8] sm:$0xff] %v2789
          %2822 = vst [vmem:[#allocation3 + $0x710] sm:$0xff] %v2790
          %2823 = vst [vmem:[#allocation3 + $0x758] sm:$0xff] %v2791
          %2824 = vst [vmem:[#allocation3 + $0x7a0] sm:$0xff] %v2792
          %2825 = vst [vmem:[#allocation3 + $0x7e8] sm:$0xff] %v2793
          %2826 = vst [vmem:[#allocation3 + $0x830] sm:$0xff] %v2794
          %2827 = vst [vmem:[#allocation3 + $0x878] sm:$0xff] %v2795
          %2828 = vst [vmem:[#allocation3 + $0x8c0] sm:$0xff] %v2796
          %v2829 = vld [vmem:[#allocation2 + $0x2] sm:$0xff]
          %v2830 = vld [vmem:[#allocation2 + $0xa] sm:$0xff]
          %v2831 = vld [vmem:[#allocation2 + $0x1a] sm:$0xff]
          %v2832 = vld [vmem:[#allocation2 + $0x22] sm:$0xff]
          %v2833 = vld [vmem:[#allocation2 + $0x32] sm:$0xff]
          %v2834 = vld [vmem:[#allocation2 + $0x3a] sm:$0xff]
          %v2835 = vld [vmem:[#allocation2 + $0x4a] sm:$0xff]
          %v2836 = vld [vmem:[#allocation2 + $0x52] sm:$0xff]
          %v2837 = vld [vmem:[#allocation2 + $0x62] sm:$0xff]
          %v2838 = vld [vmem:[#allocation2 + $0x6a] sm:$0xff]
          %v2839 = vld [vmem:[#allocation2 + $0x7a] sm:$0xff]
          %v2840 = vld [vmem:[#allocation2 + $0x82] sm:$0xff]
          %v2841 = vld [vmem:[#allocation2 + $0x92] sm:$0xff]
          %v2842 = vld [vmem:[#allocation2 + $0x9a] sm:$0xff]
          %v2843 = vld [vmem:[#allocation2 + $0xaa] sm:$0xff]
          %v2844 = vld [vmem:[#allocation2 + $0xb2] sm:$0xff]
          %v2845 = vld [vmem:[#allocation2 + $0xc2] sm:$0xff]
          %v2846 = vld [vmem:[#allocation2 + $0xca] sm:$0xff]
          %v2847 = vld [vmem:[#allocation2 + $0xda] sm:$0xff]
          %v2848 = vld [vmem:[#allocation2 + $0xe2] sm:$0xff]
          %v2849 = vld [vmem:[#allocation2 + $0xf2] sm:$0xff]
          %v2850 = vld [vmem:[#allocation2 + $0xfa] sm:$0xff]
          %v2851 = vld [vmem:[#allocation2 + $0x10a] sm:$0xff]
          %v2852 = vld [vmem:[#allocation2 + $0x112] sm:$0xff]
          %v2853 = vld [vmem:[#allocation2 + $0x122] sm:$0xff]
          %v2854 = vld [vmem:[#allocation2 + $0x12a] sm:$0xff]
          %v2855 = vld [vmem:[#allocation2 + $0x13a] sm:$0xff]
          %v2856 = vld [vmem:[#allocation2 + $0x142] sm:$0xff]
          %v2857 = vld [vmem:[#allocation2 + $0x152] sm:$0xff]
          %v2858 = vld [vmem:[#allocation2 + $0x15a] sm:$0xff]
          %v2859 = vld [vmem:[#allocation2 + $0x16a] sm:$0xff]
          %v2860 = vld [vmem:[#allocation2 + $0x172] sm:$0xff]
          %2861 = vst [vmem:[#allocation3 + $0x10] sm:$0xff] %v2829
          %2862 = vst [vmem:[#allocation3 + $0x58] sm:$0xff] %v2830
          %2863 = vst [vmem:[#allocation3 + $0xa0] sm:$0xff] %v2831
          %2864 = vst [vmem:[#allocation3 + $0xe8] sm:$0xff] %v2832
          %2865 = vst [vmem:[#allocation3 + $0x130] sm:$0xff] %v2833
          %2866 = vst [vmem:[#allocation3 + $0x178] sm:$0xff] %v2834
          %2867 = vst [vmem:[#allocation3 + $0x1c0] sm:$0xff] %v2835
          %2868 = vst [vmem:[#allocation3 + $0x208] sm:$0xff] %v2836
          %2869 = vst [vmem:[#allocation3 + $0x250] sm:$0xff] %v2837
          %2870 = vst [vmem:[#allocation3 + $0x298] sm:$0xff] %v2838
          %2871 = vst [vmem:[#allocation3 + $0x2e0] sm:$0xff] %v2839
          %2872 = vst [vmem:[#allocation3 + $0x328] sm:$0xff] %v2840
          %2873 = vst [vmem:[#allocation3 + $0x370] sm:$0xff] %v2841
          %2874 = vst [vmem:[#allocation3 + $0x3b8] sm:$0xff] %v2842
          %2875 = vst [vmem:[#allocation3 + $0x400] sm:$0xff] %v2843
          %2876 = vst [vmem:[#allocation3 + $0x448] sm:$0xff] %v2844
          %2877 = vst [vmem:[#allocation3 + $0x490] sm:$0xff] %v2845
          %2878 = vst [vmem:[#allocation3 + $0x4d8] sm:$0xff] %v2846
          %2879 = vst [vmem:[#allocation3 + $0x520] sm:$0xff] %v2847
          %2880 = vst [vmem:[#allocation3 + $0x568] sm:$0xff] %v2848
          %2881 = vst [vmem:[#allocation3 + $0x5b0] sm:$0xff] %v2849
          %2882 = vst [vmem:[#allocation3 + $0x5f8] sm:$0xff] %v2850
          %2883 = vst [vmem:[#allocation3 + $0x640] sm:$0xff] %v2851
          %2884 = vst [vmem:[#allocation3 + $0x688] sm:$0xff] %v2852
          %2885 = vst [vmem:[#allocation3 + $0x6d0] sm:$0xff] %v2853
          %2886 = vst [vmem:[#allocation3 + $0x718] sm:$0xff] %v2854
          %2887 = vst [vmem:[#allocation3 + $0x760] sm:$0xff] %v2855
          %2888 = vst [vmem:[#allocation3 + $0x7a8] sm:$0xff] %v2856
          %2889 = vst [vmem:[#allocation3 + $0x7f0] sm:$0xff] %v2857
          %2890 = vst [vmem:[#allocation3 + $0x838] sm:$0xff] %v2858
          %2891 = vst [vmem:[#allocation3 + $0x880] sm:$0xff] %v2859
          %2892 = vst [vmem:[#allocation3 + $0x8c8] sm:$0xff] %v2860
          %v2893 = vld [vmem:[%s406] sm:$0xff]
          %v2894 = vld [vmem:[%s406 + $0x8] sm:$0xff]
          %v2895 = vld [vmem:[%s406 + $0x18] sm:$0xff]
          %v2896 = vld [vmem:[%s406 + $0x20] sm:$0xff]
          %v2897 = vld [vmem:[%s406 + $0x30] sm:$0xff]
          %v2898 = vld [vmem:[%s406 + $0x38] sm:$0xff]
          %v2899 = vld [vmem:[%s406 + $0x48] sm:$0xff]
          %v2900 = vld [vmem:[%s406 + $0x50] sm:$0xff]
          %v2901 = vld [vmem:[%s406 + $0x60] sm:$0xff]
          %v2902 = vld [vmem:[%s406 + $0x68] sm:$0xff]
          %v2903 = vld [vmem:[%s406 + $0x78] sm:$0xff]
          %v2904 = vld [vmem:[%s406 + $0x80] sm:$0xff]
          %v2905 = vld [vmem:[%s406 + $0x90] sm:$0xff]
          %v2906 = vld [vmem:[%s406 + $0x98] sm:$0xff]
          %v2907 = vld [vmem:[%s406 + $0xa8] sm:$0xff]
          %v2908 = vld [vmem:[%s406 + $0xb0] sm:$0xff]
          %v2909 = vld [vmem:[%s406 + $0xc0] sm:$0xff]
          %v2910 = vld [vmem:[%s406 + $0xc8] sm:$0xff]
          %v2911 = vld [vmem:[%s406 + $0xd8] sm:$0xff]
          %v2912 = vld [vmem:[%s406 + $0xe0] sm:$0xff]
          %v2913 = vld [vmem:[%s406 + $0xf0] sm:$0xff]
          %v2914 = vld [vmem:[%s406 + $0xf8] sm:$0xff]
          %v2915 = vld [vmem:[%s406 + $0x108] sm:$0xff]
          %v2916 = vld [vmem:[%s406 + $0x110] sm:$0xff]
          %v2917 = vld [vmem:[%s406 + $0x120] sm:$0xff]
          %v2918 = vld [vmem:[%s406 + $0x128] sm:$0xff]
          %v2919 = vld [vmem:[%s406 + $0x138] sm:$0xff]
          %v2920 = vld [vmem:[%s406 + $0x140] sm:$0xff]
          %v2921 = vld [vmem:[%s406 + $0x150] sm:$0xff]
          %v2922 = vld [vmem:[%s406 + $0x158] sm:$0xff]
          %v2923 = vld [vmem:[%s406 + $0x168] sm:$0xff]
          %v2924 = vld [vmem:[%s406 + $0x170] sm:$0xff]
          %2925 = vst [vmem:[#allocation3 + $0x18] sm:$0xff] %v2893
          %2926 = vst [vmem:[#allocation3 + $0x60] sm:$0xff] %v2894
          %2927 = vst [vmem:[#allocation3 + $0xa8] sm:$0xff] %v2895
          %2928 = vst [vmem:[#allocation3 + $0xf0] sm:$0xff] %v2896
          %2929 = vst [vmem:[#allocation3 + $0x138] sm:$0xff] %v2897
          %2930 = vst [vmem:[#allocation3 + $0x180] sm:$0xff] %v2898
          %2931 = vst [vmem:[#allocation3 + $0x1c8] sm:$0xff] %v2899
          %2932 = vst [vmem:[#allocation3 + $0x210] sm:$0xff] %v2900
          %2933 = vst [vmem:[#allocation3 + $0x258] sm:$0xff] %v2901
          %2934 = vst [vmem:[#allocation3 + $0x2a0] sm:$0xff] %v2902
          %2935 = vst [vmem:[#allocation3 + $0x2e8] sm:$0xff] %v2903
          %2936 = vst [vmem:[#allocation3 + $0x330] sm:$0xff] %v2904
          %2937 = vst [vmem:[#allocation3 + $0x378] sm:$0xff] %v2905
          %2938 = vst [vmem:[#allocation3 + $0x3c0] sm:$0xff] %v2906
          %2939 = vst [vmem:[#allocation3 + $0x408] sm:$0xff] %v2907
          %2940 = vst [vmem:[#allocation3 + $0x450] sm:$0xff] %v2908
          %2941 = vst [vmem:[#allocation3 + $0x498] sm:$0xff] %v2909
          %2942 = vst [vmem:[#allocation3 + $0x4e0] sm:$0xff] %v2910
          %2943 = vst [vmem:[#allocation3 + $0x528] sm:$0xff] %v2911
          %2944 = vst [vmem:[#allocation3 + $0x570] sm:$0xff] %v2912
          %2945 = vst [vmem:[#allocation3 + $0x5b8] sm:$0xff] %v2913
          %2946 = vst [vmem:[#allocation3 + $0x600] sm:$0xff] %v2914
          %2947 = vst [vmem:[#allocation3 + $0x648] sm:$0xff] %v2915
          %2948 = vst [vmem:[#allocation3 + $0x690] sm:$0xff] %v2916
          %2949 = vst [vmem:[#allocation3 + $0x6d8] sm:$0xff] %v2917
          %2950 = vst [vmem:[#allocation3 + $0x720] sm:$0xff] %v2918
          %2951 = vst [vmem:[#allocation3 + $0x768] sm:$0xff] %v2919
          %2952 = vst [vmem:[#allocation3 + $0x7b0] sm:$0xff] %v2920
          %2953 = vst [vmem:[#allocation3 + $0x7f8] sm:$0xff] %v2921
          %2954 = vst [vmem:[#allocation3 + $0x840] sm:$0xff] %v2922
          %2955 = vst [vmem:[#allocation3 + $0x888] sm:$0xff] %v2923
          %2956 = vst [vmem:[#allocation3 + $0x8d0] sm:$0xff] %v2924
          %v2957 = vld [vmem:[%s406 + $0x1] sm:$0xff]
          %v2958 = vld [vmem:[%s406 + $0x9] sm:$0xff]
          %v2959 = vld [vmem:[%s406 + $0x19] sm:$0xff]
          %v2960 = vld [vmem:[%s406 + $0x21] sm:$0xff]
          %v2961 = vld [vmem:[%s406 + $0x31] sm:$0xff]
          %v2962 = vld [vmem:[%s406 + $0x39] sm:$0xff]
          %v2963 = vld [vmem:[%s406 + $0x49] sm:$0xff]
          %v2964 = vld [vmem:[%s406 + $0x51] sm:$0xff]
          %v2965 = vld [vmem:[%s406 + $0x61] sm:$0xff]
          %v2966 = vld [vmem:[%s406 + $0x69] sm:$0xff]
          %v2967 = vld [vmem:[%s406 + $0x79] sm:$0xff]
          %v2968 = vld [vmem:[%s406 + $0x81] sm:$0xff]
          %v2969 = vld [vmem:[%s406 + $0x91] sm:$0xff]
          %v2970 = vld [vmem:[%s406 + $0x99] sm:$0xff]
          %v2971 = vld [vmem:[%s406 + $0xa9] sm:$0xff]
          %v2972 = vld [vmem:[%s406 + $0xb1] sm:$0xff]
          %v2973 = vld [vmem:[%s406 + $0xc1] sm:$0xff]
          %v2974 = vld [vmem:[%s406 + $0xc9] sm:$0xff]
          %v2975 = vld [vmem:[%s406 + $0xd9] sm:$0xff]
          %v2976 = vld [vmem:[%s406 + $0xe1] sm:$0xff]
          %v2977 = vld [vmem:[%s406 + $0xf1] sm:$0xff]
          %v2978 = vld [vmem:[%s406 + $0xf9] sm:$0xff]
          %v2979 = vld [vmem:[%s406 + $0x109] sm:$0xff]
          %v2980 = vld [vmem:[%s406 + $0x111] sm:$0xff]
          %v2981 = vld [vmem:[%s406 + $0x121] sm:$0xff]
          %v2982 = vld [vmem:[%s406 + $0x129] sm:$0xff]
          %v2983 = vld [vmem:[%s406 + $0x139] sm:$0xff]
          %v2984 = vld [vmem:[%s406 + $0x141] sm:$0xff]
          %v2985 = vld [vmem:[%s406 + $0x151] sm:$0xff]
          %v2986 = vld [vmem:[%s406 + $0x159] sm:$0xff]
          %v2987 = vld [vmem:[%s406 + $0x169] sm:$0xff]
          %v2988 = vld [vmem:[%s406 + $0x171] sm:$0xff]
          %2989 = vst [vmem:[#allocation3 + $0x20] sm:$0xff] %v2957
          %2990 = vst [vmem:[#allocation3 + $0x68] sm:$0xff] %v2958
          %2991 = vst [vmem:[#allocation3 + $0xb0] sm:$0xff] %v2959
          %2992 = vst [vmem:[#allocation3 + $0xf8] sm:$0xff] %v2960
          %2993 = vst [vmem:[#allocation3 + $0x140] sm:$0xff] %v2961
          %2994 = vst [vmem:[#allocation3 + $0x188] sm:$0xff] %v2962
          %2995 = vst [vmem:[#allocation3 + $0x1d0] sm:$0xff] %v2963
          %2996 = vst [vmem:[#allocation3 + $0x218] sm:$0xff] %v2964
          %2997 = vst [vmem:[#allocation3 + $0x260] sm:$0xff] %v2965
          %2998 = vst [vmem:[#allocation3 + $0x2a8] sm:$0xff] %v2966
          %2999 = vst [vmem:[#allocation3 + $0x2f0] sm:$0xff] %v2967
          %3000 = vst [vmem:[#allocation3 + $0x338] sm:$0xff] %v2968
          %3001 = vst [vmem:[#allocation3 + $0x380] sm:$0xff] %v2969
          %3002 = vst [vmem:[#allocation3 + $0x3c8] sm:$0xff] %v2970
          %3003 = vst [vmem:[#allocation3 + $0x410] sm:$0xff] %v2971
          %3004 = vst [vmem:[#allocation3 + $0x458] sm:$0xff] %v2972
          %3005 = vst [vmem:[#allocation3 + $0x4a0] sm:$0xff] %v2973
          %3006 = vst [vmem:[#allocation3 + $0x4e8] sm:$0xff] %v2974
          %3007 = vst [vmem:[#allocation3 + $0x530] sm:$0xff] %v2975
          %3008 = vst [vmem:[#allocation3 + $0x578] sm:$0xff] %v2976
          %3009 = vst [vmem:[#allocation3 + $0x5c0] sm:$0xff] %v2977
          %3010 = vst [vmem:[#allocation3 + $0x608] sm:$0xff] %v2978
          %3011 = vst [vmem:[#allocation3 + $0x650] sm:$0xff] %v2979
          %3012 = vst [vmem:[#allocation3 + $0x698] sm:$0xff] %v2980
          %3013 = vst [vmem:[#allocation3 + $0x6e0] sm:$0xff] %v2981
          %3014 = vst [vmem:[#allocation3 + $0x728] sm:$0xff] %v2982
          %3015 = vst [vmem:[#allocation3 + $0x770] sm:$0xff] %v2983
          %3016 = vst [vmem:[#allocation3 + $0x7b8] sm:$0xff] %v2984
          %3017 = vst [vmem:[#allocation3 + $0x800] sm:$0xff] %v2985
          %3018 = vst [vmem:[#allocation3 + $0x848] sm:$0xff] %v2986
          %3019 = vst [vmem:[#allocation3 + $0x890] sm:$0xff] %v2987
          %3020 = vst [vmem:[#allocation3 + $0x8d8] sm:$0xff] %v2988
          %v3021 = vld [vmem:[%s406 + $0x2] sm:$0xff]
          %v3022 = vld [vmem:[%s406 + $0xa] sm:$0xff]
          %v3023 = vld [vmem:[%s406 + $0x1a] sm:$0xff]
          %v3024 = vld [vmem:[%s406 + $0x22] sm:$0xff]
          %v3025 = vld [vmem:[%s406 + $0x32] sm:$0xff]
          %v3026 = vld [vmem:[%s406 + $0x3a] sm:$0xff]
          %v3027 = vld [vmem:[%s406 + $0x4a] sm:$0xff]
          %v3028 = vld [vmem:[%s406 + $0x52] sm:$0xff]
          %v3029 = vld [vmem:[%s406 + $0x62] sm:$0xff]
          %v3030 = vld [vmem:[%s406 + $0x6a] sm:$0xff]
          %v3031 = vld [vmem:[%s406 + $0x7a] sm:$0xff]
          %v3032 = vld [vmem:[%s406 + $0x82] sm:$0xff]
          %v3033 = vld [vmem:[%s406 + $0x92] sm:$0xff]
          %v3034 = vld [vmem:[%s406 + $0x9a] sm:$0xff]
          %v3035 = vld [vmem:[%s406 + $0xaa] sm:$0xff]
          %v3036 = vld [vmem:[%s406 + $0xb2] sm:$0xff]
          %v3037 = vld [vmem:[%s406 + $0xc2] sm:$0xff]
          %v3038 = vld [vmem:[%s406 + $0xca] sm:$0xff]
          %v3039 = vld [vmem:[%s406 + $0xda] sm:$0xff]
          %v3040 = vld [vmem:[%s406 + $0xe2] sm:$0xff]
          %v3041 = vld [vmem:[%s406 + $0xf2] sm:$0xff]
          %v3042 = vld [vmem:[%s406 + $0xfa] sm:$0xff]
          %v3043 = vld [vmem:[%s406 + $0x10a] sm:$0xff]
          %v3044 = vld [vmem:[%s406 + $0x112] sm:$0xff]
          %v3045 = vld [vmem:[%s406 + $0x122] sm:$0xff]
          %v3046 = vld [vmem:[%s406 + $0x12a] sm:$0xff]
          %v3047 = vld [vmem:[%s406 + $0x13a] sm:$0xff]
          %v3048 = vld [vmem:[%s406 + $0x142] sm:$0xff]
          %v3049 = vld [vmem:[%s406 + $0x152] sm:$0xff]
          %v3050 = vld [vmem:[%s406 + $0x15a] sm:$0xff]
          %v3051 = vld [vmem:[%s406 + $0x16a] sm:$0xff]
          %v3052 = vld [vmem:[%s406 + $0x172] sm:$0xff]
          %3053 = vst [vmem:[#allocation3 + $0x28] sm:$0xff] %v3021
          %3054 = vst [vmem:[#allocation3 + $0x70] sm:$0xff] %v3022
          %3055 = vst [vmem:[#allocation3 + $0xb8] sm:$0xff] %v3023
          %3056 = vst [vmem:[#allocation3 + $0x100] sm:$0xff] %v3024
          %3057 = vst [vmem:[#allocation3 + $0x148] sm:$0xff] %v3025
          %3058 = vst [vmem:[#allocation3 + $0x190] sm:$0xff] %v3026
          %3059 = vst [vmem:[#allocation3 + $0x1d8] sm:$0xff] %v3027
          %3060 = vst [vmem:[#allocation3 + $0x220] sm:$0xff] %v3028
          %3061 = vst [vmem:[#allocation3 + $0x268] sm:$0xff] %v3029
          %3062 = vst [vmem:[#allocation3 + $0x2b0] sm:$0xff] %v3030
          %3063 = vst [vmem:[#allocation3 + $0x2f8] sm:$0xff] %v3031
          %3064 = vst [vmem:[#allocation3 + $0x340] sm:$0xff] %v3032
          %3065 = vst [vmem:[#allocation3 + $0x388] sm:$0xff] %v3033
          %3066 = vst [vmem:[#allocation3 + $0x3d0] sm:$0xff] %v3034
          %3067 = vst [vmem:[#allocation3 + $0x418] sm:$0xff] %v3035
          %3068 = vst [vmem:[#allocation3 + $0x460] sm:$0xff] %v3036
          %3069 = vst [vmem:[#allocation3 + $0x4a8] sm:$0xff] %v3037
          %3070 = vst [vmem:[#allocation3 + $0x4f0] sm:$0xff] %v3038
          %3071 = vst [vmem:[#allocation3 + $0x538] sm:$0xff] %v3039
          %3072 = vst [vmem:[#allocation3 + $0x580] sm:$0xff] %v3040
          %3073 = vst [vmem:[#allocation3 + $0x5c8] sm:$0xff] %v3041
          %3074 = vst [vmem:[#allocation3 + $0x610] sm:$0xff] %v3042
          %3075 = vst [vmem:[#allocation3 + $0x658] sm:$0xff] %v3043
          %3076 = vst [vmem:[#allocation3 + $0x6a0] sm:$0xff] %v3044
          %3077 = vst [vmem:[#allocation3 + $0x6e8] sm:$0xff] %v3045
          %3078 = vst [vmem:[#allocation3 + $0x730] sm:$0xff] %v3046
          %3079 = vst [vmem:[#allocation3 + $0x778] sm:$0xff] %v3047
          %3080 = vst [vmem:[#allocation3 + $0x7c0] sm:$0xff] %v3048
          %3081 = vst [vmem:[#allocation3 + $0x808] sm:$0xff] %v3049
          %3082 = vst [vmem:[#allocation3 + $0x850] sm:$0xff] %v3050
          %3083 = vst [vmem:[#allocation3 + $0x898] sm:$0xff] %v3051
          %3084 = vst [vmem:[#allocation3 + $0x8e0] sm:$0xff] %v3052
          %v3085 = vld [vmem:[%s823] sm:$0xff]
          %v3086 = vld [vmem:[%s823 + $0x8] sm:$0xff]
          %v3087 = vld [vmem:[%s823 + $0x18] sm:$0xff]
          %v3088 = vld [vmem:[%s823 + $0x20] sm:$0xff]
          %v3089 = vld [vmem:[%s823 + $0x30] sm:$0xff]
          %v3090 = vld [vmem:[%s823 + $0x38] sm:$0xff]
          %v3091 = vld [vmem:[%s823 + $0x48] sm:$0xff]
          %v3092 = vld [vmem:[%s823 + $0x50] sm:$0xff]
          %v3093 = vld [vmem:[%s823 + $0x60] sm:$0xff]
          %v3094 = vld [vmem:[%s823 + $0x68] sm:$0xff]
          %v3095 = vld [vmem:[%s823 + $0x78] sm:$0xff]
          %v3096 = vld [vmem:[%s823 + $0x80] sm:$0xff]
          %v3097 = vld [vmem:[%s823 + $0x90] sm:$0xff]
          %v3098 = vld [vmem:[%s823 + $0x98] sm:$0xff]
          %v3099 = vld [vmem:[%s823 + $0xa8] sm:$0xff]
          %v3100 = vld [vmem:[%s823 + $0xb0] sm:$0xff]
          %v3101 = vld [vmem:[%s823 + $0xc0] sm:$0xff]
          %v3102 = vld [vmem:[%s823 + $0xc8] sm:$0xff]
          %v3103 = vld [vmem:[%s823 + $0xd8] sm:$0xff]
          %v3104 = vld [vmem:[%s823 + $0xe0] sm:$0xff]
          %v3105 = vld [vmem:[%s823 + $0xf0] sm:$0xff]
          %v3106 = vld [vmem:[%s823 + $0xf8] sm:$0xff]
          %v3107 = vld [vmem:[%s823 + $0x108] sm:$0xff]
          %v3108 = vld [vmem:[%s823 + $0x110] sm:$0xff]
          %v3109 = vld [vmem:[%s823 + $0x120] sm:$0xff]
          %v3110 = vld [vmem:[%s823 + $0x128] sm:$0xff]
          %v3111 = vld [vmem:[%s823 + $0x138] sm:$0xff]
          %v3112 = vld [vmem:[%s823 + $0x140] sm:$0xff]
          %v3113 = vld [vmem:[%s823 + $0x150] sm:$0xff]
          %v3114 = vld [vmem:[%s823 + $0x158] sm:$0xff]
          %v3115 = vld [vmem:[%s823 + $0x168] sm:$0xff]
          %v3116 = vld [vmem:[%s823 + $0x170] sm:$0xff]
          %3117 = vst [vmem:[#allocation3 + $0x30] sm:$0xff] %v3085
          %3118 = vst [vmem:[#allocation3 + $0x78] sm:$0xff] %v3086
          %3119 = vst [vmem:[#allocation3 + $0xc0] sm:$0xff] %v3087
          %3120 = vst [vmem:[#allocation3 + $0x108] sm:$0xff] %v3088
          %3121 = vst [vmem:[#allocation3 + $0x150] sm:$0xff] %v3089
          %3122 = vst [vmem:[#allocation3 + $0x198] sm:$0xff] %v3090
          %3123 = vst [vmem:[#allocation3 + $0x1e0] sm:$0xff] %v3091
          %3124 = vst [vmem:[#allocation3 + $0x228] sm:$0xff] %v3092
          %3125 = vst [vmem:[#allocation3 + $0x270] sm:$0xff] %v3093
          %3126 = vst [vmem:[#allocation3 + $0x2b8] sm:$0xff] %v3094
          %3127 = vst [vmem:[#allocation3 + $0x300] sm:$0xff] %v3095
          %3128 = vst [vmem:[#allocation3 + $0x348] sm:$0xff] %v3096
          %3129 = vst [vmem:[#allocation3 + $0x390] sm:$0xff] %v3097
          %3130 = vst [vmem:[#allocation3 + $0x3d8] sm:$0xff] %v3098
          %3131 = vst [vmem:[#allocation3 + $0x420] sm:$0xff] %v3099
          %3132 = vst [vmem:[#allocation3 + $0x468] sm:$0xff] %v3100
          %3133 = vst [vmem:[#allocation3 + $0x4b0] sm:$0xff] %v3101
          %3134 = vst [vmem:[#allocation3 + $0x4f8] sm:$0xff] %v3102
          %3135 = vst [vmem:[#allocation3 + $0x540] sm:$0xff] %v3103
          %3136 = vst [vmem:[#allocation3 + $0x588] sm:$0xff] %v3104
          %3137 = vst [vmem:[#allocation3 + $0x5d0] sm:$0xff] %v3105
          %3138 = vst [vmem:[#allocation3 + $0x618] sm:$0xff] %v3106
          %3139 = vst [vmem:[#allocation3 + $0x660] sm:$0xff] %v3107
          %3140 = vst [vmem:[#allocation3 + $0x6a8] sm:$0xff] %v3108
          %3141 = vst [vmem:[#allocation3 + $0x6f0] sm:$0xff] %v3109
          %3142 = vst [vmem:[#allocation3 + $0x738] sm:$0xff] %v3110
          %3143 = vst [vmem:[#allocation3 + $0x780] sm:$0xff] %v3111
          %3144 = vst [vmem:[#allocation3 + $0x7c8] sm:$0xff] %v3112
          %3145 = vst [vmem:[#allocation3 + $0x810] sm:$0xff] %v3113
          %3146 = vst [vmem:[#allocation3 + $0x858] sm:$0xff] %v3114
          %3147 = vst [vmem:[#allocation3 + $0x8a0] sm:$0xff] %v3115
          %3148 = vst [vmem:[#allocation3 + $0x8e8] sm:$0xff] %v3116
          %v3149 = vld [vmem:[%s823 + $0x1] sm:$0xff]
          %v3150 = vld [vmem:[%s823 + $0x9] sm:$0xff]
          %v3151 = vld [vmem:[%s823 + $0x19] sm:$0xff]
          %v3152 = vld [vmem:[%s823 + $0x21] sm:$0xff]
          %v3153 = vld [vmem:[%s823 + $0x31] sm:$0xff]
          %v3154 = vld [vmem:[%s823 + $0x39] sm:$0xff]
          %v3155 = vld [vmem:[%s823 + $0x49] sm:$0xff]
          %v3156 = vld [vmem:[%s823 + $0x51] sm:$0xff]
          %v3157 = vld [vmem:[%s823 + $0x61] sm:$0xff]
          %v3158 = vld [vmem:[%s823 + $0x69] sm:$0xff]
          %v3159 = vld [vmem:[%s823 + $0x79] sm:$0xff]
          %v3160 = vld [vmem:[%s823 + $0x81] sm:$0xff]
          %v3161 = vld [vmem:[%s823 + $0x91] sm:$0xff]
          %v3162 = vld [vmem:[%s823 + $0x99] sm:$0xff]
          %v3163 = vld [vmem:[%s823 + $0xa9] sm:$0xff]
          %v3164 = vld [vmem:[%s823 + $0xb1] sm:$0xff]
          %v3165 = vld [vmem:[%s823 + $0xc1] sm:$0xff]
          %v3166 = vld [vmem:[%s823 + $0xc9] sm:$0xff]
          %v3167 = vld [vmem:[%s823 + $0xd9] sm:$0xff]
          %v3168 = vld [vmem:[%s823 + $0xe1] sm:$0xff]
          %v3169 = vld [vmem:[%s823 + $0xf1] sm:$0xff]
          %v3170 = vld [vmem:[%s823 + $0xf9] sm:$0xff]
          %v3171 = vld [vmem:[%s823 + $0x109] sm:$0xff]
          %v3172 = vld [vmem:[%s823 + $0x111] sm:$0xff]
          %v3173 = vld [vmem:[%s823 + $0x121] sm:$0xff]
          %v3174 = vld [vmem:[%s823 + $0x129] sm:$0xff]
          %v3175 = vld [vmem:[%s823 + $0x139] sm:$0xff]
          %v3176 = vld [vmem:[%s823 + $0x141] sm:$0xff]
          %v3177 = vld [vmem:[%s823 + $0x151] sm:$0xff]
          %v3178 = vld [vmem:[%s823 + $0x159] sm:$0xff]
          %v3179 = vld [vmem:[%s823 + $0x169] sm:$0xff]
          %v3180 = vld [vmem:[%s823 + $0x171] sm:$0xff]
          %3181 = vst [vmem:[#allocation3 + $0x38] sm:$0xff] %v3149
          %3182 = vst [vmem:[#allocation3 + $0x80] sm:$0xff] %v3150
          %3183 = vst [vmem:[#allocation3 + $0xc8] sm:$0xff] %v3151
          %3184 = vst [vmem:[#allocation3 + $0x110] sm:$0xff] %v3152
          %3185 = vst [vmem:[#allocation3 + $0x158] sm:$0xff] %v3153
          %3186 = vst [vmem:[#allocation3 + $0x1a0] sm:$0xff] %v3154
          %3187 = vst [vmem:[#allocation3 + $0x1e8] sm:$0xff] %v3155
          %3188 = vst [vmem:[#allocation3 + $0x230] sm:$0xff] %v3156
          %3189 = vst [vmem:[#allocation3 + $0x278] sm:$0xff] %v3157
          %3190 = vst [vmem:[#allocation3 + $0x2c0] sm:$0xff] %v3158
          %3191 = vst [vmem:[#allocation3 + $0x308] sm:$0xff] %v3159
          %3192 = vst [vmem:[#allocation3 + $0x350] sm:$0xff] %v3160
          %3193 = vst [vmem:[#allocation3 + $0x398] sm:$0xff] %v3161
          %3194 = vst [vmem:[#allocation3 + $0x3e0] sm:$0xff] %v3162
          %3195 = vst [vmem:[#allocation3 + $0x428] sm:$0xff] %v3163
          %3196 = vst [vmem:[#allocation3 + $0x470] sm:$0xff] %v3164
          %3197 = vst [vmem:[#allocation3 + $0x4b8] sm:$0xff] %v3165
          %3198 = vst [vmem:[#allocation3 + $0x500] sm:$0xff] %v3166
          %3199 = vst [vmem:[#allocation3 + $0x548] sm:$0xff] %v3167
          %3200 = vst [vmem:[#allocation3 + $0x590] sm:$0xff] %v3168
          %3201 = vst [vmem:[#allocation3 + $0x5d8] sm:$0xff] %v3169
          %3202 = vst [vmem:[#allocation3 + $0x620] sm:$0xff] %v3170
          %3203 = vst [vmem:[#allocation3 + $0x668] sm:$0xff] %v3171
          %3204 = vst [vmem:[#allocation3 + $0x6b0] sm:$0xff] %v3172
          %3205 = vst [vmem:[#allocation3 + $0x6f8] sm:$0xff] %v3173
          %3206 = vst [vmem:[#allocation3 + $0x740] sm:$0xff] %v3174
          %3207 = vst [vmem:[#allocation3 + $0x788] sm:$0xff] %v3175
          %3208 = vst [vmem:[#allocation3 + $0x7d0] sm:$0xff] %v3176
          %3209 = vst [vmem:[#allocation3 + $0x818] sm:$0xff] %v3177
          %3210 = vst [vmem:[#allocation3 + $0x860] sm:$0xff] %v3178
          %3211 = vst [vmem:[#allocation3 + $0x8a8] sm:$0xff] %v3179
          %3212 = vst [vmem:[#allocation3 + $0x8f0] sm:$0xff] %v3180
          %v3213 = vld [vmem:[%s823 + $0x2] sm:$0xff]
          %v3214 = vld [vmem:[%s823 + $0xa] sm:$0xff]
          %v3215 = vld [vmem:[%s823 + $0x1a] sm:$0xff]
          %v3216 = vld [vmem:[%s823 + $0x22] sm:$0xff]
          %v3217 = vld [vmem:[%s823 + $0x32] sm:$0xff]
          %v3218 = vld [vmem:[%s823 + $0x3a] sm:$0xff]
          %v3219 = vld [vmem:[%s823 + $0x4a] sm:$0xff]
          %v3220 = vld [vmem:[%s823 + $0x52] sm:$0xff]
          %v3221 = vld [vmem:[%s823 + $0x62] sm:$0xff]
          %v3222 = vld [vmem:[%s823 + $0x6a] sm:$0xff]
          %v3223 = vld [vmem:[%s823 + $0x7a] sm:$0xff]
          %v3224 = vld [vmem:[%s823 + $0x82] sm:$0xff]
          %v3225 = vld [vmem:[%s823 + $0x92] sm:$0xff]
          %v3226 = vld [vmem:[%s823 + $0x9a] sm:$0xff]
          %v3227 = vld [vmem:[%s823 + $0xaa] sm:$0xff]
          %v3228 = vld [vmem:[%s823 + $0xb2] sm:$0xff]
          %v3229 = vld [vmem:[%s823 + $0xc2] sm:$0xff]
          %v3230 = vld [vmem:[%s823 + $0xca] sm:$0xff]
          %v3231 = vld [vmem:[%s823 + $0xda] sm:$0xff]
          %v3232 = vld [vmem:[%s823 + $0xe2] sm:$0xff]
          %v3233 = vld [vmem:[%s823 + $0xf2] sm:$0xff]
          %v3234 = vld [vmem:[%s823 + $0xfa] sm:$0xff]
          %v3235 = vld [vmem:[%s823 + $0x10a] sm:$0xff]
          %v3236 = vld [vmem:[%s823 + $0x112] sm:$0xff]
          %v3237 = vld [vmem:[%s823 + $0x122] sm:$0xff]
          %v3238 = vld [vmem:[%s823 + $0x12a] sm:$0xff]
          %v3239 = vld [vmem:[%s823 + $0x13a] sm:$0xff]
          %v3240 = vld [vmem:[%s823 + $0x142] sm:$0xff]
          %v3241 = vld [vmem:[%s823 + $0x152] sm:$0xff]
          %v3242 = vld [vmem:[%s823 + $0x15a] sm:$0xff]
          %v3243 = vld [vmem:[%s823 + $0x16a] sm:$0xff]
          %v3244 = vld [vmem:[%s823 + $0x172] sm:$0xff]
          %3245 = vst [vmem:[#allocation3 + $0x40] sm:$0xff] %v3213
          %3246 = vst [vmem:[#allocation3 + $0x88] sm:$0xff] %v3214
          %3247 = vst [vmem:[#allocation3 + $0xd0] sm:$0xff] %v3215
          %3248 = vst [vmem:[#allocation3 + $0x118] sm:$0xff] %v3216
          %3249 = vst [vmem:[#allocation3 + $0x160] sm:$0xff] %v3217
          %3250 = vst [vmem:[#allocation3 + $0x1a8] sm:$0xff] %v3218
          %3251 = vst [vmem:[#allocation3 + $0x1f0] sm:$0xff] %v3219
          %3252 = vst [vmem:[#allocation3 + $0x238] sm:$0xff] %v3220
          %3253 = vst [vmem:[#allocation3 + $0x280] sm:$0xff] %v3221
          %3254 = vst [vmem:[#allocation3 + $0x2c8] sm:$0xff] %v3222
          %3255 = vst [vmem:[#allocation3 + $0x310] sm:$0xff] %v3223
          %3256 = vst [vmem:[#allocation3 + $0x358] sm:$0xff] %v3224
          %3257 = vst [vmem:[#allocation3 + $0x3a0] sm:$0xff] %v3225
          %3258 = vst [vmem:[#allocation3 + $0x3e8] sm:$0xff] %v3226
          %3259 = vst [vmem:[#allocation3 + $0x430] sm:$0xff] %v3227
          %3260 = vst [vmem:[#allocation3 + $0x478] sm:$0xff] %v3228
          %3261 = vst [vmem:[#allocation3 + $0x4c0] sm:$0xff] %v3229
          %3262 = vst [vmem:[#allocation3 + $0x508] sm:$0xff] %v3230
          %3263 = vst [vmem:[#allocation3 + $0x550] sm:$0xff] %v3231
          %3264 = vst [vmem:[#allocation3 + $0x598] sm:$0xff] %v3232
          %3265 = vst [vmem:[#allocation3 + $0x5e0] sm:$0xff] %v3233
          %3266 = vst [vmem:[#allocation3 + $0x628] sm:$0xff] %v3234
          %3267 = vst [vmem:[#allocation3 + $0x670] sm:$0xff] %v3235
          %3268 = vst [vmem:[#allocation3 + $0x6b8] sm:$0xff] %v3236
          %3269 = vst [vmem:[#allocation3 + $0x700] sm:$0xff] %v3237
          %3270 = vst [vmem:[#allocation3 + $0x748] sm:$0xff] %v3238
          %3271 = vst [vmem:[#allocation3 + $0x790] sm:$0xff] %v3239
          %3272 = vst [vmem:[#allocation3 + $0x7d8] sm:$0xff] %v3240
          %3273 = vst [vmem:[#allocation3 + $0x820] sm:$0xff] %v3241
          %3274 = vst [vmem:[#allocation3 + $0x868] sm:$0xff] %v3242
          %3275 = vst [vmem:[#allocation3 + $0x8b0] sm:$0xff] %v3243
          %3276 = vst [vmem:[#allocation3 + $0x8f8] sm:$0xff] %v3244
          %v3277 = vld [vmem:[#allocation3] sm:$0xff]
          %v3278 = vld [vmem:[#allocation3 + $0x8] sm:$0xff]
          %v3279 = vld [vmem:[#allocation3 + $0x10] sm:$0xff]
          %v3280 = vld [vmem:[#allocation3 + $0x18] sm:$0xff]
          %v3281 = vld [vmem:[#allocation3 + $0x20] sm:$0xff]
          %v3282 = vld [vmem:[#allocation3 + $0x28] sm:$0xff]
          %v3283 = vld [vmem:[#allocation3 + $0x30] sm:$0xff]
          %v3284 = vld [vmem:[#allocation3 + $0x38] sm:$0xff]
          %v3285 = vld [vmem:[#allocation3 + $0x40] sm:$0xff]
          %v3286 = vld [vmem:[#allocation3 + $0x48] sm:$0xff]
          %v3287 = vld [vmem:[#allocation3 + $0x50] sm:$0xff]
          %v3288 = vld [vmem:[#allocation3 + $0x58] sm:$0xff]
          %v3289 = vld [vmem:[#allocation3 + $0x60] sm:$0xff]
          %v3290 = vld [vmem:[#allocation3 + $0x68] sm:$0xff]
          %v3291 = vld [vmem:[#allocation3 + $0x70] sm:$0xff]
          %v3292 = vld [vmem:[#allocation3 + $0x78] sm:$0xff]
          %v3293 = vld [vmem:[#allocation3 + $0x80] sm:$0xff]
          %v3294 = vld [vmem:[#allocation3 + $0x88] sm:$0xff]
          %v3295 = vld [vmem:[#allocation3 + $0x90] sm:$0xff]
          %v3296 = vld [vmem:[#allocation3 + $0x98] sm:$0xff]
          %v3297 = vld [vmem:[#allocation3 + $0xa0] sm:$0xff]
          %v3298 = vld [vmem:[#allocation3 + $0xa8] sm:$0xff]
          %v3299 = vld [vmem:[#allocation3 + $0xb0] sm:$0xff]
          %v3300 = vld [vmem:[#allocation3 + $0xb8] sm:$0xff]
          %v3301 = vld [vmem:[#allocation3 + $0xc0] sm:$0xff]
          %v3302 = vld [vmem:[#allocation3 + $0xc8] sm:$0xff]
          %v3303 = vld [vmem:[#allocation3 + $0xd0] sm:$0xff]
          %v3304 = vld [vmem:[#allocation3 + $0xd8] sm:$0xff]
          %v3305 = vld [vmem:[#allocation3 + $0xe0] sm:$0xff]
          %v3306 = vld [vmem:[#allocation3 + $0xe8] sm:$0xff]
          %v3307 = vld [vmem:[#allocation3 + $0xf0] sm:$0xff]
          %v3308 = vld [vmem:[#allocation3 + $0xf8] sm:$0xff]
          %v3309 = vld [vmem:[#allocation3 + $0x100] sm:$0xff]
          %v3310 = vld [vmem:[#allocation3 + $0x108] sm:$0xff]
          %v3311 = vld [vmem:[#allocation3 + $0x110] sm:$0xff]
          %v3312 = vld [vmem:[#allocation3 + $0x118] sm:$0xff]
          %v3313 = vld [vmem:[#allocation3 + $0x120] sm:$0xff]
          %v3314 = vld [vmem:[#allocation3 + $0x128] sm:$0xff]
          %v3315 = vld [vmem:[#allocation3 + $0x130] sm:$0xff]
          %v3316 = vld [vmem:[#allocation3 + $0x138] sm:$0xff]
          %v3317 = vld [vmem:[#allocation3 + $0x140] sm:$0xff]
          %v3318 = vld [vmem:[#allocation3 + $0x148] sm:$0xff]
          %v3319 = vld [vmem:[#allocation3 + $0x150] sm:$0xff]
          %v3320 = vld [vmem:[#allocation3 + $0x158] sm:$0xff]
          %v3321 = vld [vmem:[#allocation3 + $0x160] sm:$0xff]
          %v3322 = vld [vmem:[#allocation3 + $0x168] sm:$0xff]
          %v3323 = vld [vmem:[#allocation3 + $0x170] sm:$0xff]
          %v3324 = vld [vmem:[#allocation3 + $0x178] sm:$0xff]
          %v3325 = vld [vmem:[#allocation3 + $0x180] sm:$0xff]
          %v3326 = vld [vmem:[#allocation3 + $0x188] sm:$0xff]
          %v3327 = vld [vmem:[#allocation3 + $0x190] sm:$0xff]
          %v3328 = vld [vmem:[#allocation3 + $0x198] sm:$0xff]
          %v3329 = vld [vmem:[#allocation3 + $0x1a0] sm:$0xff]
          %v3330 = vld [vmem:[#allocation3 + $0x1a8] sm:$0xff]
          %v3331 = vld [vmem:[#allocation3 + $0x1b0] sm:$0xff]
          %v3332 = vld [vmem:[#allocation3 + $0x1b8] sm:$0xff]
          %v3333 = vld [vmem:[#allocation3 + $0x1c0] sm:$0xff]
          %v3334 = vld [vmem:[#allocation3 + $0x1c8] sm:$0xff]
          %v3335 = vld [vmem:[#allocation3 + $0x1d0] sm:$0xff]
          %v3336 = vld [vmem:[#allocation3 + $0x1d8] sm:$0xff]
          %v3337 = vld [vmem:[#allocation3 + $0x1e0] sm:$0xff]
          %v3338 = vld [vmem:[#allocation3 + $0x1e8] sm:$0xff]
          %v3339 = vld [vmem:[#allocation3 + $0x1f0] sm:$0xff]
          %v3340 = vld [vmem:[#allocation3 + $0x1f8] sm:$0xff]
          %v3341 = vld [vmem:[#allocation3 + $0x200] sm:$0xff]
          %v3342 = vld [vmem:[#allocation3 + $0x208] sm:$0xff]
          %v3343 = vld [vmem:[#allocation3 + $0x210] sm:$0xff]
          %v3344 = vld [vmem:[#allocation3 + $0x218] sm:$0xff]
          %v3345 = vld [vmem:[#allocation3 + $0x220] sm:$0xff]
          %v3346 = vld [vmem:[#allocation3 + $0x228] sm:$0xff]
          %v3347 = vld [vmem:[#allocation3 + $0x230] sm:$0xff]
          %v3348 = vld [vmem:[#allocation3 + $0x238] sm:$0xff]
          %v3349 = vld [vmem:[#allocation3 + $0x240] sm:$0xff]
          %v3350 = vld [vmem:[#allocation3 + $0x248] sm:$0xff]
          %v3351 = vld [vmem:[#allocation3 + $0x250] sm:$0xff]
          %v3352 = vld [vmem:[#allocation3 + $0x258] sm:$0xff]
          %v3353 = vld [vmem:[#allocation3 + $0x260] sm:$0xff]
          %v3354 = vld [vmem:[#allocation3 + $0x268] sm:$0xff]
          %v3355 = vld [vmem:[#allocation3 + $0x270] sm:$0xff]
          %v3356 = vld [vmem:[#allocation3 + $0x278] sm:$0xff]
          %v3357 = vld [vmem:[#allocation3 + $0x280] sm:$0xff]
          %v3358 = vld [vmem:[#allocation3 + $0x288] sm:$0xff]
          %v3359 = vld [vmem:[#allocation3 + $0x290] sm:$0xff]
          %v3360 = vld [vmem:[#allocation3 + $0x298] sm:$0xff]
          %v3361 = vld [vmem:[#allocation3 + $0x2a0] sm:$0xff]
          %v3362 = vld [vmem:[#allocation3 + $0x2a8] sm:$0xff]
          %v3363 = vld [vmem:[#allocation3 + $0x2b0] sm:$0xff]
          %v3364 = vld [vmem:[#allocation3 + $0x2b8] sm:$0xff]
          %v3365 = vld [vmem:[#allocation3 + $0x2c0] sm:$0xff]
          %v3366 = vld [vmem:[#allocation3 + $0x2c8] sm:$0xff]
          %v3367 = vld [vmem:[#allocation3 + $0x2d0] sm:$0xff]
          %v3368 = vld [vmem:[#allocation3 + $0x2d8] sm:$0xff]
          %v3369 = vld [vmem:[#allocation3 + $0x2e0] sm:$0xff]
          %v3370 = vld [vmem:[#allocation3 + $0x2e8] sm:$0xff]
          %v3371 = vld [vmem:[#allocation3 + $0x2f0] sm:$0xff]
          %v3372 = vld [vmem:[#allocation3 + $0x2f8] sm:$0xff]
          %v3373 = vld [vmem:[#allocation3 + $0x300] sm:$0xff]
          %v3374 = vld [vmem:[#allocation3 + $0x308] sm:$0xff]
          %v3375 = vld [vmem:[#allocation3 + $0x310] sm:$0xff]
          %v3376 = vld [vmem:[#allocation3 + $0x318] sm:$0xff]
          %v3377 = vld [vmem:[#allocation3 + $0x320] sm:$0xff]
          %v3378 = vld [vmem:[#allocation3 + $0x328] sm:$0xff]
          %v3379 = vld [vmem:[#allocation3 + $0x330] sm:$0xff]
          %v3380 = vld [vmem:[#allocation3 + $0x338] sm:$0xff]
          %v3381 = vld [vmem:[#allocation3 + $0x340] sm:$0xff]
          %v3382 = vld [vmem:[#allocation3 + $0x348] sm:$0xff]
          %v3383 = vld [vmem:[#allocation3 + $0x350] sm:$0xff]
          %v3384 = vld [vmem:[#allocation3 + $0x358] sm:$0xff]
          %v3385 = vld [vmem:[#allocation3 + $0x360] sm:$0xff]
          %v3386 = vld [vmem:[#allocation3 + $0x368] sm:$0xff]
          %v3387 = vld [vmem:[#allocation3 + $0x370] sm:$0xff]
          %v3388 = vld [vmem:[#allocation3 + $0x378] sm:$0xff]
          %v3389 = vld [vmem:[#allocation3 + $0x380] sm:$0xff]
          %v3390 = vld [vmem:[#allocation3 + $0x388] sm:$0xff]
          %v3391 = vld [vmem:[#allocation3 + $0x390] sm:$0xff]
          %v3392 = vld [vmem:[#allocation3 + $0x398] sm:$0xff]
          %v3393 = vld [vmem:[#allocation3 + $0x3a0] sm:$0xff]
          %v3394 = vld [vmem:[#allocation3 + $0x3a8] sm:$0xff]
          %v3395 = vld [vmem:[#allocation3 + $0x3b0] sm:$0xff]
          %v3396 = vld [vmem:[#allocation3 + $0x3b8] sm:$0xff]
          %v3397 = vld [vmem:[#allocation3 + $0x3c0] sm:$0xff]
          %v3398 = vld [vmem:[#allocation3 + $0x3c8] sm:$0xff]
          %v3399 = vld [vmem:[#allocation3 + $0x3d0] sm:$0xff]
          %v3400 = vld [vmem:[#allocation3 + $0x3d8] sm:$0xff]
          %v3401 = vld [vmem:[#allocation3 + $0x3e0] sm:$0xff]
          %v3402 = vld [vmem:[#allocation3 + $0x3e8] sm:$0xff]
          %v3403 = vld [vmem:[#allocation3 + $0x3f0] sm:$0xff]
          %v3404 = vld [vmem:[#allocation3 + $0x3f8] sm:$0xff]
          %v3405 = vld [vmem:[#allocation3 + $0x400] sm:$0xff]
          %v3406 = vld [vmem:[#allocation3 + $0x408] sm:$0xff]
          %v3407 = vld [vmem:[#allocation3 + $0x410] sm:$0xff]
          %v3408 = vld [vmem:[#allocation3 + $0x418] sm:$0xff]
          %v3409 = vld [vmem:[#allocation3 + $0x420] sm:$0xff]
          %v3410 = vld [vmem:[#allocation3 + $0x428] sm:$0xff]
          %v3411 = vld [vmem:[#allocation3 + $0x430] sm:$0xff]
          %v3412 = vld [vmem:[#allocation3 + $0x438] sm:$0xff]
          %v3413 = vld [vmem:[#allocation3 + $0x440] sm:$0xff]
          %v3414 = vld [vmem:[#allocation3 + $0x448] sm:$0xff]
          %v3415 = vld [vmem:[#allocation3 + $0x450] sm:$0xff]
          %v3416 = vld [vmem:[#allocation3 + $0x458] sm:$0xff]
          %v3417 = vld [vmem:[#allocation3 + $0x460] sm:$0xff]
          %v3418 = vld [vmem:[#allocation3 + $0x468] sm:$0xff]
          %v3419 = vld [vmem:[#allocation3 + $0x470] sm:$0xff]
          %v3420 = vld [vmem:[#allocation3 + $0x478] sm:$0xff]
          %v3421 = vld [vmem:[#allocation3 + $0x480] sm:$0xff]
          %v3422 = vld [vmem:[#allocation3 + $0x488] sm:$0xff]
          %v3423 = vld [vmem:[#allocation3 + $0x490] sm:$0xff]
          %v3424 = vld [vmem:[#allocation3 + $0x498] sm:$0xff]
          %v3425 = vld [vmem:[#allocation3 + $0x4a0] sm:$0xff]
          %v3426 = vld [vmem:[#allocation3 + $0x4a8] sm:$0xff]
          %v3427 = vld [vmem:[#allocation3 + $0x4b0] sm:$0xff]
          %v3428 = vld [vmem:[#allocation3 + $0x4b8] sm:$0xff]
          %v3429 = vld [vmem:[#allocation3 + $0x4c0] sm:$0xff]
          %v3430 = vld [vmem:[#allocation3 + $0x4c8] sm:$0xff]
          %v3431 = vld [vmem:[#allocation3 + $0x4d0] sm:$0xff]
          %v3432 = vld [vmem:[#allocation3 + $0x4d8] sm:$0xff]
          %v3433 = vld [vmem:[#allocation3 + $0x4e0] sm:$0xff]
          %v3434 = vld [vmem:[#allocation3 + $0x4e8] sm:$0xff]
          %v3435 = vld [vmem:[#allocation3 + $0x4f0] sm:$0xff]
          %v3436 = vld [vmem:[#allocation3 + $0x4f8] sm:$0xff]
          %v3437 = vld [vmem:[#allocation3 + $0x500] sm:$0xff]
          %v3438 = vld [vmem:[#allocation3 + $0x508] sm:$0xff]
          %v3439 = vld [vmem:[#allocation3 + $0x510] sm:$0xff]
          %v3440 = vld [vmem:[#allocation3 + $0x518] sm:$0xff]
          %v3441 = vld [vmem:[#allocation3 + $0x520] sm:$0xff]
          %v3442 = vld [vmem:[#allocation3 + $0x528] sm:$0xff]
          %v3443 = vld [vmem:[#allocation3 + $0x530] sm:$0xff]
          %v3444 = vld [vmem:[#allocation3 + $0x538] sm:$0xff]
          %v3445 = vld [vmem:[#allocation3 + $0x540] sm:$0xff]
          %v3446 = vld [vmem:[#allocation3 + $0x548] sm:$0xff]
          %v3447 = vld [vmem:[#allocation3 + $0x550] sm:$0xff]
          %v3448 = vld [vmem:[#allocation3 + $0x558] sm:$0xff]
          %v3449 = vld [vmem:[#allocation3 + $0x560] sm:$0xff]
          %v3450 = vld [vmem:[#allocation3 + $0x568] sm:$0xff]
          %v3451 = vld [vmem:[#allocation3 + $0x570] sm:$0xff]
          %v3452 = vld [vmem:[#allocation3 + $0x578] sm:$0xff]
          %v3453 = vld [vmem:[#allocation3 + $0x580] sm:$0xff]
          %v3454 = vld [vmem:[#allocation3 + $0x588] sm:$0xff]
          %v3455 = vld [vmem:[#allocation3 + $0x590] sm:$0xff]
          %v3456 = vld [vmem:[#allocation3 + $0x598] sm:$0xff]
          %v3457 = vld [vmem:[#allocation3 + $0x5a0] sm:$0xff]
          %v3458 = vld [vmem:[#allocation3 + $0x5a8] sm:$0xff]
          %v3459 = vld [vmem:[#allocation3 + $0x5b0] sm:$0xff]
          %v3460 = vld [vmem:[#allocation3 + $0x5b8] sm:$0xff]
          %v3461 = vld [vmem:[#allocation3 + $0x5c0] sm:$0xff]
          %v3462 = vld [vmem:[#allocation3 + $0x5c8] sm:$0xff]
          %v3463 = vld [vmem:[#allocation3 + $0x5d0] sm:$0xff]
          %v3464 = vld [vmem:[#allocation3 + $0x5d8] sm:$0xff]
          %v3465 = vld [vmem:[#allocation3 + $0x5e0] sm:$0xff]
          %v3466 = vld [vmem:[#allocation3 + $0x5e8] sm:$0xff]
          %v3467 = vld [vmem:[#allocation3 + $0x5f0] sm:$0xff]
          %v3468 = vld [vmem:[#allocation3 + $0x5f8] sm:$0xff]
          %v3469 = vld [vmem:[#allocation3 + $0x600] sm:$0xff]
          %v3470 = vld [vmem:[#allocation3 + $0x608] sm:$0xff]
          %v3471 = vld [vmem:[#allocation3 + $0x610] sm:$0xff]
          %v3472 = vld [vmem:[#allocation3 + $0x618] sm:$0xff]
          %v3473 = vld [vmem:[#allocation3 + $0x620] sm:$0xff]
          %v3474 = vld [vmem:[#allocation3 + $0x628] sm:$0xff]
          %v3475 = vld [vmem:[#allocation3 + $0x630] sm:$0xff]
          %v3476 = vld [vmem:[#allocation3 + $0x638] sm:$0xff]
          %v3477 = vld [vmem:[#allocation3 + $0x640] sm:$0xff]
          %v3478 = vld [vmem:[#allocation3 + $0x648] sm:$0xff]
          %v3479 = vld [vmem:[#allocation3 + $0x650] sm:$0xff]
          %v3480 = vld [vmem:[#allocation3 + $0x658] sm:$0xff]
          %v3481 = vld [vmem:[#allocation3 + $0x660] sm:$0xff]
          %v3482 = vld [vmem:[#allocation3 + $0x668] sm:$0xff]
          %v3483 = vld [vmem:[#allocation3 + $0x670] sm:$0xff]
          %v3484 = vld [vmem:[#allocation3 + $0x678] sm:$0xff]
          %v3485 = vld [vmem:[#allocation3 + $0x680] sm:$0xff]
          %v3486 = vld [vmem:[#allocation3 + $0x688] sm:$0xff]
          %v3487 = vld [vmem:[#allocation3 + $0x690] sm:$0xff]
          %v3488 = vld [vmem:[#allocation3 + $0x698] sm:$0xff]
          %v3489 = vld [vmem:[#allocation3 + $0x6a0] sm:$0xff]
          %v3490 = vld [vmem:[#allocation3 + $0x6a8] sm:$0xff]
          %v3491 = vld [vmem:[#allocation3 + $0x6b0] sm:$0xff]
          %v3492 = vld [vmem:[#allocation3 + $0x6b8] sm:$0xff]
          %v3493 = vld [vmem:[#allocation3 + $0x6c0] sm:$0xff]
          %v3494 = vld [vmem:[#allocation3 + $0x6c8] sm:$0xff]
          %v3495 = vld [vmem:[#allocation3 + $0x6d0] sm:$0xff]
          %v3496 = vld [vmem:[#allocation3 + $0x6d8] sm:$0xff]
          %v3497 = vld [vmem:[#allocation3 + $0x6e0] sm:$0xff]
          %v3498 = vld [vmem:[#allocation3 + $0x6e8] sm:$0xff]
          %v3499 = vld [vmem:[#allocation3 + $0x6f0] sm:$0xff]
          %v3500 = vld [vmem:[#allocation3 + $0x6f8] sm:$0xff]
          %v3501 = vld [vmem:[#allocation3 + $0x700] sm:$0xff]
          %v3502 = vld [vmem:[#allocation3 + $0x708] sm:$0xff]
          %v3503 = vld [vmem:[#allocation3 + $0x710] sm:$0xff]
          %v3504 = vld [vmem:[#allocation3 + $0x718] sm:$0xff]
          %v3505 = vld [vmem:[#allocation3 + $0x720] sm:$0xff]
          %v3506 = vld [vmem:[#allocation3 + $0x728] sm:$0xff]
          %v3507 = vld [vmem:[#allocation3 + $0x730] sm:$0xff]
          %v3508 = vld [vmem:[#allocation3 + $0x738] sm:$0xff]
          %v3509 = vld [vmem:[#allocation3 + $0x740] sm:$0xff]
          %v3510 = vld [vmem:[#allocation3 + $0x748] sm:$0xff]
          %v3511 = vld [vmem:[#allocation3 + $0x750] sm:$0xff]
          %v3512 = vld [vmem:[#allocation3 + $0x758] sm:$0xff]
          %v3513 = vld [vmem:[#allocation3 + $0x760] sm:$0xff]
          %v3514 = vld [vmem:[#allocation3 + $0x768] sm:$0xff]
          %v3515 = vld [vmem:[#allocation3 + $0x770] sm:$0xff]
          %v3516 = vld [vmem:[#allocation3 + $0x778] sm:$0xff]
          %v3517 = vld [vmem:[#allocation3 + $0x780] sm:$0xff]
          %v3518 = vld [vmem:[#allocation3 + $0x788] sm:$0xff]
          %v3519 = vld [vmem:[#allocation3 + $0x790] sm:$0xff]
          %v3520 = vld [vmem:[#allocation3 + $0x798] sm:$0xff]
          %v3521 = vld [vmem:[#allocation3 + $0x7a0] sm:$0xff]
          %v3522 = vld [vmem:[#allocation3 + $0x7a8] sm:$0xff]
          %v3523 = vld [vmem:[#allocation3 + $0x7b0] sm:$0xff]
          %v3524 = vld [vmem:[#allocation3 + $0x7b8] sm:$0xff]
          %v3525 = vld [vmem:[#allocation3 + $0x7c0] sm:$0xff]
          %v3526 = vld [vmem:[#allocation3 + $0x7c8] sm:$0xff]
          %v3527 = vld [vmem:[#allocation3 + $0x7d0] sm:$0xff]
          %v3528 = vld [vmem:[#allocation3 + $0x7d8] sm:$0xff]
          %v3529 = vld [vmem:[#allocation3 + $0x7e0] sm:$0xff]
          %v3530 = vld [vmem:[#allocation3 + $0x7e8] sm:$0xff]
          %v3531 = vld [vmem:[#allocation3 + $0x7f0] sm:$0xff]
          %v3532 = vld [vmem:[#allocation3 + $0x7f8] sm:$0xff]
          %v3533 = vld [vmem:[#allocation3 + $0x800] sm:$0xff]
          %v3534 = vld [vmem:[#allocation3 + $0x808] sm:$0xff]
          %v3535 = vld [vmem:[#allocation3 + $0x810] sm:$0xff]
          %v3536 = vld [vmem:[#allocation3 + $0x818] sm:$0xff]
          %v3537 = vld [vmem:[#allocation3 + $0x820] sm:$0xff]
          %v3538 = vld [vmem:[#allocation3 + $0x828] sm:$0xff]
          %v3539 = vld [vmem:[#allocation3 + $0x830] sm:$0xff]
          %v3540 = vld [vmem:[#allocation3 + $0x838] sm:$0xff]
          %v3541 = vld [vmem:[#allocation3 + $0x840] sm:$0xff]
          %v3542 = vld [vmem:[#allocation3 + $0x848] sm:$0xff]
          %v3543 = vld [vmem:[#allocation3 + $0x850] sm:$0xff]
          %v3544 = vld [vmem:[#allocation3 + $0x858] sm:$0xff]
          %v3545 = vld [vmem:[#allocation3 + $0x860] sm:$0xff]
          %v3546 = vld [vmem:[#allocation3 + $0x868] sm:$0xff]
          %v3547 = vld [vmem:[#allocation3 + $0x870] sm:$0xff]
          %v3548 = vld [vmem:[#allocation3 + $0x878] sm:$0xff]
          %v3549 = vld [vmem:[#allocation3 + $0x880] sm:$0xff]
          %v3550 = vld [vmem:[#allocation3 + $0x888] sm:$0xff]
          %v3551 = vld [vmem:[#allocation3 + $0x890] sm:$0xff]
          %v3552 = vld [vmem:[#allocation3 + $0x898] sm:$0xff]
          %v3553 = vld [vmem:[#allocation3 + $0x8a0] sm:$0xff]
          %v3554 = vld [vmem:[#allocation3 + $0x8a8] sm:$0xff]
          %v3555 = vld [vmem:[#allocation3 + $0x8b0] sm:$0xff]
          %v3556 = vld [vmem:[#allocation3 + $0x8b8] sm:$0xff]
          %v3557 = vld [vmem:[#allocation3 + $0x8c0] sm:$0xff]
          %v3558 = vld [vmem:[#allocation3 + $0x8c8] sm:$0xff]
          %v3559 = vld [vmem:[#allocation3 + $0x8d0] sm:$0xff]
          %v3560 = vld [vmem:[#allocation3 + $0x8d8] sm:$0xff]
          %v3561 = vld [vmem:[#allocation3 + $0x8e0] sm:$0xff]
          %v3562 = vld [vmem:[#allocation3 + $0x8e8] sm:$0xff]
          %v3563 = vld [vmem:[#allocation3 + $0x8f0] sm:$0xff]
          %v3564 = vld [vmem:[#allocation3 + $0x8f8] sm:$0xff]
          %v3565 = vld [vmem:[#allocation10] sm:$0xff]
          %v3566 = vld [vmem:[#allocation10 + $0x8] sm:$0xff]
          %v3567 = vld [vmem:[#allocation10 + $0x10] sm:$0xff]
          %v3568 = vld [vmem:[#allocation10 + $0x18] sm:$0xff]
          %v3569 = vld [vmem:[#allocation10 + $0x20] sm:$0xff]
          %v3570 = vld [vmem:[#allocation10 + $0x28] sm:$0xff]
          %v3571 = vld [vmem:[#allocation10 + $0x30] sm:$0xff]
          %v3572 = vld [vmem:[#allocation10 + $0x38] sm:$0xff]
          %v3573 = vld [vmem:[#allocation10 + $0x40] sm:$0xff]
          %v3574 = vld [vmem:[#allocation10 + $0x48] sm:$0xff]
          %v3575 = vld [vmem:[#allocation10 + $0x50] sm:$0xff]
          %v3576 = vld [vmem:[#allocation10 + $0x58] sm:$0xff]
          %v3577 = vld [vmem:[#allocation10 + $0x60] sm:$0xff]
          %v3578 = vld [vmem:[#allocation10 + $0x68] sm:$0xff]
          %v3579 = vld [vmem:[#allocation10 + $0x70] sm:$0xff]
          %v3580 = vld [vmem:[#allocation10 + $0x78] sm:$0xff]
          %v3581 = vld [vmem:[#allocation10 + $0x80] sm:$0xff]
          %v3582 = vld [vmem:[#allocation10 + $0x88] sm:$0xff]
          %v3583 = vld [vmem:[#allocation10 + $0x90] sm:$0xff]
          %v3584 = vld [vmem:[#allocation10 + $0x98] sm:$0xff]
          %v3585 = vld [vmem:[#allocation10 + $0xa0] sm:$0xff]
          %v3586 = vld [vmem:[#allocation10 + $0xa8] sm:$0xff]
          %v3587 = vld [vmem:[#allocation10 + $0xb0] sm:$0xff]
          %v3588 = vld [vmem:[#allocation10 + $0xb8] sm:$0xff]
          %v3589 = vld [vmem:[#allocation10 + $0xc0] sm:$0xff]
          %v3590 = vld [vmem:[#allocation10 + $0xc8] sm:$0xff]
          %v3591 = vld [vmem:[#allocation10 + $0xd0] sm:$0xff]
          %v3592 = vld [vmem:[#allocation10 + $0xd8] sm:$0xff]
          %v3593 = vld [vmem:[#allocation10 + $0xe0] sm:$0xff]
          %v3594 = vld [vmem:[#allocation10 + $0xe8] sm:$0xff]
          %v3595 = vld [vmem:[#allocation10 + $0xf0] sm:$0xff]
          %v3596 = vld [vmem:[#allocation10 + $0xf8] sm:$0xff]
          %v3597 = vld [vmem:[#allocation10 + $0x100] sm:$0xff]
          %v3598 = vld [vmem:[#allocation10 + $0x108] sm:$0xff]
          %v3599 = vld [vmem:[#allocation10 + $0x110] sm:$0xff]
          %v3600 = vld [vmem:[#allocation10 + $0x118] sm:$0xff]
          %v3601 = vld [vmem:[#allocation10 + $0x120] sm:$0xff]
          %v3602 = vld [vmem:[#allocation10 + $0x128] sm:$0xff]
          %v3603 = vld [vmem:[#allocation10 + $0x130] sm:$0xff]
          %v3604 = vld [vmem:[#allocation10 + $0x138] sm:$0xff]
          %v3605 = vld [vmem:[#allocation10 + $0x140] sm:$0xff]
          %v3606 = vld [vmem:[#allocation10 + $0x148] sm:$0xff]
          %v3607 = vld [vmem:[#allocation10 + $0x150] sm:$0xff]
          %v3608 = vld [vmem:[#allocation10 + $0x158] sm:$0xff]
          %v3609 = vld [vmem:[#allocation10 + $0x160] sm:$0xff]
          %v3610 = vld [vmem:[#allocation10 + $0x168] sm:$0xff]
          %v3611 = vld [vmem:[#allocation10 + $0x170] sm:$0xff]
          %v3612 = vld [vmem:[#allocation10 + $0x178] sm:$0xff]
          %v3613 = vld [vmem:[#allocation10 + $0x180] sm:$0xff]
          %v3614 = vld [vmem:[#allocation10 + $0x188] sm:$0xff]
          %v3615 = vld [vmem:[#allocation10 + $0x190] sm:$0xff]
          %v3616 = vld [vmem:[#allocation10 + $0x198] sm:$0xff]
          %v3617 = vld [vmem:[#allocation10 + $0x1a0] sm:$0xff]
          %v3618 = vld [vmem:[#allocation10 + $0x1a8] sm:$0xff]
          %v3619 = vld [vmem:[#allocation10 + $0x1b0] sm:$0xff]
          %v3620 = vld [vmem:[#allocation10 + $0x1b8] sm:$0xff]
          %v3621 = vld [vmem:[#allocation10 + $0x1c0] sm:$0xff]
          %v3622 = vld [vmem:[#allocation10 + $0x1c8] sm:$0xff]
          %v3623 = vld [vmem:[#allocation10 + $0x1d0] sm:$0xff]
          %v3624 = vld [vmem:[#allocation10 + $0x1d8] sm:$0xff]
          %v3625 = vld [vmem:[#allocation10 + $0x1e0] sm:$0xff]
          %v3626 = vld [vmem:[#allocation10 + $0x1e8] sm:$0xff]
          %v3627 = vld [vmem:[#allocation10 + $0x1f0] sm:$0xff]
          %v3628 = vld [vmem:[#allocation10 + $0x1f8] sm:$0xff]
          %v3629 = vld [vmem:[#allocation10 + $0x200] sm:$0xff]
          %v3630 = vld [vmem:[#allocation10 + $0x208] sm:$0xff]
          %v3631 = vld [vmem:[#allocation10 + $0x210] sm:$0xff]
          %v3632 = vld [vmem:[#allocation10 + $0x218] sm:$0xff]
          %v3633 = vld [vmem:[#allocation10 + $0x220] sm:$0xff]
          %v3634 = vld [vmem:[#allocation10 + $0x228] sm:$0xff]
          %v3635 = vld [vmem:[#allocation10 + $0x230] sm:$0xff]
          %v3636 = vld [vmem:[#allocation10 + $0x238] sm:$0xff]
          %v3637 = vld [vmem:[#allocation10 + $0x240] sm:$0xff]
          %v3638 = vld [vmem:[#allocation10 + $0x248] sm:$0xff]
          %v3639 = vld [vmem:[#allocation10 + $0x250] sm:$0xff]
          %v3640 = vld [vmem:[#allocation10 + $0x258] sm:$0xff]
          %v3641 = vld [vmem:[#allocation10 + $0x260] sm:$0xff]
          %v3642 = vld [vmem:[#allocation10 + $0x268] sm:$0xff]
          %v3643 = vld [vmem:[#allocation10 + $0x270] sm:$0xff]
          %v3644 = vld [vmem:[#allocation10 + $0x278] sm:$0xff]
          %v3645 = vld [vmem:[#allocation10 + $0x280] sm:$0xff]
          %v3646 = vld [vmem:[#allocation10 + $0x288] sm:$0xff]
          %v3647 = vld [vmem:[#allocation10 + $0x290] sm:$0xff]
          %v3648 = vld [vmem:[#allocation10 + $0x298] sm:$0xff]
          %v3649 = vld [vmem:[#allocation10 + $0x2a0] sm:$0xff]
          %v3650 = vld [vmem:[#allocation10 + $0x2a8] sm:$0xff]
          %v3651 = vld [vmem:[#allocation10 + $0x2b0] sm:$0xff]
          %v3652 = vld [vmem:[#allocation10 + $0x2b8] sm:$0xff]
          %v3653 = vld [vmem:[#allocation10 + $0x2c0] sm:$0xff]
          %v3654 = vld [vmem:[#allocation10 + $0x2c8] sm:$0xff]
          %v3655 = vld [vmem:[#allocation10 + $0x2d0] sm:$0xff]
          %v3656 = vld [vmem:[#allocation10 + $0x2d8] sm:$0xff]
          %v3657 = vld [vmem:[#allocation10 + $0x2e0] sm:$0xff]
          %v3658 = vld [vmem:[#allocation10 + $0x2e8] sm:$0xff]
          %v3659 = vld [vmem:[#allocation10 + $0x2f0] sm:$0xff]
          %v3660 = vld [vmem:[#allocation10 + $0x2f8] sm:$0xff]
          %v3661 = vld [vmem:[#allocation10 + $0x300] sm:$0xff]
          %v3662 = vld [vmem:[#allocation10 + $0x308] sm:$0xff]
          %v3663 = vld [vmem:[#allocation10 + $0x310] sm:$0xff]
          %v3664 = vld [vmem:[#allocation10 + $0x318] sm:$0xff]
          %v3665 = vld [vmem:[#allocation10 + $0x320] sm:$0xff]
          %v3666 = vld [vmem:[#allocation10 + $0x328] sm:$0xff]
          %v3667 = vld [vmem:[#allocation10 + $0x330] sm:$0xff]
          %v3668 = vld [vmem:[#allocation10 + $0x338] sm:$0xff]
          %v3669 = vld [vmem:[#allocation10 + $0x340] sm:$0xff]
          %v3670 = vld [vmem:[#allocation10 + $0x348] sm:$0xff]
          %v3671 = vld [vmem:[#allocation10 + $0x350] sm:$0xff]
          %v3672 = vld [vmem:[#allocation10 + $0x358] sm:$0xff]
          %v3673 = vld [vmem:[#allocation10 + $0x360] sm:$0xff]
          %v3674 = vld [vmem:[#allocation10 + $0x368] sm:$0xff]
          %v3675 = vld [vmem:[#allocation10 + $0x370] sm:$0xff]
          %v3676 = vld [vmem:[#allocation10 + $0x378] sm:$0xff]
          %v3677 = vld [vmem:[#allocation10 + $0x380] sm:$0xff]
          %v3678 = vld [vmem:[#allocation10 + $0x388] sm:$0xff]
          %v3679 = vld [vmem:[#allocation10 + $0x390] sm:$0xff]
          %v3680 = vld [vmem:[#allocation10 + $0x398] sm:$0xff]
          %v3681 = vld [vmem:[#allocation10 + $0x3a0] sm:$0xff]
          %v3682 = vld [vmem:[#allocation10 + $0x3a8] sm:$0xff]
          %v3683 = vld [vmem:[#allocation10 + $0x3b0] sm:$0xff]
          %v3684 = vld [vmem:[#allocation10 + $0x3b8] sm:$0xff]
          %v3685 = vld [vmem:[#allocation10 + $0x3c0] sm:$0xff]
          %v3686 = vld [vmem:[#allocation10 + $0x3c8] sm:$0xff]
          %v3687 = vld [vmem:[#allocation10 + $0x3d0] sm:$0xff]
          %v3688 = vld [vmem:[#allocation10 + $0x3d8] sm:$0xff]
          %v3689 = vld [vmem:[#allocation10 + $0x3e0] sm:$0xff]
          %v3690 = vld [vmem:[#allocation10 + $0x3e8] sm:$0xff]
          %v3691 = vld [vmem:[#allocation10 + $0x3f0] sm:$0xff]
          %v3692 = vld [vmem:[#allocation10 + $0x3f8] sm:$0xff]
          %v3693 = vld [vmem:[#allocation10 + $0x400] sm:$0xff]
          %v3694 = vld [vmem:[#allocation10 + $0x408] sm:$0xff]
          %v3695 = vld [vmem:[#allocation10 + $0x410] sm:$0xff]
          %v3696 = vld [vmem:[#allocation10 + $0x418] sm:$0xff]
          %v3697 = vld [vmem:[#allocation10 + $0x420] sm:$0xff]
          %v3698 = vld [vmem:[#allocation10 + $0x428] sm:$0xff]
          %v3699 = vld [vmem:[#allocation10 + $0x430] sm:$0xff]
          %v3700 = vld [vmem:[#allocation10 + $0x438] sm:$0xff]
          %v3701 = vld [vmem:[#allocation10 + $0x440] sm:$0xff]
          %v3702 = vld [vmem:[#allocation10 + $0x448] sm:$0xff]
          %v3703 = vld [vmem:[#allocation10 + $0x450] sm:$0xff]
          %v3704 = vld [vmem:[#allocation10 + $0x458] sm:$0xff]
          %v3705 = vld [vmem:[#allocation10 + $0x460] sm:$0xff]
          %v3706 = vld [vmem:[#allocation10 + $0x468] sm:$0xff]
          %v3707 = vld [vmem:[#allocation10 + $0x470] sm:$0xff]
          %v3708 = vld [vmem:[#allocation10 + $0x478] sm:$0xff]
          %3709 = vmatprep.subr.mxu0 0.0
          %3710 = vmatpush1.msra.mxu0 %v3565
          %3711 = vmatprep.subr.mxu0 0.0
          %3712 = vmatpush1.msra.mxu0 %v3566
          %3713 = vmatprep.subr.mxu0 0.0
          %3714 = vmatpush1.msra.mxu0 %v3567
          %3715 = vmatprep.subr.mxu0 0.0
          %3716 = vmatpush1.msra.mxu0 %v3568
          %3717 = vmatprep.subr.mxu0 0.0
          %3718 = vmatpush1.msra.mxu0 %v3569
          %3719 = vmatprep.subr.mxu0 0.0
          %3720 = vmatpush1.msra.mxu0 %v3570
          %3721 = vmatprep.subr.mxu0 0.0
          %3722 = vmatpush1.msra.mxu0 %v3571
          %3723 = vmatprep.subr.mxu0 0.0
          %3724 = vmatpush1.msra.mxu0 %v3572
          %3725 = vmatprep.subr.mxu0 0.0
          %3726 = vmatpush1.msra.mxu0 %v3573
          %3727 = vmatprep.subr.mxu0 0.0
          %3728 = vmatpush1.msra.mxu0 %v3574
          %3729 = vmatprep.subr.mxu0 0.0
          %3730 = vmatpush1.msra.mxu0 %v3575
          %3731 = vmatprep.subr.mxu0 0.0
          %3732 = vmatpush1.msra.mxu0 %v3576
          %3733 = vmatprep.subr.mxu0 0.0
          %3734 = vmatpush1.msra.mxu0 %v3577
          %3735 = vmatprep.subr.mxu0 0.0
          %3736 = vmatpush1.msra.mxu0 %v3578
          %3737 = vmatprep.subr.mxu0 0.0
          %3738 = vmatpush1.msra.mxu0 %v3579
          %3739 = vmatprep.subr.mxu0 0.0
          %3740 = vmatpush1.msra.mxu0 %v3580
          %3741 = vmatprep.subr.mxu0 0.0
          %3742 = vmatpush1.msra.mxu0 %v3581
          %3743 = vmatprep.subr.mxu0 0.0
          %3744 = vmatpush1.msra.mxu0 %v3582
          %3745 = vmatprep.subr.mxu0 0.0
          %3746 = vmatpush1.msra.mxu0 %v3583
          %3747 = vmatprep.subr.mxu0 0.0
          %3748 = vmatpush1.msra.mxu0 %v3584
          %3749 = vmatprep.subr.mxu0 0.0
          %3750 = vmatpush1.msra.mxu0 %v3585
          %3751 = vmatprep.subr.mxu0 0.0
          %3752 = vmatpush1.msra.mxu0 %v3586
          %3753 = vmatprep.subr.mxu0 0.0
          %3754 = vmatpush1.msra.mxu0 %v3587
          %3755 = vmatprep.subr.mxu0 0.0
          %3756 = vmatpush1.msra.mxu0 %v3588
          %3757 = vmatprep.subr.mxu0 0.0
          %3758 = vmatpush1.msra.mxu0 %v3589
          %3759 = vmatprep.subr.mxu0 0.0
          %3760 = vmatpush1.msra.mxu0 %v3590
          %3761 = vmatprep.subr.mxu0 0.0
          %3762 = vmatpush1.msra.mxu0 %v3591
          %3763 = vmatprep.subr.mxu0 0.0
          %3764 = vmatpush1.msra.mxu0 %v3592
          %3765 = vmatprep.subr.mxu0 0.0
          %3766 = vmatpush1.msra.mxu0 %v3593
          %3767 = vmatprep.subr.mxu0 0.0
          %3768 = vmatpush1.msra.mxu0 %v3594
          %3769 = vmatprep.subr.mxu0 0.0
          %3770 = vmatpush1.msra.mxu0 %v3595
          %3771 = vmatprep.subr.mxu0 0.0
          %3772 = vmatpush1.msra.mxu0 %v3596
          %3773 = vmatprep.mubr.f32.mxu0 %v3278
          %3774 = vmatmul.mubr.f32.gmra.mrb[0].mxu0 %v3277
          %v3775 = vpop.f32.mrb[0].mxu0
          %v3776 = vadd.f32 0.0, %v3775
          %v3777 = vpop.f32.mrb[0].mxu0
          %3778 = vmatprep.mubr.f32.mxu0 %v3287
          %3779 = vmatmul.mubr.f32.gmra.mrb[0].mxu0 %v3286
          %v3780 = vpop.f32.mrb[0].mxu0
          %v3781 = vadd.f32 0.0, %v3780
          %v3782 = vpop.f32.mrb[0].mxu0
          %3783 = vmatprep.mubr.f32.mxu0 %v3296
          %3784 = vmatmul.mubr.f32.gmra.mrb[0].mxu0 %v3295
          %v3785 = vpop.f32.mrb[0].mxu0
          %v3786 = vadd.f32 0.0, %v3785
          %v3787 = vpop.f32.mrb[0].mxu0
          %3788 = vmatprep.mubr.f32.mxu0 %v3305
          %3789 = vmatmul.mubr.f32.gmra.mrb[0].mxu0 %v3304
          %v3790 = vpop.f32.mrb[0].mxu0
          %v3791 = vadd.f32 0.0, %v3790
          %v3792 = vpop.f32.mrb[0].mxu0
          %3793 = vmatprep.mubr.f32.mxu0 %v3314
          %3794 = vmatmul.mubr.f32.gmra.mrb[0].mxu0 %v3313
          %v3795 = vpop.f32.mrb[0].mxu0
          %v3796 = vadd.f32 0.0, %v3795
          %v3797 = vpop.f32.mrb[0].mxu0
          %3798 = vmatprep.mubr.f32.mxu0 %v3323
          %3799 = vmatmul.mubr.f32.gmra.mrb[0].mxu0 %v3322
          %v3800 = vpop.f32.mrb[0].mxu0
          %v3801 = vadd.f32 0.0, %v3800
          %v3802 = vpop.f32.mrb[0].mxu0
          %3803 = vmatprep.mubr.f32.mxu0 %v3332
          %3804 = vmatmul.mubr.f32.gmra.mrb[0].mxu0 %v3331
          %v3805 = vpop.f32.mrb[0].mxu0
          %v3806 = vadd.f32 0.0, %v3805
          %v3807 = vpop.f32.mrb[0].mxu0
          %3808 = vmatprep.mubr.f32.mxu0 %v3341
          %3809 = vmatmul.mubr.f32.gmra.mrb[0].mxu0 %v3340
          %v3810 = vpop.f32.mrb[0].mxu0
          %v3811 = vadd.f32 0.0, %v3810
          %v3812 = vpop.f32.mrb[0].mxu0
          %3813 = vmatprep.mubr.f32.mxu0 %v3350
          %3814 = vmatmul.mubr.f32.gmra.mrb[0].mxu0 %v3349
          %v3815 = vpop.f32.mrb[0].mxu0
          %v3816 = vadd.f32 0.0, %v3815
          %v3817 = vpop.f32.mrb[0].mxu0
          %3818 = vmatprep.mubr.f32.mxu0 %v3359
          %3819 = vmatmul.mubr.f32.gmra.mrb[0].mxu0 %v3358
          %v3820 = vpop.f32.mrb[0].mxu0
          %v3821 = vadd.f32 0.0, %v3820
          %v3822 = vpop.f32.mrb[0].mxu0
          %3823 = vmatprep.mubr.f32.mxu0 %v3368
          %3824 = vmatmul.mubr.f32.gmra.mrb[0].mxu0 %v3367
          %v3825 = vpop.f32.mrb[0].mxu0
          %v3826 = vadd.f32 0.0, %v3825
          %v3827 = vpop.f32.mrb[0].mxu0
          %3828 = vmatprep.mubr.f32.mxu0 %v3377
          %3829 = vmatmul.mubr.f32.gmra.mrb[0].mxu0 %v3376
          %v3830 = vpop.f32.mrb[0].mxu0
          %v3831 = vadd.f32 0.0, %v3830
          %v3832 = vpop.f32.mrb[0].mxu0
          %3833 = vmatprep.mubr.f32.mxu0 %v3386
          %3834 = vmatmul.mubr.f32.gmra.mrb[0].mxu0 %v3385
          %v3835 = vpop.f32.mrb[0].mxu0
          %v3836 = vadd.f32 0.0, %v3835
          %v3837 = vpop.f32.mrb[0].mxu0
          %3838 = vmatprep.mubr.f32.mxu0 %v3395
          %3839 = vmatmul.mubr.f32.gmra.mrb[0].mxu0 %v3394
          %v3840 = vpop.f32.mrb[0].mxu0
          %v3841 = vadd.f32 0.0, %v3840
          %v3842 = vpop.f32.mrb[0].mxu0
          %3843 = vmatprep.mubr.f32.mxu0 %v3404
          %3844 = vmatmul.mubr.f32.gmra.mrb[0].mxu0 %v3403
          %v3845 = vpop.f32.mrb[0].mxu0
          %v3846 = vadd.f32 0.0, %v3845
          %v3847 = vpop.f32.mrb[0].mxu0
          %3848 = vmatprep.mubr.f32.mxu0 %v3413
          %3849 = vmatmul.mubr.f32.gmra.mrb[0].mxu0 %v3412
          %v3850 = vpop.f32.mrb[0].mxu0
          %v3851 = vadd.f32 0.0, %v3850
          %v3852 = vpop.f32.mrb[0].mxu0
          %3853 = vmatprep.mubr.f32.mxu0 %v3422
          %3854 = vmatmul.mubr.f32.gmra.mrb[0].mxu0 %v3421
          %v3855 = vpop.f32.mrb[0].mxu0
          %v3856 = vadd.f32 0.0, %v3855
          %v3857 = vpop.f32.mrb[0].mxu0
          %3858 = vmatprep.mubr.f32.mxu0 %v3431
          %3859 = vmatmul.mubr.f32.gmra.mrb[0].mxu0 %v3430
          %v3860 = vpop.f32.mrb[0].mxu0
          %v3861 = vadd.f32 0.0, %v3860
          %v3862 = vpop.f32.mrb[0].mxu0
          %3863 = vmatprep.mubr.f32.mxu0 %v3440
          %3864 = vmatmul.mubr.f32.gmra.mrb[0].mxu0 %v3439
          %v3865 = vpop.f32.mrb[0].mxu0
          %v3866 = vadd.f32 0.0, %v3865
          %v3867 = vpop.f32.mrb[0].mxu0
          %3868 = vmatprep.mubr.f32.mxu0 %v3449
          %3869 = vmatmul.mubr.f32.gmra.mrb[0].mxu0 %v3448
          %v3870 = vpop.f32.mrb[0].mxu0
          %v3871 = vadd.f32 0.0, %v3870
          %v3872 = vpop.f32.mrb[0].mxu0
          %3873 = vmatprep.mubr.f32.mxu0 %v3458
          %3874 = vmatmul.mubr.f32.gmra.mrb[0].mxu0 %v3457
          %v3875 = vpop.f32.mrb[0].mxu0
          %v3876 = vadd.f32 0.0, %v3875
          %v3877 = vpop.f32.mrb[0].mxu0
          %3878 = vmatprep.mubr.f32.mxu0 %v3467
          %3879 = vmatmul.mubr.f32.gmra.mrb[0].mxu0 %v3466
          %v3880 = vpop.f32.mrb[0].mxu0
          %v3881 = vadd.f32 0.0, %v3880
          %v3882 = vpop.f32.mrb[0].mxu0
          %3883 = vmatprep.mubr.f32.mxu0 %v3476
          %3884 = vmatmul.mubr.f32.gmra.mrb[0].mxu0 %v3475
          %v3885 = vpop.f32.mrb[0].mxu0
          %v3886 = vadd.f32 0.0, %v3885
          %v3887 = vpop.f32.mrb[0].mxu0
          %3888 = vmatprep.mubr.f32.mxu0 %v3485
          %3889 = vmatmul.mubr.f32.gmra.mrb[0].mxu0 %v3484
          %v3890 = vpop.f32.mrb[0].mxu0
          %v3891 = vadd.f32 0.0, %v3890
          %v3892 = vpop.f32.mrb[0].mxu0
          %3893 = vmatprep.mubr.f32.mxu0 %v3494
          %3894 = vmatmul.mubr.f32.gmra.mrb[0].mxu0 %v3493
          %v3895 = vpop.f32.mrb[0].mxu0
          %v3896 = vadd.f32 0.0, %v3895
          %v3897 = vpop.f32.mrb[0].mxu0
          %3898 = vmatprep.mubr.f32.mxu0 %v3503
          %3899 = vmatmul.mubr.f32.gmra.mrb[0].mxu0 %v3502
          %v3900 = vpop.f32.mrb[0].mxu0
          %v3901 = vadd.f32 0.0, %v3900
          %v3902 = vpop.f32.mrb[0].mxu0
          %3903 = vmatprep.mubr.f32.mxu0 %v3512
          %3904 = vmatmul.mubr.f32.gmra.mrb[0].mxu0 %v3511
          %v3905 = vpop.f32.mrb[0].mxu0
          %v3906 = vadd.f32 0.0, %v3905
          %v3907 = vpop.f32.mrb[0].mxu0
          %3908 = vmatprep.mubr.f32.mxu0 %v3521
          %3909 = vmatmul.mubr.f32.gmra.mrb[0].mxu0 %v3520
          %v3910 = vpop.f32.mrb[0].mxu0
          %v3911 = vadd.f32 0.0, %v3910
          %v3912 = vpop.f32.mrb[0].mxu0
          %3913 = vmatprep.mubr.f32.mxu0 %v3530
          %3914 = vmatmul.mubr.f32.gmra.mrb[0].mxu0 %v3529
          %v3915 = vpop.f32.mrb[0].mxu0
          %v3916 = vadd.f32 0.0, %v3915
          %v3917 = vpop.f32.mrb[0].mxu0
          %3918 = vmatprep.mubr.f32.mxu0 %v3539
          %3919 = vmatmul.mubr.f32.gmra.mrb[0].mxu0 %v3538
          %v3920 = vpop.f32.mrb[0].mxu0
          %v3921 = vadd.f32 0.0, %v3920
          %v3922 = vpop.f32.mrb[0].mxu0
          %3923 = vmatprep.mubr.f32.mxu0 %v3548
          %3924 = vmatmul.mubr.f32.gmra.mrb[0].mxu0 %v3547
          %v3925 = vpop.f32.mrb[0].mxu0
          %v3926 = vadd.f32 0.0, %v3925
          %v3927 = vpop.f32.mrb[0].mxu0
          %3928 = vmatprep.mubr.f32.mxu0 %v3557
          %3929 = vmatmul.mubr.f32.gmra.mrb[0].mxu0 %v3556
          %v3930 = vpop.f32.mrb[0].mxu0
          %v3931 = vadd.f32 0.0, %v3930
          %v3932 = vpop.f32.mrb[0].mxu0
          %3933 = vdwg.mxu0
          %3934 = vmatprep.subr.mxu0 0.0
          %3935 = vmatpush1.msra.mxu0 %v3597
          %3936 = vmatprep.subr.mxu0 0.0
          %3937 = vmatpush1.msra.mxu0 %v3598
          %3938 = vmatprep.subr.mxu0 0.0
          %3939 = vmatpush1.msra.mxu0 %v3599
          %3940 = vmatprep.subr.mxu0 0.0
          %3941 = vmatpush1.msra.mxu0 %v3600
          %3942 = vmatprep.subr.mxu0 0.0
          %3943 = vmatpush1.msra.mxu0 %v3601
          %3944 = vmatprep.subr.mxu0 0.0
          %3945 = vmatpush1.msra.mxu0 %v3602
          %3946 = vmatprep.subr.mxu0 0.0
          %3947 = vmatpush1.msra.mxu0 %v3603
          %3948 = vmatprep.subr.mxu0 0.0
          %3949 = vmatpush1.msra.mxu0 %v3604
          %3950 = vmatprep.subr.mxu0 0.0
          %3951 = vmatpush1.msra.mxu0 %v3605
          %3952 = vmatprep.subr.mxu0 0.0
          %3953 = vmatpush1.msra.mxu0 %v3606
          %3954 = vmatprep.subr.mxu0 0.0
          %3955 = vmatpush1.msra.mxu0 %v3607
          %3956 = vmatprep.subr.mxu0 0.0
          %3957 = vmatpush1.msra.mxu0 %v3608
          %3958 = vmatprep.subr.mxu0 0.0
          %3959 = vmatpush1.msra.mxu0 %v3609
          %3960 = vmatprep.subr.mxu0 0.0
          %3961 = vmatpush1.msra.mxu0 %v3610
          %3962 = vmatprep.subr.mxu0 0.0
          %3963 = vmatpush1.msra.mxu0 %v3611
          %3964 = vmatprep.subr.mxu0 0.0
          %3965 = vmatpush1.msra.mxu0 %v3612
          %3966 = vmatprep.subr.mxu0 0.0
          %3967 = vmatpush1.msra.mxu0 %v3613
          %3968 = vmatprep.subr.mxu0 0.0
          %3969 = vmatpush1.msra.mxu0 %v3614
          %3970 = vmatprep.subr.mxu0 0.0
          %3971 = vmatpush1.msra.mxu0 %v3615
          %3972 = vmatprep.subr.mxu0 0.0
          %3973 = vmatpush1.msra.mxu0 %v3616
          %3974 = vmatprep.subr.mxu0 0.0
          %3975 = vmatpush1.msra.mxu0 %v3617
          %3976 = vmatprep.subr.mxu0 0.0
          %3977 = vmatpush1.msra.mxu0 %v3618
          %3978 = vmatprep.subr.mxu0 0.0
          %3979 = vmatpush1.msra.mxu0 %v3619
          %3980 = vmatprep.subr.mxu0 0.0
          %3981 = vmatpush1.msra.mxu0 %v3620
          %3982 = vmatprep.subr.mxu0 0.0
          %3983 = vmatpush1.msra.mxu0 %v3621
          %3984 = vmatprep.subr.mxu0 0.0
          %3985 = vmatpush1.msra.mxu0 %v3622
          %3986 = vmatprep.subr.mxu0 0.0
          %3987 = vmatpush1.msra.mxu0 %v3623
          %3988 = vmatprep.subr.mxu0 0.0
          %3989 = vmatpush1.msra.mxu0 %v3624
          %3990 = vmatprep.subr.mxu0 0.0
          %3991 = vmatpush1.msra.mxu0 %v3625
          %3992 = vmatprep.subr.mxu0 0.0
          %3993 = vmatpush1.msra.mxu0 %v3626
          %3994 = vmatprep.subr.mxu0 0.0
          %3995 = vmatpush1.msra.mxu0 %v3627
          %3996 = vmatprep.subr.mxu0 0.0
          %3997 = vmatpush1.msra.mxu0 %v3628
          %3998 = vmatprep.mubr.f32.mxu0 %v3280
          %3999 = vmatmul.mubr.f32.gmra.mrb[0].mxu0 %v3279
          %v4000 = vpop.f32.mrb[0].mxu0
          %v4001 = vadd.f32 %v3776, %v4000
          %v4002 = vpop.f32.mrb[0].mxu0
          %4003 = vmatprep.mubr.f32.mxu0 %v3289
          %4004 = vmatmul.mubr.f32.gmra.mrb[0].mxu0 %v3288
          %v4005 = vpop.f32.mrb[0].mxu0
          %v4006 = vadd.f32 %v3781, %v4005
          %v4007 = vpop.f32.mrb[0].mxu0
          %4008 = vmatprep.mubr.f32.mxu0 %v3298
          %4009 = vmatmul.mubr.f32.gmra.mrb[0].mxu0 %v3297
          %v4010 = vpop.f32.mrb[0].mxu0
          %v4011 = vadd.f32 %v3786, %v4010
          %v4012 = vpop.f32.mrb[0].mxu0
          %4013 = vmatprep.mubr.f32.mxu0 %v3307
          %4014 = vmatmul.mubr.f32.gmra.mrb[0].mxu0 %v3306
          %v4015 = vpop.f32.mrb[0].mxu0
          %v4016 = vadd.f32 %v3791, %v4015
          %v4017 = vpop.f32.mrb[0].mxu0
          %4018 = vmatprep.mubr.f32.mxu0 %v3316
          %4019 = vmatmul.mubr.f32.gmra.mrb[0].mxu0 %v3315
          %v4020 = vpop.f32.mrb[0].mxu0
          %v4021 = vadd.f32 %v3796, %v4020
          %v4022 = vpop.f32.mrb[0].mxu0
          %4023 = vmatprep.mubr.f32.mxu0 %v3325
          %4024 = vmatmul.mubr.f32.gmra.mrb[0].mxu0 %v3324
          %v4025 = vpop.f32.mrb[0].mxu0
          %v4026 = vadd.f32 %v3801, %v4025
          %v4027 = vpop.f32.mrb[0].mxu0
          %4028 = vmatprep.mubr.f32.mxu0 %v3334
          %4029 = vmatmul.mubr.f32.gmra.mrb[0].mxu0 %v3333
          %v4030 = vpop.f32.mrb[0].mxu0
          %v4031 = vadd.f32 %v3806, %v4030
          %v4032 = vpop.f32.mrb[0].mxu0
          %4033 = vmatprep.mubr.f32.mxu0 %v3343
          %4034 = vmatmul.mubr.f32.gmra.mrb[0].mxu0 %v3342
          %v4035 = vpop.f32.mrb[0].mxu0
          %v4036 = vadd.f32 %v3811, %v4035
          %v4037 = vpop.f32.mrb[0].mxu0
          %4038 = vmatprep.mubr.f32.mxu0 %v3352
          %4039 = vmatmul.mubr.f32.gmra.mrb[0].mxu0 %v3351
          %v4040 = vpop.f32.mrb[0].mxu0
          %v4041 = vadd.f32 %v3816, %v4040
          %v4042 = vpop.f32.mrb[0].mxu0
          %4043 = vmatprep.mubr.f32.mxu0 %v3361
          %4044 = vmatmul.mubr.f32.gmra.mrb[0].mxu0 %v3360
          %v4045 = vpop.f32.mrb[0].mxu0
          %v4046 = vadd.f32 %v3821, %v4045
          %v4047 = vpop.f32.mrb[0].mxu0
          %4048 = vmatprep.mubr.f32.mxu0 %v3370
          %4049 = vmatmul.mubr.f32.gmra.mrb[0].mxu0 %v3369
          %v4050 = vpop.f32.mrb[0].mxu0
          %v4051 = vadd.f32 %v3826, %v4050
          %v4052 = vpop.f32.mrb[0].mxu0
          %4053 = vmatprep.mubr.f32.mxu0 %v3379
          %4054 = vmatmul.mubr.f32.gmra.mrb[0].mxu0 %v3378
          %v4055 = vpop.f32.mrb[0].mxu0
          %v4056 = vadd.f32 %v3831, %v4055
          %v4057 = vpop.f32.mrb[0].mxu0
          %4058 = vmatprep.mubr.f32.mxu0 %v3388
          %4059 = vmatmul.mubr.f32.gmra.mrb[0].mxu0 %v3387
          %v4060 = vpop.f32.mrb[0].mxu0
          %v4061 = vadd.f32 %v3836, %v4060
          %v4062 = vpop.f32.mrb[0].mxu0
          %4063 = vmatprep.mubr.f32.mxu0 %v3397
          %4064 = vmatmul.mubr.f32.gmra.mrb[0].mxu0 %v3396
          %v4065 = vpop.f32.mrb[0].mxu0
          %v4066 = vadd.f32 %v3841, %v4065
          %v4067 = vpop.f32.mrb[0].mxu0
          %4068 = vmatprep.mubr.f32.mxu0 %v3406
          %4069 = vmatmul.mubr.f32.gmra.mrb[0].mxu0 %v3405
          %v4070 = vpop.f32.mrb[0].mxu0
          %v4071 = vadd.f32 %v3846, %v4070
          %v4072 = vpop.f32.mrb[0].mxu0
          %4073 = vmatprep.mubr.f32.mxu0 %v3415
          %4074 = vmatmul.mubr.f32.gmra.mrb[0].mxu0 %v3414
          %v4075 = vpop.f32.mrb[0].mxu0
          %v4076 = vadd.f32 %v3851, %v4075
          %v4077 = vpop.f32.mrb[0].mxu0
          %4078 = vmatprep.mubr.f32.mxu0 %v3424
          %4079 = vmatmul.mubr.f32.gmra.mrb[0].mxu0 %v3423
          %v4080 = vpop.f32.mrb[0].mxu0
          %v4081 = vadd.f32 %v3856, %v4080
          %v4082 = vpop.f32.mrb[0].mxu0
          %4083 = vmatprep.mubr.f32.mxu0 %v3433
          %4084 = vmatmul.mubr.f32.gmra.mrb[0].mxu0 %v3432
          %v4085 = vpop.f32.mrb[0].mxu0
          %v4086 = vadd.f32 %v3861, %v4085
          %v4087 = vpop.f32.mrb[0].mxu0
          %4088 = vmatprep.mubr.f32.mxu0 %v3442
          %4089 = vmatmul.mubr.f32.gmra.mrb[0].mxu0 %v3441
          %v4090 = vpop.f32.mrb[0].mxu0
          %v4091 = vadd.f32 %v3866, %v4090
          %v4092 = vpop.f32.mrb[0].mxu0
          %4093 = vmatprep.mubr.f32.mxu0 %v3451
          %4094 = vmatmul.mubr.f32.gmra.mrb[0].mxu0 %v3450
          %v4095 = vpop.f32.mrb[0].mxu0
          %v4096 = vadd.f32 %v3871, %v4095
          %v4097 = vpop.f32.mrb[0].mxu0
          %4098 = vmatprep.mubr.f32.mxu0 %v3460
          %4099 = vmatmul.mubr.f32.gmra.mrb[0].mxu0 %v3459
          %v4100 = vpop.f32.mrb[0].mxu0
          %v4101 = vadd.f32 %v3876, %v4100
          %v4102 = vpop.f32.mrb[0].mxu0
          %4103 = vmatprep.mubr.f32.mxu0 %v3469
          %4104 = vmatmul.mubr.f32.gmra.mrb[0].mxu0 %v3468
          %v4105 = vpop.f32.mrb[0].mxu0
          %v4106 = vadd.f32 %v3881, %v4105
          %v4107 = vpop.f32.mrb[0].mxu0
          %4108 = vmatprep.mubr.f32.mxu0 %v3478
          %4109 = vmatmul.mubr.f32.gmra.mrb[0].mxu0 %v3477
          %v4110 = vpop.f32.mrb[0].mxu0
          %v4111 = vadd.f32 %v3886, %v4110
          %v4112 = vpop.f32.mrb[0].mxu0
          %4113 = vmatprep.mubr.f32.mxu0 %v3487
          %4114 = vmatmul.mubr.f32.gmra.mrb[0].mxu0 %v3486
          %v4115 = vpop.f32.mrb[0].mxu0
          %v4116 = vadd.f32 %v3891, %v4115
          %v4117 = vpop.f32.mrb[0].mxu0
          %4118 = vmatprep.mubr.f32.mxu0 %v3496
          %4119 = vmatmul.mubr.f32.gmra.mrb[0].mxu0 %v3495
          %v4120 = vpop.f32.mrb[0].mxu0
          %v4121 = vadd.f32 %v3896, %v4120
          %v4122 = vpop.f32.mrb[0].mxu0
          %4123 = vmatprep.mubr.f32.mxu0 %v3505
          %4124 = vmatmul.mubr.f32.gmra.mrb[0].mxu0 %v3504
          %v4125 = vpop.f32.mrb[0].mxu0
          %v4126 = vadd.f32 %v3901, %v4125
          %v4127 = vpop.f32.mrb[0].mxu0
          %4128 = vmatprep.mubr.f32.mxu0 %v3514
          %4129 = vmatmul.mubr.f32.gmra.mrb[0].mxu0 %v3513
          %v4130 = vpop.f32.mrb[0].mxu0
          %v4131 = vadd.f32 %v3906, %v4130
          %v4132 = vpop.f32.mrb[0].mxu0
          %4133 = vmatprep.mubr.f32.mxu0 %v3523
          %4134 = vmatmul.mubr.f32.gmra.mrb[0].mxu0 %v3522
          %v4135 = vpop.f32.mrb[0].mxu0
          %v4136 = vadd.f32 %v3911, %v4135
          %v4137 = vpop.f32.mrb[0].mxu0
          %4138 = vmatprep.mubr.f32.mxu0 %v3532
          %4139 = vmatmul.mubr.f32.gmra.mrb[0].mxu0 %v3531
          %v4140 = vpop.f32.mrb[0].mxu0
          %v4141 = vadd.f32 %v3916, %v4140
          %v4142 = vpop.f32.mrb[0].mxu0
          %4143 = vmatprep.mubr.f32.mxu0 %v3541
          %4144 = vmatmul.mubr.f32.gmra.mrb[0].mxu0 %v3540
          %v4145 = vpop.f32.mrb[0].mxu0
          %v4146 = vadd.f32 %v3921, %v4145
          %v4147 = vpop.f32.mrb[0].mxu0
          %4148 = vmatprep.mubr.f32.mxu0 %v3550
          %4149 = vmatmul.mubr.f32.gmra.mrb[0].mxu0 %v3549
          %v4150 = vpop.f32.mrb[0].mxu0
          %v4151 = vadd.f32 %v3926, %v4150
          %v4152 = vpop.f32.mrb[0].mxu0
          %4153 = vmatprep.mubr.f32.mxu0 %v3559
          %4154 = vmatmul.mubr.f32.gmra.mrb[0].mxu0 %v3558
          %v4155 = vpop.f32.mrb[0].mxu0
          %v4156 = vadd.f32 %v3931, %v4155
          %v4157 = vpop.f32.mrb[0].mxu0
          %4158 = vdwg.mxu0
          %4159 = vmatprep.subr.mxu0 0.0
          %4160 = vmatpush1.msra.mxu0 %v3629
          %4161 = vmatprep.subr.mxu0 0.0
          %4162 = vmatpush1.msra.mxu0 %v3630
          %4163 = vmatprep.subr.mxu0 0.0
          %4164 = vmatpush1.msra.mxu0 %v3631
          %4165 = vmatprep.subr.mxu0 0.0
          %4166 = vmatpush1.msra.mxu0 %v3632
          %4167 = vmatprep.subr.mxu0 0.0
          %4168 = vmatpush1.msra.mxu0 %v3633
          %4169 = vmatprep.subr.mxu0 0.0
          %4170 = vmatpush1.msra.mxu0 %v3634
          %4171 = vmatprep.subr.mxu0 0.0
          %4172 = vmatpush1.msra.mxu0 %v3635
          %4173 = vmatprep.subr.mxu0 0.0
          %4174 = vmatpush1.msra.mxu0 %v3636
          %4175 = vmatprep.subr.mxu0 0.0
          %4176 = vmatpush1.msra.mxu0 %v3637
          %4177 = vmatprep.subr.mxu0 0.0
          %4178 = vmatpush1.msra.mxu0 %v3638
          %4179 = vmatprep.subr.mxu0 0.0
          %4180 = vmatpush1.msra.mxu0 %v3639
          %4181 = vmatprep.subr.mxu0 0.0
          %4182 = vmatpush1.msra.mxu0 %v3640
          %4183 = vmatprep.subr.mxu0 0.0
          %4184 = vmatpush1.msra.mxu0 %v3641
          %4185 = vmatprep.subr.mxu0 0.0
          %4186 = vmatpush1.msra.mxu0 %v3642
          %4187 = vmatprep.subr.mxu0 0.0
          %4188 = vmatpush1.msra.mxu0 %v3643
          %4189 = vmatprep.subr.mxu0 0.0
          %4190 = vmatpush1.msra.mxu0 %v3644
          %4191 = vmatprep.subr.mxu0 0.0
          %4192 = vmatpush1.msra.mxu0 %v3645
          %4193 = vmatprep.subr.mxu0 0.0
          %4194 = vmatpush1.msra.mxu0 %v3646
          %4195 = vmatprep.subr.mxu0 0.0
          %4196 = vmatpush1.msra.mxu0 %v3647
          %4197 = vmatprep.subr.mxu0 0.0
          %4198 = vmatpush1.msra.mxu0 %v3648
          %4199 = vmatprep.subr.mxu0 0.0
          %4200 = vmatpush1.msra.mxu0 %v3649
          %4201 = vmatprep.subr.mxu0 0.0
          %4202 = vmatpush1.msra.mxu0 %v3650
          %4203 = vmatprep.subr.mxu0 0.0
          %4204 = vmatpush1.msra.mxu0 %v3651
          %4205 = vmatprep.subr.mxu0 0.0
          %4206 = vmatpush1.msra.mxu0 %v3652
          %4207 = vmatprep.subr.mxu0 0.0
          %4208 = vmatpush1.msra.mxu0 %v3653
          %4209 = vmatprep.subr.mxu0 0.0
          %4210 = vmatpush1.msra.mxu0 %v3654
          %4211 = vmatprep.subr.mxu0 0.0
          %4212 = vmatpush1.msra.mxu0 %v3655
          %4213 = vmatprep.subr.mxu0 0.0
          %4214 = vmatpush1.msra.mxu0 %v3656
          %4215 = vmatprep.subr.mxu0 0.0
          %4216 = vmatpush1.msra.mxu0 %v3657
          %4217 = vmatprep.subr.mxu0 0.0
          %4218 = vmatpush1.msra.mxu0 %v3658
          %4219 = vmatprep.subr.mxu0 0.0
          %4220 = vmatpush1.msra.mxu0 %v3659
          %4221 = vmatprep.subr.mxu0 0.0
          %4222 = vmatpush1.msra.mxu0 %v3660
          %4223 = vmatprep.mubr.f32.mxu0 %v3282
          %4224 = vmatmul.mubr.f32.gmra.mrb[0].mxu0 %v3281
          %v4225 = vpop.f32.mrb[0].mxu0
          %v4226 = vadd.f32 %v4001, %v4225
          %v4227 = vpop.f32.mrb[0].mxu0
          %4228 = vmatprep.mubr.f32.mxu0 %v3291
          %4229 = vmatmul.mubr.f32.gmra.mrb[0].mxu0 %v3290
          %v4230 = vpop.f32.mrb[0].mxu0
          %v4231 = vadd.f32 %v4006, %v4230
          %v4232 = vpop.f32.mrb[0].mxu0
          %4233 = vmatprep.mubr.f32.mxu0 %v3300
          %4234 = vmatmul.mubr.f32.gmra.mrb[0].mxu0 %v3299
          %v4235 = vpop.f32.mrb[0].mxu0
          %v4236 = vadd.f32 %v4011, %v4235
          %v4237 = vpop.f32.mrb[0].mxu0
          %4238 = vmatprep.mubr.f32.mxu0 %v3309
          %4239 = vmatmul.mubr.f32.gmra.mrb[0].mxu0 %v3308
          %v4240 = vpop.f32.mrb[0].mxu0
          %v4241 = vadd.f32 %v4016, %v4240
          %v4242 = vpop.f32.mrb[0].mxu0
          %4243 = vmatprep.mubr.f32.mxu0 %v3318
          %4244 = vmatmul.mubr.f32.gmra.mrb[0].mxu0 %v3317
          %v4245 = vpop.f32.mrb[0].mxu0
          %v4246 = vadd.f32 %v4021, %v4245
          %v4247 = vpop.f32.mrb[0].mxu0
          %4248 = vmatprep.mubr.f32.mxu0 %v3327
          %4249 = vmatmul.mubr.f32.gmra.mrb[0].mxu0 %v3326
          %v4250 = vpop.f32.mrb[0].mxu0
          %v4251 = vadd.f32 %v4026, %v4250
          %v4252 = vpop.f32.mrb[0].mxu0
          %4253 = vmatprep.mubr.f32.mxu0 %v3336
          %4254 = vmatmul.mubr.f32.gmra.mrb[0].mxu0 %v3335
          %v4255 = vpop.f32.mrb[0].mxu0
          %v4256 = vadd.f32 %v4031, %v4255
          %v4257 = vpop.f32.mrb[0].mxu0
          %4258 = vmatprep.mubr.f32.mxu0 %v3345
          %4259 = vmatmul.mubr.f32.gmra.mrb[0].mxu0 %v3344
          %v4260 = vpop.f32.mrb[0].mxu0
          %v4261 = vadd.f32 %v4036, %v4260
          %v4262 = vpop.f32.mrb[0].mxu0
          %4263 = vmatprep.mubr.f32.mxu0 %v3354
          %4264 = vmatmul.mubr.f32.gmra.mrb[0].mxu0 %v3353
          %v4265 = vpop.f32.mrb[0].mxu0
          %v4266 = vadd.f32 %v4041, %v4265
          %v4267 = vpop.f32.mrb[0].mxu0
          %4268 = vmatprep.mubr.f32.mxu0 %v3363
          %4269 = vmatmul.mubr.f32.gmra.mrb[0].mxu0 %v3362
          %v4270 = vpop.f32.mrb[0].mxu0
          %v4271 = vadd.f32 %v4046, %v4270
          %v4272 = vpop.f32.mrb[0].mxu0
          %4273 = vmatprep.mubr.f32.mxu0 %v3372
          %4274 = vmatmul.mubr.f32.gmra.mrb[0].mxu0 %v3371
          %v4275 = vpop.f32.mrb[0].mxu0
          %v4276 = vadd.f32 %v4051, %v4275
          %v4277 = vpop.f32.mrb[0].mxu0
          %4278 = vmatprep.mubr.f32.mxu0 %v3381
          %4279 = vmatmul.mubr.f32.gmra.mrb[0].mxu0 %v3380
          %v4280 = vpop.f32.mrb[0].mxu0
          %v4281 = vadd.f32 %v4056, %v4280
          %v4282 = vpop.f32.mrb[0].mxu0
          %4283 = vmatprep.mubr.f32.mxu0 %v3390
          %4284 = vmatmul.mubr.f32.gmra.mrb[0].mxu0 %v3389
          %v4285 = vpop.f32.mrb[0].mxu0
          %v4286 = vadd.f32 %v4061, %v4285
          %v4287 = vpop.f32.mrb[0].mxu0
          %4288 = vmatprep.mubr.f32.mxu0 %v3399
          %4289 = vmatmul.mubr.f32.gmra.mrb[0].mxu0 %v3398
          %v4290 = vpop.f32.mrb[0].mxu0
          %v4291 = vadd.f32 %v4066, %v4290
          %v4292 = vpop.f32.mrb[0].mxu0
          %4293 = vmatprep.mubr.f32.mxu0 %v3408
          %4294 = vmatmul.mubr.f32.gmra.mrb[0].mxu0 %v3407
          %v4295 = vpop.f32.mrb[0].mxu0
          %v4296 = vadd.f32 %v4071, %v4295
          %v4297 = vpop.f32.mrb[0].mxu0
          %4298 = vmatprep.mubr.f32.mxu0 %v3417
          %4299 = vmatmul.mubr.f32.gmra.mrb[0].mxu0 %v3416
          %v4300 = vpop.f32.mrb[0].mxu0
          %v4301 = vadd.f32 %v4076, %v4300
          %v4302 = vpop.f32.mrb[0].mxu0
          %4303 = vmatprep.mubr.f32.mxu0 %v3426
          %4304 = vmatmul.mubr.f32.gmra.mrb[0].mxu0 %v3425
          %v4305 = vpop.f32.mrb[0].mxu0
          %v4306 = vadd.f32 %v4081, %v4305
          %v4307 = vpop.f32.mrb[0].mxu0
          %4308 = vmatprep.mubr.f32.mxu0 %v3435
          %4309 = vmatmul.mubr.f32.gmra.mrb[0].mxu0 %v3434
          %v4310 = vpop.f32.mrb[0].mxu0
          %v4311 = vadd.f32 %v4086, %v4310
          %v4312 = vpop.f32.mrb[0].mxu0
          %4313 = vmatprep.mubr.f32.mxu0 %v3444
          %4314 = vmatmul.mubr.f32.gmra.mrb[0].mxu0 %v3443
          %v4315 = vpop.f32.mrb[0].mxu0
          %v4316 = vadd.f32 %v4091, %v4315
          %v4317 = vpop.f32.mrb[0].mxu0
          %4318 = vmatprep.mubr.f32.mxu0 %v3453
          %4319 = vmatmul.mubr.f32.gmra.mrb[0].mxu0 %v3452
          %v4320 = vpop.f32.mrb[0].mxu0
          %v4321 = vadd.f32 %v4096, %v4320
          %v4322 = vpop.f32.mrb[0].mxu0
          %4323 = vmatprep.mubr.f32.mxu0 %v3462
          %4324 = vmatmul.mubr.f32.gmra.mrb[0].mxu0 %v3461
          %v4325 = vpop.f32.mrb[0].mxu0
          %v4326 = vadd.f32 %v4101, %v4325
          %v4327 = vpop.f32.mrb[0].mxu0
          %4328 = vmatprep.mubr.f32.mxu0 %v3471
          %4329 = vmatmul.mubr.f32.gmra.mrb[0].mxu0 %v3470
          %v4330 = vpop.f32.mrb[0].mxu0
          %v4331 = vadd.f32 %v4106, %v4330
          %v4332 = vpop.f32.mrb[0].mxu0
          %4333 = vmatprep.mubr.f32.mxu0 %v3480
          %4334 = vmatmul.mubr.f32.gmra.mrb[0].mxu0 %v3479
          %v4335 = vpop.f32.mrb[0].mxu0
          %v4336 = vadd.f32 %v4111, %v4335
          %v4337 = vpop.f32.mrb[0].mxu0
          %4338 = vmatprep.mubr.f32.mxu0 %v3489
          %4339 = vmatmul.mubr.f32.gmra.mrb[0].mxu0 %v3488
          %v4340 = vpop.f32.mrb[0].mxu0
          %v4341 = vadd.f32 %v4116, %v4340
          %v4342 = vpop.f32.mrb[0].mxu0
          %4343 = vmatprep.mubr.f32.mxu0 %v3498
          %4344 = vmatmul.mubr.f32.gmra.mrb[0].mxu0 %v3497
          %v4345 = vpop.f32.mrb[0].mxu0
          %v4346 = vadd.f32 %v4121, %v4345
          %v4347 = vpop.f32.mrb[0].mxu0
          %4348 = vmatprep.mubr.f32.mxu0 %v3507
          %4349 = vmatmul.mubr.f32.gmra.mrb[0].mxu0 %v3506
          %v4350 = vpop.f32.mrb[0].mxu0
          %v4351 = vadd.f32 %v4126, %v4350
          %v4352 = vpop.f32.mrb[0].mxu0
          %4353 = vmatprep.mubr.f32.mxu0 %v3516
          %4354 = vmatmul.mubr.f32.gmra.mrb[0].mxu0 %v3515
          %v4355 = vpop.f32.mrb[0].mxu0
          %v4356 = vadd.f32 %v4131, %v4355
          %v4357 = vpop.f32.mrb[0].mxu0
          %4358 = vmatprep.mubr.f32.mxu0 %v3525
          %4359 = vmatmul.mubr.f32.gmra.mrb[0].mxu0 %v3524
          %v4360 = vpop.f32.mrb[0].mxu0
          %v4361 = vadd.f32 %v4136, %v4360
          %v4362 = vpop.f32.mrb[0].mxu0
          %4363 = vmatprep.mubr.f32.mxu0 %v3534
          %4364 = vmatmul.mubr.f32.gmra.mrb[0].mxu0 %v3533
          %v4365 = vpop.f32.mrb[0].mxu0
          %v4366 = vadd.f32 %v4141, %v4365
          %v4367 = vpop.f32.mrb[0].mxu0
          %4368 = vmatprep.mubr.f32.mxu0 %v3543
          %4369 = vmatmul.mubr.f32.gmra.mrb[0].mxu0 %v3542
          %v4370 = vpop.f32.mrb[0].mxu0
          %v4371 = vadd.f32 %v4146, %v4370
          %v4372 = vpop.f32.mrb[0].mxu0
          %4373 = vmatprep.mubr.f32.mxu0 %v3552
          %4374 = vmatmul.mubr.f32.gmra.mrb[0].mxu0 %v3551
          %v4375 = vpop.f32.mrb[0].mxu0
          %v4376 = vadd.f32 %v4151, %v4375
          %v4377 = vpop.f32.mrb[0].mxu0
          %4378 = vmatprep.mubr.f32.mxu0 %v3561
          %4379 = vmatmul.mubr.f32.gmra.mrb[0].mxu0 %v3560
          %v4380 = vpop.f32.mrb[0].mxu0
          %v4381 = vadd.f32 %v4156, %v4380
          %v4382 = vpop.f32.mrb[0].mxu0
          %4383 = vdwg.mxu0
          %4384 = vmatprep.subr.mxu0 0.0
          %4385 = vmatpush1.msra.mxu0 %v3661
          %4386 = vmatprep.subr.mxu0 0.0
          %4387 = vmatpush1.msra.mxu0 %v3662
          %4388 = vmatprep.subr.mxu0 0.0
          %4389 = vmatpush1.msra.mxu0 %v3663
          %4390 = vmatprep.subr.mxu0 0.0
          %4391 = vmatpush1.msra.mxu0 %v3664
          %4392 = vmatprep.subr.mxu0 0.0
          %4393 = vmatpush1.msra.mxu0 %v3665
          %4394 = vmatprep.subr.mxu0 0.0
          %4395 = vmatpush1.msra.mxu0 %v3666
          %4396 = vmatprep.subr.mxu0 0.0
          %4397 = vmatpush1.msra.mxu0 %v3667
          %4398 = vmatprep.subr.mxu0 0.0
          %4399 = vmatpush1.msra.mxu0 %v3668
          %4400 = vmatprep.subr.mxu0 0.0
          %4401 = vmatpush1.msra.mxu0 %v3669
          %4402 = vmatprep.subr.mxu0 0.0
          %4403 = vmatpush1.msra.mxu0 %v3670
          %4404 = vmatprep.subr.mxu0 0.0
          %4405 = vmatpush1.msra.mxu0 %v3671
          %4406 = vmatprep.subr.mxu0 0.0
          %4407 = vmatpush1.msra.mxu0 %v3672
          %4408 = vmatprep.subr.mxu0 0.0
          %4409 = vmatpush1.msra.mxu0 %v3673
          %4410 = vmatprep.subr.mxu0 0.0
          %4411 = vmatpush1.msra.mxu0 %v3674
          %4412 = vmatprep.subr.mxu0 0.0
          %4413 = vmatpush1.msra.mxu0 %v3675
          %4414 = vmatprep.subr.mxu0 0.0
          %4415 = vmatpush1.msra.mxu0 %v3676
          %4416 = vmatprep.subr.mxu0 0.0
          %4417 = vmatpush1.msra.mxu0 %v3677
          %4418 = vmatprep.subr.mxu0 0.0
          %4419 = vmatpush1.msra.mxu0 %v3678
          %4420 = vmatprep.subr.mxu0 0.0
          %4421 = vmatpush1.msra.mxu0 %v3679
          %4422 = vmatprep.subr.mxu0 0.0
          %4423 = vmatpush1.msra.mxu0 %v3680
          %4424 = vmatprep.subr.mxu0 0.0
          %4425 = vmatpush1.msra.mxu0 %v3681
          %4426 = vmatprep.subr.mxu0 0.0
          %4427 = vmatpush1.msra.mxu0 %v3682
          %4428 = vmatprep.subr.mxu0 0.0
          %4429 = vmatpush1.msra.mxu0 %v3683
          %4430 = vmatprep.subr.mxu0 0.0
          %4431 = vmatpush1.msra.mxu0 %v3684
          %4432 = vmatprep.subr.mxu0 0.0
          %4433 = vmatpush1.msra.mxu0 %v3685
          %4434 = vmatprep.subr.mxu0 0.0
          %4435 = vmatpush1.msra.mxu0 %v3686
          %4436 = vmatprep.subr.mxu0 0.0
          %4437 = vmatpush1.msra.mxu0 %v3687
          %4438 = vmatprep.subr.mxu0 0.0
          %4439 = vmatpush1.msra.mxu0 %v3688
          %4440 = vmatprep.subr.mxu0 0.0
          %4441 = vmatpush1.msra.mxu0 %v3689
          %4442 = vmatprep.subr.mxu0 0.0
          %4443 = vmatpush1.msra.mxu0 %v3690
          %4444 = vmatprep.subr.mxu0 0.0
          %4445 = vmatpush1.msra.mxu0 %v3691
          %4446 = vmatprep.subr.mxu0 0.0
          %4447 = vmatpush1.msra.mxu0 %v3692
          %4448 = vmatprep.mubr.f32.mxu0 %v3284
          %4449 = vmatmul.mubr.f32.gmra.mrb[0].mxu0 %v3283
          %v4450 = vpop.f32.mrb[0].mxu0
          %v4451 = vadd.f32 %v4226, %v4450
          %v4452 = vpop.f32.mrb[0].mxu0
          %4453 = vmatprep.mubr.f32.mxu0 %v3293
          %4454 = vmatmul.mubr.f32.gmra.mrb[0].mxu0 %v3292
          %v4455 = vpop.f32.mrb[0].mxu0
          %v4456 = vadd.f32 %v4231, %v4455
          %v4457 = vpop.f32.mrb[0].mxu0
          %4458 = vmatprep.mubr.f32.mxu0 %v3302
          %4459 = vmatmul.mubr.f32.gmra.mrb[0].mxu0 %v3301
          %v4460 = vpop.f32.mrb[0].mxu0
          %v4461 = vadd.f32 %v4236, %v4460
          %v4462 = vpop.f32.mrb[0].mxu0
          %4463 = vmatprep.mubr.f32.mxu0 %v3311
          %4464 = vmatmul.mubr.f32.gmra.mrb[0].mxu0 %v3310
          %v4465 = vpop.f32.mrb[0].mxu0
          %v4466 = vadd.f32 %v4241, %v4465
          %v4467 = vpop.f32.mrb[0].mxu0
          %4468 = vmatprep.mubr.f32.mxu0 %v3320
          %4469 = vmatmul.mubr.f32.gmra.mrb[0].mxu0 %v3319
          %v4470 = vpop.f32.mrb[0].mxu0
          %v4471 = vadd.f32 %v4246, %v4470
          %v4472 = vpop.f32.mrb[0].mxu0
          %4473 = vmatprep.mubr.f32.mxu0 %v3329
          %4474 = vmatmul.mubr.f32.gmra.mrb[0].mxu0 %v3328
          %v4475 = vpop.f32.mrb[0].mxu0
          %v4476 = vadd.f32 %v4251, %v4475
          %v4477 = vpop.f32.mrb[0].mxu0
          %4478 = vmatprep.mubr.f32.mxu0 %v3338
          %4479 = vmatmul.mubr.f32.gmra.mrb[0].mxu0 %v3337
          %v4480 = vpop.f32.mrb[0].mxu0
          %v4481 = vadd.f32 %v4256, %v4480
          %v4482 = vpop.f32.mrb[0].mxu0
          %4483 = vmatprep.mubr.f32.mxu0 %v3347
          %4484 = vmatmul.mubr.f32.gmra.mrb[0].mxu0 %v3346
          %v4485 = vpop.f32.mrb[0].mxu0
          %v4486 = vadd.f32 %v4261, %v4485
          %v4487 = vpop.f32.mrb[0].mxu0
          %4488 = vmatprep.mubr.f32.mxu0 %v3356
          %4489 = vmatmul.mubr.f32.gmra.mrb[0].mxu0 %v3355
          %v4490 = vpop.f32.mrb[0].mxu0
          %v4491 = vadd.f32 %v4266, %v4490
          %v4492 = vpop.f32.mrb[0].mxu0
          %4493 = vmatprep.mubr.f32.mxu0 %v3365
          %4494 = vmatmul.mubr.f32.gmra.mrb[0].mxu0 %v3364
          %v4495 = vpop.f32.mrb[0].mxu0
          %v4496 = vadd.f32 %v4271, %v4495
          %v4497 = vpop.f32.mrb[0].mxu0
          %4498 = vmatprep.mubr.f32.mxu0 %v3374
          %4499 = vmatmul.mubr.f32.gmra.mrb[0].mxu0 %v3373
          %v4500 = vpop.f32.mrb[0].mxu0
          %v4501 = vadd.f32 %v4276, %v4500
          %v4502 = vpop.f32.mrb[0].mxu0
          %4503 = vmatprep.mubr.f32.mxu0 %v3383
          %4504 = vmatmul.mubr.f32.gmra.mrb[0].mxu0 %v3382
          %v4505 = vpop.f32.mrb[0].mxu0
          %v4506 = vadd.f32 %v4281, %v4505
          %v4507 = vpop.f32.mrb[0].mxu0
          %4508 = vmatprep.mubr.f32.mxu0 %v3392
          %4509 = vmatmul.mubr.f32.gmra.mrb[0].mxu0 %v3391
          %v4510 = vpop.f32.mrb[0].mxu0
          %v4511 = vadd.f32 %v4286, %v4510
          %v4512 = vpop.f32.mrb[0].mxu0
          %4513 = vmatprep.mubr.f32.mxu0 %v3401
          %4514 = vmatmul.mubr.f32.gmra.mrb[0].mxu0 %v3400
          %v4515 = vpop.f32.mrb[0].mxu0
          %v4516 = vadd.f32 %v4291, %v4515
          %v4517 = vpop.f32.mrb[0].mxu0
          %4518 = vmatprep.mubr.f32.mxu0 %v3410
          %4519 = vmatmul.mubr.f32.gmra.mrb[0].mxu0 %v3409
          %v4520 = vpop.f32.mrb[0].mxu0
          %v4521 = vadd.f32 %v4296, %v4520
          %v4522 = vpop.f32.mrb[0].mxu0
          %4523 = vmatprep.mubr.f32.mxu0 %v3419
          %4524 = vmatmul.mubr.f32.gmra.mrb[0].mxu0 %v3418
          %v4525 = vpop.f32.mrb[0].mxu0
          %v4526 = vadd.f32 %v4301, %v4525
          %v4527 = vpop.f32.mrb[0].mxu0
          %4528 = vmatprep.mubr.f32.mxu0 %v3428
          %4529 = vmatmul.mubr.f32.gmra.mrb[0].mxu0 %v3427
          %v4530 = vpop.f32.mrb[0].mxu0
          %v4531 = vadd.f32 %v4306, %v4530
          %v4532 = vpop.f32.mrb[0].mxu0
          %4533 = vmatprep.mubr.f32.mxu0 %v3437
          %4534 = vmatmul.mubr.f32.gmra.mrb[0].mxu0 %v3436
          %v4535 = vpop.f32.mrb[0].mxu0
          %v4536 = vadd.f32 %v4311, %v4535
          %v4537 = vpop.f32.mrb[0].mxu0
          %4538 = vmatprep.mubr.f32.mxu0 %v3446
          %4539 = vmatmul.mubr.f32.gmra.mrb[0].mxu0 %v3445
          %v4540 = vpop.f32.mrb[0].mxu0
          %v4541 = vadd.f32 %v4316, %v4540
          %v4542 = vpop.f32.mrb[0].mxu0
          %4543 = vmatprep.mubr.f32.mxu0 %v3455
          %4544 = vmatmul.mubr.f32.gmra.mrb[0].mxu0 %v3454
          %v4545 = vpop.f32.mrb[0].mxu0
          %v4546 = vadd.f32 %v4321, %v4545
          %v4547 = vpop.f32.mrb[0].mxu0
          %4548 = vmatprep.mubr.f32.mxu0 %v3464
          %4549 = vmatmul.mubr.f32.gmra.mrb[0].mxu0 %v3463
          %v4550 = vpop.f32.mrb[0].mxu0
          %v4551 = vadd.f32 %v4326, %v4550
          %v4552 = vpop.f32.mrb[0].mxu0
          %4553 = vmatprep.mubr.f32.mxu0 %v3473
          %4554 = vmatmul.mubr.f32.gmra.mrb[0].mxu0 %v3472
          %v4555 = vpop.f32.mrb[0].mxu0
          %v4556 = vadd.f32 %v4331, %v4555
          %v4557 = vpop.f32.mrb[0].mxu0
          %4558 = vmatprep.mubr.f32.mxu0 %v3482
          %4559 = vmatmul.mubr.f32.gmra.mrb[0].mxu0 %v3481
          %v4560 = vpop.f32.mrb[0].mxu0
          %v4561 = vadd.f32 %v4336, %v4560
          %v4562 = vpop.f32.mrb[0].mxu0
          %4563 = vmatprep.mubr.f32.mxu0 %v3491
          %4564 = vmatmul.mubr.f32.gmra.mrb[0].mxu0 %v3490
          %v4565 = vpop.f32.mrb[0].mxu0
          %v4566 = vadd.f32 %v4341, %v4565
          %v4567 = vpop.f32.mrb[0].mxu0
          %4568 = vmatprep.mubr.f32.mxu0 %v3500
          %4569 = vmatmul.mubr.f32.gmra.mrb[0].mxu0 %v3499
          %v4570 = vpop.f32.mrb[0].mxu0
          %v4571 = vadd.f32 %v4346, %v4570
          %v4572 = vpop.f32.mrb[0].mxu0
          %4573 = vmatprep.mubr.f32.mxu0 %v3509
          %4574 = vmatmul.mubr.f32.gmra.mrb[0].mxu0 %v3508
          %v4575 = vpop.f32.mrb[0].mxu0
          %v4576 = vadd.f32 %v4351, %v4575
          %v4577 = vpop.f32.mrb[0].mxu0
          %4578 = vmatprep.mubr.f32.mxu0 %v3518
          %4579 = vmatmul.mubr.f32.gmra.mrb[0].mxu0 %v3517
          %v4580 = vpop.f32.mrb[0].mxu0
          %v4581 = vadd.f32 %v4356, %v4580
          %v4582 = vpop.f32.mrb[0].mxu0
          %4583 = vmatprep.mubr.f32.mxu0 %v3527
          %4584 = vmatmul.mubr.f32.gmra.mrb[0].mxu0 %v3526
          %v4585 = vpop.f32.mrb[0].mxu0
          %v4586 = vadd.f32 %v4361, %v4585
          %v4587 = vpop.f32.mrb[0].mxu0
          %4588 = vmatprep.mubr.f32.mxu0 %v3536
          %4589 = vmatmul.mubr.f32.gmra.mrb[0].mxu0 %v3535
          %v4590 = vpop.f32.mrb[0].mxu0
          %v4591 = vadd.f32 %v4366, %v4590
          %v4592 = vpop.f32.mrb[0].mxu0
          %4593 = vmatprep.mubr.f32.mxu0 %v3545
          %4594 = vmatmul.mubr.f32.gmra.mrb[0].mxu0 %v3544
          %v4595 = vpop.f32.mrb[0].mxu0
          %v4596 = vadd.f32 %v4371, %v4595
          %v4597 = vpop.f32.mrb[0].mxu0
          %4598 = vmatprep.mubr.f32.mxu0 %v3554
          %4599 = vmatmul.mubr.f32.gmra.mrb[0].mxu0 %v3553
          %v4600 = vpop.f32.mrb[0].mxu0
          %v4601 = vadd.f32 %v4376, %v4600
          %v4602 = vpop.f32.mrb[0].mxu0
          %4603 = vmatprep.mubr.f32.mxu0 %v3563
          %4604 = vmatmul.mubr.f32.gmra.mrb[0].mxu0 %v3562
          %v4605 = vpop.f32.mrb[0].mxu0
          %v4606 = vadd.f32 %v4381, %v4605
          %v4607 = vpop.f32.mrb[0].mxu0
          %4608 = vdwg.mxu0
          %4609 = vmatprep.subr.mxu0 0.0
          %4610 = vmatpush1.msra.mxu0 %v3693
          %4611 = vmatprep.subr.mxu0 0.0
          %4612 = vmatpush1.msra.mxu0 %v3694
          %4613 = vmatprep.subr.mxu0 0.0
          %4614 = vmatpush1.msra.mxu0 %v3695
          %4615 = vmatprep.subr.mxu0 0.0
          %4616 = vmatpush1.msra.mxu0 %v3696
          %4617 = vmatprep.subr.mxu0 0.0
          %4618 = vmatpush1.msra.mxu0 %v3697
          %4619 = vmatprep.subr.mxu0 0.0
          %4620 = vmatpush1.msra.mxu0 %v3698
          %4621 = vmatprep.subr.mxu0 0.0
          %4622 = vmatpush1.msra.mxu0 %v3699
          %4623 = vmatprep.subr.mxu0 0.0
          %4624 = vmatpush1.msra.mxu0 %v3700
          %4625 = vmatprep.subr.mxu0 0.0
          %4626 = vmatpush1.msra.mxu0 %v3701
          %4627 = vmatprep.subr.mxu0 0.0
          %4628 = vmatpush1.msra.mxu0 %v3702
          %4629 = vmatprep.subr.mxu0 0.0
          %4630 = vmatpush1.msra.mxu0 %v3703
          %4631 = vmatprep.subr.mxu0 0.0
          %4632 = vmatpush1.msra.mxu0 %v3704
          %4633 = vmatprep.subr.mxu0 0.0
          %4634 = vmatpush1.msra.mxu0 %v3705
          %4635 = vmatprep.subr.mxu0 0.0
          %4636 = vmatpush1.msra.mxu0 %v3706
          %4637 = vmatprep.subr.mxu0 0.0
          %4638 = vmatpush1.msra.mxu0 %v3707
          %4639 = vmatprep.subr.mxu0 0.0
          %4640 = vmatpush1.msra.mxu0 %v3708
          %4641 = vmatprep.subr.mxu0 0.0
          %4642 = vmatpush1.msra.mxu0 0.0
          %4643 = vmatprep.subr.mxu0 0.0
          %4644 = vmatpush1.msra.mxu0 0.0
          %4645 = vmatprep.subr.mxu0 0.0
          %4646 = vmatpush1.msra.mxu0 0.0
          %4647 = vmatprep.subr.mxu0 0.0
          %4648 = vmatpush1.msra.mxu0 0.0
          %4649 = vmatprep.subr.mxu0 0.0
          %4650 = vmatpush1.msra.mxu0 0.0
          %4651 = vmatprep.subr.mxu0 0.0
          %4652 = vmatpush1.msra.mxu0 0.0
          %4653 = vmatprep.subr.mxu0 0.0
          %4654 = vmatpush1.msra.mxu0 0.0
          %4655 = vmatprep.subr.mxu0 0.0
          %4656 = vmatpush1.msra.mxu0 0.0
          %4657 = vmatprep.subr.mxu0 0.0
          %4658 = vmatpush1.msra.mxu0 0.0
          %4659 = vmatprep.subr.mxu0 0.0
          %4660 = vmatpush1.msra.mxu0 0.0
          %4661 = vmatprep.subr.mxu0 0.0
          %4662 = vmatpush1.msra.mxu0 0.0
          %4663 = vmatprep.subr.mxu0 0.0
          %4664 = vmatpush1.msra.mxu0 0.0
          %4665 = vmatprep.subr.mxu0 0.0
          %4666 = vmatpush1.msra.mxu0 0.0
          %4667 = vmatprep.subr.mxu0 0.0
          %4668 = vmatpush1.msra.mxu0 0.0
          %4669 = vmatprep.subr.mxu0 0.0
          %4670 = vmatpush1.msra.mxu0 0.0
          %4671 = vmatprep.subr.mxu0 0.0
          %4672 = vmatpush1.msra.mxu0 0.0
          %4673 = vmatprep.mubr.f32.mxu0 0.0
          %4674 = vmatmul.mubr.f32.gmra.mrb[0].mxu0 %v3285
          %v4675 = vpop.f32.mrb[0].mxu0
          %v4676 = vadd.f32 %v4451, %v4675
          %v4677 = vpop.f32.mrb[0].mxu0
          %4678 = vmatprep.mubr.f32.mxu0 0.0
          %4679 = vmatmul.mubr.f32.gmra.mrb[0].mxu0 %v3294
          %v4680 = vpop.f32.mrb[0].mxu0
          %v4681 = vadd.f32 %v4456, %v4680
          %v4682 = vpop.f32.mrb[0].mxu0
          %4683 = vmatprep.mubr.f32.mxu0 0.0
          %4684 = vmatmul.mubr.f32.gmra.mrb[0].mxu0 %v3303
          %v4685 = vpop.f32.mrb[0].mxu0
          %v4686 = vadd.f32 %v4461, %v4685
          %v4687 = vpop.f32.mrb[0].mxu0
          %4688 = vmatprep.mubr.f32.mxu0 0.0
          %4689 = vmatmul.mubr.f32.gmra.mrb[0].mxu0 %v3312
          %v4690 = vpop.f32.mrb[0].mxu0
          %v4691 = vadd.f32 %v4466, %v4690
          %v4692 = vpop.f32.mrb[0].mxu0
          %4693 = vmatprep.mubr.f32.mxu0 0.0
          %4694 = vmatmul.mubr.f32.gmra.mrb[0].mxu0 %v3321
          %v4695 = vpop.f32.mrb[0].mxu0
          %v4696 = vadd.f32 %v4471, %v4695
          %v4697 = vpop.f32.mrb[0].mxu0
          %4698 = vmatprep.mubr.f32.mxu0 0.0
          %4699 = vmatmul.mubr.f32.gmra.mrb[0].mxu0 %v3330
          %v4700 = vpop.f32.mrb[0].mxu0
          %v4701 = vadd.f32 %v4476, %v4700
          %v4702 = vpop.f32.mrb[0].mxu0
          %4703 = vmatprep.mubr.f32.mxu0 0.0
          %4704 = vmatmul.mubr.f32.gmra.mrb[0].mxu0 %v3339
          %v4705 = vpop.f32.mrb[0].mxu0
          %v4706 = vadd.f32 %v4481, %v4705
          %v4707 = vpop.f32.mrb[0].mxu0
          %4708 = vmatprep.mubr.f32.mxu0 0.0
          %4709 = vmatmul.mubr.f32.gmra.mrb[0].mxu0 %v3348
          %v4710 = vpop.f32.mrb[0].mxu0
          %v4711 = vadd.f32 %v4486, %v4710
          %v4712 = vpop.f32.mrb[0].mxu0
          %4713 = vmatprep.mubr.f32.mxu0 0.0
          %4714 = vmatmul.mubr.f32.gmra.mrb[0].mxu0 %v3357
          %v4715 = vpop.f32.mrb[0].mxu0
          %v4716 = vadd.f32 %v4491, %v4715
          %v4717 = vpop.f32.mrb[0].mxu0
          %4718 = vmatprep.mubr.f32.mxu0 0.0
          %4719 = vmatmul.mubr.f32.gmra.mrb[0].mxu0 %v3366
          %v4720 = vpop.f32.mrb[0].mxu0
          %v4721 = vadd.f32 %v4496, %v4720
          %v4722 = vpop.f32.mrb[0].mxu0
          %4723 = vmatprep.mubr.f32.mxu0 0.0
          %4724 = vmatmul.mubr.f32.gmra.mrb[0].mxu0 %v3375
          %v4725 = vpop.f32.mrb[0].mxu0
          %v4726 = vadd.f32 %v4501, %v4725
          %v4727 = vpop.f32.mrb[0].mxu0
          %4728 = vmatprep.mubr.f32.mxu0 0.0
          %4729 = vmatmul.mubr.f32.gmra.mrb[0].mxu0 %v3384
          %v4730 = vpop.f32.mrb[0].mxu0
          %v4731 = vadd.f32 %v4506, %v4730
          %v4732 = vpop.f32.mrb[0].mxu0
          %4733 = vmatprep.mubr.f32.mxu0 0.0
          %4734 = vmatmul.mubr.f32.gmra.mrb[0].mxu0 %v3393
          %v4735 = vpop.f32.mrb[0].mxu0
          %v4736 = vadd.f32 %v4511, %v4735
          %v4737 = vpop.f32.mrb[0].mxu0
          %4738 = vmatprep.mubr.f32.mxu0 0.0
          %4739 = vmatmul.mubr.f32.gmra.mrb[0].mxu0 %v3402
          %v4740 = vpop.f32.mrb[0].mxu0
          %v4741 = vadd.f32 %v4516, %v4740
          %v4742 = vpop.f32.mrb[0].mxu0
          %4743 = vmatprep.mubr.f32.mxu0 0.0
          %4744 = vmatmul.mubr.f32.gmra.mrb[0].mxu0 %v3411
          %v4745 = vpop.f32.mrb[0].mxu0
          %v4746 = vadd.f32 %v4521, %v4745
          %v4747 = vpop.f32.mrb[0].mxu0
          %4748 = vmatprep.mubr.f32.mxu0 0.0
          %4749 = vmatmul.mubr.f32.gmra.mrb[0].mxu0 %v3420
          %v4750 = vpop.f32.mrb[0].mxu0
          %v4751 = vadd.f32 %v4526, %v4750
          %v4752 = vpop.f32.mrb[0].mxu0
          %4753 = vmatprep.mubr.f32.mxu0 0.0
          %4754 = vmatmul.mubr.f32.gmra.mrb[0].mxu0 %v3429
          %v4755 = vpop.f32.mrb[0].mxu0
          %v4756 = vadd.f32 %v4531, %v4755
          %v4757 = vpop.f32.mrb[0].mxu0
          %4758 = vmatprep.mubr.f32.mxu0 0.0
          %4759 = vmatmul.mubr.f32.gmra.mrb[0].mxu0 %v3438
          %v4760 = vpop.f32.mrb[0].mxu0
          %v4761 = vadd.f32 %v4536, %v4760
          %v4762 = vpop.f32.mrb[0].mxu0
          %4763 = vmatprep.mubr.f32.mxu0 0.0
          %4764 = vmatmul.mubr.f32.gmra.mrb[0].mxu0 %v3447
          %v4765 = vpop.f32.mrb[0].mxu0
          %v4766 = vadd.f32 %v4541, %v4765
          %v4767 = vpop.f32.mrb[0].mxu0
          %4768 = vmatprep.mubr.f32.mxu0 0.0
          %4769 = vmatmul.mubr.f32.gmra.mrb[0].mxu0 %v3456
          %v4770 = vpop.f32.mrb[0].mxu0
          %v4771 = vadd.f32 %v4546, %v4770
          %v4772 = vpop.f32.mrb[0].mxu0
          %4773 = vmatprep.mubr.f32.mxu0 0.0
          %4774 = vmatmul.mubr.f32.gmra.mrb[0].mxu0 %v3465
          %v4775 = vpop.f32.mrb[0].mxu0
          %v4776 = vadd.f32 %v4551, %v4775
          %v4777 = vpop.f32.mrb[0].mxu0
          %4778 = vmatprep.mubr.f32.mxu0 0.0
          %4779 = vmatmul.mubr.f32.gmra.mrb[0].mxu0 %v3474
          %v4780 = vpop.f32.mrb[0].mxu0
          %v4781 = vadd.f32 %v4556, %v4780
          %v4782 = vpop.f32.mrb[0].mxu0
          %4783 = vmatprep.mubr.f32.mxu0 0.0
          %4784 = vmatmul.mubr.f32.gmra.mrb[0].mxu0 %v3483
          %v4785 = vpop.f32.mrb[0].mxu0
          %v4786 = vadd.f32 %v4561, %v4785
          %v4787 = vpop.f32.mrb[0].mxu0
          %4788 = vmatprep.mubr.f32.mxu0 0.0
          %4789 = vmatmul.mubr.f32.gmra.mrb[0].mxu0 %v3492
          %v4790 = vpop.f32.mrb[0].mxu0
          %v4791 = vadd.f32 %v4566, %v4790
          %v4792 = vpop.f32.mrb[0].mxu0
          %4793 = vmatprep.mubr.f32.mxu0 0.0
          %4794 = vmatmul.mubr.f32.gmra.mrb[0].mxu0 %v3501
          %v4795 = vpop.f32.mrb[0].mxu0
          %v4796 = vadd.f32 %v4571, %v4795
          %v4797 = vpop.f32.mrb[0].mxu0
          %4798 = vmatprep.mubr.f32.mxu0 0.0
          %4799 = vmatmul.mubr.f32.gmra.mrb[0].mxu0 %v3510
          %v4800 = vpop.f32.mrb[0].mxu0
          %v4801 = vadd.f32 %v4576, %v4800
          %v4802 = vpop.f32.mrb[0].mxu0
          %4803 = vmatprep.mubr.f32.mxu0 0.0
          %4804 = vmatmul.mubr.f32.gmra.mrb[0].mxu0 %v3519
          %v4805 = vpop.f32.mrb[0].mxu0
          %v4806 = vadd.f32 %v4581, %v4805
          %v4807 = vpop.f32.mrb[0].mxu0
          %4808 = vmatprep.mubr.f32.mxu0 0.0
          %4809 = vmatmul.mubr.f32.gmra.mrb[0].mxu0 %v3528
          %v4810 = vpop.f32.mrb[0].mxu0
          %v4811 = vadd.f32 %v4586, %v4810
          %v4812 = vpop.f32.mrb[0].mxu0
          %4813 = vmatprep.mubr.f32.mxu0 0.0
          %4814 = vmatmul.mubr.f32.gmra.mrb[0].mxu0 %v3537
          %v4815 = vpop.f32.mrb[0].mxu0
          %v4816 = vadd.f32 %v4591, %v4815
          %v4817 = vpop.f32.mrb[0].mxu0
          %4818 = vmatprep.mubr.f32.mxu0 0.0
          %4819 = vmatmul.mubr.f32.gmra.mrb[0].mxu0 %v3546
          %v4820 = vpop.f32.mrb[0].mxu0
          %v4821 = vadd.f32 %v4596, %v4820
          %v4822 = vpop.f32.mrb[0].mxu0
          %4823 = vmatprep.mubr.f32.mxu0 0.0
          %4824 = vmatmul.mubr.f32.gmra.mrb[0].mxu0 %v3555
          %v4825 = vpop.f32.mrb[0].mxu0
          %v4826 = vadd.f32 %v4601, %v4825
          %v4827 = vpop.f32.mrb[0].mxu0
          %4828 = vmatprep.mubr.f32.mxu0 0.0
          %4829 = vmatmul.mubr.f32.gmra.mrb[0].mxu0 %v3564
          %v4830 = vpop.f32.mrb[0].mxu0
          %v4831 = vadd.f32 %v4606, %v4830
          %v4832 = vpop.f32.mrb[0].mxu0
          %4833 = vdwg.mxu0
          %v4834 = vld [vmem:[%s187] sm:$0xff]
          %v4835 = vld [vmem:[%s187 + $0x8] sm:$0xff]
          %v4836 = vld [vmem:[%s187 + $0x10] sm:$0xff]
          %v4837 = vld [vmem:[%s187 + $0x18] sm:$0xff]
          %v4838 = vld [vmem:[%s187 + $0x20] sm:$0xff]
          %v4839 = vld [vmem:[%s187 + $0x28] sm:$0xff]
          %v4840 = vld [vmem:[%s187 + $0x30] sm:$0xff]
          %v4841 = vld [vmem:[%s187 + $0x38] sm:$0xff]
          %v4842 = vld [vmem:[%s187 + $0x40] sm:$0xff]
          %v4843 = vld [vmem:[%s187 + $0x48] sm:$0xff]
          %v4844 = vld [vmem:[%s187 + $0x50] sm:$0xff]
          %v4845 = vld [vmem:[%s187 + $0x58] sm:$0xff]
          %v4846 = vld [vmem:[%s187 + $0x60] sm:$0xff]
          %v4847 = vld [vmem:[%s187 + $0x68] sm:$0xff]
          %v4848 = vld [vmem:[%s187 + $0x70] sm:$0xff]
          %v4849 = vld [vmem:[%s187 + $0x78] sm:$0xff]
          %v4850 = vld [vmem:[%s187 + $0x80] sm:$0xff]
          %v4851 = vld [vmem:[%s187 + $0x88] sm:$0xff]
          %v4852 = vld [vmem:[%s187 + $0x90] sm:$0xff]
          %v4853 = vld [vmem:[%s187 + $0x98] sm:$0xff]
          %v4854 = vld [vmem:[%s187 + $0xa0] sm:$0xff]
          %v4855 = vld [vmem:[%s187 + $0xa8] sm:$0xff]
          %v4856 = vld [vmem:[%s187 + $0xb0] sm:$0xff]
          %v4857 = vld [vmem:[%s187 + $0xb8] sm:$0xff]
          %v4858 = vld [vmem:[%s187 + $0xc0] sm:$0xff]
          %v4859 = vld [vmem:[%s187 + $0xc8] sm:$0xff]
          %v4860 = vld [vmem:[%s187 + $0xd0] sm:$0xff]
          %v4861 = vld [vmem:[%s187 + $0xd8] sm:$0xff]
          %v4862 = vld [vmem:[%s187 + $0xe0] sm:$0xff]
          %v4863 = vld [vmem:[%s187 + $0xe8] sm:$0xff]
          %v4864 = vld [vmem:[%s187 + $0xf0] sm:$0xff]
          %v4865 = vld [vmem:[%s187 + $0xf8] sm:$0xff]
          %v4866 = vadd.f32 %v4676, %v4834
          %v4867 = vadd.f32 %v4681, %v4835
          %v4868 = vadd.f32 %v4686, %v4836
          %v4869 = vadd.f32 %v4691, %v4837
          %v4870 = vadd.f32 %v4696, %v4838
          %v4871 = vadd.f32 %v4701, %v4839
          %v4872 = vadd.f32 %v4706, %v4840
          %v4873 = vadd.f32 %v4711, %v4841
          %v4874 = vadd.f32 %v4716, %v4842
          %v4875 = vadd.f32 %v4721, %v4843
          %v4876 = vadd.f32 %v4726, %v4844
          %v4877 = vadd.f32 %v4731, %v4845
          %v4878 = vadd.f32 %v4736, %v4846
          %v4879 = vadd.f32 %v4741, %v4847
          %v4880 = vadd.f32 %v4746, %v4848
          %v4881 = vadd.f32 %v4751, %v4849
          %v4882 = vadd.f32 %v4756, %v4850
          %v4883 = vadd.f32 %v4761, %v4851
          %v4884 = vadd.f32 %v4766, %v4852
          %v4885 = vadd.f32 %v4771, %v4853
          %v4886 = vadd.f32 %v4776, %v4854
          %v4887 = vadd.f32 %v4781, %v4855
          %v4888 = vadd.f32 %v4786, %v4856
          %v4889 = vadd.f32 %v4791, %v4857
          %v4890 = vadd.f32 %v4796, %v4858
          %v4891 = vadd.f32 %v4801, %v4859
          %v4892 = vadd.f32 %v4806, %v4860
          %v4893 = vadd.f32 %v4811, %v4861
          %v4894 = vadd.f32 %v4816, %v4862
          %v4895 = vadd.f32 %v4821, %v4863
          %v4896 = vadd.f32 %v4826, %v4864
          %v4897 = vadd.f32 %v4831, %v4865
          %4898 = vst [vmem:[#allocation4] sm:$0xff] %v4866
          %4899 = vst [vmem:[#allocation4 + $0x8] sm:$0xff] %v4867
          %4900 = vst [vmem:[#allocation4 + $0x10] sm:$0xff] %v4868
          %4901 = vst [vmem:[#allocation4 + $0x18] sm:$0xff] %v4869
          %4902 = vst [vmem:[#allocation4 + $0x20] sm:$0xff] %v4870
          %4903 = vst [vmem:[#allocation4 + $0x28] sm:$0xff] %v4871
          %4904 = vst [vmem:[#allocation4 + $0x30] sm:$0xff] %v4872
          %4905 = vst [vmem:[#allocation4 + $0x38] sm:$0xff] %v4873
          %4906 = vst [vmem:[#allocation4 + $0x40] sm:$0xff] %v4874
          %4907 = vst [vmem:[#allocation4 + $0x48] sm:$0xff] %v4875
          %4908 = vst [vmem:[#allocation4 + $0x50] sm:$0xff] %v4876
          %4909 = vst [vmem:[#allocation4 + $0x58] sm:$0xff] %v4877
          %4910 = vst [vmem:[#allocation4 + $0x60] sm:$0xff] %v4878
          %4911 = vst [vmem:[#allocation4 + $0x68] sm:$0xff] %v4879
          %4912 = vst [vmem:[#allocation4 + $0x70] sm:$0xff] %v4880
          %4913 = vst [vmem:[#allocation4 + $0x78] sm:$0xff] %v4881
          %4914 = vst [vmem:[#allocation4 + $0x80] sm:$0xff] %v4882
          %4915 = vst [vmem:[#allocation4 + $0x88] sm:$0xff] %v4883
          %4916 = vst [vmem:[#allocation4 + $0x90] sm:$0xff] %v4884
          %4917 = vst [vmem:[#allocation4 + $0x98] sm:$0xff] %v4885
          %4918 = vst [vmem:[#allocation4 + $0xa0] sm:$0xff] %v4886
          %4919 = vst [vmem:[#allocation4 + $0xa8] sm:$0xff] %v4887
          %4920 = vst [vmem:[#allocation4 + $0xb0] sm:$0xff] %v4888
          %4921 = vst [vmem:[#allocation4 + $0xb8] sm:$0xff] %v4889
          %4922 = vst [vmem:[#allocation4 + $0xc0] sm:$0xff] %v4890
          %4923 = vst [vmem:[#allocation4 + $0xc8] sm:$0xff] %v4891
          %4924 = vst [vmem:[#allocation4 + $0xd0] sm:$0xff] %v4892
          %4925 = vst [vmem:[#allocation4 + $0xd8] sm:$0xff] %v4893
          %4926 = vst [vmem:[#allocation4 + $0xe0] sm:$0xff] %v4894
          %4927 = vst [vmem:[#allocation4 + $0xe8] sm:$0xff] %v4895
          %4928 = vst [vmem:[#allocation4 + $0xf0] sm:$0xff] %v4896
          %4929 = vst [vmem:[#allocation4 + $0xf8] sm:$0xff] %v4897
        $region49: #{tpu_custom_call.1} parent=31 // loop_footer
          %s341 = sadd.s32 1, %s337
        $region50: #{tpu_custom_call.1} parent=31 // loop_footer_branch
          %336 = sbr.rel target = $region46
        $region51: #{tpu_custom_call.1} parent=31 // loop_exit
          _
        %v4930 = vld [vmem:[#allocation4] sm:$0xff]
        %v4931 = vld [vmem:[#allocation4 + $0x8] sm:$0xff]
        %v4932 = vld [vmem:[#allocation4 + $0x10] sm:$0xff]
        %v4933 = vld [vmem:[#allocation4 + $0x18] sm:$0xff]
        %v4934 = vld [vmem:[#allocation4 + $0x20] sm:$0xff]
        %v4935 = vld [vmem:[#allocation4 + $0x28] sm:$0xff]
        %v4936 = vld [vmem:[#allocation4 + $0x30] sm:$0xff]
        %v4937 = vld [vmem:[#allocation4 + $0x38] sm:$0xff]
        %v4938 = vld [vmem:[#allocation4 + $0x40] sm:$0xff]
        %v4939 = vld [vmem:[#allocation4 + $0x48] sm:$0xff]
        %v4940 = vld [vmem:[#allocation4 + $0x50] sm:$0xff]
        %v4941 = vld [vmem:[#allocation4 + $0x58] sm:$0xff]
        %v4942 = vld [vmem:[#allocation4 + $0x60] sm:$0xff]
        %v4943 = vld [vmem:[#allocation4 + $0x68] sm:$0xff]
        %v4944 = vld [vmem:[#allocation4 + $0x70] sm:$0xff]
        %v4945 = vld [vmem:[#allocation4 + $0x78] sm:$0xff]
        %v4946 = vld [vmem:[#allocation4 + $0x80] sm:$0xff]
        %v4947 = vld [vmem:[#allocation4 + $0x88] sm:$0xff]
        %v4948 = vld [vmem:[#allocation4 + $0x90] sm:$0xff]
        %v4949 = vld [vmem:[#allocation4 + $0x98] sm:$0xff]
        %v4950 = vld [vmem:[#allocation4 + $0xa0] sm:$0xff]
        %v4951 = vld [vmem:[#allocation4 + $0xa8] sm:$0xff]
        %v4952 = vld [vmem:[#allocation4 + $0xb0] sm:$0xff]
        %v4953 = vld [vmem:[#allocation4 + $0xb8] sm:$0xff]
        %v4954 = vld [vmem:[#allocation4 + $0xc0] sm:$0xff]
        %v4955 = vld [vmem:[#allocation4 + $0xc8] sm:$0xff]
        %v4956 = vld [vmem:[#allocation4 + $0xd0] sm:$0xff]
        %v4957 = vld [vmem:[#allocation4 + $0xd8] sm:$0xff]
        %v4958 = vld [vmem:[#allocation4 + $0xe0] sm:$0xff]
        %v4959 = vld [vmem:[#allocation4 + $0xe8] sm:$0xff]
        %v4960 = vld [vmem:[#allocation4 + $0xf0] sm:$0xff]
        %v4961 = vld [vmem:[#allocation4 + $0xf8] sm:$0xff]
        %4962 = vst [vmem:[%s217] sm:$0xff] %v4930
        %4963 = vst [vmem:[%s217 + $0x8] sm:$0xff] %v4931
        %4964 = vst [vmem:[%s217 + $0x10] sm:$0xff] %v4932
        %4965 = vst [vmem:[%s217 + $0x18] sm:$0xff] %v4933
        %4966 = vst [vmem:[%s217 + $0x20] sm:$0xff] %v4934
        %4967 = vst [vmem:[%s217 + $0x28] sm:$0xff] %v4935
        %4968 = vst [vmem:[%s217 + $0x30] sm:$0xff] %v4936
        %4969 = vst [vmem:[%s217 + $0x38] sm:$0xff] %v4937
        %4970 = vst [vmem:[%s217 + $0x40] sm:$0xff] %v4938
        %4971 = vst [vmem:[%s217 + $0x48] sm:$0xff] %v4939
        %4972 = vst [vmem:[%s217 + $0x50] sm:$0xff] %v4940
        %4973 = vst [vmem:[%s217 + $0x58] sm:$0xff] %v4941
        %4974 = vst [vmem:[%s217 + $0x60] sm:$0xff] %v4942
        %4975 = vst [vmem:[%s217 + $0x68] sm:$0xff] %v4943
        %4976 = vst [vmem:[%s217 + $0x70] sm:$0xff] %v4944
        %4977 = vst [vmem:[%s217 + $0x78] sm:$0xff] %v4945
        %4978 = vst [vmem:[%s217 + $0x80] sm:$0xff] %v4946
        %4979 = vst [vmem:[%s217 + $0x88] sm:$0xff] %v4947
        %4980 = vst [vmem:[%s217 + $0x90] sm:$0xff] %v4948
        %4981 = vst [vmem:[%s217 + $0x98] sm:$0xff] %v4949
        %4982 = vst [vmem:[%s217 + $0xa0] sm:$0xff] %v4950
        %4983 = vst [vmem:[%s217 + $0xa8] sm:$0xff] %v4951
        %4984 = vst [vmem:[%s217 + $0xb0] sm:$0xff] %v4952
        %4985 = vst [vmem:[%s217 + $0xb8] sm:$0xff] %v4953
        %4986 = vst [vmem:[%s217 + $0xc0] sm:$0xff] %v4954
        %4987 = vst [vmem:[%s217 + $0xc8] sm:$0xff] %v4955
        %4988 = vst [vmem:[%s217 + $0xd0] sm:$0xff] %v4956
        %4989 = vst [vmem:[%s217 + $0xd8] sm:$0xff] %v4957
        %4990 = vst [vmem:[%s217 + $0xe0] sm:$0xff] %v4958
        %4991 = vst [vmem:[%s217 + $0xe8] sm:$0xff] %v4959
        %4992 = vst [vmem:[%s217 + $0xf0] sm:$0xff] %v4960
        %4993 = vst [vmem:[%s217 + $0xf8] sm:$0xff] %v4961
        %s4994 = sand.u32 %s97, 1
        %s4995 = scalar_lea.sflag [#allocation7], %s4994
        %s4996 = sand.u32 %s97, 1
        %s4997 = smul.addr %s4996, 256
        %s4998 = scalar_lea.vmem [#allocation11], %s4997
        // Predicated region
        $region52: #{tpu_custom_call.1} parent=31 // pred_check
          %p4999 = pneg %p107
        $region53: #{tpu_custom_call.1} parent=31 // pred_check_branch
          %5001 = sbr.rel (%p4999) target = $region55
        $region54: #{tpu_custom_call.1} parent=31 // pred_region
          %s5003 = ssub.s32 4096, 4096
          %5004 = vsyncadd %s4995, %s5003
          %s5005 = smul.addr %s21, 32
          %s5006 = smul.addr %s5005, 128
          %s5007 = scalar_lea.hbm %s3, %s5006
          %s5008 = sshll.u32 %s4998, 4
          %s5009 = int_to_ptr.vmem [resolvable:$true] %s5008
          %5014 = dma.vmem_to_hbm [thread:$0]  %s5009, 4096, %s5007, %s4995, 128, 128, 8
        $region55: #{tpu_custom_call.1} parent=31 // pred_fallthru
          _
      $region32: #{tpu_custom_call.1} parent=5 // pred_fallthru
        _
      %p5015 = scmp.le.s32.totalorder 2, %s16
      // Predicated region
      $region56: #{tpu_custom_call.1} parent=5 // pred_check
        %p5016 = pneg %p5015
      $region57: #{tpu_custom_call.1} parent=5 // pred_check_branch
        %5018 = sbr.rel (%p5016) target = $region59
      $region58: #{tpu_custom_call.1} parent=5 // pred_region
        %s5019 = ssub.s32 %s16, 2
        // Predicated region
        $region60: #{tpu_custom_call.1} parent=58 // pred_check
          %p5020 = pneg %p113
        $region61: #{tpu_custom_call.1} parent=58 // pred_check_branch
          %5022 = sbr.rel (%p5020) target = $region63
        $region62: #{tpu_custom_call.1} parent=58 // pred_region
          %s5023 = sand.u32 %s98, 1
          %s5024 = scalar_lea.sflag [#allocation7], %s5023
          %s5025 = sand.u32 %s98, 1
          %s5026 = smul.addr %s5025, 256
          %s5027 = scalar_lea.vmem [#allocation11], %s5026
          %5028 = dma.done %s5024, 4096
        $region63: #{tpu_custom_call.1} parent=58 // pred_fallthru
          _
      $region59: #{tpu_custom_call.1} parent=5 // pred_fallthru
        _
    $region6: #{tpu_custom_call.1} parent=1 // loop_footer
      %s20 = sadd.s32 1, %s16
    $region7: #{tpu_custom_call.1} parent=1 // loop_footer_branch
      %15 = sbr.rel target = $region3
    $region8: #{tpu_custom_call.1} parent=1 // loop_exit
      _
    %5029 = vsyncpa [#allocation6], 1
    %s5030 = scalar_lea.sflag [#allocation6], 1
    %5031 = vsyncpa %s5030, 1
    %5032 = vsyncpa [#allocation9], 1
    %5033 = vsyncpa [#allocation7], 1
    %s5034 = scalar_lea.sflag [#allocation7], 1
    %5035 = vsyncpa %s5034, 1

</llo_original>
